<compile_context>
chip_gen: v5e
topology: v5e:2x2
jax: 0.10.0
libtpu: 0.0.40
codegen_flags: <defaults>
</compile_context>

<pallas_src>
import jax
import jax.numpy as jnp
from jax.experimental import pallas as pl
from jax.experimental.pallas import tpu as pltpu

NUM_CLASSES = 10
FEAT_DIM = 2048
HID1 = 1024
HID2 = 512
BN_EPS = 1e-5
OUT_PAD = 128  # lane-dense padded logits width (>= NUM_CLASSES)


def _round_up(x, m):
    return (x + m - 1) // m * m


def _head_kernel(x_ref, w1_ref, b1_ref, w2_ref, b2_ref, w3_ref, b3_ref, out_ref):
    # x_ref: (TB, 2048) bf16 pooled features. Weights are bf16 with the eval
    # BatchNorms pre-folded; biases f32. All matmuls accumulate in f32 (MXU).
    h = jnp.dot(x_ref[...], w1_ref[...], preferred_element_type=jnp.float32)
    h = jnp.maximum(h + b1_ref[...], 0.0)                       # Linear+BN+ReLU
    h = jnp.dot(h.astype(jnp.bfloat16), w2_ref[...],
                preferred_element_type=jnp.float32)
    h = jnp.maximum(h + b2_ref[...], 0.0)                       # Linear+BN+ReLU
    # Dropout(p=0.5): identity in eval/inference mode.
    out = jnp.dot(h.astype(jnp.bfloat16), w3_ref[...],
                  preferred_element_type=jnp.float32)
    out_ref[...] = out + b3_ref[...]


def fold_params(p):
    """Fold eval BatchNorms into the Linears, cast weights to bf16, pad logits.

    Call ONCE at parameter-load time (outside the jitted per-call forward) so
    the BN fold / f32->bf16 cast is not re-done (and re-read from HBM) every
    forward pass.
    """
    s1 = p["g1"] * jax.lax.rsqrt(p["v1"] + BN_EPS)              # (1, 1024)
    w1 = (p["w1"] * s1).astype(jnp.bfloat16)                    # (2048, 1024)
    b1 = ((p["b1"] - p["m1"]) * s1 + p["beta1"]).astype(jnp.float32)

    s2 = p["g2"] * jax.lax.rsqrt(p["v2"] + BN_EPS)              # (1, 512)
    w2 = (p["w2"] * s2).astype(jnp.bfloat16)                    # (1024, 512)
    b2 = ((p["b2"] - p["m2"]) * s2 + p["beta2"]).astype(jnp.float32)

    w3 = jnp.zeros((HID2, OUT_PAD), jnp.bfloat16).at[:, :NUM_CLASSES].set(
        p["w3"].astype(jnp.bfloat16))
    b3 = jnp.zeros((1, OUT_PAD), jnp.float32).at[:, :NUM_CLASSES].set(
        p["b3"].astype(jnp.float32))
    return w1, b1, w2, b2, w3, b3


def car_classifier_forward(x_nchw, folded):
    """x_nchw: (B, 2048, H, W) feature map from the (frozen) ResNet50 trunk.

    `folded` is the output of fold_params(): pre-folded bf16 weights / f32
    biases, kept resident in HBM across calls.
    """
    w1, b1, w2, b2, w3, b3 = folded
    B = x_nchw.shape[0]

    # AdaptiveAvgPool2d((1,1)) + view: spatial mean directly on NCHW with f32
    # accumulation (dtype=f32 accumulates without materializing an f32 copy of
    # the trunk output, so a bf16 trunk output is read as bf16 from HBM).
    feats = jnp.mean(x_nchw, axis=(2, 3), dtype=jnp.float32).astype(jnp.bfloat16)

    # Batch tile: multiple of 16 rows (bf16 packs 2 rows/sublane -> full (16,128)
    # tiles), up to 512 rows to amortize the ~0.35 us per-grid-step overhead.
    TB = min(512, _round_up(B, 16))
    if B >= 256:
        # Keep >=2 grid steps so dimension_semantics=("parallel",) can shard
        # the batch across v7x's two TensorCores once per-step work is large.
        TB = min(TB, _round_up(_round_up(_round_up(B, 16) // 2, 1), 16))
        TB = _round_up(max(TB, 16), 16)
    B_pad = _round_up(B, TB)
    if B_pad != B:
        feats = jnp.pad(feats, ((0, B_pad - B), (0, 0)))

    # Weights / biases stay resident across the grid; single-buffer them
    # (constant block index -> no point paying the default double-buffer VMEM).
    const = lambda i: (0, 0)
    resident = lambda shape: pl.BlockSpec(shape, const, pipeline_mode=pl.Buffered(1))

    # TODO(synk): for latency-critical serving, weights could additionally be
    # made cross-call VMEM-resident (P10 semaphore/VMEM futures) or quantized
    # (int8 on v5e/v6e, fp8 on v7x) to halve the binding HBM weight stream.
    out = pl.pallas_call(
        _head_kernel,
        out_shape=jax.ShapeDtypeStruct((B_pad, OUT_PAD), jnp.float32),
        grid=(B_pad // TB,),
        in_specs=[
            pl.BlockSpec((TB, FEAT_DIM), lambda i: (i, 0)),     # pooled feats tile
            resident((FEAT_DIM, HID1)),                         # w1 (BN1 folded)
            resident((1, HID1)),                                # b1
            resident((HID1, HID2)),                             # w2 (BN2 folded)
            resident((1, HID2)),                                # b2
            resident((HID2, OUT_PAD)),                          # w3 (padded)
            resident((1, OUT_PAD)),                             # b3 (padded)
        ],
        out_specs=pl.BlockSpec((TB, OUT_PAD), lambda i: (i, 0)),
        compiler_params=pltpu.CompilerParams(
            dimension_semantics=("parallel",),                  # megacore on v7x
            vmem_limit_bytes=32 * 1024 * 1024,                  # overrides v5e 16 MiB default
        ),
    )(feats, w1, b1, w2, b2, w3, b3)
    return out[:B, :NUM_CLASSES]


def init_params(key):
    ks = jax.random.split(key, 8)

    def lin(k, fin, fout, scale=0.02):
        kw, kb = jax.random.split(k)
        # stored already transposed to (in, out); PyTorch stores (out, in)
        w = (scale * jax.random.normal(kw, (fin, fout))).astype(jnp.float32)
        b = (scale * jax.random.normal(kb, (1, fout))).astype(jnp.float32)
        return w, b

    w1, b1 = lin(ks[0], FEAT_DIM, HID1)
    w2, b2 = lin(ks[1], HID1, HID2)
    w3, b3 = lin(ks[2], HID2, NUM_CLASSES)

    def bn(k, n):
        kg, kb, km, kv = jax.random.split(k, 4)
        g = (1.0 + 0.01 * jax.random.normal(kg, (1, n))).astype(jnp.float32)
        be = (0.01 * jax.random.normal(kb, (1, n))).astype(jnp.float32)
        m = (0.05 * jax.random.normal(km, (1, n))).astype(jnp.float32)
        v = (1.0 + 0.1 * jnp.abs(jax.random.normal(kv, (1, n)))).astype(jnp.float32)
        return g, be, m, v

    g1, beta1, m1, v1 = bn(ks[3], HID1)
    g2, beta2, m2, v2 = bn(ks[4], HID2)

    return dict(w1=w1, b1=b1, g1=g1, beta1=beta1, m1=m1, v1=v1,
                w2=w2, b2=b2, g2=g2, beta2=beta2, m2=m2, v2=v2,
                w3=w3, b3=b3)


def reference_forward_f32(x_nchw, p):
    """Original module math (unfolded BN, f32 everywhere)."""
    feats = jnp.mean(x_nchw, axis=(2, 3))  # AdaptiveAvgPool2d((1,1)) + view
    h = feats @ p["w1"] + p["b1"]
    h = p["g1"] * (h - p["m1"]) * jax.lax.rsqrt(p["v1"] + BN_EPS) + p["beta1"]
    h = jnp.maximum(h, 0.0)
    h = h @ p["w2"] + p["b2"]
    h = p["g2"] * (h - p["m2"]) * jax.lax.rsqrt(p["v2"] + BN_EPS) + p["beta2"]
    h = jnp.maximum(h, 0.0)
    return h @ p["w3"] + p["b3"]


def reference_forward_bf16(x_nchw, folded):
    """Same folded bf16 math as the kernel, for a tight numerical check."""
    w1, b1, w2, b2, w3, b3 = folded
    feats = jnp.mean(x_nchw, axis=(2, 3), dtype=jnp.float32).astype(jnp.bfloat16)
    h = jnp.dot(feats, w1, preferred_element_type=jnp.float32) + b1
    h = jnp.maximum(h, 0.0).astype(jnp.bfloat16)
    h = jnp.dot(h, w2, preferred_element_type=jnp.float32) + b2
    h = jnp.maximum(h, 0.0).astype(jnp.bfloat16)
    out = jnp.dot(h, w3, preferred_element_type=jnp.float32) + b3
    return out[:, :NUM_CLASSES]


if __name__ == "__main__":
    # TODO(synk): the pretrained ResNet50 convolutional trunk itself is not
    # re-implemented; the kernel consumes its output feature map directly.
    key = jax.random.PRNGKey(0)
    k_x, k_p = jax.random.split(key)

    B, H, W = 2, 4, 4
    x = jax.random.normal(k_x, (B, FEAT_DIM, H, W), dtype=jnp.float32)
    params = init_params(k_p)

    # Fold BN into the Linears once, at "parameter-load" time (outside jit).
    folded = jax.tree_util.tree_map(jax.block_until_ready, fold_params(params))

    fwd = jax.jit(car_classifier_forward)
    out = jax.block_until_ready(fwd(x, folded))
    ref_bf16 = jax.block_until_ready(reference_forward_bf16(x, folded))
    ref_f32 = jax.block_until_ready(reference_forward_f32(x, params))

    assert out.shape == (B, NUM_CLASSES), out.shape
    assert jnp.allclose(out, ref_bf16, atol=1e-2, rtol=1e-2), (out, ref_bf16)
    # Loose check vs the full-precision original-module math (bf16 rounding).
    assert jnp.allclose(out, ref_f32, atol=5e-2, rtol=5e-2), (out, ref_f32)
    print("KERNEL_OK")
</pallas_src>

<mosaic_0001>
module attributes {stable_mosaic.version = 11 : i64} {
  func.func @_head_kernel(%arg0: i32, %arg1: memref<16x2048xbf16, #tpu.memory_space<vmem>>, %arg2: memref<2048x1024xbf16, #tpu.memory_space<vmem>>, %arg3: memref<1x1024xf32, #tpu.memory_space<vmem>>, %arg4: memref<1024x512xbf16, #tpu.memory_space<vmem>>, %arg5: memref<1x512xf32, #tpu.memory_space<vmem>>, %arg6: memref<512x128xbf16, #tpu.memory_space<vmem>>, %arg7: memref<1x128xf32, #tpu.memory_space<vmem>>, %arg8: memref<16x128xf32, #tpu.memory_space<vmem>>) attributes {dimension_semantics = [#tpu.dimension_semantics<parallel>], iteration_bounds = array<i64: 1>, scalar_prefetch = 0 : i64, scratch_operands = 0 : i64, tpu.core_type = #tpu.core_type<tc>, window_params = [{transform_indices = @transform_0, window_bounds = array<i64: 16, 2048>}, {pipeline_mode = #tpu.pipeline_mode<synchronous>, transform_indices = @transform_1, window_bounds = array<i64: 2048, 1024>}, {pipeline_mode = #tpu.pipeline_mode<synchronous>, transform_indices = @transform_2, window_bounds = array<i64: 1, 1024>}, {pipeline_mode = #tpu.pipeline_mode<synchronous>, transform_indices = @transform_3, window_bounds = array<i64: 1024, 512>}, {pipeline_mode = #tpu.pipeline_mode<synchronous>, transform_indices = @transform_4, window_bounds = array<i64: 1, 512>}, {pipeline_mode = #tpu.pipeline_mode<synchronous>, transform_indices = @transform_5, window_bounds = array<i64: 512, 128>}, {pipeline_mode = #tpu.pipeline_mode<synchronous>, transform_indices = @transform_6, window_bounds = array<i64: 1, 128>}, {transform_indices = @transform_7, window_bounds = array<i64: 16, 128>}]} {
    %c0 = arith.constant 0 : index
    %c0_0 = arith.constant 0 : index
    %0 = vector.load %arg1[%c0, %c0_0] : memref<16x2048xbf16, #tpu.memory_space<vmem>>, vector<16x2048xbf16>
    %c0_1 = arith.constant 0 : index
    %c0_2 = arith.constant 0 : index
    %1 = vector.load %arg2[%c0_1, %c0_2] : memref<2048x1024xbf16, #tpu.memory_space<vmem>>, vector<2048x1024xbf16>
    %cst = arith.constant dense<0.000000e+00> : vector<16x1024xf32>
    %2 = tpu.matmul %0, %1, %cst {dimension_numbers = #tpu.dot_dimension_numbers<[1], [0], [0], [1], [0, 0, 1, 1], [], []>} : vector<16x2048xbf16>, vector<2048x1024xbf16>, vector<16x1024xf32> -> vector<16x1024xf32>
    %c0_3 = arith.constant 0 : index
    %c0_4 = arith.constant 0 : index
    %3 = vector.load %arg3[%c0_3, %c0_4] : memref<1x1024xf32, #tpu.memory_space<vmem>>, vector<1x1024xf32>
    %4 = vector.broadcast %3 : vector<1x1024xf32> to vector<16x1024xf32>
    %5 = arith.addf %2, %4 : vector<16x1024xf32>
    %cst_5 = arith.constant 0.000000e+00 : f32
    %6 = vector.broadcast %cst_5 : f32 to vector<16x1024xf32>
    %7 = arith.maximumf %5, %6 : vector<16x1024xf32>
    %8 = arith.truncf %7 : vector<16x1024xf32> to vector<16x1024xbf16>
    %c0_6 = arith.constant 0 : index
    %c0_7 = arith.constant 0 : index
    %9 = vector.load %arg4[%c0_6, %c0_7] : memref<1024x512xbf16, #tpu.memory_space<vmem>>, vector<1024x512xbf16>
    %cst_8 = arith.constant dense<0.000000e+00> : vector<16x512xf32>
    %10 = tpu.matmul %8, %9, %cst_8 {dimension_numbers = #tpu.dot_dimension_numbers<[1], [0], [0], [1], [0, 0, 1, 1], [], []>} : vector<16x1024xbf16>, vector<1024x512xbf16>, vector<16x512xf32> -> vector<16x512xf32>
    %c0_9 = arith.constant 0 : index
    %c0_10 = arith.constant 0 : index
    %11 = vector.load %arg5[%c0_9, %c0_10] : memref<1x512xf32, #tpu.memory_space<vmem>>, vector<1x512xf32>
    %12 = vector.broadcast %11 : vector<1x512xf32> to vector<16x512xf32>
    %13 = arith.addf %10, %12 : vector<16x512xf32>
    %cst_11 = arith.constant 0.000000e+00 : f32
    %14 = vector.broadcast %cst_11 : f32 to vector<16x512xf32>
    %15 = arith.maximumf %13, %14 : vector<16x512xf32>
    %16 = arith.truncf %15 : vector<16x512xf32> to vector<16x512xbf16>
    %c0_12 = arith.constant 0 : index
    %c0_13 = arith.constant 0 : index
    %17 = vector.load %arg6[%c0_12, %c0_13] : memref<512x128xbf16, #tpu.memory_space<vmem>>, vector<512x128xbf16>
    %cst_14 = arith.constant dense<0.000000e+00> : vector<16x128xf32>
    %18 = tpu.matmul %16, %17, %cst_14 {dimension_numbers = #tpu.dot_dimension_numbers<[1], [0], [0], [1], [0, 0, 1, 1], [], []>} : vector<16x512xbf16>, vector<512x128xbf16>, vector<16x128xf32> -> vector<16x128xf32>
    %c0_15 = arith.constant 0 : index
    %c0_16 = arith.constant 0 : index
    %19 = vector.load %arg7[%c0_15, %c0_16] : memref<1x128xf32, #tpu.memory_space<vmem>>, vector<1x128xf32>
    %20 = vector.broadcast %19 : vector<1x128xf32> to vector<16x128xf32>
    %21 = arith.addf %18, %20 : vector<16x128xf32>
    %c0_17 = arith.constant 0 : index
    %c0_18 = arith.constant 0 : index
    %22 = vector.load %arg8[%c0_17, %c0_18] : memref<16x128xf32, #tpu.memory_space<vmem>>, vector<16x128xf32>
    tpu.vector_store %arg8[%c0_17, %c0_18], %21 {strides = array<i32>} : memref<16x128xf32, #tpu.memory_space<vmem>>, vector<16x128xf32>,
    return
  }
  func.func @transform_0(%arg0: i32) -> (i32, i32) {
    %c0_i32 = arith.constant 0 : i32
    %c0_i32_0 = arith.constant 0 : i32
    return %arg0, %c0_i32 : i32, i32
  }
  func.func @transform_1(%arg0: i32) -> (i32, i32) {
    %c0_i32 = arith.constant 0 : i32
    %c0_i32_0 = arith.constant 0 : i32
    %c0_i32_1 = arith.constant 0 : i32
    return %c0_i32, %c0_i32_0 : i32, i32
  }
  func.func @transform_2(%arg0: i32) -> (i32, i32) {
    %c0_i32 = arith.constant 0 : i32
    %c0_i32_0 = arith.constant 0 : i32
    %c0_i32_1 = arith.constant 0 : i32
    return %c0_i32, %c0_i32_0 : i32, i32
  }
  func.func @transform_3(%arg0: i32) -> (i32, i32) {
    %c0_i32 = arith.constant 0 : i32
    %c0_i32_0 = arith.constant 0 : i32
    %c0_i32_1 = arith.constant 0 : i32
    return %c0_i32, %c0_i32_0 : i32, i32
  }
  func.func @transform_4(%arg0: i32) -> (i32, i32) {
    %c0_i32 = arith.constant 0 : i32
    %c0_i32_0 = arith.constant 0 : i32
    %c0_i32_1 = arith.constant 0 : i32
    return %c0_i32, %c0_i32_0 : i32, i32
  }
  func.func @transform_5(%arg0: i32) -> (i32, i32) {
    %c0_i32 = arith.constant 0 : i32
    %c0_i32_0 = arith.constant 0 : i32
    %c0_i32_1 = arith.constant 0 : i32
    return %c0_i32, %c0_i32_0 : i32, i32
  }
  func.func @transform_6(%arg0: i32) -> (i32, i32) {
    %c0_i32 = arith.constant 0 : i32
    %c0_i32_0 = arith.constant 0 : i32
    %c0_i32_1 = arith.constant 0 : i32
    return %c0_i32, %c0_i32_0 : i32, i32
  }
  func.func @transform_7(%arg0: i32) -> (i32, i32) {
    %c0_i32 = arith.constant 0 : i32
    %c0_i32_0 = arith.constant 0 : i32
    return %arg0, %c0_i32 : i32, i32
  }
}

</mosaic_0001>

<llo_original>
// kernel: car_classifier_forward.1
$region0: #{car_classifier_forward.1}
  #allocation0 [shape = 'u32[]', space=smem, size = 0x4, offset = 0x4, fixed_abs, tag = 'smem constant byte address 0x4 - core index']
  #allocation1 [shape = 'u32[72,128]{1,0:T(1,128)}', space=vmem, size = 0x9000, scoped, tag = 'internal scratch']
  %s0 = inlined_call_operand.vmem [shape: bf16[16,2048], index: 0, kind: input, shape index: {}]
  %s1 = inlined_call_operand.hbm [shape: bf16[2048,1024], index: 1, kind: input, shape index: {}]
  %s2 = inlined_call_operand.hbm [shape: f32[1,1024], index: 2, kind: input, shape index: {}]
  %s3 = inlined_call_operand.hbm [shape: bf16[1024,512], index: 3, kind: input, shape index: {}]
  %s4 = inlined_call_operand.hbm [shape: f32[1,512], index: 4, kind: input, shape index: {}]
  %s5 = inlined_call_operand.hbm [shape: bf16[512,128], index: 5, kind: input, shape index: {}]
  %s6 = inlined_call_operand.hbm [shape: f32[1,128], index: 6, kind: input, shape index: {}]
  %s7 = inlined_call_operand.vmem [shape: f32[16,128], index: 7, kind: output, shape index: {}]
  %s8 = sld [smem:[#allocation0]]
  $region62: #{car_classifier_forward.1} parent=0
    _
  %s10 = ssub.s32 1, %s8
  %s11 = scalar_select 0, %s10, %s8
  $region1: #{car_classifier_forward.1} parent=0
    #allocation2 [shape = 'u8[4194304]{0}', space=vmem, size = 0x400000, scoped, tag = 'input window, operand 1, single buffered']
    #allocation3 [shape = 's32[1]{0}', space=sflag, size = 0x4, scoped, tag = 'scoped memory for car_classifier_forward.1']
    #allocation4 [shape = 'u8[4096]{0}', space=vmem, size = 0x1000, scoped, tag = 'input window, operand 2, single buffered']
    #allocation5 [shape = 's32[1]{0}', space=sflag, size = 0x4, scoped, tag = 'scoped memory for car_classifier_forward.1']
    #allocation6 [shape = 'u8[1048576]{0}', space=vmem, size = 0x100000, scoped, tag = 'input window, operand 3, single buffered']
    #allocation7 [shape = 'u8[2048]{0}', space=vmem, size = 0x800, scoped, tag = 'input window, operand 4, single buffered']
    #allocation8 [shape = 's32[1]{0}', space=sflag, size = 0x4, scoped, tag = 'scoped memory for car_classifier_forward.1']
    #allocation9 [shape = 'u8[131072]{0}', space=vmem, size = 0x20000, scoped, tag = 'input window, operand 5, single buffered']
    #allocation10 [shape = 'u8[512]{0}', space=vmem, size = 0x400, scoped, tag = 'input window, operand 6, single buffered']
    #allocation11 [shape = 's32[1]{0}', space=sflag, size = 0x4, scoped, tag = 'scoped memory for car_classifier_forward.1']
    %12 = vsyncpa [#allocation3], 0
    %13 = vsyncpa [#allocation5], 0
    %14 = vsyncpa [#allocation8], 0
    %15 = vsyncpa [#allocation11], 0
    // Predicated region
    $region2: #{car_classifier_forward.1} parent=1 // pred_check
      _
    $region3: #{car_classifier_forward.1} parent=1 // pred_check_branch
      %17 = sbr.rel (0) target = $region5
    $region4: #{car_classifier_forward.1} parent=1 // pred_region
      _
    $region5: #{car_classifier_forward.1} parent=1 // pred_fallthru
      _
    // Predicated region
    $region6: #{car_classifier_forward.1} parent=1 // pred_check
      _
    $region7: #{car_classifier_forward.1} parent=1 // pred_check_branch
      %19 = sbr.rel (0) target = $region9
    $region8: #{car_classifier_forward.1} parent=1 // pred_region
      %21 = vsyncadd [#allocation3], 0
      %s22 = sshll.u32 %s1, 4
      %s23 = int_to_ptr.hbm [resolvable:$true] %s22
      %s24 = sshll.u32 [#allocation2], 4
      %s25 = int_to_ptr.vmem [resolvable:$true] %s24
      %30 = dma.hbm_to_vmem [thread:$0]  %s23, 131072, %s25, [#allocation3], 512, 512, 32
    $region9: #{car_classifier_forward.1} parent=1 // pred_fallthru
      _
    // Predicated region
    $region10: #{car_classifier_forward.1} parent=1 // pred_check
      _
    $region11: #{car_classifier_forward.1} parent=1 // pred_check_branch
      %32 = sbr.rel (0) target = $region13
    $region12: #{car_classifier_forward.1} parent=1 // pred_region
      %34 = vsyncadd [#allocation5], 0
      %s36 = sshll.u32 %s2, 4
      %s37 = int_to_ptr.hbm [resolvable:$true] %s36
      %s38 = sshll.u32 [#allocation4], 4
      %s39 = int_to_ptr.vmem [resolvable:$true] %s38
      %41 = dma.hbm_to_vmem [thread:$0]  %s37, 128, %s39, [#allocation5]
    $region13: #{car_classifier_forward.1} parent=1 // pred_fallthru
      _
    // Predicated region
    $region14: #{car_classifier_forward.1} parent=1 // pred_check
      _
    $region15: #{car_classifier_forward.1} parent=1 // pred_check_branch
      %43 = sbr.rel (0) target = $region17
    $region16: #{car_classifier_forward.1} parent=1 // pred_region
      %45 = vsyncadd [#allocation5], 0
      %s46 = sshll.u32 %s3, 4
      %s47 = int_to_ptr.hbm [resolvable:$true] %s46
      %s48 = sshll.u32 [#allocation6], 4
      %s49 = int_to_ptr.vmem [resolvable:$true] %s48
      %54 = dma.hbm_to_vmem [thread:$0]  %s47, 32768, %s49, [#allocation5], 256, 256, 16
    $region17: #{car_classifier_forward.1} parent=1 // pred_fallthru
      _
    // Predicated region
    $region18: #{car_classifier_forward.1} parent=1 // pred_check
      _
    $region19: #{car_classifier_forward.1} parent=1 // pred_check_branch
      %56 = sbr.rel (0) target = $region21
    $region20: #{car_classifier_forward.1} parent=1 // pred_region
      %58 = vsyncadd [#allocation8], 0
      %s60 = sshll.u32 %s4, 4
      %s61 = int_to_ptr.hbm [resolvable:$true] %s60
      %s62 = sshll.u32 [#allocation7], 4
      %s63 = int_to_ptr.vmem [resolvable:$true] %s62
      %65 = dma.hbm_to_vmem [thread:$0]  %s61, 64, %s63, [#allocation8]
    $region21: #{car_classifier_forward.1} parent=1 // pred_fallthru
      _
    // Predicated region
    $region22: #{car_classifier_forward.1} parent=1 // pred_check
      _
    $region23: #{car_classifier_forward.1} parent=1 // pred_check_branch
      %67 = sbr.rel (0) target = $region25
    $region24: #{car_classifier_forward.1} parent=1 // pred_region
      %69 = vsyncadd [#allocation8], 0
      %s70 = sshll.u32 %s5, 4
      %s71 = int_to_ptr.hbm [resolvable:$true] %s70
      %s72 = sshll.u32 [#allocation9], 4
      %s73 = int_to_ptr.vmem [resolvable:$true] %s72
      %78 = dma.hbm_to_vmem [thread:$0]  %s71, 4096, %s73, [#allocation8], 64, 64, 4
    $region25: #{car_classifier_forward.1} parent=1 // pred_fallthru
      _
    // Predicated region
    $region26: #{car_classifier_forward.1} parent=1 // pred_check
      _
    $region27: #{car_classifier_forward.1} parent=1 // pred_check_branch
      %80 = sbr.rel (0) target = $region29
    $region28: #{car_classifier_forward.1} parent=1 // pred_region
      %82 = vsyncadd [#allocation11], 0
      %s84 = sshll.u32 %s6, 4
      %s85 = int_to_ptr.hbm [resolvable:$true] %s84
      %s86 = sshll.u32 [#allocation10], 4
      %s87 = int_to_ptr.vmem [resolvable:$true] %s86
      %89 = dma.hbm_to_vmem [thread:$0]  %s85, 16, %s87, [#allocation11]
    $region29: #{car_classifier_forward.1} parent=1 // pred_fallthru
      _
    // Predicated region
    $region30: #{car_classifier_forward.1} parent=1 // pred_check
      _
    $region31: #{car_classifier_forward.1} parent=1 // pred_check_branch
      %91 = sbr.rel (0) target = $region33
    $region32: #{car_classifier_forward.1} parent=1 // pred_region
      %93 = dma.done [#allocation3], 131072
    $region33: #{car_classifier_forward.1} parent=1 // pred_fallthru
      _
    // Predicated region
    $region34: #{car_classifier_forward.1} parent=1 // pred_check
      _
    $region35: #{car_classifier_forward.1} parent=1 // pred_check_branch
      %95 = sbr.rel (0) target = $region37
    $region36: #{car_classifier_forward.1} parent=1 // pred_region
      %97 = dma.done [#allocation5], 128
    $region37: #{car_classifier_forward.1} parent=1 // pred_fallthru
      _
    // Predicated region
    $region38: #{car_classifier_forward.1} parent=1 // pred_check
      _
    $region39: #{car_classifier_forward.1} parent=1 // pred_check_branch
      %99 = sbr.rel (0) target = $region41
    $region40: #{car_classifier_forward.1} parent=1 // pred_region
      %101 = dma.done [#allocation5], 32768
    $region41: #{car_classifier_forward.1} parent=1 // pred_fallthru
      _
    // Predicated region
    $region42: #{car_classifier_forward.1} parent=1 // pred_check
      _
    $region43: #{car_classifier_forward.1} parent=1 // pred_check_branch
      %103 = sbr.rel (0) target = $region45
    $region44: #{car_classifier_forward.1} parent=1 // pred_region
      %105 = dma.done [#allocation8], 64
    $region45: #{car_classifier_forward.1} parent=1 // pred_fallthru
      _
    // Predicated region
    $region46: #{car_classifier_forward.1} parent=1 // pred_check
      _
    $region47: #{car_classifier_forward.1} parent=1 // pred_check_branch
      %107 = sbr.rel (0) target = $region49
    $region48: #{car_classifier_forward.1} parent=1 // pred_region
      %109 = dma.done [#allocation8], 4096
    $region49: #{car_classifier_forward.1} parent=1 // pred_fallthru
      _
    // Predicated region
    $region50: #{car_classifier_forward.1} parent=1 // pred_check
      _
    $region51: #{car_classifier_forward.1} parent=1 // pred_check_branch
      %111 = sbr.rel (0) target = $region53
    $region52: #{car_classifier_forward.1} parent=1 // pred_region
      %113 = dma.done [#allocation11], 16
    $region53: #{car_classifier_forward.1} parent=1 // pred_fallthru
      _
    %v114 = vld [vmem:[%s0] sm:$0xff]
    %v115 = vld [vmem:[%s0 + $0x8] sm:$0xff]
    %v116 = vld [vmem:[%s0 + $0x10] sm:$0xff]
    %v117 = vld [vmem:[%s0 + $0x18] sm:$0xff]
    %v118 = vld [vmem:[%s0 + $0x20] sm:$0xff]
    %v119 = vld [vmem:[%s0 + $0x28] sm:$0xff]
    %v120 = vld [vmem:[%s0 + $0x30] sm:$0xff]
    %v121 = vld [vmem:[%s0 + $0x38] sm:$0xff]
    %v122 = vld [vmem:[%s0 + $0x40] sm:$0xff]
    %v123 = vld [vmem:[%s0 + $0x48] sm:$0xff]
    %v124 = vld [vmem:[%s0 + $0x50] sm:$0xff]
    %v125 = vld [vmem:[%s0 + $0x58] sm:$0xff]
    %v126 = vld [vmem:[%s0 + $0x60] sm:$0xff]
    %v127 = vld [vmem:[%s0 + $0x68] sm:$0xff]
    %v128 = vld [vmem:[%s0 + $0x70] sm:$0xff]
    %v129 = vld [vmem:[%s0 + $0x78] sm:$0xff]
    %v130 = vld [vmem:[#allocation2] sm:$0xff]
    %v131 = vld [vmem:[#allocation2 + $0x8] sm:$0xff]
    %v132 = vld [vmem:[#allocation2 + $0x10] sm:$0xff]
    %v133 = vld [vmem:[#allocation2 + $0x18] sm:$0xff]
    %v134 = vld [vmem:[#allocation2 + $0x20] sm:$0xff]
    %v135 = vld [vmem:[#allocation2 + $0x28] sm:$0xff]
    %v136 = vld [vmem:[#allocation2 + $0x30] sm:$0xff]
    %v137 = vld [vmem:[#allocation2 + $0x38] sm:$0xff]
    %v138 = vld [vmem:[#allocation2 + $0x40] sm:$0xff]
    %v139 = vld [vmem:[#allocation2 + $0x48] sm:$0xff]
    %v140 = vld [vmem:[#allocation2 + $0x50] sm:$0xff]
    %v141 = vld [vmem:[#allocation2 + $0x58] sm:$0xff]
    %v142 = vld [vmem:[#allocation2 + $0x60] sm:$0xff]
    %v143 = vld [vmem:[#allocation2 + $0x68] sm:$0xff]
    %v144 = vld [vmem:[#allocation2 + $0x70] sm:$0xff]
    %v145 = vld [vmem:[#allocation2 + $0x78] sm:$0xff]
    %v146 = vld [vmem:[#allocation2 + $0x80] sm:$0xff]
    %v147 = vld [vmem:[#allocation2 + $0x88] sm:$0xff]
    %v148 = vld [vmem:[#allocation2 + $0x90] sm:$0xff]
    %v149 = vld [vmem:[#allocation2 + $0x98] sm:$0xff]
    %v150 = vld [vmem:[#allocation2 + $0xa0] sm:$0xff]
    %v151 = vld [vmem:[#allocation2 + $0xa8] sm:$0xff]
    %v152 = vld [vmem:[#allocation2 + $0xb0] sm:$0xff]
    %v153 = vld [vmem:[#allocation2 + $0xb8] sm:$0xff]
    %v154 = vld [vmem:[#allocation2 + $0xc0] sm:$0xff]
    %v155 = vld [vmem:[#allocation2 + $0xc8] sm:$0xff]
    %v156 = vld [vmem:[#allocation2 + $0xd0] sm:$0xff]
    %v157 = vld [vmem:[#allocation2 + $0xd8] sm:$0xff]
    %v158 = vld [vmem:[#allocation2 + $0xe0] sm:$0xff]
    %v159 = vld [vmem:[#allocation2 + $0xe8] sm:$0xff]
    %v160 = vld [vmem:[#allocation2 + $0xf0] sm:$0xff]
    %v161 = vld [vmem:[#allocation2 + $0xf8] sm:$0xff]
    %v162 = vld [vmem:[#allocation2 + $0x100] sm:$0xff]
    %v163 = vld [vmem:[#allocation2 + $0x108] sm:$0xff]
    %v164 = vld [vmem:[#allocation2 + $0x110] sm:$0xff]
    %v165 = vld [vmem:[#allocation2 + $0x118] sm:$0xff]
    %v166 = vld [vmem:[#allocation2 + $0x120] sm:$0xff]
    %v167 = vld [vmem:[#allocation2 + $0x128] sm:$0xff]
    %v168 = vld [vmem:[#allocation2 + $0x130] sm:$0xff]
    %v169 = vld [vmem:[#allocation2 + $0x138] sm:$0xff]
    %v170 = vld [vmem:[#allocation2 + $0x140] sm:$0xff]
    %v171 = vld [vmem:[#allocation2 + $0x148] sm:$0xff]
    %v172 = vld [vmem:[#allocation2 + $0x150] sm:$0xff]
    %v173 = vld [vmem:[#allocation2 + $0x158] sm:$0xff]
    %v174 = vld [vmem:[#allocation2 + $0x160] sm:$0xff]
    %v175 = vld [vmem:[#allocation2 + $0x168] sm:$0xff]
    %v176 = vld [vmem:[#allocation2 + $0x170] sm:$0xff]
    %v177 = vld [vmem:[#allocation2 + $0x178] sm:$0xff]
    %v178 = vld [vmem:[#allocation2 + $0x180] sm:$0xff]
    %v179 = vld [vmem:[#allocation2 + $0x188] sm:$0xff]
    %v180 = vld [vmem:[#allocation2 + $0x190] sm:$0xff]
    %v181 = vld [vmem:[#allocation2 + $0x198] sm:$0xff]
    %v182 = vld [vmem:[#allocation2 + $0x1a0] sm:$0xff]
    %v183 = vld [vmem:[#allocation2 + $0x1a8] sm:$0xff]
    %v184 = vld [vmem:[#allocation2 + $0x1b0] sm:$0xff]
    %v185 = vld [vmem:[#allocation2 + $0x1b8] sm:$0xff]
    %v186 = vld [vmem:[#allocation2 + $0x1c0] sm:$0xff]
    %v187 = vld [vmem:[#allocation2 + $0x1c8] sm:$0xff]
    %v188 = vld [vmem:[#allocation2 + $0x1d0] sm:$0xff]
    %v189 = vld [vmem:[#allocation2 + $0x1d8] sm:$0xff]
    %v190 = vld [vmem:[#allocation2 + $0x1e0] sm:$0xff]
    %v191 = vld [vmem:[#allocation2 + $0x1e8] sm:$0xff]
    %v192 = vld [vmem:[#allocation2 + $0x1f0] sm:$0xff]
    %v193 = vld [vmem:[#allocation2 + $0x1f8] sm:$0xff]
    %v194 = vld [vmem:[#allocation2 + $0x200] sm:$0xff]
    %v195 = vld [vmem:[#allocation2 + $0x208] sm:$0xff]
    %v196 = vld [vmem:[#allocation2 + $0x210] sm:$0xff]
    %v197 = vld [vmem:[#allocation2 + $0x218] sm:$0xff]
    %v198 = vld [vmem:[#allocation2 + $0x220] sm:$0xff]
    %v199 = vld [vmem:[#allocation2 + $0x228] sm:$0xff]
    %v200 = vld [vmem:[#allocation2 + $0x230] sm:$0xff]
    %v201 = vld [vmem:[#allocation2 + $0x238] sm:$0xff]
    %v202 = vld [vmem:[#allocation2 + $0x240] sm:$0xff]
    %v203 = vld [vmem:[#allocation2 + $0x248] sm:$0xff]
    %v204 = vld [vmem:[#allocation2 + $0x250] sm:$0xff]
    %v205 = vld [vmem:[#allocation2 + $0x258] sm:$0xff]
    %v206 = vld [vmem:[#allocation2 + $0x260] sm:$0xff]
    %v207 = vld [vmem:[#allocation2 + $0x268] sm:$0xff]
    %v208 = vld [vmem:[#allocation2 + $0x270] sm:$0xff]
    %v209 = vld [vmem:[#allocation2 + $0x278] sm:$0xff]
    %v210 = vld [vmem:[#allocation2 + $0x280] sm:$0xff]
    %v211 = vld [vmem:[#allocation2 + $0x288] sm:$0xff]
    %v212 = vld [vmem:[#allocation2 + $0x290] sm:$0xff]
    %v213 = vld [vmem:[#allocation2 + $0x298] sm:$0xff]
    %v214 = vld [vmem:[#allocation2 + $0x2a0] sm:$0xff]
    %v215 = vld [vmem:[#allocation2 + $0x2a8] sm:$0xff]
    %v216 = vld [vmem:[#allocation2 + $0x2b0] sm:$0xff]
    %v217 = vld [vmem:[#allocation2 + $0x2b8] sm:$0xff]
    %v218 = vld [vmem:[#allocation2 + $0x2c0] sm:$0xff]
    %v219 = vld [vmem:[#allocation2 + $0x2c8] sm:$0xff]
    %v220 = vld [vmem:[#allocation2 + $0x2d0] sm:$0xff]
    %v221 = vld [vmem:[#allocation2 + $0x2d8] sm:$0xff]
    %v222 = vld [vmem:[#allocation2 + $0x2e0] sm:$0xff]
    %v223 = vld [vmem:[#allocation2 + $0x2e8] sm:$0xff]
    %v224 = vld [vmem:[#allocation2 + $0x2f0] sm:$0xff]
    %v225 = vld [vmem:[#allocation2 + $0x2f8] sm:$0xff]
    %v226 = vld [vmem:[#allocation2 + $0x300] sm:$0xff]
    %v227 = vld [vmem:[#allocation2 + $0x308] sm:$0xff]
    %v228 = vld [vmem:[#allocation2 + $0x310] sm:$0xff]
    %v229 = vld [vmem:[#allocation2 + $0x318] sm:$0xff]
    %v230 = vld [vmem:[#allocation2 + $0x320] sm:$0xff]
    %v231 = vld [vmem:[#allocation2 + $0x328] sm:$0xff]
    %v232 = vld [vmem:[#allocation2 + $0x330] sm:$0xff]
    %v233 = vld [vmem:[#allocation2 + $0x338] sm:$0xff]
    %v234 = vld [vmem:[#allocation2 + $0x340] sm:$0xff]
    %v235 = vld [vmem:[#allocation2 + $0x348] sm:$0xff]
    %v236 = vld [vmem:[#allocation2 + $0x350] sm:$0xff]
    %v237 = vld [vmem:[#allocation2 + $0x358] sm:$0xff]
    %v238 = vld [vmem:[#allocation2 + $0x360] sm:$0xff]
    %v239 = vld [vmem:[#allocation2 + $0x368] sm:$0xff]
    %v240 = vld [vmem:[#allocation2 + $0x370] sm:$0xff]
    %v241 = vld [vmem:[#allocation2 + $0x378] sm:$0xff]
    %v242 = vld [vmem:[#allocation2 + $0x380] sm:$0xff]
    %v243 = vld [vmem:[#allocation2 + $0x388] sm:$0xff]
    %v244 = vld [vmem:[#allocation2 + $0x390] sm:$0xff]
    %v245 = vld [vmem:[#allocation2 + $0x398] sm:$0xff]
    %v246 = vld [vmem:[#allocation2 + $0x3a0] sm:$0xff]
    %v247 = vld [vmem:[#allocation2 + $0x3a8] sm:$0xff]
    %v248 = vld [vmem:[#allocation2 + $0x3b0] sm:$0xff]
    %v249 = vld [vmem:[#allocation2 + $0x3b8] sm:$0xff]
    %v250 = vld [vmem:[#allocation2 + $0x3c0] sm:$0xff]
    %v251 = vld [vmem:[#allocation2 + $0x3c8] sm:$0xff]
    %v252 = vld [vmem:[#allocation2 + $0x3d0] sm:$0xff]
    %v253 = vld [vmem:[#allocation2 + $0x3d8] sm:$0xff]
    %v254 = vld [vmem:[#allocation2 + $0x3e0] sm:$0xff]
    %v255 = vld [vmem:[#allocation2 + $0x3e8] sm:$0xff]
    %v256 = vld [vmem:[#allocation2 + $0x3f0] sm:$0xff]
    %v257 = vld [vmem:[#allocation2 + $0x3f8] sm:$0xff]
    %v258 = vld [vmem:[#allocation2 + $0x400] sm:$0xff]
    %v259 = vld [vmem:[#allocation2 + $0x408] sm:$0xff]
    %v260 = vld [vmem:[#allocation2 + $0x410] sm:$0xff]
    %v261 = vld [vmem:[#allocation2 + $0x418] sm:$0xff]
    %v262 = vld [vmem:[#allocation2 + $0x420] sm:$0xff]
    %v263 = vld [vmem:[#allocation2 + $0x428] sm:$0xff]
    %v264 = vld [vmem:[#allocation2 + $0x430] sm:$0xff]
    %v265 = vld [vmem:[#allocation2 + $0x438] sm:$0xff]
    %v266 = vld [vmem:[#allocation2 + $0x440] sm:$0xff]
    %v267 = vld [vmem:[#allocation2 + $0x448] sm:$0xff]
    %v268 = vld [vmem:[#allocation2 + $0x450] sm:$0xff]
    %v269 = vld [vmem:[#allocation2 + $0x458] sm:$0xff]
    %v270 = vld [vmem:[#allocation2 + $0x460] sm:$0xff]
    %v271 = vld [vmem:[#allocation2 + $0x468] sm:$0xff]
    %v272 = vld [vmem:[#allocation2 + $0x470] sm:$0xff]
    %v273 = vld [vmem:[#allocation2 + $0x478] sm:$0xff]
    %v274 = vld [vmem:[#allocation2 + $0x480] sm:$0xff]
    %v275 = vld [vmem:[#allocation2 + $0x488] sm:$0xff]
    %v276 = vld [vmem:[#allocation2 + $0x490] sm:$0xff]
    %v277 = vld [vmem:[#allocation2 + $0x498] sm:$0xff]
    %v278 = vld [vmem:[#allocation2 + $0x4a0] sm:$0xff]
    %v279 = vld [vmem:[#allocation2 + $0x4a8] sm:$0xff]
    %v280 = vld [vmem:[#allocation2 + $0x4b0] sm:$0xff]
    %v281 = vld [vmem:[#allocation2 + $0x4b8] sm:$0xff]
    %v282 = vld [vmem:[#allocation2 + $0x4c0] sm:$0xff]
    %v283 = vld [vmem:[#allocation2 + $0x4c8] sm:$0xff]
    %v284 = vld [vmem:[#allocation2 + $0x4d0] sm:$0xff]
    %v285 = vld [vmem:[#allocation2 + $0x4d8] sm:$0xff]
    %v286 = vld [vmem:[#allocation2 + $0x4e0] sm:$0xff]
    %v287 = vld [vmem:[#allocation2 + $0x4e8] sm:$0xff]
    %v288 = vld [vmem:[#allocation2 + $0x4f0] sm:$0xff]
    %v289 = vld [vmem:[#allocation2 + $0x4f8] sm:$0xff]
    %v290 = vld [vmem:[#allocation2 + $0x500] sm:$0xff]
    %v291 = vld [vmem:[#allocation2 + $0x508] sm:$0xff]
    %v292 = vld [vmem:[#allocation2 + $0x510] sm:$0xff]
    %v293 = vld [vmem:[#allocation2 + $0x518] sm:$0xff]
    %v294 = vld [vmem:[#allocation2 + $0x520] sm:$0xff]
    %v295 = vld [vmem:[#allocation2 + $0x528] sm:$0xff]
    %v296 = vld [vmem:[#allocation2 + $0x530] sm:$0xff]
    %v297 = vld [vmem:[#allocation2 + $0x538] sm:$0xff]
    %v298 = vld [vmem:[#allocation2 + $0x540] sm:$0xff]
    %v299 = vld [vmem:[#allocation2 + $0x548] sm:$0xff]
    %v300 = vld [vmem:[#allocation2 + $0x550] sm:$0xff]
    %v301 = vld [vmem:[#allocation2 + $0x558] sm:$0xff]
    %v302 = vld [vmem:[#allocation2 + $0x560] sm:$0xff]
    %v303 = vld [vmem:[#allocation2 + $0x568] sm:$0xff]
    %v304 = vld [vmem:[#allocation2 + $0x570] sm:$0xff]
    %v305 = vld [vmem:[#allocation2 + $0x578] sm:$0xff]
    %v306 = vld [vmem:[#allocation2 + $0x580] sm:$0xff]
    %v307 = vld [vmem:[#allocation2 + $0x588] sm:$0xff]
    %v308 = vld [vmem:[#allocation2 + $0x590] sm:$0xff]
    %v309 = vld [vmem:[#allocation2 + $0x598] sm:$0xff]
    %v310 = vld [vmem:[#allocation2 + $0x5a0] sm:$0xff]
    %v311 = vld [vmem:[#allocation2 + $0x5a8] sm:$0xff]
    %v312 = vld [vmem:[#allocation2 + $0x5b0] sm:$0xff]
    %v313 = vld [vmem:[#allocation2 + $0x5b8] sm:$0xff]
    %v314 = vld [vmem:[#allocation2 + $0x5c0] sm:$0xff]
    %v315 = vld [vmem:[#allocation2 + $0x5c8] sm:$0xff]
    %v316 = vld [vmem:[#allocation2 + $0x5d0] sm:$0xff]
    %v317 = vld [vmem:[#allocation2 + $0x5d8] sm:$0xff]
    %v318 = vld [vmem:[#allocation2 + $0x5e0] sm:$0xff]
    %v319 = vld [vmem:[#allocation2 + $0x5e8] sm:$0xff]
    %v320 = vld [vmem:[#allocation2 + $0x5f0] sm:$0xff]
    %v321 = vld [vmem:[#allocation2 + $0x5f8] sm:$0xff]
    %v322 = vld [vmem:[#allocation2 + $0x600] sm:$0xff]
    %v323 = vld [vmem:[#allocation2 + $0x608] sm:$0xff]
    %v324 = vld [vmem:[#allocation2 + $0x610] sm:$0xff]
    %v325 = vld [vmem:[#allocation2 + $0x618] sm:$0xff]
    %v326 = vld [vmem:[#allocation2 + $0x620] sm:$0xff]
    %v327 = vld [vmem:[#allocation2 + $0x628] sm:$0xff]
    %v328 = vld [vmem:[#allocation2 + $0x630] sm:$0xff]
    %v329 = vld [vmem:[#allocation2 + $0x638] sm:$0xff]
    %v330 = vld [vmem:[#allocation2 + $0x640] sm:$0xff]
    %v331 = vld [vmem:[#allocation2 + $0x648] sm:$0xff]
    %v332 = vld [vmem:[#allocation2 + $0x650] sm:$0xff]
    %v333 = vld [vmem:[#allocation2 + $0x658] sm:$0xff]
    %v334 = vld [vmem:[#allocation2 + $0x660] sm:$0xff]
    %v335 = vld [vmem:[#allocation2 + $0x668] sm:$0xff]
    %v336 = vld [vmem:[#allocation2 + $0x670] sm:$0xff]
    %v337 = vld [vmem:[#allocation2 + $0x678] sm:$0xff]
    %v338 = vld [vmem:[#allocation2 + $0x680] sm:$0xff]
    %v339 = vld [vmem:[#allocation2 + $0x688] sm:$0xff]
    %v340 = vld [vmem:[#allocation2 + $0x690] sm:$0xff]
    %v341 = vld [vmem:[#allocation2 + $0x698] sm:$0xff]
    %v342 = vld [vmem:[#allocation2 + $0x6a0] sm:$0xff]
    %v343 = vld [vmem:[#allocation2 + $0x6a8] sm:$0xff]
    %v344 = vld [vmem:[#allocation2 + $0x6b0] sm:$0xff]
    %v345 = vld [vmem:[#allocation2 + $0x6b8] sm:$0xff]
    %v346 = vld [vmem:[#allocation2 + $0x6c0] sm:$0xff]
    %v347 = vld [vmem:[#allocation2 + $0x6c8] sm:$0xff]
    %v348 = vld [vmem:[#allocation2 + $0x6d0] sm:$0xff]
    %v349 = vld [vmem:[#allocation2 + $0x6d8] sm:$0xff]
    %v350 = vld [vmem:[#allocation2 + $0x6e0] sm:$0xff]
    %v351 = vld [vmem:[#allocation2 + $0x6e8] sm:$0xff]
    %v352 = vld [vmem:[#allocation2 + $0x6f0] sm:$0xff]
    %v353 = vld [vmem:[#allocation2 + $0x6f8] sm:$0xff]
    %v354 = vld [vmem:[#allocation2 + $0x700] sm:$0xff]
    %v355 = vld [vmem:[#allocation2 + $0x708] sm:$0xff]
    %v356 = vld [vmem:[#allocation2 + $0x710] sm:$0xff]
    %v357 = vld [vmem:[#allocation2 + $0x718] sm:$0xff]
    %v358 = vld [vmem:[#allocation2 + $0x720] sm:$0xff]
    %v359 = vld [vmem:[#allocation2 + $0x728] sm:$0xff]
    %v360 = vld [vmem:[#allocation2 + $0x730] sm:$0xff]
    %v361 = vld [vmem:[#allocation2 + $0x738] sm:$0xff]
    %v362 = vld [vmem:[#allocation2 + $0x740] sm:$0xff]
    %v363 = vld [vmem:[#allocation2 + $0x748] sm:$0xff]
    %v364 = vld [vmem:[#allocation2 + $0x750] sm:$0xff]
    %v365 = vld [vmem:[#allocation2 + $0x758] sm:$0xff]
    %v366 = vld [vmem:[#allocation2 + $0x760] sm:$0xff]
    %v367 = vld [vmem:[#allocation2 + $0x768] sm:$0xff]
    %v368 = vld [vmem:[#allocation2 + $0x770] sm:$0xff]
    %v369 = vld [vmem:[#allocation2 + $0x778] sm:$0xff]
    %v370 = vld [vmem:[#allocation2 + $0x780] sm:$0xff]
    %v371 = vld [vmem:[#allocation2 + $0x788] sm:$0xff]
    %v372 = vld [vmem:[#allocation2 + $0x790] sm:$0xff]
    %v373 = vld [vmem:[#allocation2 + $0x798] sm:$0xff]
    %v374 = vld [vmem:[#allocation2 + $0x7a0] sm:$0xff]
    %v375 = vld [vmem:[#allocation2 + $0x7a8] sm:$0xff]
    %v376 = vld [vmem:[#allocation2 + $0x7b0] sm:$0xff]
    %v377 = vld [vmem:[#allocation2 + $0x7b8] sm:$0xff]
    %v378 = vld [vmem:[#allocation2 + $0x7c0] sm:$0xff]
    %v379 = vld [vmem:[#allocation2 + $0x7c8] sm:$0xff]
    %v380 = vld [vmem:[#allocation2 + $0x7d0] sm:$0xff]
    %v381 = vld [vmem:[#allocation2 + $0x7d8] sm:$0xff]
    %v382 = vld [vmem:[#allocation2 + $0x7e0] sm:$0xff]
    %v383 = vld [vmem:[#allocation2 + $0x7e8] sm:$0xff]
    %v384 = vld [vmem:[#allocation2 + $0x7f0] sm:$0xff]
    %v385 = vld [vmem:[#allocation2 + $0x7f8] sm:$0xff]
    %v386 = vld [vmem:[#allocation2 + $0x800] sm:$0xff]
    %v387 = vld [vmem:[#allocation2 + $0x808] sm:$0xff]
    %v388 = vld [vmem:[#allocation2 + $0x810] sm:$0xff]
    %v389 = vld [vmem:[#allocation2 + $0x818] sm:$0xff]
    %v390 = vld [vmem:[#allocation2 + $0x820] sm:$0xff]
    %v391 = vld [vmem:[#allocation2 + $0x828] sm:$0xff]
    %v392 = vld [vmem:[#allocation2 + $0x830] sm:$0xff]
    %v393 = vld [vmem:[#allocation2 + $0x838] sm:$0xff]
    %v394 = vld [vmem:[#allocation2 + $0x840] sm:$0xff]
    %v395 = vld [vmem:[#allocation2 + $0x848] sm:$0xff]
    %v396 = vld [vmem:[#allocation2 + $0x850] sm:$0xff]
    %v397 = vld [vmem:[#allocation2 + $0x858] sm:$0xff]
    %v398 = vld [vmem:[#allocation2 + $0x860] sm:$0xff]
    %v399 = vld [vmem:[#allocation2 + $0x868] sm:$0xff]
    %v400 = vld [vmem:[#allocation2 + $0x870] sm:$0xff]
    %v401 = vld [vmem:[#allocation2 + $0x878] sm:$0xff]
    %v402 = vld [vmem:[#allocation2 + $0x880] sm:$0xff]
    %v403 = vld [vmem:[#allocation2 + $0x888] sm:$0xff]
    %v404 = vld [vmem:[#allocation2 + $0x890] sm:$0xff]
    %v405 = vld [vmem:[#allocation2 + $0x898] sm:$0xff]
    %v406 = vld [vmem:[#allocation2 + $0x8a0] sm:$0xff]
    %v407 = vld [vmem:[#allocation2 + $0x8a8] sm:$0xff]
    %v408 = vld [vmem:[#allocation2 + $0x8b0] sm:$0xff]
    %v409 = vld [vmem:[#allocation2 + $0x8b8] sm:$0xff]
    %v410 = vld [vmem:[#allocation2 + $0x8c0] sm:$0xff]
    %v411 = vld [vmem:[#allocation2 + $0x8c8] sm:$0xff]
    %v412 = vld [vmem:[#allocation2 + $0x8d0] sm:$0xff]
    %v413 = vld [vmem:[#allocation2 + $0x8d8] sm:$0xff]
    %v414 = vld [vmem:[#allocation2 + $0x8e0] sm:$0xff]
    %v415 = vld [vmem:[#allocation2 + $0x8e8] sm:$0xff]
    %v416 = vld [vmem:[#allocation2 + $0x8f0] sm:$0xff]
    %v417 = vld [vmem:[#allocation2 + $0x8f8] sm:$0xff]
    %v418 = vld [vmem:[#allocation2 + $0x900] sm:$0xff]
    %v419 = vld [vmem:[#allocation2 + $0x908] sm:$0xff]
    %v420 = vld [vmem:[#allocation2 + $0x910] sm:$0xff]
    %v421 = vld [vmem:[#allocation2 + $0x918] sm:$0xff]
    %v422 = vld [vmem:[#allocation2 + $0x920] sm:$0xff]
    %v423 = vld [vmem:[#allocation2 + $0x928] sm:$0xff]
    %v424 = vld [vmem:[#allocation2 + $0x930] sm:$0xff]
    %v425 = vld [vmem:[#allocation2 + $0x938] sm:$0xff]
    %v426 = vld [vmem:[#allocation2 + $0x940] sm:$0xff]
    %v427 = vld [vmem:[#allocation2 + $0x948] sm:$0xff]
    %v428 = vld [vmem:[#allocation2 + $0x950] sm:$0xff]
    %v429 = vld [vmem:[#allocation2 + $0x958] sm:$0xff]
    %v430 = vld [vmem:[#allocation2 + $0x960] sm:$0xff]
    %v431 = vld [vmem:[#allocation2 + $0x968] sm:$0xff]
    %v432 = vld [vmem:[#allocation2 + $0x970] sm:$0xff]
    %v433 = vld [vmem:[#allocation2 + $0x978] sm:$0xff]
    %v434 = vld [vmem:[#allocation2 + $0x980] sm:$0xff]
    %v435 = vld [vmem:[#allocation2 + $0x988] sm:$0xff]
    %v436 = vld [vmem:[#allocation2 + $0x990] sm:$0xff]
    %v437 = vld [vmem:[#allocation2 + $0x998] sm:$0xff]
    %v438 = vld [vmem:[#allocation2 + $0x9a0] sm:$0xff]
    %v439 = vld [vmem:[#allocation2 + $0x9a8] sm:$0xff]
    %v440 = vld [vmem:[#allocation2 + $0x9b0] sm:$0xff]
    %v441 = vld [vmem:[#allocation2 + $0x9b8] sm:$0xff]
    %v442 = vld [vmem:[#allocation2 + $0x9c0] sm:$0xff]
    %v443 = vld [vmem:[#allocation2 + $0x9c8] sm:$0xff]
    %v444 = vld [vmem:[#allocation2 + $0x9d0] sm:$0xff]
    %v445 = vld [vmem:[#allocation2 + $0x9d8] sm:$0xff]
    %v446 = vld [vmem:[#allocation2 + $0x9e0] sm:$0xff]
    %v447 = vld [vmem:[#allocation2 + $0x9e8] sm:$0xff]
    %v448 = vld [vmem:[#allocation2 + $0x9f0] sm:$0xff]
    %v449 = vld [vmem:[#allocation2 + $0x9f8] sm:$0xff]
    %v450 = vld [vmem:[#allocation2 + $0xa00] sm:$0xff]
    %v451 = vld [vmem:[#allocation2 + $0xa08] sm:$0xff]
    %v452 = vld [vmem:[#allocation2 + $0xa10] sm:$0xff]
    %v453 = vld [vmem:[#allocation2 + $0xa18] sm:$0xff]
    %v454 = vld [vmem:[#allocation2 + $0xa20] sm:$0xff]
    %v455 = vld [vmem:[#allocation2 + $0xa28] sm:$0xff]
    %v456 = vld [vmem:[#allocation2 + $0xa30] sm:$0xff]
    %v457 = vld [vmem:[#allocation2 + $0xa38] sm:$0xff]
    %v458 = vld [vmem:[#allocation2 + $0xa40] sm:$0xff]
    %v459 = vld [vmem:[#allocation2 + $0xa48] sm:$0xff]
    %v460 = vld [vmem:[#allocation2 + $0xa50] sm:$0xff]
    %v461 = vld [vmem:[#allocation2 + $0xa58] sm:$0xff]
    %v462 = vld [vmem:[#allocation2 + $0xa60] sm:$0xff]
    %v463 = vld [vmem:[#allocation2 + $0xa68] sm:$0xff]
    %v464 = vld [vmem:[#allocation2 + $0xa70] sm:$0xff]
    %v465 = vld [vmem:[#allocation2 + $0xa78] sm:$0xff]
    %v466 = vld [vmem:[#allocation2 + $0xa80] sm:$0xff]
    %v467 = vld [vmem:[#allocation2 + $0xa88] sm:$0xff]
    %v468 = vld [vmem:[#allocation2 + $0xa90] sm:$0xff]
    %v469 = vld [vmem:[#allocation2 + $0xa98] sm:$0xff]
    %v470 = vld [vmem:[#allocation2 + $0xaa0] sm:$0xff]
    %v471 = vld [vmem:[#allocation2 + $0xaa8] sm:$0xff]
    %v472 = vld [vmem:[#allocation2 + $0xab0] sm:$0xff]
    %v473 = vld [vmem:[#allocation2 + $0xab8] sm:$0xff]
    %v474 = vld [vmem:[#allocation2 + $0xac0] sm:$0xff]
    %v475 = vld [vmem:[#allocation2 + $0xac8] sm:$0xff]
    %v476 = vld [vmem:[#allocation2 + $0xad0] sm:$0xff]
    %v477 = vld [vmem:[#allocation2 + $0xad8] sm:$0xff]
    %v478 = vld [vmem:[#allocation2 + $0xae0] sm:$0xff]
    %v479 = vld [vmem:[#allocation2 + $0xae8] sm:$0xff]
    %v480 = vld [vmem:[#allocation2 + $0xaf0] sm:$0xff]
    %v481 = vld [vmem:[#allocation2 + $0xaf8] sm:$0xff]
    %v482 = vld [vmem:[#allocation2 + $0xb00] sm:$0xff]
    %v483 = vld [vmem:[#allocation2 + $0xb08] sm:$0xff]
    %v484 = vld [vmem:[#allocation2 + $0xb10] sm:$0xff]
    %v485 = vld [vmem:[#allocation2 + $0xb18] sm:$0xff]
    %v486 = vld [vmem:[#allocation2 + $0xb20] sm:$0xff]
    %v487 = vld [vmem:[#allocation2 + $0xb28] sm:$0xff]
    %v488 = vld [vmem:[#allocation2 + $0xb30] sm:$0xff]
    %v489 = vld [vmem:[#allocation2 + $0xb38] sm:$0xff]
    %v490 = vld [vmem:[#allocation2 + $0xb40] sm:$0xff]
    %v491 = vld [vmem:[#allocation2 + $0xb48] sm:$0xff]
    %v492 = vld [vmem:[#allocation2 + $0xb50] sm:$0xff]
    %v493 = vld [vmem:[#allocation2 + $0xb58] sm:$0xff]
    %v494 = vld [vmem:[#allocation2 + $0xb60] sm:$0xff]
    %v495 = vld [vmem:[#allocation2 + $0xb68] sm:$0xff]
    %v496 = vld [vmem:[#allocation2 + $0xb70] sm:$0xff]
    %v497 = vld [vmem:[#allocation2 + $0xb78] sm:$0xff]
    %v498 = vld [vmem:[#allocation2 + $0xb80] sm:$0xff]
    %v499 = vld [vmem:[#allocation2 + $0xb88] sm:$0xff]
    %v500 = vld [vmem:[#allocation2 + $0xb90] sm:$0xff]
    %v501 = vld [vmem:[#allocation2 + $0xb98] sm:$0xff]
    %v502 = vld [vmem:[#allocation2 + $0xba0] sm:$0xff]
    %v503 = vld [vmem:[#allocation2 + $0xba8] sm:$0xff]
    %v504 = vld [vmem:[#allocation2 + $0xbb0] sm:$0xff]
    %v505 = vld [vmem:[#allocation2 + $0xbb8] sm:$0xff]
    %v506 = vld [vmem:[#allocation2 + $0xbc0] sm:$0xff]
    %v507 = vld [vmem:[#allocation2 + $0xbc8] sm:$0xff]
    %v508 = vld [vmem:[#allocation2 + $0xbd0] sm:$0xff]
    %v509 = vld [vmem:[#allocation2 + $0xbd8] sm:$0xff]
    %v510 = vld [vmem:[#allocation2 + $0xbe0] sm:$0xff]
    %v511 = vld [vmem:[#allocation2 + $0xbe8] sm:$0xff]
    %v512 = vld [vmem:[#allocation2 + $0xbf0] sm:$0xff]
    %v513 = vld [vmem:[#allocation2 + $0xbf8] sm:$0xff]
    %v514 = vld [vmem:[#allocation2 + $0xc00] sm:$0xff]
    %v515 = vld [vmem:[#allocation2 + $0xc08] sm:$0xff]
    %v516 = vld [vmem:[#allocation2 + $0xc10] sm:$0xff]
    %v517 = vld [vmem:[#allocation2 + $0xc18] sm:$0xff]
    %v518 = vld [vmem:[#allocation2 + $0xc20] sm:$0xff]
    %v519 = vld [vmem:[#allocation2 + $0xc28] sm:$0xff]
    %v520 = vld [vmem:[#allocation2 + $0xc30] sm:$0xff]
    %v521 = vld [vmem:[#allocation2 + $0xc38] sm:$0xff]
    %v522 = vld [vmem:[#allocation2 + $0xc40] sm:$0xff]
    %v523 = vld [vmem:[#allocation2 + $0xc48] sm:$0xff]
    %v524 = vld [vmem:[#allocation2 + $0xc50] sm:$0xff]
    %v525 = vld [vmem:[#allocation2 + $0xc58] sm:$0xff]
    %v526 = vld [vmem:[#allocation2 + $0xc60] sm:$0xff]
    %v527 = vld [vmem:[#allocation2 + $0xc68] sm:$0xff]
    %v528 = vld [vmem:[#allocation2 + $0xc70] sm:$0xff]
    %v529 = vld [vmem:[#allocation2 + $0xc78] sm:$0xff]
    %v530 = vld [vmem:[#allocation2 + $0xc80] sm:$0xff]
    %v531 = vld [vmem:[#allocation2 + $0xc88] sm:$0xff]
    %v532 = vld [vmem:[#allocation2 + $0xc90] sm:$0xff]
    %v533 = vld [vmem:[#allocation2 + $0xc98] sm:$0xff]
    %v534 = vld [vmem:[#allocation2 + $0xca0] sm:$0xff]
    %v535 = vld [vmem:[#allocation2 + $0xca8] sm:$0xff]
    %v536 = vld [vmem:[#allocation2 + $0xcb0] sm:$0xff]
    %v537 = vld [vmem:[#allocation2 + $0xcb8] sm:$0xff]
    %v538 = vld [vmem:[#allocation2 + $0xcc0] sm:$0xff]
    %v539 = vld [vmem:[#allocation2 + $0xcc8] sm:$0xff]
    %v540 = vld [vmem:[#allocation2 + $0xcd0] sm:$0xff]
    %v541 = vld [vmem:[#allocation2 + $0xcd8] sm:$0xff]
    %v542 = vld [vmem:[#allocation2 + $0xce0] sm:$0xff]
    %v543 = vld [vmem:[#allocation2 + $0xce8] sm:$0xff]
    %v544 = vld [vmem:[#allocation2 + $0xcf0] sm:$0xff]
    %v545 = vld [vmem:[#allocation2 + $0xcf8] sm:$0xff]
    %v546 = vld [vmem:[#allocation2 + $0xd00] sm:$0xff]
    %v547 = vld [vmem:[#allocation2 + $0xd08] sm:$0xff]
    %v548 = vld [vmem:[#allocation2 + $0xd10] sm:$0xff]
    %v549 = vld [vmem:[#allocation2 + $0xd18] sm:$0xff]
    %v550 = vld [vmem:[#allocation2 + $0xd20] sm:$0xff]
    %v551 = vld [vmem:[#allocation2 + $0xd28] sm:$0xff]
    %v552 = vld [vmem:[#allocation2 + $0xd30] sm:$0xff]
    %v553 = vld [vmem:[#allocation2 + $0xd38] sm:$0xff]
    %v554 = vld [vmem:[#allocation2 + $0xd40] sm:$0xff]
    %v555 = vld [vmem:[#allocation2 + $0xd48] sm:$0xff]
    %v556 = vld [vmem:[#allocation2 + $0xd50] sm:$0xff]
    %v557 = vld [vmem:[#allocation2 + $0xd58] sm:$0xff]
    %v558 = vld [vmem:[#allocation2 + $0xd60] sm:$0xff]
    %v559 = vld [vmem:[#allocation2 + $0xd68] sm:$0xff]
    %v560 = vld [vmem:[#allocation2 + $0xd70] sm:$0xff]
    %v561 = vld [vmem:[#allocation2 + $0xd78] sm:$0xff]
    %v562 = vld [vmem:[#allocation2 + $0xd80] sm:$0xff]
    %v563 = vld [vmem:[#allocation2 + $0xd88] sm:$0xff]
    %v564 = vld [vmem:[#allocation2 + $0xd90] sm:$0xff]
    %v565 = vld [vmem:[#allocation2 + $0xd98] sm:$0xff]
    %v566 = vld [vmem:[#allocation2 + $0xda0] sm:$0xff]
    %v567 = vld [vmem:[#allocation2 + $0xda8] sm:$0xff]
    %v568 = vld [vmem:[#allocation2 + $0xdb0] sm:$0xff]
    %v569 = vld [vmem:[#allocation2 + $0xdb8] sm:$0xff]
    %v570 = vld [vmem:[#allocation2 + $0xdc0] sm:$0xff]
    %v571 = vld [vmem:[#allocation2 + $0xdc8] sm:$0xff]
    %v572 = vld [vmem:[#allocation2 + $0xdd0] sm:$0xff]
    %v573 = vld [vmem:[#allocation2 + $0xdd8] sm:$0xff]
    %v574 = vld [vmem:[#allocation2 + $0xde0] sm:$0xff]
    %v575 = vld [vmem:[#allocation2 + $0xde8] sm:$0xff]
    %v576 = vld [vmem:[#allocation2 + $0xdf0] sm:$0xff]
    %v577 = vld [vmem:[#allocation2 + $0xdf8] sm:$0xff]
    %v578 = vld [vmem:[#allocation2 + $0xe00] sm:$0xff]
    %v579 = vld [vmem:[#allocation2 + $0xe08] sm:$0xff]
    %v580 = vld [vmem:[#allocation2 + $0xe10] sm:$0xff]
    %v581 = vld [vmem:[#allocation2 + $0xe18] sm:$0xff]
    %v582 = vld [vmem:[#allocation2 + $0xe20] sm:$0xff]
    %v583 = vld [vmem:[#allocation2 + $0xe28] sm:$0xff]
    %v584 = vld [vmem:[#allocation2 + $0xe30] sm:$0xff]
    %v585 = vld [vmem:[#allocation2 + $0xe38] sm:$0xff]
    %v586 = vld [vmem:[#allocation2 + $0xe40] sm:$0xff]
    %v587 = vld [vmem:[#allocation2 + $0xe48] sm:$0xff]
    %v588 = vld [vmem:[#allocation2 + $0xe50] sm:$0xff]
    %v589 = vld [vmem:[#allocation2 + $0xe58] sm:$0xff]
    %v590 = vld [vmem:[#allocation2 + $0xe60] sm:$0xff]
    %v591 = vld [vmem:[#allocation2 + $0xe68] sm:$0xff]
    %v592 = vld [vmem:[#allocation2 + $0xe70] sm:$0xff]
    %v593 = vld [vmem:[#allocation2 + $0xe78] sm:$0xff]
    %v594 = vld [vmem:[#allocation2 + $0xe80] sm:$0xff]
    %v595 = vld [vmem:[#allocation2 + $0xe88] sm:$0xff]
    %v596 = vld [vmem:[#allocation2 + $0xe90] sm:$0xff]
    %v597 = vld [vmem:[#allocation2 + $0xe98] sm:$0xff]
    %v598 = vld [vmem:[#allocation2 + $0xea0] sm:$0xff]
    %v599 = vld [vmem:[#allocation2 + $0xea8] sm:$0xff]
    %v600 = vld [vmem:[#allocation2 + $0xeb0] sm:$0xff]
    %v601 = vld [vmem:[#allocation2 + $0xeb8] sm:$0xff]
    %v602 = vld [vmem:[#allocation2 + $0xec0] sm:$0xff]
    %v603 = vld [vmem:[#allocation2 + $0xec8] sm:$0xff]
    %v604 = vld [vmem:[#allocation2 + $0xed0] sm:$0xff]
    %v605 = vld [vmem:[#allocation2 + $0xed8] sm:$0xff]
    %v606 = vld [vmem:[#allocation2 + $0xee0] sm:$0xff]
    %v607 = vld [vmem:[#allocation2 + $0xee8] sm:$0xff]
    %v608 = vld [vmem:[#allocation2 + $0xef0] sm:$0xff]
    %v609 = vld [vmem:[#allocation2 + $0xef8] sm:$0xff]
    %v610 = vld [vmem:[#allocation2 + $0xf00] sm:$0xff]
    %v611 = vld [vmem:[#allocation2 + $0xf08] sm:$0xff]
    %v612 = vld [vmem:[#allocation2 + $0xf10] sm:$0xff]
    %v613 = vld [vmem:[#allocation2 + $0xf18] sm:$0xff]
    %v614 = vld [vmem:[#allocation2 + $0xf20] sm:$0xff]
    %v615 = vld [vmem:[#allocation2 + $0xf28] sm:$0xff]
    %v616 = vld [vmem:[#allocation2 + $0xf30] sm:$0xff]
    %v617 = vld [vmem:[#allocation2 + $0xf38] sm:$0xff]
    %v618 = vld [vmem:[#allocation2 + $0xf40] sm:$0xff]
    %v619 = vld [vmem:[#allocation2 + $0xf48] sm:$0xff]
    %v620 = vld [vmem:[#allocation2 + $0xf50] sm:$0xff]
    %v621 = vld [vmem:[#allocation2 + $0xf58] sm:$0xff]
    %v622 = vld [vmem:[#allocation2 + $0xf60] sm:$0xff]
    %v623 = vld [vmem:[#allocation2 + $0xf68] sm:$0xff]
    %v624 = vld [vmem:[#allocation2 + $0xf70] sm:$0xff]
    %v625 = vld [vmem:[#allocation2 + $0xf78] sm:$0xff]
    %v626 = vld [vmem:[#allocation2 + $0xf80] sm:$0xff]
    %v627 = vld [vmem:[#allocation2 + $0xf88] sm:$0xff]
    %v628 = vld [vmem:[#allocation2 + $0xf90] sm:$0xff]
    %v629 = vld [vmem:[#allocation2 + $0xf98] sm:$0xff]
    %v630 = vld [vmem:[#allocation2 + $0xfa0] sm:$0xff]
    %v631 = vld [vmem:[#allocation2 + $0xfa8] sm:$0xff]
    %v632 = vld [vmem:[#allocation2 + $0xfb0] sm:$0xff]
    %v633 = vld [vmem:[#allocation2 + $0xfb8] sm:$0xff]
    %v634 = vld [vmem:[#allocation2 + $0xfc0] sm:$0xff]
    %v635 = vld [vmem:[#allocation2 + $0xfc8] sm:$0xff]
    %v636 = vld [vmem:[#allocation2 + $0xfd0] sm:$0xff]
    %v637 = vld [vmem:[#allocation2 + $0xfd8] sm:$0xff]
    %v638 = vld [vmem:[#allocation2 + $0xfe0] sm:$0xff]
    %v639 = vld [vmem:[#allocation2 + $0xfe8] sm:$0xff]
    %v640 = vld [vmem:[#allocation2 + $0xff0] sm:$0xff]
    %v641 = vld [vmem:[#allocation2 + $0xff8] sm:$0xff]
    %v642 = vld [vmem:[#allocation2 + $0x1000] sm:$0xff]
    %v643 = vld [vmem:[#allocation2 + $0x1008] sm:$0xff]
    %v644 = vld [vmem:[#allocation2 + $0x1010] sm:$0xff]
    %v645 = vld [vmem:[#allocation2 + $0x1018] sm:$0xff]
    %v646 = vld [vmem:[#allocation2 + $0x1020] sm:$0xff]
    %v647 = vld [vmem:[#allocation2 + $0x1028] sm:$0xff]
    %v648 = vld [vmem:[#allocation2 + $0x1030] sm:$0xff]
    %v649 = vld [vmem:[#allocation2 + $0x1038] sm:$0xff]
    %v650 = vld [vmem:[#allocation2 + $0x1040] sm:$0xff]
    %v651 = vld [vmem:[#allocation2 + $0x1048] sm:$0xff]
    %v652 = vld [vmem:[#allocation2 + $0x1050] sm:$0xff]
    %v653 = vld [vmem:[#allocation2 + $0x1058] sm:$0xff]
    %v654 = vld [vmem:[#allocation2 + $0x1060] sm:$0xff]
    %v655 = vld [vmem:[#allocation2 + $0x1068] sm:$0xff]
    %v656 = vld [vmem:[#allocation2 + $0x1070] sm:$0xff]
    %v657 = vld [vmem:[#allocation2 + $0x1078] sm:$0xff]
    %v658 = vld [vmem:[#allocation2 + $0x1080] sm:$0xff]
    %v659 = vld [vmem:[#allocation2 + $0x1088] sm:$0xff]
    %v660 = vld [vmem:[#allocation2 + $0x1090] sm:$0xff]
    %v661 = vld [vmem:[#allocation2 + $0x1098] sm:$0xff]
    %v662 = vld [vmem:[#allocation2 + $0x10a0] sm:$0xff]
    %v663 = vld [vmem:[#allocation2 + $0x10a8] sm:$0xff]
    %v664 = vld [vmem:[#allocation2 + $0x10b0] sm:$0xff]
    %v665 = vld [vmem:[#allocation2 + $0x10b8] sm:$0xff]
    %v666 = vld [vmem:[#allocation2 + $0x10c0] sm:$0xff]
    %v667 = vld [vmem:[#allocation2 + $0x10c8] sm:$0xff]
    %v668 = vld [vmem:[#allocation2 + $0x10d0] sm:$0xff]
    %v669 = vld [vmem:[#allocation2 + $0x10d8] sm:$0xff]
    %v670 = vld [vmem:[#allocation2 + $0x10e0] sm:$0xff]
    %v671 = vld [vmem:[#allocation2 + $0x10e8] sm:$0xff]
    %v672 = vld [vmem:[#allocation2 + $0x10f0] sm:$0xff]
    %v673 = vld [vmem:[#allocation2 + $0x10f8] sm:$0xff]
    %v674 = vld [vmem:[#allocation2 + $0x1100] sm:$0xff]
    %v675 = vld [vmem:[#allocation2 + $0x1108] sm:$0xff]
    %v676 = vld [vmem:[#allocation2 + $0x1110] sm:$0xff]
    %v677 = vld [vmem:[#allocation2 + $0x1118] sm:$0xff]
    %v678 = vld [vmem:[#allocation2 + $0x1120] sm:$0xff]
    %v679 = vld [vmem:[#allocation2 + $0x1128] sm:$0xff]
    %v680 = vld [vmem:[#allocation2 + $0x1130] sm:$0xff]
    %v681 = vld [vmem:[#allocation2 + $0x1138] sm:$0xff]
    %v682 = vld [vmem:[#allocation2 + $0x1140] sm:$0xff]
    %v683 = vld [vmem:[#allocation2 + $0x1148] sm:$0xff]
    %v684 = vld [vmem:[#allocation2 + $0x1150] sm:$0xff]
    %v685 = vld [vmem:[#allocation2 + $0x1158] sm:$0xff]
    %v686 = vld [vmem:[#allocation2 + $0x1160] sm:$0xff]
    %v687 = vld [vmem:[#allocation2 + $0x1168] sm:$0xff]
    %v688 = vld [vmem:[#allocation2 + $0x1170] sm:$0xff]
    %v689 = vld [vmem:[#allocation2 + $0x1178] sm:$0xff]
    %v690 = vld [vmem:[#allocation2 + $0x1180] sm:$0xff]
    %v691 = vld [vmem:[#allocation2 + $0x1188] sm:$0xff]
    %v692 = vld [vmem:[#allocation2 + $0x1190] sm:$0xff]
    %v693 = vld [vmem:[#allocation2 + $0x1198] sm:$0xff]
    %v694 = vld [vmem:[#allocation2 + $0x11a0] sm:$0xff]
    %v695 = vld [vmem:[#allocation2 + $0x11a8] sm:$0xff]
    %v696 = vld [vmem:[#allocation2 + $0x11b0] sm:$0xff]
    %v697 = vld [vmem:[#allocation2 + $0x11b8] sm:$0xff]
    %v698 = vld [vmem:[#allocation2 + $0x11c0] sm:$0xff]
    %v699 = vld [vmem:[#allocation2 + $0x11c8] sm:$0xff]
    %v700 = vld [vmem:[#allocation2 + $0x11d0] sm:$0xff]
    %v701 = vld [vmem:[#allocation2 + $0x11d8] sm:$0xff]
    %v702 = vld [vmem:[#allocation2 + $0x11e0] sm:$0xff]
    %v703 = vld [vmem:[#allocation2 + $0x11e8] sm:$0xff]
    %v704 = vld [vmem:[#allocation2 + $0x11f0] sm:$0xff]
    %v705 = vld [vmem:[#allocation2 + $0x11f8] sm:$0xff]
    %v706 = vld [vmem:[#allocation2 + $0x1200] sm:$0xff]
    %v707 = vld [vmem:[#allocation2 + $0x1208] sm:$0xff]
    %v708 = vld [vmem:[#allocation2 + $0x1210] sm:$0xff]
    %v709 = vld [vmem:[#allocation2 + $0x1218] sm:$0xff]
    %v710 = vld [vmem:[#allocation2 + $0x1220] sm:$0xff]
    %v711 = vld [vmem:[#allocation2 + $0x1228] sm:$0xff]
    %v712 = vld [vmem:[#allocation2 + $0x1230] sm:$0xff]
    %v713 = vld [vmem:[#allocation2 + $0x1238] sm:$0xff]
    %v714 = vld [vmem:[#allocation2 + $0x1240] sm:$0xff]
    %v715 = vld [vmem:[#allocation2 + $0x1248] sm:$0xff]
    %v716 = vld [vmem:[#allocation2 + $0x1250] sm:$0xff]
    %v717 = vld [vmem:[#allocation2 + $0x1258] sm:$0xff]
    %v718 = vld [vmem:[#allocation2 + $0x1260] sm:$0xff]
    %v719 = vld [vmem:[#allocation2 + $0x1268] sm:$0xff]
    %v720 = vld [vmem:[#allocation2 + $0x1270] sm:$0xff]
    %v721 = vld [vmem:[#allocation2 + $0x1278] sm:$0xff]
    %v722 = vld [vmem:[#allocation2 + $0x1280] sm:$0xff]
    %v723 = vld [vmem:[#allocation2 + $0x1288] sm:$0xff]
    %v724 = vld [vmem:[#allocation2 + $0x1290] sm:$0xff]
    %v725 = vld [vmem:[#allocation2 + $0x1298] sm:$0xff]
    %v726 = vld [vmem:[#allocation2 + $0x12a0] sm:$0xff]
    %v727 = vld [vmem:[#allocation2 + $0x12a8] sm:$0xff]
    %v728 = vld [vmem:[#allocation2 + $0x12b0] sm:$0xff]
    %v729 = vld [vmem:[#allocation2 + $0x12b8] sm:$0xff]
    %v730 = vld [vmem:[#allocation2 + $0x12c0] sm:$0xff]
    %v731 = vld [vmem:[#allocation2 + $0x12c8] sm:$0xff]
    %v732 = vld [vmem:[#allocation2 + $0x12d0] sm:$0xff]
    %v733 = vld [vmem:[#allocation2 + $0x12d8] sm:$0xff]
    %v734 = vld [vmem:[#allocation2 + $0x12e0] sm:$0xff]
    %v735 = vld [vmem:[#allocation2 + $0x12e8] sm:$0xff]
    %v736 = vld [vmem:[#allocation2 + $0x12f0] sm:$0xff]
    %v737 = vld [vmem:[#allocation2 + $0x12f8] sm:$0xff]
    %v738 = vld [vmem:[#allocation2 + $0x1300] sm:$0xff]
    %v739 = vld [vmem:[#allocation2 + $0x1308] sm:$0xff]
    %v740 = vld [vmem:[#allocation2 + $0x1310] sm:$0xff]
    %v741 = vld [vmem:[#allocation2 + $0x1318] sm:$0xff]
    %v742 = vld [vmem:[#allocation2 + $0x1320] sm:$0xff]
    %v743 = vld [vmem:[#allocation2 + $0x1328] sm:$0xff]
    %v744 = vld [vmem:[#allocation2 + $0x1330] sm:$0xff]
    %v745 = vld [vmem:[#allocation2 + $0x1338] sm:$0xff]
    %v746 = vld [vmem:[#allocation2 + $0x1340] sm:$0xff]
    %v747 = vld [vmem:[#allocation2 + $0x1348] sm:$0xff]
    %v748 = vld [vmem:[#allocation2 + $0x1350] sm:$0xff]
    %v749 = vld [vmem:[#allocation2 + $0x1358] sm:$0xff]
    %v750 = vld [vmem:[#allocation2 + $0x1360] sm:$0xff]
    %v751 = vld [vmem:[#allocation2 + $0x1368] sm:$0xff]
    %v752 = vld [vmem:[#allocation2 + $0x1370] sm:$0xff]
    %v753 = vld [vmem:[#allocation2 + $0x1378] sm:$0xff]
    %v754 = vld [vmem:[#allocation2 + $0x1380] sm:$0xff]
    %v755 = vld [vmem:[#allocation2 + $0x1388] sm:$0xff]
    %v756 = vld [vmem:[#allocation2 + $0x1390] sm:$0xff]
    %v757 = vld [vmem:[#allocation2 + $0x1398] sm:$0xff]
    %v758 = vld [vmem:[#allocation2 + $0x13a0] sm:$0xff]
    %v759 = vld [vmem:[#allocation2 + $0x13a8] sm:$0xff]
    %v760 = vld [vmem:[#allocation2 + $0x13b0] sm:$0xff]
    %v761 = vld [vmem:[#allocation2 + $0x13b8] sm:$0xff]
    %v762 = vld [vmem:[#allocation2 + $0x13c0] sm:$0xff]
    %v763 = vld [vmem:[#allocation2 + $0x13c8] sm:$0xff]
    %v764 = vld [vmem:[#allocation2 + $0x13d0] sm:$0xff]
    %v765 = vld [vmem:[#allocation2 + $0x13d8] sm:$0xff]
    %v766 = vld [vmem:[#allocation2 + $0x13e0] sm:$0xff]
    %v767 = vld [vmem:[#allocation2 + $0x13e8] sm:$0xff]
    %v768 = vld [vmem:[#allocation2 + $0x13f0] sm:$0xff]
    %v769 = vld [vmem:[#allocation2 + $0x13f8] sm:$0xff]
    %v770 = vld [vmem:[#allocation2 + $0x1400] sm:$0xff]
    %v771 = vld [vmem:[#allocation2 + $0x1408] sm:$0xff]
    %v772 = vld [vmem:[#allocation2 + $0x1410] sm:$0xff]
    %v773 = vld [vmem:[#allocation2 + $0x1418] sm:$0xff]
    %v774 = vld [vmem:[#allocation2 + $0x1420] sm:$0xff]
    %v775 = vld [vmem:[#allocation2 + $0x1428] sm:$0xff]
    %v776 = vld [vmem:[#allocation2 + $0x1430] sm:$0xff]
    %v777 = vld [vmem:[#allocation2 + $0x1438] sm:$0xff]
    %v778 = vld [vmem:[#allocation2 + $0x1440] sm:$0xff]
    %v779 = vld [vmem:[#allocation2 + $0x1448] sm:$0xff]
    %v780 = vld [vmem:[#allocation2 + $0x1450] sm:$0xff]
    %v781 = vld [vmem:[#allocation2 + $0x1458] sm:$0xff]
    %v782 = vld [vmem:[#allocation2 + $0x1460] sm:$0xff]
    %v783 = vld [vmem:[#allocation2 + $0x1468] sm:$0xff]
    %v784 = vld [vmem:[#allocation2 + $0x1470] sm:$0xff]
    %v785 = vld [vmem:[#allocation2 + $0x1478] sm:$0xff]
    %v786 = vld [vmem:[#allocation2 + $0x1480] sm:$0xff]
    %v787 = vld [vmem:[#allocation2 + $0x1488] sm:$0xff]
    %v788 = vld [vmem:[#allocation2 + $0x1490] sm:$0xff]
    %v789 = vld [vmem:[#allocation2 + $0x1498] sm:$0xff]
    %v790 = vld [vmem:[#allocation2 + $0x14a0] sm:$0xff]
    %v791 = vld [vmem:[#allocation2 + $0x14a8] sm:$0xff]
    %v792 = vld [vmem:[#allocation2 + $0x14b0] sm:$0xff]
    %v793 = vld [vmem:[#allocation2 + $0x14b8] sm:$0xff]
    %v794 = vld [vmem:[#allocation2 + $0x14c0] sm:$0xff]
    %v795 = vld [vmem:[#allocation2 + $0x14c8] sm:$0xff]
    %v796 = vld [vmem:[#allocation2 + $0x14d0] sm:$0xff]
    %v797 = vld [vmem:[#allocation2 + $0x14d8] sm:$0xff]
    %v798 = vld [vmem:[#allocation2 + $0x14e0] sm:$0xff]
    %v799 = vld [vmem:[#allocation2 + $0x14e8] sm:$0xff]
    %v800 = vld [vmem:[#allocation2 + $0x14f0] sm:$0xff]
    %v801 = vld [vmem:[#allocation2 + $0x14f8] sm:$0xff]
    %v802 = vld [vmem:[#allocation2 + $0x1500] sm:$0xff]
    %v803 = vld [vmem:[#allocation2 + $0x1508] sm:$0xff]
    %v804 = vld [vmem:[#allocation2 + $0x1510] sm:$0xff]
    %v805 = vld [vmem:[#allocation2 + $0x1518] sm:$0xff]
    %v806 = vld [vmem:[#allocation2 + $0x1520] sm:$0xff]
    %v807 = vld [vmem:[#allocation2 + $0x1528] sm:$0xff]
    %v808 = vld [vmem:[#allocation2 + $0x1530] sm:$0xff]
    %v809 = vld [vmem:[#allocation2 + $0x1538] sm:$0xff]
    %v810 = vld [vmem:[#allocation2 + $0x1540] sm:$0xff]
    %v811 = vld [vmem:[#allocation2 + $0x1548] sm:$0xff]
    %v812 = vld [vmem:[#allocation2 + $0x1550] sm:$0xff]
    %v813 = vld [vmem:[#allocation2 + $0x1558] sm:$0xff]
    %v814 = vld [vmem:[#allocation2 + $0x1560] sm:$0xff]
    %v815 = vld [vmem:[#allocation2 + $0x1568] sm:$0xff]
    %v816 = vld [vmem:[#allocation2 + $0x1570] sm:$0xff]
    %v817 = vld [vmem:[#allocation2 + $0x1578] sm:$0xff]
    %v818 = vld [vmem:[#allocation2 + $0x1580] sm:$0xff]
    %v819 = vld [vmem:[#allocation2 + $0x1588] sm:$0xff]
    %v820 = vld [vmem:[#allocation2 + $0x1590] sm:$0xff]
    %v821 = vld [vmem:[#allocation2 + $0x1598] sm:$0xff]
    %v822 = vld [vmem:[#allocation2 + $0x15a0] sm:$0xff]
    %v823 = vld [vmem:[#allocation2 + $0x15a8] sm:$0xff]
    %v824 = vld [vmem:[#allocation2 + $0x15b0] sm:$0xff]
    %v825 = vld [vmem:[#allocation2 + $0x15b8] sm:$0xff]
    %v826 = vld [vmem:[#allocation2 + $0x15c0] sm:$0xff]
    %v827 = vld [vmem:[#allocation2 + $0x15c8] sm:$0xff]
    %v828 = vld [vmem:[#allocation2 + $0x15d0] sm:$0xff]
    %v829 = vld [vmem:[#allocation2 + $0x15d8] sm:$0xff]
    %v830 = vld [vmem:[#allocation2 + $0x15e0] sm:$0xff]
    %v831 = vld [vmem:[#allocation2 + $0x15e8] sm:$0xff]
    %v832 = vld [vmem:[#allocation2 + $0x15f0] sm:$0xff]
    %v833 = vld [vmem:[#allocation2 + $0x15f8] sm:$0xff]
    %v834 = vld [vmem:[#allocation2 + $0x1600] sm:$0xff]
    %v835 = vld [vmem:[#allocation2 + $0x1608] sm:$0xff]
    %v836 = vld [vmem:[#allocation2 + $0x1610] sm:$0xff]
    %v837 = vld [vmem:[#allocation2 + $0x1618] sm:$0xff]
    %v838 = vld [vmem:[#allocation2 + $0x1620] sm:$0xff]
    %v839 = vld [vmem:[#allocation2 + $0x1628] sm:$0xff]
    %v840 = vld [vmem:[#allocation2 + $0x1630] sm:$0xff]
    %v841 = vld [vmem:[#allocation2 + $0x1638] sm:$0xff]
    %v842 = vld [vmem:[#allocation2 + $0x1640] sm:$0xff]
    %v843 = vld [vmem:[#allocation2 + $0x1648] sm:$0xff]
    %v844 = vld [vmem:[#allocation2 + $0x1650] sm:$0xff]
    %v845 = vld [vmem:[#allocation2 + $0x1658] sm:$0xff]
    %v846 = vld [vmem:[#allocation2 + $0x1660] sm:$0xff]
    %v847 = vld [vmem:[#allocation2 + $0x1668] sm:$0xff]
    %v848 = vld [vmem:[#allocation2 + $0x1670] sm:$0xff]
    %v849 = vld [vmem:[#allocation2 + $0x1678] sm:$0xff]
    %v850 = vld [vmem:[#allocation2 + $0x1680] sm:$0xff]
    %v851 = vld [vmem:[#allocation2 + $0x1688] sm:$0xff]
    %v852 = vld [vmem:[#allocation2 + $0x1690] sm:$0xff]
    %v853 = vld [vmem:[#allocation2 + $0x1698] sm:$0xff]
    %v854 = vld [vmem:[#allocation2 + $0x16a0] sm:$0xff]
    %v855 = vld [vmem:[#allocation2 + $0x16a8] sm:$0xff]
    %v856 = vld [vmem:[#allocation2 + $0x16b0] sm:$0xff]
    %v857 = vld [vmem:[#allocation2 + $0x16b8] sm:$0xff]
    %v858 = vld [vmem:[#allocation2 + $0x16c0] sm:$0xff]
    %v859 = vld [vmem:[#allocation2 + $0x16c8] sm:$0xff]
    %v860 = vld [vmem:[#allocation2 + $0x16d0] sm:$0xff]
    %v861 = vld [vmem:[#allocation2 + $0x16d8] sm:$0xff]
    %v862 = vld [vmem:[#allocation2 + $0x16e0] sm:$0xff]
    %v863 = vld [vmem:[#allocation2 + $0x16e8] sm:$0xff]
    %v864 = vld [vmem:[#allocation2 + $0x16f0] sm:$0xff]
    %v865 = vld [vmem:[#allocation2 + $0x16f8] sm:$0xff]
    %v866 = vld [vmem:[#allocation2 + $0x1700] sm:$0xff]
    %v867 = vld [vmem:[#allocation2 + $0x1708] sm:$0xff]
    %v868 = vld [vmem:[#allocation2 + $0x1710] sm:$0xff]
    %v869 = vld [vmem:[#allocation2 + $0x1718] sm:$0xff]
    %v870 = vld [vmem:[#allocation2 + $0x1720] sm:$0xff]
    %v871 = vld [vmem:[#allocation2 + $0x1728] sm:$0xff]
    %v872 = vld [vmem:[#allocation2 + $0x1730] sm:$0xff]
    %v873 = vld [vmem:[#allocation2 + $0x1738] sm:$0xff]
    %v874 = vld [vmem:[#allocation2 + $0x1740] sm:$0xff]
    %v875 = vld [vmem:[#allocation2 + $0x1748] sm:$0xff]
    %v876 = vld [vmem:[#allocation2 + $0x1750] sm:$0xff]
    %v877 = vld [vmem:[#allocation2 + $0x1758] sm:$0xff]
    %v878 = vld [vmem:[#allocation2 + $0x1760] sm:$0xff]
    %v879 = vld [vmem:[#allocation2 + $0x1768] sm:$0xff]
    %v880 = vld [vmem:[#allocation2 + $0x1770] sm:$0xff]
    %v881 = vld [vmem:[#allocation2 + $0x1778] sm:$0xff]
    %v882 = vld [vmem:[#allocation2 + $0x1780] sm:$0xff]
    %v883 = vld [vmem:[#allocation2 + $0x1788] sm:$0xff]
    %v884 = vld [vmem:[#allocation2 + $0x1790] sm:$0xff]
    %v885 = vld [vmem:[#allocation2 + $0x1798] sm:$0xff]
    %v886 = vld [vmem:[#allocation2 + $0x17a0] sm:$0xff]
    %v887 = vld [vmem:[#allocation2 + $0x17a8] sm:$0xff]
    %v888 = vld [vmem:[#allocation2 + $0x17b0] sm:$0xff]
    %v889 = vld [vmem:[#allocation2 + $0x17b8] sm:$0xff]
    %v890 = vld [vmem:[#allocation2 + $0x17c0] sm:$0xff]
    %v891 = vld [vmem:[#allocation2 + $0x17c8] sm:$0xff]
    %v892 = vld [vmem:[#allocation2 + $0x17d0] sm:$0xff]
    %v893 = vld [vmem:[#allocation2 + $0x17d8] sm:$0xff]
    %v894 = vld [vmem:[#allocation2 + $0x17e0] sm:$0xff]
    %v895 = vld [vmem:[#allocation2 + $0x17e8] sm:$0xff]
    %v896 = vld [vmem:[#allocation2 + $0x17f0] sm:$0xff]
    %v897 = vld [vmem:[#allocation2 + $0x17f8] sm:$0xff]
    %v898 = vld [vmem:[#allocation2 + $0x1800] sm:$0xff]
    %v899 = vld [vmem:[#allocation2 + $0x1808] sm:$0xff]
    %v900 = vld [vmem:[#allocation2 + $0x1810] sm:$0xff]
    %v901 = vld [vmem:[#allocation2 + $0x1818] sm:$0xff]
    %v902 = vld [vmem:[#allocation2 + $0x1820] sm:$0xff]
    %v903 = vld [vmem:[#allocation2 + $0x1828] sm:$0xff]
    %v904 = vld [vmem:[#allocation2 + $0x1830] sm:$0xff]
    %v905 = vld [vmem:[#allocation2 + $0x1838] sm:$0xff]
    %v906 = vld [vmem:[#allocation2 + $0x1840] sm:$0xff]
    %v907 = vld [vmem:[#allocation2 + $0x1848] sm:$0xff]
    %v908 = vld [vmem:[#allocation2 + $0x1850] sm:$0xff]
    %v909 = vld [vmem:[#allocation2 + $0x1858] sm:$0xff]
    %v910 = vld [vmem:[#allocation2 + $0x1860] sm:$0xff]
    %v911 = vld [vmem:[#allocation2 + $0x1868] sm:$0xff]
    %v912 = vld [vmem:[#allocation2 + $0x1870] sm:$0xff]
    %v913 = vld [vmem:[#allocation2 + $0x1878] sm:$0xff]
    %v914 = vld [vmem:[#allocation2 + $0x1880] sm:$0xff]
    %v915 = vld [vmem:[#allocation2 + $0x1888] sm:$0xff]
    %v916 = vld [vmem:[#allocation2 + $0x1890] sm:$0xff]
    %v917 = vld [vmem:[#allocation2 + $0x1898] sm:$0xff]
    %v918 = vld [vmem:[#allocation2 + $0x18a0] sm:$0xff]
    %v919 = vld [vmem:[#allocation2 + $0x18a8] sm:$0xff]
    %v920 = vld [vmem:[#allocation2 + $0x18b0] sm:$0xff]
    %v921 = vld [vmem:[#allocation2 + $0x18b8] sm:$0xff]
    %v922 = vld [vmem:[#allocation2 + $0x18c0] sm:$0xff]
    %v923 = vld [vmem:[#allocation2 + $0x18c8] sm:$0xff]
    %v924 = vld [vmem:[#allocation2 + $0x18d0] sm:$0xff]
    %v925 = vld [vmem:[#allocation2 + $0x18d8] sm:$0xff]
    %v926 = vld [vmem:[#allocation2 + $0x18e0] sm:$0xff]
    %v927 = vld [vmem:[#allocation2 + $0x18e8] sm:$0xff]
    %v928 = vld [vmem:[#allocation2 + $0x18f0] sm:$0xff]
    %v929 = vld [vmem:[#allocation2 + $0x18f8] sm:$0xff]
    %v930 = vld [vmem:[#allocation2 + $0x1900] sm:$0xff]
    %v931 = vld [vmem:[#allocation2 + $0x1908] sm:$0xff]
    %v932 = vld [vmem:[#allocation2 + $0x1910] sm:$0xff]
    %v933 = vld [vmem:[#allocation2 + $0x1918] sm:$0xff]
    %v934 = vld [vmem:[#allocation2 + $0x1920] sm:$0xff]
    %v935 = vld [vmem:[#allocation2 + $0x1928] sm:$0xff]
    %v936 = vld [vmem:[#allocation2 + $0x1930] sm:$0xff]
    %v937 = vld [vmem:[#allocation2 + $0x1938] sm:$0xff]
    %v938 = vld [vmem:[#allocation2 + $0x1940] sm:$0xff]
    %v939 = vld [vmem:[#allocation2 + $0x1948] sm:$0xff]
    %v940 = vld [vmem:[#allocation2 + $0x1950] sm:$0xff]
    %v941 = vld [vmem:[#allocation2 + $0x1958] sm:$0xff]
    %v942 = vld [vmem:[#allocation2 + $0x1960] sm:$0xff]
    %v943 = vld [vmem:[#allocation2 + $0x1968] sm:$0xff]
    %v944 = vld [vmem:[#allocation2 + $0x1970] sm:$0xff]
    %v945 = vld [vmem:[#allocation2 + $0x1978] sm:$0xff]
    %v946 = vld [vmem:[#allocation2 + $0x1980] sm:$0xff]
    %v947 = vld [vmem:[#allocation2 + $0x1988] sm:$0xff]
    %v948 = vld [vmem:[#allocation2 + $0x1990] sm:$0xff]
    %v949 = vld [vmem:[#allocation2 + $0x1998] sm:$0xff]
    %v950 = vld [vmem:[#allocation2 + $0x19a0] sm:$0xff]
    %v951 = vld [vmem:[#allocation2 + $0x19a8] sm:$0xff]
    %v952 = vld [vmem:[#allocation2 + $0x19b0] sm:$0xff]
    %v953 = vld [vmem:[#allocation2 + $0x19b8] sm:$0xff]
    %v954 = vld [vmem:[#allocation2 + $0x19c0] sm:$0xff]
    %v955 = vld [vmem:[#allocation2 + $0x19c8] sm:$0xff]
    %v956 = vld [vmem:[#allocation2 + $0x19d0] sm:$0xff]
    %v957 = vld [vmem:[#allocation2 + $0x19d8] sm:$0xff]
    %v958 = vld [vmem:[#allocation2 + $0x19e0] sm:$0xff]
    %v959 = vld [vmem:[#allocation2 + $0x19e8] sm:$0xff]
    %v960 = vld [vmem:[#allocation2 + $0x19f0] sm:$0xff]
    %v961 = vld [vmem:[#allocation2 + $0x19f8] sm:$0xff]
    %v962 = vld [vmem:[#allocation2 + $0x1a00] sm:$0xff]
    %v963 = vld [vmem:[#allocation2 + $0x1a08] sm:$0xff]
    %v964 = vld [vmem:[#allocation2 + $0x1a10] sm:$0xff]
    %v965 = vld [vmem:[#allocation2 + $0x1a18] sm:$0xff]
    %v966 = vld [vmem:[#allocation2 + $0x1a20] sm:$0xff]
    %v967 = vld [vmem:[#allocation2 + $0x1a28] sm:$0xff]
    %v968 = vld [vmem:[#allocation2 + $0x1a30] sm:$0xff]
    %v969 = vld [vmem:[#allocation2 + $0x1a38] sm:$0xff]
    %v970 = vld [vmem:[#allocation2 + $0x1a40] sm:$0xff]
    %v971 = vld [vmem:[#allocation2 + $0x1a48] sm:$0xff]
    %v972 = vld [vmem:[#allocation2 + $0x1a50] sm:$0xff]
    %v973 = vld [vmem:[#allocation2 + $0x1a58] sm:$0xff]
    %v974 = vld [vmem:[#allocation2 + $0x1a60] sm:$0xff]
    %v975 = vld [vmem:[#allocation2 + $0x1a68] sm:$0xff]
    %v976 = vld [vmem:[#allocation2 + $0x1a70] sm:$0xff]
    %v977 = vld [vmem:[#allocation2 + $0x1a78] sm:$0xff]
    %v978 = vld [vmem:[#allocation2 + $0x1a80] sm:$0xff]
    %v979 = vld [vmem:[#allocation2 + $0x1a88] sm:$0xff]
    %v980 = vld [vmem:[#allocation2 + $0x1a90] sm:$0xff]
    %v981 = vld [vmem:[#allocation2 + $0x1a98] sm:$0xff]
    %v982 = vld [vmem:[#allocation2 + $0x1aa0] sm:$0xff]
    %v983 = vld [vmem:[#allocation2 + $0x1aa8] sm:$0xff]
    %v984 = vld [vmem:[#allocation2 + $0x1ab0] sm:$0xff]
    %v985 = vld [vmem:[#allocation2 + $0x1ab8] sm:$0xff]
    %v986 = vld [vmem:[#allocation2 + $0x1ac0] sm:$0xff]
    %v987 = vld [vmem:[#allocation2 + $0x1ac8] sm:$0xff]
    %v988 = vld [vmem:[#allocation2 + $0x1ad0] sm:$0xff]
    %v989 = vld [vmem:[#allocation2 + $0x1ad8] sm:$0xff]
    %v990 = vld [vmem:[#allocation2 + $0x1ae0] sm:$0xff]
    %v991 = vld [vmem:[#allocation2 + $0x1ae8] sm:$0xff]
    %v992 = vld [vmem:[#allocation2 + $0x1af0] sm:$0xff]
    %v993 = vld [vmem:[#allocation2 + $0x1af8] sm:$0xff]
    %v994 = vld [vmem:[#allocation2 + $0x1b00] sm:$0xff]
    %v995 = vld [vmem:[#allocation2 + $0x1b08] sm:$0xff]
    %v996 = vld [vmem:[#allocation2 + $0x1b10] sm:$0xff]
    %v997 = vld [vmem:[#allocation2 + $0x1b18] sm:$0xff]
    %v998 = vld [vmem:[#allocation2 + $0x1b20] sm:$0xff]
    %v999 = vld [vmem:[#allocation2 + $0x1b28] sm:$0xff]
    %v1000 = vld [vmem:[#allocation2 + $0x1b30] sm:$0xff]
    %v1001 = vld [vmem:[#allocation2 + $0x1b38] sm:$0xff]
    %v1002 = vld [vmem:[#allocation2 + $0x1b40] sm:$0xff]
    %v1003 = vld [vmem:[#allocation2 + $0x1b48] sm:$0xff]
    %v1004 = vld [vmem:[#allocation2 + $0x1b50] sm:$0xff]
    %v1005 = vld [vmem:[#allocation2 + $0x1b58] sm:$0xff]
    %v1006 = vld [vmem:[#allocation2 + $0x1b60] sm:$0xff]
    %v1007 = vld [vmem:[#allocation2 + $0x1b68] sm:$0xff]
    %v1008 = vld [vmem:[#allocation2 + $0x1b70] sm:$0xff]
    %v1009 = vld [vmem:[#allocation2 + $0x1b78] sm:$0xff]
    %v1010 = vld [vmem:[#allocation2 + $0x1b80] sm:$0xff]
    %v1011 = vld [vmem:[#allocation2 + $0x1b88] sm:$0xff]
    %v1012 = vld [vmem:[#allocation2 + $0x1b90] sm:$0xff]
    %v1013 = vld [vmem:[#allocation2 + $0x1b98] sm:$0xff]
    %v1014 = vld [vmem:[#allocation2 + $0x1ba0] sm:$0xff]
    %v1015 = vld [vmem:[#allocation2 + $0x1ba8] sm:$0xff]
    %v1016 = vld [vmem:[#allocation2 + $0x1bb0] sm:$0xff]
    %v1017 = vld [vmem:[#allocation2 + $0x1bb8] sm:$0xff]
    %v1018 = vld [vmem:[#allocation2 + $0x1bc0] sm:$0xff]
    %v1019 = vld [vmem:[#allocation2 + $0x1bc8] sm:$0xff]
    %v1020 = vld [vmem:[#allocation2 + $0x1bd0] sm:$0xff]
    %v1021 = vld [vmem:[#allocation2 + $0x1bd8] sm:$0xff]
    %v1022 = vld [vmem:[#allocation2 + $0x1be0] sm:$0xff]
    %v1023 = vld [vmem:[#allocation2 + $0x1be8] sm:$0xff]
    %v1024 = vld [vmem:[#allocation2 + $0x1bf0] sm:$0xff]
    %v1025 = vld [vmem:[#allocation2 + $0x1bf8] sm:$0xff]
    %v1026 = vld [vmem:[#allocation2 + $0x1c00] sm:$0xff]
    %v1027 = vld [vmem:[#allocation2 + $0x1c08] sm:$0xff]
    %v1028 = vld [vmem:[#allocation2 + $0x1c10] sm:$0xff]
    %v1029 = vld [vmem:[#allocation2 + $0x1c18] sm:$0xff]
    %v1030 = vld [vmem:[#allocation2 + $0x1c20] sm:$0xff]
    %v1031 = vld [vmem:[#allocation2 + $0x1c28] sm:$0xff]
    %v1032 = vld [vmem:[#allocation2 + $0x1c30] sm:$0xff]
    %v1033 = vld [vmem:[#allocation2 + $0x1c38] sm:$0xff]
    %v1034 = vld [vmem:[#allocation2 + $0x1c40] sm:$0xff]
    %v1035 = vld [vmem:[#allocation2 + $0x1c48] sm:$0xff]
    %v1036 = vld [vmem:[#allocation2 + $0x1c50] sm:$0xff]
    %v1037 = vld [vmem:[#allocation2 + $0x1c58] sm:$0xff]
    %v1038 = vld [vmem:[#allocation2 + $0x1c60] sm:$0xff]
    %v1039 = vld [vmem:[#allocation2 + $0x1c68] sm:$0xff]
    %v1040 = vld [vmem:[#allocation2 + $0x1c70] sm:$0xff]
    %v1041 = vld [vmem:[#allocation2 + $0x1c78] sm:$0xff]
    %v1042 = vld [vmem:[#allocation2 + $0x1c80] sm:$0xff]
    %v1043 = vld [vmem:[#allocation2 + $0x1c88] sm:$0xff]
    %v1044 = vld [vmem:[#allocation2 + $0x1c90] sm:$0xff]
    %v1045 = vld [vmem:[#allocation2 + $0x1c98] sm:$0xff]
    %v1046 = vld [vmem:[#allocation2 + $0x1ca0] sm:$0xff]
    %v1047 = vld [vmem:[#allocation2 + $0x1ca8] sm:$0xff]
    %v1048 = vld [vmem:[#allocation2 + $0x1cb0] sm:$0xff]
    %v1049 = vld [vmem:[#allocation2 + $0x1cb8] sm:$0xff]
    %v1050 = vld [vmem:[#allocation2 + $0x1cc0] sm:$0xff]
    %v1051 = vld [vmem:[#allocation2 + $0x1cc8] sm:$0xff]
    %v1052 = vld [vmem:[#allocation2 + $0x1cd0] sm:$0xff]
    %v1053 = vld [vmem:[#allocation2 + $0x1cd8] sm:$0xff]
    %v1054 = vld [vmem:[#allocation2 + $0x1ce0] sm:$0xff]
    %v1055 = vld [vmem:[#allocation2 + $0x1ce8] sm:$0xff]
    %v1056 = vld [vmem:[#allocation2 + $0x1cf0] sm:$0xff]
    %v1057 = vld [vmem:[#allocation2 + $0x1cf8] sm:$0xff]
    %v1058 = vld [vmem:[#allocation2 + $0x1d00] sm:$0xff]
    %v1059 = vld [vmem:[#allocation2 + $0x1d08] sm:$0xff]
    %v1060 = vld [vmem:[#allocation2 + $0x1d10] sm:$0xff]
    %v1061 = vld [vmem:[#allocation2 + $0x1d18] sm:$0xff]
    %v1062 = vld [vmem:[#allocation2 + $0x1d20] sm:$0xff]
    %v1063 = vld [vmem:[#allocation2 + $0x1d28] sm:$0xff]
    %v1064 = vld [vmem:[#allocation2 + $0x1d30] sm:$0xff]
    %v1065 = vld [vmem:[#allocation2 + $0x1d38] sm:$0xff]
    %v1066 = vld [vmem:[#allocation2 + $0x1d40] sm:$0xff]
    %v1067 = vld [vmem:[#allocation2 + $0x1d48] sm:$0xff]
    %v1068 = vld [vmem:[#allocation2 + $0x1d50] sm:$0xff]
    %v1069 = vld [vmem:[#allocation2 + $0x1d58] sm:$0xff]
    %v1070 = vld [vmem:[#allocation2 + $0x1d60] sm:$0xff]
    %v1071 = vld [vmem:[#allocation2 + $0x1d68] sm:$0xff]
    %v1072 = vld [vmem:[#allocation2 + $0x1d70] sm:$0xff]
    %v1073 = vld [vmem:[#allocation2 + $0x1d78] sm:$0xff]
    %v1074 = vld [vmem:[#allocation2 + $0x1d80] sm:$0xff]
    %v1075 = vld [vmem:[#allocation2 + $0x1d88] sm:$0xff]
    %v1076 = vld [vmem:[#allocation2 + $0x1d90] sm:$0xff]
    %v1077 = vld [vmem:[#allocation2 + $0x1d98] sm:$0xff]
    %v1078 = vld [vmem:[#allocation2 + $0x1da0] sm:$0xff]
    %v1079 = vld [vmem:[#allocation2 + $0x1da8] sm:$0xff]
    %v1080 = vld [vmem:[#allocation2 + $0x1db0] sm:$0xff]
    %v1081 = vld [vmem:[#allocation2 + $0x1db8] sm:$0xff]
    %v1082 = vld [vmem:[#allocation2 + $0x1dc0] sm:$0xff]
    %v1083 = vld [vmem:[#allocation2 + $0x1dc8] sm:$0xff]
    %v1084 = vld [vmem:[#allocation2 + $0x1dd0] sm:$0xff]
    %v1085 = vld [vmem:[#allocation2 + $0x1dd8] sm:$0xff]
    %v1086 = vld [vmem:[#allocation2 + $0x1de0] sm:$0xff]
    %v1087 = vld [vmem:[#allocation2 + $0x1de8] sm:$0xff]
    %v1088 = vld [vmem:[#allocation2 + $0x1df0] sm:$0xff]
    %v1089 = vld [vmem:[#allocation2 + $0x1df8] sm:$0xff]
    %v1090 = vld [vmem:[#allocation2 + $0x1e00] sm:$0xff]
    %v1091 = vld [vmem:[#allocation2 + $0x1e08] sm:$0xff]
    %v1092 = vld [vmem:[#allocation2 + $0x1e10] sm:$0xff]
    %v1093 = vld [vmem:[#allocation2 + $0x1e18] sm:$0xff]
    %v1094 = vld [vmem:[#allocation2 + $0x1e20] sm:$0xff]
    %v1095 = vld [vmem:[#allocation2 + $0x1e28] sm:$0xff]
    %v1096 = vld [vmem:[#allocation2 + $0x1e30] sm:$0xff]
    %v1097 = vld [vmem:[#allocation2 + $0x1e38] sm:$0xff]
    %v1098 = vld [vmem:[#allocation2 + $0x1e40] sm:$0xff]
    %v1099 = vld [vmem:[#allocation2 + $0x1e48] sm:$0xff]
    %v1100 = vld [vmem:[#allocation2 + $0x1e50] sm:$0xff]
    %v1101 = vld [vmem:[#allocation2 + $0x1e58] sm:$0xff]
    %v1102 = vld [vmem:[#allocation2 + $0x1e60] sm:$0xff]
    %v1103 = vld [vmem:[#allocation2 + $0x1e68] sm:$0xff]
    %v1104 = vld [vmem:[#allocation2 + $0x1e70] sm:$0xff]
    %v1105 = vld [vmem:[#allocation2 + $0x1e78] sm:$0xff]
    %v1106 = vld [vmem:[#allocation2 + $0x1e80] sm:$0xff]
    %v1107 = vld [vmem:[#allocation2 + $0x1e88] sm:$0xff]
    %v1108 = vld [vmem:[#allocation2 + $0x1e90] sm:$0xff]
    %v1109 = vld [vmem:[#allocation2 + $0x1e98] sm:$0xff]
    %v1110 = vld [vmem:[#allocation2 + $0x1ea0] sm:$0xff]
    %v1111 = vld [vmem:[#allocation2 + $0x1ea8] sm:$0xff]
    %v1112 = vld [vmem:[#allocation2 + $0x1eb0] sm:$0xff]
    %v1113 = vld [vmem:[#allocation2 + $0x1eb8] sm:$0xff]
    %v1114 = vld [vmem:[#allocation2 + $0x1ec0] sm:$0xff]
    %v1115 = vld [vmem:[#allocation2 + $0x1ec8] sm:$0xff]
    %v1116 = vld [vmem:[#allocation2 + $0x1ed0] sm:$0xff]
    %v1117 = vld [vmem:[#allocation2 + $0x1ed8] sm:$0xff]
    %v1118 = vld [vmem:[#allocation2 + $0x1ee0] sm:$0xff]
    %v1119 = vld [vmem:[#allocation2 + $0x1ee8] sm:$0xff]
    %v1120 = vld [vmem:[#allocation2 + $0x1ef0] sm:$0xff]
    %v1121 = vld [vmem:[#allocation2 + $0x1ef8] sm:$0xff]
    %v1122 = vld [vmem:[#allocation2 + $0x1f00] sm:$0xff]
    %v1123 = vld [vmem:[#allocation2 + $0x1f08] sm:$0xff]
    %v1124 = vld [vmem:[#allocation2 + $0x1f10] sm:$0xff]
    %v1125 = vld [vmem:[#allocation2 + $0x1f18] sm:$0xff]
    %v1126 = vld [vmem:[#allocation2 + $0x1f20] sm:$0xff]
    %v1127 = vld [vmem:[#allocation2 + $0x1f28] sm:$0xff]
    %v1128 = vld [vmem:[#allocation2 + $0x1f30] sm:$0xff]
    %v1129 = vld [vmem:[#allocation2 + $0x1f38] sm:$0xff]
    %v1130 = vld [vmem:[#allocation2 + $0x1f40] sm:$0xff]
    %v1131 = vld [vmem:[#allocation2 + $0x1f48] sm:$0xff]
    %v1132 = vld [vmem:[#allocation2 + $0x1f50] sm:$0xff]
    %v1133 = vld [vmem:[#allocation2 + $0x1f58] sm:$0xff]
    %v1134 = vld [vmem:[#allocation2 + $0x1f60] sm:$0xff]
    %v1135 = vld [vmem:[#allocation2 + $0x1f68] sm:$0xff]
    %v1136 = vld [vmem:[#allocation2 + $0x1f70] sm:$0xff]
    %v1137 = vld [vmem:[#allocation2 + $0x1f78] sm:$0xff]
    %v1138 = vld [vmem:[#allocation2 + $0x1f80] sm:$0xff]
    %v1139 = vld [vmem:[#allocation2 + $0x1f88] sm:$0xff]
    %v1140 = vld [vmem:[#allocation2 + $0x1f90] sm:$0xff]
    %v1141 = vld [vmem:[#allocation2 + $0x1f98] sm:$0xff]
    %v1142 = vld [vmem:[#allocation2 + $0x1fa0] sm:$0xff]
    %v1143 = vld [vmem:[#allocation2 + $0x1fa8] sm:$0xff]
    %v1144 = vld [vmem:[#allocation2 + $0x1fb0] sm:$0xff]
    %v1145 = vld [vmem:[#allocation2 + $0x1fb8] sm:$0xff]
    %v1146 = vld [vmem:[#allocation2 + $0x1fc0] sm:$0xff]
    %v1147 = vld [vmem:[#allocation2 + $0x1fc8] sm:$0xff]
    %v1148 = vld [vmem:[#allocation2 + $0x1fd0] sm:$0xff]
    %v1149 = vld [vmem:[#allocation2 + $0x1fd8] sm:$0xff]
    %v1150 = vld [vmem:[#allocation2 + $0x1fe0] sm:$0xff]
    %v1151 = vld [vmem:[#allocation2 + $0x1fe8] sm:$0xff]
    %v1152 = vld [vmem:[#allocation2 + $0x1ff0] sm:$0xff]
    %v1153 = vld [vmem:[#allocation2 + $0x1ff8] sm:$0xff]
    %v1154 = vld [vmem:[#allocation4] sm:$0xff]
    %v1156 = vperm.slane %v1154, 0
    %v1157 = vperm.slane %v1154, 1
    %v1158 = vperm.slane %v1154, 2
    %v1159 = vperm.slane %v1154, 3
    %v1160 = vperm.slane %v1154, 4
    %v1161 = vperm.slane %v1154, 5
    %v1162 = vperm.slane %v1154, 6
    %v1163 = vperm.slane %v1154, 7
    %v1188 = vunpack.c.l.b16 %v114
    %v1189 = vunpack.c.h.b16 %v114
    %v1190 = vunpack.c.l.b16 %v115
    %v1191 = vunpack.c.h.b16 %v115
    %v1192 = vunpack.c.l.b16 %v116
    %v1193 = vunpack.c.h.b16 %v116
    %v1194 = vunpack.c.l.b16 %v117
    %v1195 = vunpack.c.h.b16 %v117
    %v1196 = vunpack.c.l.b16 %v118
    %v1197 = vunpack.c.h.b16 %v118
    %v1198 = vunpack.c.l.b16 %v119
    %v1199 = vunpack.c.h.b16 %v119
    %v1200 = vunpack.c.l.b16 %v120
    %v1201 = vunpack.c.h.b16 %v120
    %v1202 = vunpack.c.l.b16 %v121
    %v1203 = vunpack.c.h.b16 %v121
    %v1204 = vunpack.c.l.b16 %v122
    %v1205 = vunpack.c.h.b16 %v122
    %v1206 = vunpack.c.l.b16 %v123
    %v1207 = vunpack.c.h.b16 %v123
    %v1208 = vunpack.c.l.b16 %v124
    %v1209 = vunpack.c.h.b16 %v124
    %v1210 = vunpack.c.l.b16 %v125
    %v1211 = vunpack.c.h.b16 %v125
    %v1212 = vunpack.c.l.b16 %v126
    %v1213 = vunpack.c.h.b16 %v126
    %v1214 = vunpack.c.l.b16 %v127
    %v1215 = vunpack.c.h.b16 %v127
    %v1216 = vunpack.c.l.b16 %v128
    %v1217 = vunpack.c.h.b16 %v128
    %v1218 = vunpack.c.l.b16 %v129
    %v1219 = vunpack.c.h.b16 %v129
    %v1220 = vpack.c.b16 %v1204, %v1188
    %v1221 = vpack.c.b16 %v1205, %v1189
    %v1222 = vpack.c.b16 %v1206, %v1190
    %v1223 = vpack.c.b16 %v1207, %v1191
    %v1224 = vpack.c.b16 %v1208, %v1192
    %v1225 = vpack.c.b16 %v1209, %v1193
    %v1226 = vpack.c.b16 %v1210, %v1194
    %v1227 = vpack.c.b16 %v1211, %v1195
    %v1228 = vpack.c.b16 %v1212, %v1196
    %v1229 = vpack.c.b16 %v1213, %v1197
    %v1230 = vpack.c.b16 %v1214, %v1198
    %v1231 = vpack.c.b16 %v1215, %v1199
    %v1232 = vpack.c.b16 %v1216, %v1200
    %v1233 = vpack.c.b16 %v1217, %v1201
    %v1234 = vpack.c.b16 %v1218, %v1202
    %v1235 = vpack.c.b16 %v1219, %v1203
    %v2276 = vunpack.c.l.b16 %v130
    %v2277 = vunpack.c.h.b16 %v130
    %v2278 = vunpack.c.l.b16 %v131
    %v2279 = vunpack.c.h.b16 %v131
    %v2280 = vunpack.c.l.b16 %v132
    %v2281 = vunpack.c.h.b16 %v132
    %v2282 = vunpack.c.l.b16 %v133
    %v2283 = vunpack.c.h.b16 %v133
    %v2284 = vunpack.c.l.b16 %v134
    %v2285 = vunpack.c.h.b16 %v134
    %v2286 = vunpack.c.l.b16 %v135
    %v2287 = vunpack.c.h.b16 %v135
    %v2288 = vunpack.c.l.b16 %v136
    %v2289 = vunpack.c.h.b16 %v136
    %v2290 = vunpack.c.l.b16 %v137
    %v2291 = vunpack.c.h.b16 %v137
    %v2292 = vunpack.c.l.b16 %v138
    %v2293 = vunpack.c.h.b16 %v138
    %v2294 = vunpack.c.l.b16 %v139
    %v2295 = vunpack.c.h.b16 %v139
    %v2296 = vunpack.c.l.b16 %v140
    %v2297 = vunpack.c.h.b16 %v140
    %v2298 = vunpack.c.l.b16 %v141
    %v2299 = vunpack.c.h.b16 %v141
    %v2300 = vunpack.c.l.b16 %v142
    %v2301 = vunpack.c.h.b16 %v142
    %v2302 = vunpack.c.l.b16 %v143
    %v2303 = vunpack.c.h.b16 %v143
    %v2304 = vunpack.c.l.b16 %v144
    %v2305 = vunpack.c.h.b16 %v144
    %v2306 = vunpack.c.l.b16 %v145
    %v2307 = vunpack.c.h.b16 %v145
    %v2308 = vunpack.c.l.b16 %v146
    %v2309 = vunpack.c.h.b16 %v146
    %v2310 = vunpack.c.l.b16 %v147
    %v2311 = vunpack.c.h.b16 %v147
    %v2312 = vunpack.c.l.b16 %v148
    %v2313 = vunpack.c.h.b16 %v148
    %v2314 = vunpack.c.l.b16 %v149
    %v2315 = vunpack.c.h.b16 %v149
    %v2316 = vunpack.c.l.b16 %v150
    %v2317 = vunpack.c.h.b16 %v150
    %v2318 = vunpack.c.l.b16 %v151
    %v2319 = vunpack.c.h.b16 %v151
    %v2320 = vunpack.c.l.b16 %v152
    %v2321 = vunpack.c.h.b16 %v152
    %v2322 = vunpack.c.l.b16 %v153
    %v2323 = vunpack.c.h.b16 %v153
    %v2324 = vunpack.c.l.b16 %v154
    %v2325 = vunpack.c.h.b16 %v154
    %v2326 = vunpack.c.l.b16 %v155
    %v2327 = vunpack.c.h.b16 %v155
    %v2328 = vunpack.c.l.b16 %v156
    %v2329 = vunpack.c.h.b16 %v156
    %v2330 = vunpack.c.l.b16 %v157
    %v2331 = vunpack.c.h.b16 %v157
    %v2332 = vunpack.c.l.b16 %v158
    %v2333 = vunpack.c.h.b16 %v158
    %v2334 = vunpack.c.l.b16 %v159
    %v2335 = vunpack.c.h.b16 %v159
    %v2336 = vunpack.c.l.b16 %v160
    %v2337 = vunpack.c.h.b16 %v160
    %v2338 = vunpack.c.l.b16 %v161
    %v2339 = vunpack.c.h.b16 %v161
    %v2340 = vunpack.c.l.b16 %v162
    %v2341 = vunpack.c.h.b16 %v162
    %v2342 = vunpack.c.l.b16 %v163
    %v2343 = vunpack.c.h.b16 %v163
    %v2344 = vunpack.c.l.b16 %v164
    %v2345 = vunpack.c.h.b16 %v164
    %v2346 = vunpack.c.l.b16 %v165
    %v2347 = vunpack.c.h.b16 %v165
    %v2348 = vunpack.c.l.b16 %v166
    %v2349 = vunpack.c.h.b16 %v166
    %v2350 = vunpack.c.l.b16 %v167
    %v2351 = vunpack.c.h.b16 %v167
    %v2352 = vunpack.c.l.b16 %v168
    %v2353 = vunpack.c.h.b16 %v168
    %v2354 = vunpack.c.l.b16 %v169
    %v2355 = vunpack.c.h.b16 %v169
    %v2356 = vunpack.c.l.b16 %v170
    %v2357 = vunpack.c.h.b16 %v170
    %v2358 = vunpack.c.l.b16 %v171
    %v2359 = vunpack.c.h.b16 %v171
    %v2360 = vunpack.c.l.b16 %v172
    %v2361 = vunpack.c.h.b16 %v172
    %v2362 = vunpack.c.l.b16 %v173
    %v2363 = vunpack.c.h.b16 %v173
    %v2364 = vunpack.c.l.b16 %v174
    %v2365 = vunpack.c.h.b16 %v174
    %v2366 = vunpack.c.l.b16 %v175
    %v2367 = vunpack.c.h.b16 %v175
    %v2368 = vunpack.c.l.b16 %v176
    %v2369 = vunpack.c.h.b16 %v176
    %v2370 = vunpack.c.l.b16 %v177
    %v2371 = vunpack.c.h.b16 %v177
    %v2372 = vunpack.c.l.b16 %v178
    %v2373 = vunpack.c.h.b16 %v178
    %v2374 = vunpack.c.l.b16 %v179
    %v2375 = vunpack.c.h.b16 %v179
    %v2376 = vunpack.c.l.b16 %v180
    %v2377 = vunpack.c.h.b16 %v180
    %v2378 = vunpack.c.l.b16 %v181
    %v2379 = vunpack.c.h.b16 %v181
    %v2380 = vunpack.c.l.b16 %v182
    %v2381 = vunpack.c.h.b16 %v182
    %v2382 = vunpack.c.l.b16 %v183
    %v2383 = vunpack.c.h.b16 %v183
    %v2384 = vunpack.c.l.b16 %v184
    %v2385 = vunpack.c.h.b16 %v184
    %v2386 = vunpack.c.l.b16 %v185
    %v2387 = vunpack.c.h.b16 %v185
    %v2388 = vunpack.c.l.b16 %v186
    %v2389 = vunpack.c.h.b16 %v186
    %v2390 = vunpack.c.l.b16 %v187
    %v2391 = vunpack.c.h.b16 %v187
    %v2392 = vunpack.c.l.b16 %v188
    %v2393 = vunpack.c.h.b16 %v188
    %v2394 = vunpack.c.l.b16 %v189
    %v2395 = vunpack.c.h.b16 %v189
    %v2396 = vunpack.c.l.b16 %v190
    %v2397 = vunpack.c.h.b16 %v190
    %v2398 = vunpack.c.l.b16 %v191
    %v2399 = vunpack.c.h.b16 %v191
    %v2400 = vunpack.c.l.b16 %v192
    %v2401 = vunpack.c.h.b16 %v192
    %v2402 = vunpack.c.l.b16 %v193
    %v2403 = vunpack.c.h.b16 %v193
    %v2404 = vunpack.c.l.b16 %v194
    %v2405 = vunpack.c.h.b16 %v194
    %v2406 = vunpack.c.l.b16 %v195
    %v2407 = vunpack.c.h.b16 %v195
    %v2408 = vunpack.c.l.b16 %v196
    %v2409 = vunpack.c.h.b16 %v196
    %v2410 = vunpack.c.l.b16 %v197
    %v2411 = vunpack.c.h.b16 %v197
    %v2412 = vunpack.c.l.b16 %v198
    %v2413 = vunpack.c.h.b16 %v198
    %v2414 = vunpack.c.l.b16 %v199
    %v2415 = vunpack.c.h.b16 %v199
    %v2416 = vunpack.c.l.b16 %v200
    %v2417 = vunpack.c.h.b16 %v200
    %v2418 = vunpack.c.l.b16 %v201
    %v2419 = vunpack.c.h.b16 %v201
    %v2420 = vunpack.c.l.b16 %v202
    %v2421 = vunpack.c.h.b16 %v202
    %v2422 = vunpack.c.l.b16 %v203
    %v2423 = vunpack.c.h.b16 %v203
    %v2424 = vunpack.c.l.b16 %v204
    %v2425 = vunpack.c.h.b16 %v204
    %v2426 = vunpack.c.l.b16 %v205
    %v2427 = vunpack.c.h.b16 %v205
    %v2428 = vunpack.c.l.b16 %v206
    %v2429 = vunpack.c.h.b16 %v206
    %v2430 = vunpack.c.l.b16 %v207
    %v2431 = vunpack.c.h.b16 %v207
    %v2432 = vunpack.c.l.b16 %v208
    %v2433 = vunpack.c.h.b16 %v208
    %v2434 = vunpack.c.l.b16 %v209
    %v2435 = vunpack.c.h.b16 %v209
    %v2436 = vunpack.c.l.b16 %v210
    %v2437 = vunpack.c.h.b16 %v210
    %v2438 = vunpack.c.l.b16 %v211
    %v2439 = vunpack.c.h.b16 %v211
    %v2440 = vunpack.c.l.b16 %v212
    %v2441 = vunpack.c.h.b16 %v212
    %v2442 = vunpack.c.l.b16 %v213
    %v2443 = vunpack.c.h.b16 %v213
    %v2444 = vunpack.c.l.b16 %v214
    %v2445 = vunpack.c.h.b16 %v214
    %v2446 = vunpack.c.l.b16 %v215
    %v2447 = vunpack.c.h.b16 %v215
    %v2448 = vunpack.c.l.b16 %v216
    %v2449 = vunpack.c.h.b16 %v216
    %v2450 = vunpack.c.l.b16 %v217
    %v2451 = vunpack.c.h.b16 %v217
    %v2452 = vunpack.c.l.b16 %v218
    %v2453 = vunpack.c.h.b16 %v218
    %v2454 = vunpack.c.l.b16 %v219
    %v2455 = vunpack.c.h.b16 %v219
    %v2456 = vunpack.c.l.b16 %v220
    %v2457 = vunpack.c.h.b16 %v220
    %v2458 = vunpack.c.l.b16 %v221
    %v2459 = vunpack.c.h.b16 %v221
    %v2460 = vunpack.c.l.b16 %v222
    %v2461 = vunpack.c.h.b16 %v222
    %v2462 = vunpack.c.l.b16 %v223
    %v2463 = vunpack.c.h.b16 %v223
    %v2464 = vunpack.c.l.b16 %v224
    %v2465 = vunpack.c.h.b16 %v224
    %v2466 = vunpack.c.l.b16 %v225
    %v2467 = vunpack.c.h.b16 %v225
    %v2468 = vunpack.c.l.b16 %v226
    %v2469 = vunpack.c.h.b16 %v226
    %v2470 = vunpack.c.l.b16 %v227
    %v2471 = vunpack.c.h.b16 %v227
    %v2472 = vunpack.c.l.b16 %v228
    %v2473 = vunpack.c.h.b16 %v228
    %v2474 = vunpack.c.l.b16 %v229
    %v2475 = vunpack.c.h.b16 %v229
    %v2476 = vunpack.c.l.b16 %v230
    %v2477 = vunpack.c.h.b16 %v230
    %v2478 = vunpack.c.l.b16 %v231
    %v2479 = vunpack.c.h.b16 %v231
    %v2480 = vunpack.c.l.b16 %v232
    %v2481 = vunpack.c.h.b16 %v232
    %v2482 = vunpack.c.l.b16 %v233
    %v2483 = vunpack.c.h.b16 %v233
    %v2484 = vunpack.c.l.b16 %v234
    %v2485 = vunpack.c.h.b16 %v234
    %v2486 = vunpack.c.l.b16 %v235
    %v2487 = vunpack.c.h.b16 %v235
    %v2488 = vunpack.c.l.b16 %v236
    %v2489 = vunpack.c.h.b16 %v236
    %v2490 = vunpack.c.l.b16 %v237
    %v2491 = vunpack.c.h.b16 %v237
    %v2492 = vunpack.c.l.b16 %v238
    %v2493 = vunpack.c.h.b16 %v238
    %v2494 = vunpack.c.l.b16 %v239
    %v2495 = vunpack.c.h.b16 %v239
    %v2496 = vunpack.c.l.b16 %v240
    %v2497 = vunpack.c.h.b16 %v240
    %v2498 = vunpack.c.l.b16 %v241
    %v2499 = vunpack.c.h.b16 %v241
    %v2500 = vunpack.c.l.b16 %v242
    %v2501 = vunpack.c.h.b16 %v242
    %v2502 = vunpack.c.l.b16 %v243
    %v2503 = vunpack.c.h.b16 %v243
    %v2504 = vunpack.c.l.b16 %v244
    %v2505 = vunpack.c.h.b16 %v244
    %v2506 = vunpack.c.l.b16 %v245
    %v2507 = vunpack.c.h.b16 %v245
    %v2508 = vunpack.c.l.b16 %v246
    %v2509 = vunpack.c.h.b16 %v246
    %v2510 = vunpack.c.l.b16 %v247
    %v2511 = vunpack.c.h.b16 %v247
    %v2512 = vunpack.c.l.b16 %v248
    %v2513 = vunpack.c.h.b16 %v248
    %v2514 = vunpack.c.l.b16 %v249
    %v2515 = vunpack.c.h.b16 %v249
    %v2516 = vunpack.c.l.b16 %v250
    %v2517 = vunpack.c.h.b16 %v250
    %v2518 = vunpack.c.l.b16 %v251
    %v2519 = vunpack.c.h.b16 %v251
    %v2520 = vunpack.c.l.b16 %v252
    %v2521 = vunpack.c.h.b16 %v252
    %v2522 = vunpack.c.l.b16 %v253
    %v2523 = vunpack.c.h.b16 %v253
    %v2524 = vunpack.c.l.b16 %v254
    %v2525 = vunpack.c.h.b16 %v254
    %v2526 = vunpack.c.l.b16 %v255
    %v2527 = vunpack.c.h.b16 %v255
    %v2528 = vunpack.c.l.b16 %v256
    %v2529 = vunpack.c.h.b16 %v256
    %v2530 = vunpack.c.l.b16 %v257
    %v2531 = vunpack.c.h.b16 %v257
    %v2532 = vunpack.c.l.b16 %v258
    %v2533 = vunpack.c.h.b16 %v258
    %v2534 = vunpack.c.l.b16 %v259
    %v2535 = vunpack.c.h.b16 %v259
    %v2536 = vunpack.c.l.b16 %v260
    %v2537 = vunpack.c.h.b16 %v260
    %v2538 = vunpack.c.l.b16 %v261
    %v2539 = vunpack.c.h.b16 %v261
    %v2540 = vunpack.c.l.b16 %v262
    %v2541 = vunpack.c.h.b16 %v262
    %v2542 = vunpack.c.l.b16 %v263
    %v2543 = vunpack.c.h.b16 %v263
    %v2544 = vunpack.c.l.b16 %v264
    %v2545 = vunpack.c.h.b16 %v264
    %v2546 = vunpack.c.l.b16 %v265
    %v2547 = vunpack.c.h.b16 %v265
    %v2548 = vunpack.c.l.b16 %v266
    %v2549 = vunpack.c.h.b16 %v266
    %v2550 = vunpack.c.l.b16 %v267
    %v2551 = vunpack.c.h.b16 %v267
    %v2552 = vunpack.c.l.b16 %v268
    %v2553 = vunpack.c.h.b16 %v268
    %v2554 = vunpack.c.l.b16 %v269
    %v2555 = vunpack.c.h.b16 %v269
    %v2556 = vunpack.c.l.b16 %v270
    %v2557 = vunpack.c.h.b16 %v270
    %v2558 = vunpack.c.l.b16 %v271
    %v2559 = vunpack.c.h.b16 %v271
    %v2560 = vunpack.c.l.b16 %v272
    %v2561 = vunpack.c.h.b16 %v272
    %v2562 = vunpack.c.l.b16 %v273
    %v2563 = vunpack.c.h.b16 %v273
    %v2564 = vunpack.c.l.b16 %v274
    %v2565 = vunpack.c.h.b16 %v274
    %v2566 = vunpack.c.l.b16 %v275
    %v2567 = vunpack.c.h.b16 %v275
    %v2568 = vunpack.c.l.b16 %v276
    %v2569 = vunpack.c.h.b16 %v276
    %v2570 = vunpack.c.l.b16 %v277
    %v2571 = vunpack.c.h.b16 %v277
    %v2572 = vunpack.c.l.b16 %v278
    %v2573 = vunpack.c.h.b16 %v278
    %v2574 = vunpack.c.l.b16 %v279
    %v2575 = vunpack.c.h.b16 %v279
    %v2576 = vunpack.c.l.b16 %v280
    %v2577 = vunpack.c.h.b16 %v280
    %v2578 = vunpack.c.l.b16 %v281
    %v2579 = vunpack.c.h.b16 %v281
    %v2580 = vunpack.c.l.b16 %v282
    %v2581 = vunpack.c.h.b16 %v282
    %v2582 = vunpack.c.l.b16 %v283
    %v2583 = vunpack.c.h.b16 %v283
    %v2584 = vunpack.c.l.b16 %v284
    %v2585 = vunpack.c.h.b16 %v284
    %v2586 = vunpack.c.l.b16 %v285
    %v2587 = vunpack.c.h.b16 %v285
    %v2588 = vunpack.c.l.b16 %v286
    %v2589 = vunpack.c.h.b16 %v286
    %v2590 = vunpack.c.l.b16 %v287
    %v2591 = vunpack.c.h.b16 %v287
    %v2592 = vunpack.c.l.b16 %v288
    %v2593 = vunpack.c.h.b16 %v288
    %v2594 = vunpack.c.l.b16 %v289
    %v2595 = vunpack.c.h.b16 %v289
    %v2596 = vunpack.c.l.b16 %v290
    %v2597 = vunpack.c.h.b16 %v290
    %v2598 = vunpack.c.l.b16 %v291
    %v2599 = vunpack.c.h.b16 %v291
    %v2600 = vunpack.c.l.b16 %v292
    %v2601 = vunpack.c.h.b16 %v292
    %v2602 = vunpack.c.l.b16 %v293
    %v2603 = vunpack.c.h.b16 %v293
    %v2604 = vunpack.c.l.b16 %v294
    %v2605 = vunpack.c.h.b16 %v294
    %v2606 = vunpack.c.l.b16 %v295
    %v2607 = vunpack.c.h.b16 %v295
    %v2608 = vunpack.c.l.b16 %v296
    %v2609 = vunpack.c.h.b16 %v296
    %v2610 = vunpack.c.l.b16 %v297
    %v2611 = vunpack.c.h.b16 %v297
    %v2612 = vunpack.c.l.b16 %v298
    %v2613 = vunpack.c.h.b16 %v298
    %v2614 = vunpack.c.l.b16 %v299
    %v2615 = vunpack.c.h.b16 %v299
    %v2616 = vunpack.c.l.b16 %v300
    %v2617 = vunpack.c.h.b16 %v300
    %v2618 = vunpack.c.l.b16 %v301
    %v2619 = vunpack.c.h.b16 %v301
    %v2620 = vunpack.c.l.b16 %v302
    %v2621 = vunpack.c.h.b16 %v302
    %v2622 = vunpack.c.l.b16 %v303
    %v2623 = vunpack.c.h.b16 %v303
    %v2624 = vunpack.c.l.b16 %v304
    %v2625 = vunpack.c.h.b16 %v304
    %v2626 = vunpack.c.l.b16 %v305
    %v2627 = vunpack.c.h.b16 %v305
    %v2628 = vunpack.c.l.b16 %v306
    %v2629 = vunpack.c.h.b16 %v306
    %v2630 = vunpack.c.l.b16 %v307
    %v2631 = vunpack.c.h.b16 %v307
    %v2632 = vunpack.c.l.b16 %v308
    %v2633 = vunpack.c.h.b16 %v308
    %v2634 = vunpack.c.l.b16 %v309
    %v2635 = vunpack.c.h.b16 %v309
    %v2636 = vunpack.c.l.b16 %v310
    %v2637 = vunpack.c.h.b16 %v310
    %v2638 = vunpack.c.l.b16 %v311
    %v2639 = vunpack.c.h.b16 %v311
    %v2640 = vunpack.c.l.b16 %v312
    %v2641 = vunpack.c.h.b16 %v312
    %v2642 = vunpack.c.l.b16 %v313
    %v2643 = vunpack.c.h.b16 %v313
    %v2644 = vunpack.c.l.b16 %v314
    %v2645 = vunpack.c.h.b16 %v314
    %v2646 = vunpack.c.l.b16 %v315
    %v2647 = vunpack.c.h.b16 %v315
    %v2648 = vunpack.c.l.b16 %v316
    %v2649 = vunpack.c.h.b16 %v316
    %v2650 = vunpack.c.l.b16 %v317
    %v2651 = vunpack.c.h.b16 %v317
    %v2652 = vunpack.c.l.b16 %v318
    %v2653 = vunpack.c.h.b16 %v318
    %v2654 = vunpack.c.l.b16 %v319
    %v2655 = vunpack.c.h.b16 %v319
    %v2656 = vunpack.c.l.b16 %v320
    %v2657 = vunpack.c.h.b16 %v320
    %v2658 = vunpack.c.l.b16 %v321
    %v2659 = vunpack.c.h.b16 %v321
    %v2660 = vunpack.c.l.b16 %v322
    %v2661 = vunpack.c.h.b16 %v322
    %v2662 = vunpack.c.l.b16 %v323
    %v2663 = vunpack.c.h.b16 %v323
    %v2664 = vunpack.c.l.b16 %v324
    %v2665 = vunpack.c.h.b16 %v324
    %v2666 = vunpack.c.l.b16 %v325
    %v2667 = vunpack.c.h.b16 %v325
    %v2668 = vunpack.c.l.b16 %v326
    %v2669 = vunpack.c.h.b16 %v326
    %v2670 = vunpack.c.l.b16 %v327
    %v2671 = vunpack.c.h.b16 %v327
    %v2672 = vunpack.c.l.b16 %v328
    %v2673 = vunpack.c.h.b16 %v328
    %v2674 = vunpack.c.l.b16 %v329
    %v2675 = vunpack.c.h.b16 %v329
    %v2676 = vunpack.c.l.b16 %v330
    %v2677 = vunpack.c.h.b16 %v330
    %v2678 = vunpack.c.l.b16 %v331
    %v2679 = vunpack.c.h.b16 %v331
    %v2680 = vunpack.c.l.b16 %v332
    %v2681 = vunpack.c.h.b16 %v332
    %v2682 = vunpack.c.l.b16 %v333
    %v2683 = vunpack.c.h.b16 %v333
    %v2684 = vunpack.c.l.b16 %v334
    %v2685 = vunpack.c.h.b16 %v334
    %v2686 = vunpack.c.l.b16 %v335
    %v2687 = vunpack.c.h.b16 %v335
    %v2688 = vunpack.c.l.b16 %v336
    %v2689 = vunpack.c.h.b16 %v336
    %v2690 = vunpack.c.l.b16 %v337
    %v2691 = vunpack.c.h.b16 %v337
    %v2692 = vunpack.c.l.b16 %v338
    %v2693 = vunpack.c.h.b16 %v338
    %v2694 = vunpack.c.l.b16 %v339
    %v2695 = vunpack.c.h.b16 %v339
    %v2696 = vunpack.c.l.b16 %v340
    %v2697 = vunpack.c.h.b16 %v340
    %v2698 = vunpack.c.l.b16 %v341
    %v2699 = vunpack.c.h.b16 %v341
    %v2700 = vunpack.c.l.b16 %v342
    %v2701 = vunpack.c.h.b16 %v342
    %v2702 = vunpack.c.l.b16 %v343
    %v2703 = vunpack.c.h.b16 %v343
    %v2704 = vunpack.c.l.b16 %v344
    %v2705 = vunpack.c.h.b16 %v344
    %v2706 = vunpack.c.l.b16 %v345
    %v2707 = vunpack.c.h.b16 %v345
    %v2708 = vunpack.c.l.b16 %v346
    %v2709 = vunpack.c.h.b16 %v346
    %v2710 = vunpack.c.l.b16 %v347
    %v2711 = vunpack.c.h.b16 %v347
    %v2712 = vunpack.c.l.b16 %v348
    %v2713 = vunpack.c.h.b16 %v348
    %v2714 = vunpack.c.l.b16 %v349
    %v2715 = vunpack.c.h.b16 %v349
    %v2716 = vunpack.c.l.b16 %v350
    %v2717 = vunpack.c.h.b16 %v350
    %v2718 = vunpack.c.l.b16 %v351
    %v2719 = vunpack.c.h.b16 %v351
    %v2720 = vunpack.c.l.b16 %v352
    %v2721 = vunpack.c.h.b16 %v352
    %v2722 = vunpack.c.l.b16 %v353
    %v2723 = vunpack.c.h.b16 %v353
    %v2724 = vunpack.c.l.b16 %v354
    %v2725 = vunpack.c.h.b16 %v354
    %v2726 = vunpack.c.l.b16 %v355
    %v2727 = vunpack.c.h.b16 %v355
    %v2728 = vunpack.c.l.b16 %v356
    %v2729 = vunpack.c.h.b16 %v356
    %v2730 = vunpack.c.l.b16 %v357
    %v2731 = vunpack.c.h.b16 %v357
    %v2732 = vunpack.c.l.b16 %v358
    %v2733 = vunpack.c.h.b16 %v358
    %v2734 = vunpack.c.l.b16 %v359
    %v2735 = vunpack.c.h.b16 %v359
    %v2736 = vunpack.c.l.b16 %v360
    %v2737 = vunpack.c.h.b16 %v360
    %v2738 = vunpack.c.l.b16 %v361
    %v2739 = vunpack.c.h.b16 %v361
    %v2740 = vunpack.c.l.b16 %v362
    %v2741 = vunpack.c.h.b16 %v362
    %v2742 = vunpack.c.l.b16 %v363
    %v2743 = vunpack.c.h.b16 %v363
    %v2744 = vunpack.c.l.b16 %v364
    %v2745 = vunpack.c.h.b16 %v364
    %v2746 = vunpack.c.l.b16 %v365
    %v2747 = vunpack.c.h.b16 %v365
    %v2748 = vunpack.c.l.b16 %v366
    %v2749 = vunpack.c.h.b16 %v366
    %v2750 = vunpack.c.l.b16 %v367
    %v2751 = vunpack.c.h.b16 %v367
    %v2752 = vunpack.c.l.b16 %v368
    %v2753 = vunpack.c.h.b16 %v368
    %v2754 = vunpack.c.l.b16 %v369
    %v2755 = vunpack.c.h.b16 %v369
    %v2756 = vunpack.c.l.b16 %v370
    %v2757 = vunpack.c.h.b16 %v370
    %v2758 = vunpack.c.l.b16 %v371
    %v2759 = vunpack.c.h.b16 %v371
    %v2760 = vunpack.c.l.b16 %v372
    %v2761 = vunpack.c.h.b16 %v372
    %v2762 = vunpack.c.l.b16 %v373
    %v2763 = vunpack.c.h.b16 %v373
    %v2764 = vunpack.c.l.b16 %v374
    %v2765 = vunpack.c.h.b16 %v374
    %v2766 = vunpack.c.l.b16 %v375
    %v2767 = vunpack.c.h.b16 %v375
    %v2768 = vunpack.c.l.b16 %v376
    %v2769 = vunpack.c.h.b16 %v376
    %v2770 = vunpack.c.l.b16 %v377
    %v2771 = vunpack.c.h.b16 %v377
    %v2772 = vunpack.c.l.b16 %v378
    %v2773 = vunpack.c.h.b16 %v378
    %v2774 = vunpack.c.l.b16 %v379
    %v2775 = vunpack.c.h.b16 %v379
    %v2776 = vunpack.c.l.b16 %v380
    %v2777 = vunpack.c.h.b16 %v380
    %v2778 = vunpack.c.l.b16 %v381
    %v2779 = vunpack.c.h.b16 %v381
    %v2780 = vunpack.c.l.b16 %v382
    %v2781 = vunpack.c.h.b16 %v382
    %v2782 = vunpack.c.l.b16 %v383
    %v2783 = vunpack.c.h.b16 %v383
    %v2784 = vunpack.c.l.b16 %v384
    %v2785 = vunpack.c.h.b16 %v384
    %v2786 = vunpack.c.l.b16 %v385
    %v2787 = vunpack.c.h.b16 %v385
    %v2788 = vunpack.c.l.b16 %v386
    %v2789 = vunpack.c.h.b16 %v386
    %v2790 = vunpack.c.l.b16 %v387
    %v2791 = vunpack.c.h.b16 %v387
    %v2792 = vunpack.c.l.b16 %v388
    %v2793 = vunpack.c.h.b16 %v388
    %v2794 = vunpack.c.l.b16 %v389
    %v2795 = vunpack.c.h.b16 %v389
    %v2796 = vunpack.c.l.b16 %v390
    %v2797 = vunpack.c.h.b16 %v390
    %v2798 = vunpack.c.l.b16 %v391
    %v2799 = vunpack.c.h.b16 %v391
    %v2800 = vunpack.c.l.b16 %v392
    %v2801 = vunpack.c.h.b16 %v392
    %v2802 = vunpack.c.l.b16 %v393
    %v2803 = vunpack.c.h.b16 %v393
    %v2804 = vunpack.c.l.b16 %v394
    %v2805 = vunpack.c.h.b16 %v394
    %v2806 = vunpack.c.l.b16 %v395
    %v2807 = vunpack.c.h.b16 %v395
    %v2808 = vunpack.c.l.b16 %v396
    %v2809 = vunpack.c.h.b16 %v396
    %v2810 = vunpack.c.l.b16 %v397
    %v2811 = vunpack.c.h.b16 %v397
    %v2812 = vunpack.c.l.b16 %v398
    %v2813 = vunpack.c.h.b16 %v398
    %v2814 = vunpack.c.l.b16 %v399
    %v2815 = vunpack.c.h.b16 %v399
    %v2816 = vunpack.c.l.b16 %v400
    %v2817 = vunpack.c.h.b16 %v400
    %v2818 = vunpack.c.l.b16 %v401
    %v2819 = vunpack.c.h.b16 %v401
    %v2820 = vunpack.c.l.b16 %v402
    %v2821 = vunpack.c.h.b16 %v402
    %v2822 = vunpack.c.l.b16 %v403
    %v2823 = vunpack.c.h.b16 %v403
    %v2824 = vunpack.c.l.b16 %v404
    %v2825 = vunpack.c.h.b16 %v404
    %v2826 = vunpack.c.l.b16 %v405
    %v2827 = vunpack.c.h.b16 %v405
    %v2828 = vunpack.c.l.b16 %v406
    %v2829 = vunpack.c.h.b16 %v406
    %v2830 = vunpack.c.l.b16 %v407
    %v2831 = vunpack.c.h.b16 %v407
    %v2832 = vunpack.c.l.b16 %v408
    %v2833 = vunpack.c.h.b16 %v408
    %v2834 = vunpack.c.l.b16 %v409
    %v2835 = vunpack.c.h.b16 %v409
    %v2836 = vunpack.c.l.b16 %v410
    %v2837 = vunpack.c.h.b16 %v410
    %v2838 = vunpack.c.l.b16 %v411
    %v2839 = vunpack.c.h.b16 %v411
    %v2840 = vunpack.c.l.b16 %v412
    %v2841 = vunpack.c.h.b16 %v412
    %v2842 = vunpack.c.l.b16 %v413
    %v2843 = vunpack.c.h.b16 %v413
    %v2844 = vunpack.c.l.b16 %v414
    %v2845 = vunpack.c.h.b16 %v414
    %v2846 = vunpack.c.l.b16 %v415
    %v2847 = vunpack.c.h.b16 %v415
    %v2848 = vunpack.c.l.b16 %v416
    %v2849 = vunpack.c.h.b16 %v416
    %v2850 = vunpack.c.l.b16 %v417
    %v2851 = vunpack.c.h.b16 %v417
    %v2852 = vunpack.c.l.b16 %v418
    %v2853 = vunpack.c.h.b16 %v418
    %v2854 = vunpack.c.l.b16 %v419
    %v2855 = vunpack.c.h.b16 %v419
    %v2856 = vunpack.c.l.b16 %v420
    %v2857 = vunpack.c.h.b16 %v420
    %v2858 = vunpack.c.l.b16 %v421
    %v2859 = vunpack.c.h.b16 %v421
    %v2860 = vunpack.c.l.b16 %v422
    %v2861 = vunpack.c.h.b16 %v422
    %v2862 = vunpack.c.l.b16 %v423
    %v2863 = vunpack.c.h.b16 %v423
    %v2864 = vunpack.c.l.b16 %v424
    %v2865 = vunpack.c.h.b16 %v424
    %v2866 = vunpack.c.l.b16 %v425
    %v2867 = vunpack.c.h.b16 %v425
    %v2868 = vunpack.c.l.b16 %v426
    %v2869 = vunpack.c.h.b16 %v426
    %v2870 = vunpack.c.l.b16 %v427
    %v2871 = vunpack.c.h.b16 %v427
    %v2872 = vunpack.c.l.b16 %v428
    %v2873 = vunpack.c.h.b16 %v428
    %v2874 = vunpack.c.l.b16 %v429
    %v2875 = vunpack.c.h.b16 %v429
    %v2876 = vunpack.c.l.b16 %v430
    %v2877 = vunpack.c.h.b16 %v430
    %v2878 = vunpack.c.l.b16 %v431
    %v2879 = vunpack.c.h.b16 %v431
    %v2880 = vunpack.c.l.b16 %v432
    %v2881 = vunpack.c.h.b16 %v432
    %v2882 = vunpack.c.l.b16 %v433
    %v2883 = vunpack.c.h.b16 %v433
    %v2884 = vunpack.c.l.b16 %v434
    %v2885 = vunpack.c.h.b16 %v434
    %v2886 = vunpack.c.l.b16 %v435
    %v2887 = vunpack.c.h.b16 %v435
    %v2888 = vunpack.c.l.b16 %v436
    %v2889 = vunpack.c.h.b16 %v436
    %v2890 = vunpack.c.l.b16 %v437
    %v2891 = vunpack.c.h.b16 %v437
    %v2892 = vunpack.c.l.b16 %v438
    %v2893 = vunpack.c.h.b16 %v438
    %v2894 = vunpack.c.l.b16 %v439
    %v2895 = vunpack.c.h.b16 %v439
    %v2896 = vunpack.c.l.b16 %v440
    %v2897 = vunpack.c.h.b16 %v440
    %v2898 = vunpack.c.l.b16 %v441
    %v2899 = vunpack.c.h.b16 %v441
    %v2900 = vunpack.c.l.b16 %v442
    %v2901 = vunpack.c.h.b16 %v442
    %v2902 = vunpack.c.l.b16 %v443
    %v2903 = vunpack.c.h.b16 %v443
    %v2904 = vunpack.c.l.b16 %v444
    %v2905 = vunpack.c.h.b16 %v444
    %v2906 = vunpack.c.l.b16 %v445
    %v2907 = vunpack.c.h.b16 %v445
    %v2908 = vunpack.c.l.b16 %v446
    %v2909 = vunpack.c.h.b16 %v446
    %v2910 = vunpack.c.l.b16 %v447
    %v2911 = vunpack.c.h.b16 %v447
    %v2912 = vunpack.c.l.b16 %v448
    %v2913 = vunpack.c.h.b16 %v448
    %v2914 = vunpack.c.l.b16 %v449
    %v2915 = vunpack.c.h.b16 %v449
    %v2916 = vunpack.c.l.b16 %v450
    %v2917 = vunpack.c.h.b16 %v450
    %v2918 = vunpack.c.l.b16 %v451
    %v2919 = vunpack.c.h.b16 %v451
    %v2920 = vunpack.c.l.b16 %v452
    %v2921 = vunpack.c.h.b16 %v452
    %v2922 = vunpack.c.l.b16 %v453
    %v2923 = vunpack.c.h.b16 %v453
    %v2924 = vunpack.c.l.b16 %v454
    %v2925 = vunpack.c.h.b16 %v454
    %v2926 = vunpack.c.l.b16 %v455
    %v2927 = vunpack.c.h.b16 %v455
    %v2928 = vunpack.c.l.b16 %v456
    %v2929 = vunpack.c.h.b16 %v456
    %v2930 = vunpack.c.l.b16 %v457
    %v2931 = vunpack.c.h.b16 %v457
    %v2932 = vunpack.c.l.b16 %v458
    %v2933 = vunpack.c.h.b16 %v458
    %v2934 = vunpack.c.l.b16 %v459
    %v2935 = vunpack.c.h.b16 %v459
    %v2936 = vunpack.c.l.b16 %v460
    %v2937 = vunpack.c.h.b16 %v460
    %v2938 = vunpack.c.l.b16 %v461
    %v2939 = vunpack.c.h.b16 %v461
    %v2940 = vunpack.c.l.b16 %v462
    %v2941 = vunpack.c.h.b16 %v462
    %v2942 = vunpack.c.l.b16 %v463
    %v2943 = vunpack.c.h.b16 %v463
    %v2944 = vunpack.c.l.b16 %v464
    %v2945 = vunpack.c.h.b16 %v464
    %v2946 = vunpack.c.l.b16 %v465
    %v2947 = vunpack.c.h.b16 %v465
    %v2948 = vunpack.c.l.b16 %v466
    %v2949 = vunpack.c.h.b16 %v466
    %v2950 = vunpack.c.l.b16 %v467
    %v2951 = vunpack.c.h.b16 %v467
    %v2952 = vunpack.c.l.b16 %v468
    %v2953 = vunpack.c.h.b16 %v468
    %v2954 = vunpack.c.l.b16 %v469
    %v2955 = vunpack.c.h.b16 %v469
    %v2956 = vunpack.c.l.b16 %v470
    %v2957 = vunpack.c.h.b16 %v470
    %v2958 = vunpack.c.l.b16 %v471
    %v2959 = vunpack.c.h.b16 %v471
    %v2960 = vunpack.c.l.b16 %v472
    %v2961 = vunpack.c.h.b16 %v472
    %v2962 = vunpack.c.l.b16 %v473
    %v2963 = vunpack.c.h.b16 %v473
    %v2964 = vunpack.c.l.b16 %v474
    %v2965 = vunpack.c.h.b16 %v474
    %v2966 = vunpack.c.l.b16 %v475
    %v2967 = vunpack.c.h.b16 %v475
    %v2968 = vunpack.c.l.b16 %v476
    %v2969 = vunpack.c.h.b16 %v476
    %v2970 = vunpack.c.l.b16 %v477
    %v2971 = vunpack.c.h.b16 %v477
    %v2972 = vunpack.c.l.b16 %v478
    %v2973 = vunpack.c.h.b16 %v478
    %v2974 = vunpack.c.l.b16 %v479
    %v2975 = vunpack.c.h.b16 %v479
    %v2976 = vunpack.c.l.b16 %v480
    %v2977 = vunpack.c.h.b16 %v480
    %v2978 = vunpack.c.l.b16 %v481
    %v2979 = vunpack.c.h.b16 %v481
    %v2980 = vunpack.c.l.b16 %v482
    %v2981 = vunpack.c.h.b16 %v482
    %v2982 = vunpack.c.l.b16 %v483
    %v2983 = vunpack.c.h.b16 %v483
    %v2984 = vunpack.c.l.b16 %v484
    %v2985 = vunpack.c.h.b16 %v484
    %v2986 = vunpack.c.l.b16 %v485
    %v2987 = vunpack.c.h.b16 %v485
    %v2988 = vunpack.c.l.b16 %v486
    %v2989 = vunpack.c.h.b16 %v486
    %v2990 = vunpack.c.l.b16 %v487
    %v2991 = vunpack.c.h.b16 %v487
    %v2992 = vunpack.c.l.b16 %v488
    %v2993 = vunpack.c.h.b16 %v488
    %v2994 = vunpack.c.l.b16 %v489
    %v2995 = vunpack.c.h.b16 %v489
    %v2996 = vunpack.c.l.b16 %v490
    %v2997 = vunpack.c.h.b16 %v490
    %v2998 = vunpack.c.l.b16 %v491
    %v2999 = vunpack.c.h.b16 %v491
    %v3000 = vunpack.c.l.b16 %v492
    %v3001 = vunpack.c.h.b16 %v492
    %v3002 = vunpack.c.l.b16 %v493
    %v3003 = vunpack.c.h.b16 %v493
    %v3004 = vunpack.c.l.b16 %v494
    %v3005 = vunpack.c.h.b16 %v494
    %v3006 = vunpack.c.l.b16 %v495
    %v3007 = vunpack.c.h.b16 %v495
    %v3008 = vunpack.c.l.b16 %v496
    %v3009 = vunpack.c.h.b16 %v496
    %v3010 = vunpack.c.l.b16 %v497
    %v3011 = vunpack.c.h.b16 %v497
    %v3012 = vunpack.c.l.b16 %v498
    %v3013 = vunpack.c.h.b16 %v498
    %v3014 = vunpack.c.l.b16 %v499
    %v3015 = vunpack.c.h.b16 %v499
    %v3016 = vunpack.c.l.b16 %v500
    %v3017 = vunpack.c.h.b16 %v500
    %v3018 = vunpack.c.l.b16 %v501
    %v3019 = vunpack.c.h.b16 %v501
    %v3020 = vunpack.c.l.b16 %v502
    %v3021 = vunpack.c.h.b16 %v502
    %v3022 = vunpack.c.l.b16 %v503
    %v3023 = vunpack.c.h.b16 %v503
    %v3024 = vunpack.c.l.b16 %v504
    %v3025 = vunpack.c.h.b16 %v504
    %v3026 = vunpack.c.l.b16 %v505
    %v3027 = vunpack.c.h.b16 %v505
    %v3028 = vunpack.c.l.b16 %v506
    %v3029 = vunpack.c.h.b16 %v506
    %v3030 = vunpack.c.l.b16 %v507
    %v3031 = vunpack.c.h.b16 %v507
    %v3032 = vunpack.c.l.b16 %v508
    %v3033 = vunpack.c.h.b16 %v508
    %v3034 = vunpack.c.l.b16 %v509
    %v3035 = vunpack.c.h.b16 %v509
    %v3036 = vunpack.c.l.b16 %v510
    %v3037 = vunpack.c.h.b16 %v510
    %v3038 = vunpack.c.l.b16 %v511
    %v3039 = vunpack.c.h.b16 %v511
    %v3040 = vunpack.c.l.b16 %v512
    %v3041 = vunpack.c.h.b16 %v512
    %v3042 = vunpack.c.l.b16 %v513
    %v3043 = vunpack.c.h.b16 %v513
    %v3044 = vunpack.c.l.b16 %v514
    %v3045 = vunpack.c.h.b16 %v514
    %v3046 = vunpack.c.l.b16 %v515
    %v3047 = vunpack.c.h.b16 %v515
    %v3048 = vunpack.c.l.b16 %v516
    %v3049 = vunpack.c.h.b16 %v516
    %v3050 = vunpack.c.l.b16 %v517
    %v3051 = vunpack.c.h.b16 %v517
    %v3052 = vunpack.c.l.b16 %v518
    %v3053 = vunpack.c.h.b16 %v518
    %v3054 = vunpack.c.l.b16 %v519
    %v3055 = vunpack.c.h.b16 %v519
    %v3056 = vunpack.c.l.b16 %v520
    %v3057 = vunpack.c.h.b16 %v520
    %v3058 = vunpack.c.l.b16 %v521
    %v3059 = vunpack.c.h.b16 %v521
    %v3060 = vunpack.c.l.b16 %v522
    %v3061 = vunpack.c.h.b16 %v522
    %v3062 = vunpack.c.l.b16 %v523
    %v3063 = vunpack.c.h.b16 %v523
    %v3064 = vunpack.c.l.b16 %v524
    %v3065 = vunpack.c.h.b16 %v524
    %v3066 = vunpack.c.l.b16 %v525
    %v3067 = vunpack.c.h.b16 %v525
    %v3068 = vunpack.c.l.b16 %v526
    %v3069 = vunpack.c.h.b16 %v526
    %v3070 = vunpack.c.l.b16 %v527
    %v3071 = vunpack.c.h.b16 %v527
    %v3072 = vunpack.c.l.b16 %v528
    %v3073 = vunpack.c.h.b16 %v528
    %v3074 = vunpack.c.l.b16 %v529
    %v3075 = vunpack.c.h.b16 %v529
    %v3076 = vunpack.c.l.b16 %v530
    %v3077 = vunpack.c.h.b16 %v530
    %v3078 = vunpack.c.l.b16 %v531
    %v3079 = vunpack.c.h.b16 %v531
    %v3080 = vunpack.c.l.b16 %v532
    %v3081 = vunpack.c.h.b16 %v532
    %v3082 = vunpack.c.l.b16 %v533
    %v3083 = vunpack.c.h.b16 %v533
    %v3084 = vunpack.c.l.b16 %v534
    %v3085 = vunpack.c.h.b16 %v534
    %v3086 = vunpack.c.l.b16 %v535
    %v3087 = vunpack.c.h.b16 %v535
    %v3088 = vunpack.c.l.b16 %v536
    %v3089 = vunpack.c.h.b16 %v536
    %v3090 = vunpack.c.l.b16 %v537
    %v3091 = vunpack.c.h.b16 %v537
    %v3092 = vunpack.c.l.b16 %v538
    %v3093 = vunpack.c.h.b16 %v538
    %v3094 = vunpack.c.l.b16 %v539
    %v3095 = vunpack.c.h.b16 %v539
    %v3096 = vunpack.c.l.b16 %v540
    %v3097 = vunpack.c.h.b16 %v540
    %v3098 = vunpack.c.l.b16 %v541
    %v3099 = vunpack.c.h.b16 %v541
    %v3100 = vunpack.c.l.b16 %v542
    %v3101 = vunpack.c.h.b16 %v542
    %v3102 = vunpack.c.l.b16 %v543
    %v3103 = vunpack.c.h.b16 %v543
    %v3104 = vunpack.c.l.b16 %v544
    %v3105 = vunpack.c.h.b16 %v544
    %v3106 = vunpack.c.l.b16 %v545
    %v3107 = vunpack.c.h.b16 %v545
    %v3108 = vunpack.c.l.b16 %v546
    %v3109 = vunpack.c.h.b16 %v546
    %v3110 = vunpack.c.l.b16 %v547
    %v3111 = vunpack.c.h.b16 %v547
    %v3112 = vunpack.c.l.b16 %v548
    %v3113 = vunpack.c.h.b16 %v548
    %v3114 = vunpack.c.l.b16 %v549
    %v3115 = vunpack.c.h.b16 %v549
    %v3116 = vunpack.c.l.b16 %v550
    %v3117 = vunpack.c.h.b16 %v550
    %v3118 = vunpack.c.l.b16 %v551
    %v3119 = vunpack.c.h.b16 %v551
    %v3120 = vunpack.c.l.b16 %v552
    %v3121 = vunpack.c.h.b16 %v552
    %v3122 = vunpack.c.l.b16 %v553
    %v3123 = vunpack.c.h.b16 %v553
    %v3124 = vunpack.c.l.b16 %v554
    %v3125 = vunpack.c.h.b16 %v554
    %v3126 = vunpack.c.l.b16 %v555
    %v3127 = vunpack.c.h.b16 %v555
    %v3128 = vunpack.c.l.b16 %v556
    %v3129 = vunpack.c.h.b16 %v556
    %v3130 = vunpack.c.l.b16 %v557
    %v3131 = vunpack.c.h.b16 %v557
    %v3132 = vunpack.c.l.b16 %v558
    %v3133 = vunpack.c.h.b16 %v558
    %v3134 = vunpack.c.l.b16 %v559
    %v3135 = vunpack.c.h.b16 %v559
    %v3136 = vunpack.c.l.b16 %v560
    %v3137 = vunpack.c.h.b16 %v560
    %v3138 = vunpack.c.l.b16 %v561
    %v3139 = vunpack.c.h.b16 %v561
    %v3140 = vunpack.c.l.b16 %v562
    %v3141 = vunpack.c.h.b16 %v562
    %v3142 = vunpack.c.l.b16 %v563
    %v3143 = vunpack.c.h.b16 %v563
    %v3144 = vunpack.c.l.b16 %v564
    %v3145 = vunpack.c.h.b16 %v564
    %v3146 = vunpack.c.l.b16 %v565
    %v3147 = vunpack.c.h.b16 %v565
    %v3148 = vunpack.c.l.b16 %v566
    %v3149 = vunpack.c.h.b16 %v566
    %v3150 = vunpack.c.l.b16 %v567
    %v3151 = vunpack.c.h.b16 %v567
    %v3152 = vunpack.c.l.b16 %v568
    %v3153 = vunpack.c.h.b16 %v568
    %v3154 = vunpack.c.l.b16 %v569
    %v3155 = vunpack.c.h.b16 %v569
    %v3156 = vunpack.c.l.b16 %v570
    %v3157 = vunpack.c.h.b16 %v570
    %v3158 = vunpack.c.l.b16 %v571
    %v3159 = vunpack.c.h.b16 %v571
    %v3160 = vunpack.c.l.b16 %v572
    %v3161 = vunpack.c.h.b16 %v572
    %v3162 = vunpack.c.l.b16 %v573
    %v3163 = vunpack.c.h.b16 %v573
    %v3164 = vunpack.c.l.b16 %v574
    %v3165 = vunpack.c.h.b16 %v574
    %v3166 = vunpack.c.l.b16 %v575
    %v3167 = vunpack.c.h.b16 %v575
    %v3168 = vunpack.c.l.b16 %v576
    %v3169 = vunpack.c.h.b16 %v576
    %v3170 = vunpack.c.l.b16 %v577
    %v3171 = vunpack.c.h.b16 %v577
    %v3172 = vunpack.c.l.b16 %v578
    %v3173 = vunpack.c.h.b16 %v578
    %v3174 = vunpack.c.l.b16 %v579
    %v3175 = vunpack.c.h.b16 %v579
    %v3176 = vunpack.c.l.b16 %v580
    %v3177 = vunpack.c.h.b16 %v580
    %v3178 = vunpack.c.l.b16 %v581
    %v3179 = vunpack.c.h.b16 %v581
    %v3180 = vunpack.c.l.b16 %v582
    %v3181 = vunpack.c.h.b16 %v582
    %v3182 = vunpack.c.l.b16 %v583
    %v3183 = vunpack.c.h.b16 %v583
    %v3184 = vunpack.c.l.b16 %v584
    %v3185 = vunpack.c.h.b16 %v584
    %v3186 = vunpack.c.l.b16 %v585
    %v3187 = vunpack.c.h.b16 %v585
    %v3188 = vunpack.c.l.b16 %v586
    %v3189 = vunpack.c.h.b16 %v586
    %v3190 = vunpack.c.l.b16 %v587
    %v3191 = vunpack.c.h.b16 %v587
    %v3192 = vunpack.c.l.b16 %v588
    %v3193 = vunpack.c.h.b16 %v588
    %v3194 = vunpack.c.l.b16 %v589
    %v3195 = vunpack.c.h.b16 %v589
    %v3196 = vunpack.c.l.b16 %v590
    %v3197 = vunpack.c.h.b16 %v590
    %v3198 = vunpack.c.l.b16 %v591
    %v3199 = vunpack.c.h.b16 %v591
    %v3200 = vunpack.c.l.b16 %v592
    %v3201 = vunpack.c.h.b16 %v592
    %v3202 = vunpack.c.l.b16 %v593
    %v3203 = vunpack.c.h.b16 %v593
    %v3204 = vunpack.c.l.b16 %v594
    %v3205 = vunpack.c.h.b16 %v594
    %v3206 = vunpack.c.l.b16 %v595
    %v3207 = vunpack.c.h.b16 %v595
    %v3208 = vunpack.c.l.b16 %v596
    %v3209 = vunpack.c.h.b16 %v596
    %v3210 = vunpack.c.l.b16 %v597
    %v3211 = vunpack.c.h.b16 %v597
    %v3212 = vunpack.c.l.b16 %v598
    %v3213 = vunpack.c.h.b16 %v598
    %v3214 = vunpack.c.l.b16 %v599
    %v3215 = vunpack.c.h.b16 %v599
    %v3216 = vunpack.c.l.b16 %v600
    %v3217 = vunpack.c.h.b16 %v600
    %v3218 = vunpack.c.l.b16 %v601
    %v3219 = vunpack.c.h.b16 %v601
    %v3220 = vunpack.c.l.b16 %v602
    %v3221 = vunpack.c.h.b16 %v602
    %v3222 = vunpack.c.l.b16 %v603
    %v3223 = vunpack.c.h.b16 %v603
    %v3224 = vunpack.c.l.b16 %v604
    %v3225 = vunpack.c.h.b16 %v604
    %v3226 = vunpack.c.l.b16 %v605
    %v3227 = vunpack.c.h.b16 %v605
    %v3228 = vunpack.c.l.b16 %v606
    %v3229 = vunpack.c.h.b16 %v606
    %v3230 = vunpack.c.l.b16 %v607
    %v3231 = vunpack.c.h.b16 %v607
    %v3232 = vunpack.c.l.b16 %v608
    %v3233 = vunpack.c.h.b16 %v608
    %v3234 = vunpack.c.l.b16 %v609
    %v3235 = vunpack.c.h.b16 %v609
    %v3236 = vunpack.c.l.b16 %v610
    %v3237 = vunpack.c.h.b16 %v610
    %v3238 = vunpack.c.l.b16 %v611
    %v3239 = vunpack.c.h.b16 %v611
    %v3240 = vunpack.c.l.b16 %v612
    %v3241 = vunpack.c.h.b16 %v612
    %v3242 = vunpack.c.l.b16 %v613
    %v3243 = vunpack.c.h.b16 %v613
    %v3244 = vunpack.c.l.b16 %v614
    %v3245 = vunpack.c.h.b16 %v614
    %v3246 = vunpack.c.l.b16 %v615
    %v3247 = vunpack.c.h.b16 %v615
    %v3248 = vunpack.c.l.b16 %v616
    %v3249 = vunpack.c.h.b16 %v616
    %v3250 = vunpack.c.l.b16 %v617
    %v3251 = vunpack.c.h.b16 %v617
    %v3252 = vunpack.c.l.b16 %v618
    %v3253 = vunpack.c.h.b16 %v618
    %v3254 = vunpack.c.l.b16 %v619
    %v3255 = vunpack.c.h.b16 %v619
    %v3256 = vunpack.c.l.b16 %v620
    %v3257 = vunpack.c.h.b16 %v620
    %v3258 = vunpack.c.l.b16 %v621
    %v3259 = vunpack.c.h.b16 %v621
    %v3260 = vunpack.c.l.b16 %v622
    %v3261 = vunpack.c.h.b16 %v622
    %v3262 = vunpack.c.l.b16 %v623
    %v3263 = vunpack.c.h.b16 %v623
    %v3264 = vunpack.c.l.b16 %v624
    %v3265 = vunpack.c.h.b16 %v624
    %v3266 = vunpack.c.l.b16 %v625
    %v3267 = vunpack.c.h.b16 %v625
    %v3268 = vunpack.c.l.b16 %v626
    %v3269 = vunpack.c.h.b16 %v626
    %v3270 = vunpack.c.l.b16 %v627
    %v3271 = vunpack.c.h.b16 %v627
    %v3272 = vunpack.c.l.b16 %v628
    %v3273 = vunpack.c.h.b16 %v628
    %v3274 = vunpack.c.l.b16 %v629
    %v3275 = vunpack.c.h.b16 %v629
    %v3276 = vunpack.c.l.b16 %v630
    %v3277 = vunpack.c.h.b16 %v630
    %v3278 = vunpack.c.l.b16 %v631
    %v3279 = vunpack.c.h.b16 %v631
    %v3280 = vunpack.c.l.b16 %v632
    %v3281 = vunpack.c.h.b16 %v632
    %v3282 = vunpack.c.l.b16 %v633
    %v3283 = vunpack.c.h.b16 %v633
    %v3284 = vunpack.c.l.b16 %v634
    %v3285 = vunpack.c.h.b16 %v634
    %v3286 = vunpack.c.l.b16 %v635
    %v3287 = vunpack.c.h.b16 %v635
    %v3288 = vunpack.c.l.b16 %v636
    %v3289 = vunpack.c.h.b16 %v636
    %v3290 = vunpack.c.l.b16 %v637
    %v3291 = vunpack.c.h.b16 %v637
    %v3292 = vunpack.c.l.b16 %v638
    %v3293 = vunpack.c.h.b16 %v638
    %v3294 = vunpack.c.l.b16 %v639
    %v3295 = vunpack.c.h.b16 %v639
    %v3296 = vunpack.c.l.b16 %v640
    %v3297 = vunpack.c.h.b16 %v640
    %v3298 = vunpack.c.l.b16 %v641
    %v3299 = vunpack.c.h.b16 %v641
    %v3300 = vunpack.c.l.b16 %v642
    %v3301 = vunpack.c.h.b16 %v642
    %v3302 = vunpack.c.l.b16 %v643
    %v3303 = vunpack.c.h.b16 %v643
    %v3304 = vunpack.c.l.b16 %v644
    %v3305 = vunpack.c.h.b16 %v644
    %v3306 = vunpack.c.l.b16 %v645
    %v3307 = vunpack.c.h.b16 %v645
    %v3308 = vunpack.c.l.b16 %v646
    %v3309 = vunpack.c.h.b16 %v646
    %v3310 = vunpack.c.l.b16 %v647
    %v3311 = vunpack.c.h.b16 %v647
    %v3312 = vunpack.c.l.b16 %v648
    %v3313 = vunpack.c.h.b16 %v648
    %v3314 = vunpack.c.l.b16 %v649
    %v3315 = vunpack.c.h.b16 %v649
    %v3316 = vunpack.c.l.b16 %v650
    %v3317 = vunpack.c.h.b16 %v650
    %v3318 = vunpack.c.l.b16 %v651
    %v3319 = vunpack.c.h.b16 %v651
    %v3320 = vunpack.c.l.b16 %v652
    %v3321 = vunpack.c.h.b16 %v652
    %v3322 = vunpack.c.l.b16 %v653
    %v3323 = vunpack.c.h.b16 %v653
    %v3324 = vunpack.c.l.b16 %v654
    %v3325 = vunpack.c.h.b16 %v654
    %v3326 = vunpack.c.l.b16 %v655
    %v3327 = vunpack.c.h.b16 %v655
    %v3328 = vunpack.c.l.b16 %v656
    %v3329 = vunpack.c.h.b16 %v656
    %v3330 = vunpack.c.l.b16 %v657
    %v3331 = vunpack.c.h.b16 %v657
    %v3332 = vunpack.c.l.b16 %v658
    %v3333 = vunpack.c.h.b16 %v658
    %v3334 = vunpack.c.l.b16 %v659
    %v3335 = vunpack.c.h.b16 %v659
    %v3336 = vunpack.c.l.b16 %v660
    %v3337 = vunpack.c.h.b16 %v660
    %v3338 = vunpack.c.l.b16 %v661
    %v3339 = vunpack.c.h.b16 %v661
    %v3340 = vunpack.c.l.b16 %v662
    %v3341 = vunpack.c.h.b16 %v662
    %v3342 = vunpack.c.l.b16 %v663
    %v3343 = vunpack.c.h.b16 %v663
    %v3344 = vunpack.c.l.b16 %v664
    %v3345 = vunpack.c.h.b16 %v664
    %v3346 = vunpack.c.l.b16 %v665
    %v3347 = vunpack.c.h.b16 %v665
    %v3348 = vunpack.c.l.b16 %v666
    %v3349 = vunpack.c.h.b16 %v666
    %v3350 = vunpack.c.l.b16 %v667
    %v3351 = vunpack.c.h.b16 %v667
    %v3352 = vunpack.c.l.b16 %v668
    %v3353 = vunpack.c.h.b16 %v668
    %v3354 = vunpack.c.l.b16 %v669
    %v3355 = vunpack.c.h.b16 %v669
    %v3356 = vunpack.c.l.b16 %v670
    %v3357 = vunpack.c.h.b16 %v670
    %v3358 = vunpack.c.l.b16 %v671
    %v3359 = vunpack.c.h.b16 %v671
    %v3360 = vunpack.c.l.b16 %v672
    %v3361 = vunpack.c.h.b16 %v672
    %v3362 = vunpack.c.l.b16 %v673
    %v3363 = vunpack.c.h.b16 %v673
    %v3364 = vunpack.c.l.b16 %v674
    %v3365 = vunpack.c.h.b16 %v674
    %v3366 = vunpack.c.l.b16 %v675
    %v3367 = vunpack.c.h.b16 %v675
    %v3368 = vunpack.c.l.b16 %v676
    %v3369 = vunpack.c.h.b16 %v676
    %v3370 = vunpack.c.l.b16 %v677
    %v3371 = vunpack.c.h.b16 %v677
    %v3372 = vunpack.c.l.b16 %v678
    %v3373 = vunpack.c.h.b16 %v678
    %v3374 = vunpack.c.l.b16 %v679
    %v3375 = vunpack.c.h.b16 %v679
    %v3376 = vunpack.c.l.b16 %v680
    %v3377 = vunpack.c.h.b16 %v680
    %v3378 = vunpack.c.l.b16 %v681
    %v3379 = vunpack.c.h.b16 %v681
    %v3380 = vunpack.c.l.b16 %v682
    %v3381 = vunpack.c.h.b16 %v682
    %v3382 = vunpack.c.l.b16 %v683
    %v3383 = vunpack.c.h.b16 %v683
    %v3384 = vunpack.c.l.b16 %v684
    %v3385 = vunpack.c.h.b16 %v684
    %v3386 = vunpack.c.l.b16 %v685
    %v3387 = vunpack.c.h.b16 %v685
    %v3388 = vunpack.c.l.b16 %v686
    %v3389 = vunpack.c.h.b16 %v686
    %v3390 = vunpack.c.l.b16 %v687
    %v3391 = vunpack.c.h.b16 %v687
    %v3392 = vunpack.c.l.b16 %v688
    %v3393 = vunpack.c.h.b16 %v688
    %v3394 = vunpack.c.l.b16 %v689
    %v3395 = vunpack.c.h.b16 %v689
    %v3396 = vunpack.c.l.b16 %v690
    %v3397 = vunpack.c.h.b16 %v690
    %v3398 = vunpack.c.l.b16 %v691
    %v3399 = vunpack.c.h.b16 %v691
    %v3400 = vunpack.c.l.b16 %v692
    %v3401 = vunpack.c.h.b16 %v692
    %v3402 = vunpack.c.l.b16 %v693
    %v3403 = vunpack.c.h.b16 %v693
    %v3404 = vunpack.c.l.b16 %v694
    %v3405 = vunpack.c.h.b16 %v694
    %v3406 = vunpack.c.l.b16 %v695
    %v3407 = vunpack.c.h.b16 %v695
    %v3408 = vunpack.c.l.b16 %v696
    %v3409 = vunpack.c.h.b16 %v696
    %v3410 = vunpack.c.l.b16 %v697
    %v3411 = vunpack.c.h.b16 %v697
    %v3412 = vunpack.c.l.b16 %v698
    %v3413 = vunpack.c.h.b16 %v698
    %v3414 = vunpack.c.l.b16 %v699
    %v3415 = vunpack.c.h.b16 %v699
    %v3416 = vunpack.c.l.b16 %v700
    %v3417 = vunpack.c.h.b16 %v700
    %v3418 = vunpack.c.l.b16 %v701
    %v3419 = vunpack.c.h.b16 %v701
    %v3420 = vunpack.c.l.b16 %v702
    %v3421 = vunpack.c.h.b16 %v702
    %v3422 = vunpack.c.l.b16 %v703
    %v3423 = vunpack.c.h.b16 %v703
    %v3424 = vunpack.c.l.b16 %v704
    %v3425 = vunpack.c.h.b16 %v704
    %v3426 = vunpack.c.l.b16 %v705
    %v3427 = vunpack.c.h.b16 %v705
    %v3428 = vunpack.c.l.b16 %v706
    %v3429 = vunpack.c.h.b16 %v706
    %v3430 = vunpack.c.l.b16 %v707
    %v3431 = vunpack.c.h.b16 %v707
    %v3432 = vunpack.c.l.b16 %v708
    %v3433 = vunpack.c.h.b16 %v708
    %v3434 = vunpack.c.l.b16 %v709
    %v3435 = vunpack.c.h.b16 %v709
    %v3436 = vunpack.c.l.b16 %v710
    %v3437 = vunpack.c.h.b16 %v710
    %v3438 = vunpack.c.l.b16 %v711
    %v3439 = vunpack.c.h.b16 %v711
    %v3440 = vunpack.c.l.b16 %v712
    %v3441 = vunpack.c.h.b16 %v712
    %v3442 = vunpack.c.l.b16 %v713
    %v3443 = vunpack.c.h.b16 %v713
    %v3444 = vunpack.c.l.b16 %v714
    %v3445 = vunpack.c.h.b16 %v714
    %v3446 = vunpack.c.l.b16 %v715
    %v3447 = vunpack.c.h.b16 %v715
    %v3448 = vunpack.c.l.b16 %v716
    %v3449 = vunpack.c.h.b16 %v716
    %v3450 = vunpack.c.l.b16 %v717
    %v3451 = vunpack.c.h.b16 %v717
    %v3452 = vunpack.c.l.b16 %v718
    %v3453 = vunpack.c.h.b16 %v718
    %v3454 = vunpack.c.l.b16 %v719
    %v3455 = vunpack.c.h.b16 %v719
    %v3456 = vunpack.c.l.b16 %v720
    %v3457 = vunpack.c.h.b16 %v720
    %v3458 = vunpack.c.l.b16 %v721
    %v3459 = vunpack.c.h.b16 %v721
    %v3460 = vunpack.c.l.b16 %v722
    %v3461 = vunpack.c.h.b16 %v722
    %v3462 = vunpack.c.l.b16 %v723
    %v3463 = vunpack.c.h.b16 %v723
    %v3464 = vunpack.c.l.b16 %v724
    %v3465 = vunpack.c.h.b16 %v724
    %v3466 = vunpack.c.l.b16 %v725
    %v3467 = vunpack.c.h.b16 %v725
    %v3468 = vunpack.c.l.b16 %v726
    %v3469 = vunpack.c.h.b16 %v726
    %v3470 = vunpack.c.l.b16 %v727
    %v3471 = vunpack.c.h.b16 %v727
    %v3472 = vunpack.c.l.b16 %v728
    %v3473 = vunpack.c.h.b16 %v728
    %v3474 = vunpack.c.l.b16 %v729
    %v3475 = vunpack.c.h.b16 %v729
    %v3476 = vunpack.c.l.b16 %v730
    %v3477 = vunpack.c.h.b16 %v730
    %v3478 = vunpack.c.l.b16 %v731
    %v3479 = vunpack.c.h.b16 %v731
    %v3480 = vunpack.c.l.b16 %v732
    %v3481 = vunpack.c.h.b16 %v732
    %v3482 = vunpack.c.l.b16 %v733
    %v3483 = vunpack.c.h.b16 %v733
    %v3484 = vunpack.c.l.b16 %v734
    %v3485 = vunpack.c.h.b16 %v734
    %v3486 = vunpack.c.l.b16 %v735
    %v3487 = vunpack.c.h.b16 %v735
    %v3488 = vunpack.c.l.b16 %v736
    %v3489 = vunpack.c.h.b16 %v736
    %v3490 = vunpack.c.l.b16 %v737
    %v3491 = vunpack.c.h.b16 %v737
    %v3492 = vunpack.c.l.b16 %v738
    %v3493 = vunpack.c.h.b16 %v738
    %v3494 = vunpack.c.l.b16 %v739
    %v3495 = vunpack.c.h.b16 %v739
    %v3496 = vunpack.c.l.b16 %v740
    %v3497 = vunpack.c.h.b16 %v740
    %v3498 = vunpack.c.l.b16 %v741
    %v3499 = vunpack.c.h.b16 %v741
    %v3500 = vunpack.c.l.b16 %v742
    %v3501 = vunpack.c.h.b16 %v742
    %v3502 = vunpack.c.l.b16 %v743
    %v3503 = vunpack.c.h.b16 %v743
    %v3504 = vunpack.c.l.b16 %v744
    %v3505 = vunpack.c.h.b16 %v744
    %v3506 = vunpack.c.l.b16 %v745
    %v3507 = vunpack.c.h.b16 %v745
    %v3508 = vunpack.c.l.b16 %v746
    %v3509 = vunpack.c.h.b16 %v746
    %v3510 = vunpack.c.l.b16 %v747
    %v3511 = vunpack.c.h.b16 %v747
    %v3512 = vunpack.c.l.b16 %v748
    %v3513 = vunpack.c.h.b16 %v748
    %v3514 = vunpack.c.l.b16 %v749
    %v3515 = vunpack.c.h.b16 %v749
    %v3516 = vunpack.c.l.b16 %v750
    %v3517 = vunpack.c.h.b16 %v750
    %v3518 = vunpack.c.l.b16 %v751
    %v3519 = vunpack.c.h.b16 %v751
    %v3520 = vunpack.c.l.b16 %v752
    %v3521 = vunpack.c.h.b16 %v752
    %v3522 = vunpack.c.l.b16 %v753
    %v3523 = vunpack.c.h.b16 %v753
    %v3524 = vunpack.c.l.b16 %v754
    %v3525 = vunpack.c.h.b16 %v754
    %v3526 = vunpack.c.l.b16 %v755
    %v3527 = vunpack.c.h.b16 %v755
    %v3528 = vunpack.c.l.b16 %v756
    %v3529 = vunpack.c.h.b16 %v756
    %v3530 = vunpack.c.l.b16 %v757
    %v3531 = vunpack.c.h.b16 %v757
    %v3532 = vunpack.c.l.b16 %v758
    %v3533 = vunpack.c.h.b16 %v758
    %v3534 = vunpack.c.l.b16 %v759
    %v3535 = vunpack.c.h.b16 %v759
    %v3536 = vunpack.c.l.b16 %v760
    %v3537 = vunpack.c.h.b16 %v760
    %v3538 = vunpack.c.l.b16 %v761
    %v3539 = vunpack.c.h.b16 %v761
    %v3540 = vunpack.c.l.b16 %v762
    %v3541 = vunpack.c.h.b16 %v762
    %v3542 = vunpack.c.l.b16 %v763
    %v3543 = vunpack.c.h.b16 %v763
    %v3544 = vunpack.c.l.b16 %v764
    %v3545 = vunpack.c.h.b16 %v764
    %v3546 = vunpack.c.l.b16 %v765
    %v3547 = vunpack.c.h.b16 %v765
    %v3548 = vunpack.c.l.b16 %v766
    %v3549 = vunpack.c.h.b16 %v766
    %v3550 = vunpack.c.l.b16 %v767
    %v3551 = vunpack.c.h.b16 %v767
    %v3552 = vunpack.c.l.b16 %v768
    %v3553 = vunpack.c.h.b16 %v768
    %v3554 = vunpack.c.l.b16 %v769
    %v3555 = vunpack.c.h.b16 %v769
    %v3556 = vunpack.c.l.b16 %v770
    %v3557 = vunpack.c.h.b16 %v770
    %v3558 = vunpack.c.l.b16 %v771
    %v3559 = vunpack.c.h.b16 %v771
    %v3560 = vunpack.c.l.b16 %v772
    %v3561 = vunpack.c.h.b16 %v772
    %v3562 = vunpack.c.l.b16 %v773
    %v3563 = vunpack.c.h.b16 %v773
    %v3564 = vunpack.c.l.b16 %v774
    %v3565 = vunpack.c.h.b16 %v774
    %v3566 = vunpack.c.l.b16 %v775
    %v3567 = vunpack.c.h.b16 %v775
    %v3568 = vunpack.c.l.b16 %v776
    %v3569 = vunpack.c.h.b16 %v776
    %v3570 = vunpack.c.l.b16 %v777
    %v3571 = vunpack.c.h.b16 %v777
    %v3572 = vunpack.c.l.b16 %v778
    %v3573 = vunpack.c.h.b16 %v778
    %v3574 = vunpack.c.l.b16 %v779
    %v3575 = vunpack.c.h.b16 %v779
    %v3576 = vunpack.c.l.b16 %v780
    %v3577 = vunpack.c.h.b16 %v780
    %v3578 = vunpack.c.l.b16 %v781
    %v3579 = vunpack.c.h.b16 %v781
    %v3580 = vunpack.c.l.b16 %v782
    %v3581 = vunpack.c.h.b16 %v782
    %v3582 = vunpack.c.l.b16 %v783
    %v3583 = vunpack.c.h.b16 %v783
    %v3584 = vunpack.c.l.b16 %v784
    %v3585 = vunpack.c.h.b16 %v784
    %v3586 = vunpack.c.l.b16 %v785
    %v3587 = vunpack.c.h.b16 %v785
    %v3588 = vunpack.c.l.b16 %v786
    %v3589 = vunpack.c.h.b16 %v786
    %v3590 = vunpack.c.l.b16 %v787
    %v3591 = vunpack.c.h.b16 %v787
    %v3592 = vunpack.c.l.b16 %v788
    %v3593 = vunpack.c.h.b16 %v788
    %v3594 = vunpack.c.l.b16 %v789
    %v3595 = vunpack.c.h.b16 %v789
    %v3596 = vunpack.c.l.b16 %v790
    %v3597 = vunpack.c.h.b16 %v790
    %v3598 = vunpack.c.l.b16 %v791
    %v3599 = vunpack.c.h.b16 %v791
    %v3600 = vunpack.c.l.b16 %v792
    %v3601 = vunpack.c.h.b16 %v792
    %v3602 = vunpack.c.l.b16 %v793
    %v3603 = vunpack.c.h.b16 %v793
    %v3604 = vunpack.c.l.b16 %v794
    %v3605 = vunpack.c.h.b16 %v794
    %v3606 = vunpack.c.l.b16 %v795
    %v3607 = vunpack.c.h.b16 %v795
    %v3608 = vunpack.c.l.b16 %v796
    %v3609 = vunpack.c.h.b16 %v796
    %v3610 = vunpack.c.l.b16 %v797
    %v3611 = vunpack.c.h.b16 %v797
    %v3612 = vunpack.c.l.b16 %v798
    %v3613 = vunpack.c.h.b16 %v798
    %v3614 = vunpack.c.l.b16 %v799
    %v3615 = vunpack.c.h.b16 %v799
    %v3616 = vunpack.c.l.b16 %v800
    %v3617 = vunpack.c.h.b16 %v800
    %v3618 = vunpack.c.l.b16 %v801
    %v3619 = vunpack.c.h.b16 %v801
    %v3620 = vunpack.c.l.b16 %v802
    %v3621 = vunpack.c.h.b16 %v802
    %v3622 = vunpack.c.l.b16 %v803
    %v3623 = vunpack.c.h.b16 %v803
    %v3624 = vunpack.c.l.b16 %v804
    %v3625 = vunpack.c.h.b16 %v804
    %v3626 = vunpack.c.l.b16 %v805
    %v3627 = vunpack.c.h.b16 %v805
    %v3628 = vunpack.c.l.b16 %v806
    %v3629 = vunpack.c.h.b16 %v806
    %v3630 = vunpack.c.l.b16 %v807
    %v3631 = vunpack.c.h.b16 %v807
    %v3632 = vunpack.c.l.b16 %v808
    %v3633 = vunpack.c.h.b16 %v808
    %v3634 = vunpack.c.l.b16 %v809
    %v3635 = vunpack.c.h.b16 %v809
    %v3636 = vunpack.c.l.b16 %v810
    %v3637 = vunpack.c.h.b16 %v810
    %v3638 = vunpack.c.l.b16 %v811
    %v3639 = vunpack.c.h.b16 %v811
    %v3640 = vunpack.c.l.b16 %v812
    %v3641 = vunpack.c.h.b16 %v812
    %v3642 = vunpack.c.l.b16 %v813
    %v3643 = vunpack.c.h.b16 %v813
    %v3644 = vunpack.c.l.b16 %v814
    %v3645 = vunpack.c.h.b16 %v814
    %v3646 = vunpack.c.l.b16 %v815
    %v3647 = vunpack.c.h.b16 %v815
    %v3648 = vunpack.c.l.b16 %v816
    %v3649 = vunpack.c.h.b16 %v816
    %v3650 = vunpack.c.l.b16 %v817
    %v3651 = vunpack.c.h.b16 %v817
    %v3652 = vunpack.c.l.b16 %v818
    %v3653 = vunpack.c.h.b16 %v818
    %v3654 = vunpack.c.l.b16 %v819
    %v3655 = vunpack.c.h.b16 %v819
    %v3656 = vunpack.c.l.b16 %v820
    %v3657 = vunpack.c.h.b16 %v820
    %v3658 = vunpack.c.l.b16 %v821
    %v3659 = vunpack.c.h.b16 %v821
    %v3660 = vunpack.c.l.b16 %v822
    %v3661 = vunpack.c.h.b16 %v822
    %v3662 = vunpack.c.l.b16 %v823
    %v3663 = vunpack.c.h.b16 %v823
    %v3664 = vunpack.c.l.b16 %v824
    %v3665 = vunpack.c.h.b16 %v824
    %v3666 = vunpack.c.l.b16 %v825
    %v3667 = vunpack.c.h.b16 %v825
    %v3668 = vunpack.c.l.b16 %v826
    %v3669 = vunpack.c.h.b16 %v826
    %v3670 = vunpack.c.l.b16 %v827
    %v3671 = vunpack.c.h.b16 %v827
    %v3672 = vunpack.c.l.b16 %v828
    %v3673 = vunpack.c.h.b16 %v828
    %v3674 = vunpack.c.l.b16 %v829
    %v3675 = vunpack.c.h.b16 %v829
    %v3676 = vunpack.c.l.b16 %v830
    %v3677 = vunpack.c.h.b16 %v830
    %v3678 = vunpack.c.l.b16 %v831
    %v3679 = vunpack.c.h.b16 %v831
    %v3680 = vunpack.c.l.b16 %v832
    %v3681 = vunpack.c.h.b16 %v832
    %v3682 = vunpack.c.l.b16 %v833
    %v3683 = vunpack.c.h.b16 %v833
    %v3684 = vunpack.c.l.b16 %v834
    %v3685 = vunpack.c.h.b16 %v834
    %v3686 = vunpack.c.l.b16 %v835
    %v3687 = vunpack.c.h.b16 %v835
    %v3688 = vunpack.c.l.b16 %v836
    %v3689 = vunpack.c.h.b16 %v836
    %v3690 = vunpack.c.l.b16 %v837
    %v3691 = vunpack.c.h.b16 %v837
    %v3692 = vunpack.c.l.b16 %v838
    %v3693 = vunpack.c.h.b16 %v838
    %v3694 = vunpack.c.l.b16 %v839
    %v3695 = vunpack.c.h.b16 %v839
    %v3696 = vunpack.c.l.b16 %v840
    %v3697 = vunpack.c.h.b16 %v840
    %v3698 = vunpack.c.l.b16 %v841
    %v3699 = vunpack.c.h.b16 %v841
    %v3700 = vunpack.c.l.b16 %v842
    %v3701 = vunpack.c.h.b16 %v842
    %v3702 = vunpack.c.l.b16 %v843
    %v3703 = vunpack.c.h.b16 %v843
    %v3704 = vunpack.c.l.b16 %v844
    %v3705 = vunpack.c.h.b16 %v844
    %v3706 = vunpack.c.l.b16 %v845
    %v3707 = vunpack.c.h.b16 %v845
    %v3708 = vunpack.c.l.b16 %v846
    %v3709 = vunpack.c.h.b16 %v846
    %v3710 = vunpack.c.l.b16 %v847
    %v3711 = vunpack.c.h.b16 %v847
    %v3712 = vunpack.c.l.b16 %v848
    %v3713 = vunpack.c.h.b16 %v848
    %v3714 = vunpack.c.l.b16 %v849
    %v3715 = vunpack.c.h.b16 %v849
    %v3716 = vunpack.c.l.b16 %v850
    %v3717 = vunpack.c.h.b16 %v850
    %v3718 = vunpack.c.l.b16 %v851
    %v3719 = vunpack.c.h.b16 %v851
    %v3720 = vunpack.c.l.b16 %v852
    %v3721 = vunpack.c.h.b16 %v852
    %v3722 = vunpack.c.l.b16 %v853
    %v3723 = vunpack.c.h.b16 %v853
    %v3724 = vunpack.c.l.b16 %v854
    %v3725 = vunpack.c.h.b16 %v854
    %v3726 = vunpack.c.l.b16 %v855
    %v3727 = vunpack.c.h.b16 %v855
    %v3728 = vunpack.c.l.b16 %v856
    %v3729 = vunpack.c.h.b16 %v856
    %v3730 = vunpack.c.l.b16 %v857
    %v3731 = vunpack.c.h.b16 %v857
    %v3732 = vunpack.c.l.b16 %v858
    %v3733 = vunpack.c.h.b16 %v858
    %v3734 = vunpack.c.l.b16 %v859
    %v3735 = vunpack.c.h.b16 %v859
    %v3736 = vunpack.c.l.b16 %v860
    %v3737 = vunpack.c.h.b16 %v860
    %v3738 = vunpack.c.l.b16 %v861
    %v3739 = vunpack.c.h.b16 %v861
    %v3740 = vunpack.c.l.b16 %v862
    %v3741 = vunpack.c.h.b16 %v862
    %v3742 = vunpack.c.l.b16 %v863
    %v3743 = vunpack.c.h.b16 %v863
    %v3744 = vunpack.c.l.b16 %v864
    %v3745 = vunpack.c.h.b16 %v864
    %v3746 = vunpack.c.l.b16 %v865
    %v3747 = vunpack.c.h.b16 %v865
    %v3748 = vunpack.c.l.b16 %v866
    %v3749 = vunpack.c.h.b16 %v866
    %v3750 = vunpack.c.l.b16 %v867
    %v3751 = vunpack.c.h.b16 %v867
    %v3752 = vunpack.c.l.b16 %v868
    %v3753 = vunpack.c.h.b16 %v868
    %v3754 = vunpack.c.l.b16 %v869
    %v3755 = vunpack.c.h.b16 %v869
    %v3756 = vunpack.c.l.b16 %v870
    %v3757 = vunpack.c.h.b16 %v870
    %v3758 = vunpack.c.l.b16 %v871
    %v3759 = vunpack.c.h.b16 %v871
    %v3760 = vunpack.c.l.b16 %v872
    %v3761 = vunpack.c.h.b16 %v872
    %v3762 = vunpack.c.l.b16 %v873
    %v3763 = vunpack.c.h.b16 %v873
    %v3764 = vunpack.c.l.b16 %v874
    %v3765 = vunpack.c.h.b16 %v874
    %v3766 = vunpack.c.l.b16 %v875
    %v3767 = vunpack.c.h.b16 %v875
    %v3768 = vunpack.c.l.b16 %v876
    %v3769 = vunpack.c.h.b16 %v876
    %v3770 = vunpack.c.l.b16 %v877
    %v3771 = vunpack.c.h.b16 %v877
    %v3772 = vunpack.c.l.b16 %v878
    %v3773 = vunpack.c.h.b16 %v878
    %v3774 = vunpack.c.l.b16 %v879
    %v3775 = vunpack.c.h.b16 %v879
    %v3776 = vunpack.c.l.b16 %v880
    %v3777 = vunpack.c.h.b16 %v880
    %v3778 = vunpack.c.l.b16 %v881
    %v3779 = vunpack.c.h.b16 %v881
    %v3780 = vunpack.c.l.b16 %v882
    %v3781 = vunpack.c.h.b16 %v882
    %v3782 = vunpack.c.l.b16 %v883
    %v3783 = vunpack.c.h.b16 %v883
    %v3784 = vunpack.c.l.b16 %v884
    %v3785 = vunpack.c.h.b16 %v884
    %v3786 = vunpack.c.l.b16 %v885
    %v3787 = vunpack.c.h.b16 %v885
    %v3788 = vunpack.c.l.b16 %v886
    %v3789 = vunpack.c.h.b16 %v886
    %v3790 = vunpack.c.l.b16 %v887
    %v3791 = vunpack.c.h.b16 %v887
    %v3792 = vunpack.c.l.b16 %v888
    %v3793 = vunpack.c.h.b16 %v888
    %v3794 = vunpack.c.l.b16 %v889
    %v3795 = vunpack.c.h.b16 %v889
    %v3796 = vunpack.c.l.b16 %v890
    %v3797 = vunpack.c.h.b16 %v890
    %v3798 = vunpack.c.l.b16 %v891
    %v3799 = vunpack.c.h.b16 %v891
    %v3800 = vunpack.c.l.b16 %v892
    %v3801 = vunpack.c.h.b16 %v892
    %v3802 = vunpack.c.l.b16 %v893
    %v3803 = vunpack.c.h.b16 %v893
    %v3804 = vunpack.c.l.b16 %v894
    %v3805 = vunpack.c.h.b16 %v894
    %v3806 = vunpack.c.l.b16 %v895
    %v3807 = vunpack.c.h.b16 %v895
    %v3808 = vunpack.c.l.b16 %v896
    %v3809 = vunpack.c.h.b16 %v896
    %v3810 = vunpack.c.l.b16 %v897
    %v3811 = vunpack.c.h.b16 %v897
    %v3812 = vunpack.c.l.b16 %v898
    %v3813 = vunpack.c.h.b16 %v898
    %v3814 = vunpack.c.l.b16 %v899
    %v3815 = vunpack.c.h.b16 %v899
    %v3816 = vunpack.c.l.b16 %v900
    %v3817 = vunpack.c.h.b16 %v900
    %v3818 = vunpack.c.l.b16 %v901
    %v3819 = vunpack.c.h.b16 %v901
    %v3820 = vunpack.c.l.b16 %v902
    %v3821 = vunpack.c.h.b16 %v902
    %v3822 = vunpack.c.l.b16 %v903
    %v3823 = vunpack.c.h.b16 %v903
    %v3824 = vunpack.c.l.b16 %v904
    %v3825 = vunpack.c.h.b16 %v904
    %v3826 = vunpack.c.l.b16 %v905
    %v3827 = vunpack.c.h.b16 %v905
    %v3828 = vunpack.c.l.b16 %v906
    %v3829 = vunpack.c.h.b16 %v906
    %v3830 = vunpack.c.l.b16 %v907
    %v3831 = vunpack.c.h.b16 %v907
    %v3832 = vunpack.c.l.b16 %v908
    %v3833 = vunpack.c.h.b16 %v908
    %v3834 = vunpack.c.l.b16 %v909
    %v3835 = vunpack.c.h.b16 %v909
    %v3836 = vunpack.c.l.b16 %v910
    %v3837 = vunpack.c.h.b16 %v910
    %v3838 = vunpack.c.l.b16 %v911
    %v3839 = vunpack.c.h.b16 %v911
    %v3840 = vunpack.c.l.b16 %v912
    %v3841 = vunpack.c.h.b16 %v912
    %v3842 = vunpack.c.l.b16 %v913
    %v3843 = vunpack.c.h.b16 %v913
    %v3844 = vunpack.c.l.b16 %v914
    %v3845 = vunpack.c.h.b16 %v914
    %v3846 = vunpack.c.l.b16 %v915
    %v3847 = vunpack.c.h.b16 %v915
    %v3848 = vunpack.c.l.b16 %v916
    %v3849 = vunpack.c.h.b16 %v916
    %v3850 = vunpack.c.l.b16 %v917
    %v3851 = vunpack.c.h.b16 %v917
    %v3852 = vunpack.c.l.b16 %v918
    %v3853 = vunpack.c.h.b16 %v918
    %v3854 = vunpack.c.l.b16 %v919
    %v3855 = vunpack.c.h.b16 %v919
    %v3856 = vunpack.c.l.b16 %v920
    %v3857 = vunpack.c.h.b16 %v920
    %v3858 = vunpack.c.l.b16 %v921
    %v3859 = vunpack.c.h.b16 %v921
    %v3860 = vunpack.c.l.b16 %v922
    %v3861 = vunpack.c.h.b16 %v922
    %v3862 = vunpack.c.l.b16 %v923
    %v3863 = vunpack.c.h.b16 %v923
    %v3864 = vunpack.c.l.b16 %v924
    %v3865 = vunpack.c.h.b16 %v924
    %v3866 = vunpack.c.l.b16 %v925
    %v3867 = vunpack.c.h.b16 %v925
    %v3868 = vunpack.c.l.b16 %v926
    %v3869 = vunpack.c.h.b16 %v926
    %v3870 = vunpack.c.l.b16 %v927
    %v3871 = vunpack.c.h.b16 %v927
    %v3872 = vunpack.c.l.b16 %v928
    %v3873 = vunpack.c.h.b16 %v928
    %v3874 = vunpack.c.l.b16 %v929
    %v3875 = vunpack.c.h.b16 %v929
    %v3876 = vunpack.c.l.b16 %v930
    %v3877 = vunpack.c.h.b16 %v930
    %v3878 = vunpack.c.l.b16 %v931
    %v3879 = vunpack.c.h.b16 %v931
    %v3880 = vunpack.c.l.b16 %v932
    %v3881 = vunpack.c.h.b16 %v932
    %v3882 = vunpack.c.l.b16 %v933
    %v3883 = vunpack.c.h.b16 %v933
    %v3884 = vunpack.c.l.b16 %v934
    %v3885 = vunpack.c.h.b16 %v934
    %v3886 = vunpack.c.l.b16 %v935
    %v3887 = vunpack.c.h.b16 %v935
    %v3888 = vunpack.c.l.b16 %v936
    %v3889 = vunpack.c.h.b16 %v936
    %v3890 = vunpack.c.l.b16 %v937
    %v3891 = vunpack.c.h.b16 %v937
    %v3892 = vunpack.c.l.b16 %v938
    %v3893 = vunpack.c.h.b16 %v938
    %v3894 = vunpack.c.l.b16 %v939
    %v3895 = vunpack.c.h.b16 %v939
    %v3896 = vunpack.c.l.b16 %v940
    %v3897 = vunpack.c.h.b16 %v940
    %v3898 = vunpack.c.l.b16 %v941
    %v3899 = vunpack.c.h.b16 %v941
    %v3900 = vunpack.c.l.b16 %v942
    %v3901 = vunpack.c.h.b16 %v942
    %v3902 = vunpack.c.l.b16 %v943
    %v3903 = vunpack.c.h.b16 %v943
    %v3904 = vunpack.c.l.b16 %v944
    %v3905 = vunpack.c.h.b16 %v944
    %v3906 = vunpack.c.l.b16 %v945
    %v3907 = vunpack.c.h.b16 %v945
    %v3908 = vunpack.c.l.b16 %v946
    %v3909 = vunpack.c.h.b16 %v946
    %v3910 = vunpack.c.l.b16 %v947
    %v3911 = vunpack.c.h.b16 %v947
    %v3912 = vunpack.c.l.b16 %v948
    %v3913 = vunpack.c.h.b16 %v948
    %v3914 = vunpack.c.l.b16 %v949
    %v3915 = vunpack.c.h.b16 %v949
    %v3916 = vunpack.c.l.b16 %v950
    %v3917 = vunpack.c.h.b16 %v950
    %v3918 = vunpack.c.l.b16 %v951
    %v3919 = vunpack.c.h.b16 %v951
    %v3920 = vunpack.c.l.b16 %v952
    %v3921 = vunpack.c.h.b16 %v952
    %v3922 = vunpack.c.l.b16 %v953
    %v3923 = vunpack.c.h.b16 %v953
    %v3924 = vunpack.c.l.b16 %v954
    %v3925 = vunpack.c.h.b16 %v954
    %v3926 = vunpack.c.l.b16 %v955
    %v3927 = vunpack.c.h.b16 %v955
    %v3928 = vunpack.c.l.b16 %v956
    %v3929 = vunpack.c.h.b16 %v956
    %v3930 = vunpack.c.l.b16 %v957
    %v3931 = vunpack.c.h.b16 %v957
    %v3932 = vunpack.c.l.b16 %v958
    %v3933 = vunpack.c.h.b16 %v958
    %v3934 = vunpack.c.l.b16 %v959
    %v3935 = vunpack.c.h.b16 %v959
    %v3936 = vunpack.c.l.b16 %v960
    %v3937 = vunpack.c.h.b16 %v960
    %v3938 = vunpack.c.l.b16 %v961
    %v3939 = vunpack.c.h.b16 %v961
    %v3940 = vunpack.c.l.b16 %v962
    %v3941 = vunpack.c.h.b16 %v962
    %v3942 = vunpack.c.l.b16 %v963
    %v3943 = vunpack.c.h.b16 %v963
    %v3944 = vunpack.c.l.b16 %v964
    %v3945 = vunpack.c.h.b16 %v964
    %v3946 = vunpack.c.l.b16 %v965
    %v3947 = vunpack.c.h.b16 %v965
    %v3948 = vunpack.c.l.b16 %v966
    %v3949 = vunpack.c.h.b16 %v966
    %v3950 = vunpack.c.l.b16 %v967
    %v3951 = vunpack.c.h.b16 %v967
    %v3952 = vunpack.c.l.b16 %v968
    %v3953 = vunpack.c.h.b16 %v968
    %v3954 = vunpack.c.l.b16 %v969
    %v3955 = vunpack.c.h.b16 %v969
    %v3956 = vunpack.c.l.b16 %v970
    %v3957 = vunpack.c.h.b16 %v970
    %v3958 = vunpack.c.l.b16 %v971
    %v3959 = vunpack.c.h.b16 %v971
    %v3960 = vunpack.c.l.b16 %v972
    %v3961 = vunpack.c.h.b16 %v972
    %v3962 = vunpack.c.l.b16 %v973
    %v3963 = vunpack.c.h.b16 %v973
    %v3964 = vunpack.c.l.b16 %v974
    %v3965 = vunpack.c.h.b16 %v974
    %v3966 = vunpack.c.l.b16 %v975
    %v3967 = vunpack.c.h.b16 %v975
    %v3968 = vunpack.c.l.b16 %v976
    %v3969 = vunpack.c.h.b16 %v976
    %v3970 = vunpack.c.l.b16 %v977
    %v3971 = vunpack.c.h.b16 %v977
    %v3972 = vunpack.c.l.b16 %v978
    %v3973 = vunpack.c.h.b16 %v978
    %v3974 = vunpack.c.l.b16 %v979
    %v3975 = vunpack.c.h.b16 %v979
    %v3976 = vunpack.c.l.b16 %v980
    %v3977 = vunpack.c.h.b16 %v980
    %v3978 = vunpack.c.l.b16 %v981
    %v3979 = vunpack.c.h.b16 %v981
    %v3980 = vunpack.c.l.b16 %v982
    %v3981 = vunpack.c.h.b16 %v982
    %v3982 = vunpack.c.l.b16 %v983
    %v3983 = vunpack.c.h.b16 %v983
    %v3984 = vunpack.c.l.b16 %v984
    %v3985 = vunpack.c.h.b16 %v984
    %v3986 = vunpack.c.l.b16 %v985
    %v3987 = vunpack.c.h.b16 %v985
    %v3988 = vunpack.c.l.b16 %v986
    %v3989 = vunpack.c.h.b16 %v986
    %v3990 = vunpack.c.l.b16 %v987
    %v3991 = vunpack.c.h.b16 %v987
    %v3992 = vunpack.c.l.b16 %v988
    %v3993 = vunpack.c.h.b16 %v988
    %v3994 = vunpack.c.l.b16 %v989
    %v3995 = vunpack.c.h.b16 %v989
    %v3996 = vunpack.c.l.b16 %v990
    %v3997 = vunpack.c.h.b16 %v990
    %v3998 = vunpack.c.l.b16 %v991
    %v3999 = vunpack.c.h.b16 %v991
    %v4000 = vunpack.c.l.b16 %v992
    %v4001 = vunpack.c.h.b16 %v992
    %v4002 = vunpack.c.l.b16 %v993
    %v4003 = vunpack.c.h.b16 %v993
    %v4004 = vunpack.c.l.b16 %v994
    %v4005 = vunpack.c.h.b16 %v994
    %v4006 = vunpack.c.l.b16 %v995
    %v4007 = vunpack.c.h.b16 %v995
    %v4008 = vunpack.c.l.b16 %v996
    %v4009 = vunpack.c.h.b16 %v996
    %v4010 = vunpack.c.l.b16 %v997
    %v4011 = vunpack.c.h.b16 %v997
    %v4012 = vunpack.c.l.b16 %v998
    %v4013 = vunpack.c.h.b16 %v998
    %v4014 = vunpack.c.l.b16 %v999
    %v4015 = vunpack.c.h.b16 %v999
    %v4016 = vunpack.c.l.b16 %v1000
    %v4017 = vunpack.c.h.b16 %v1000
    %v4018 = vunpack.c.l.b16 %v1001
    %v4019 = vunpack.c.h.b16 %v1001
    %v4020 = vunpack.c.l.b16 %v1002
    %v4021 = vunpack.c.h.b16 %v1002
    %v4022 = vunpack.c.l.b16 %v1003
    %v4023 = vunpack.c.h.b16 %v1003
    %v4024 = vunpack.c.l.b16 %v1004
    %v4025 = vunpack.c.h.b16 %v1004
    %v4026 = vunpack.c.l.b16 %v1005
    %v4027 = vunpack.c.h.b16 %v1005
    %v4028 = vunpack.c.l.b16 %v1006
    %v4029 = vunpack.c.h.b16 %v1006
    %v4030 = vunpack.c.l.b16 %v1007
    %v4031 = vunpack.c.h.b16 %v1007
    %v4032 = vunpack.c.l.b16 %v1008
    %v4033 = vunpack.c.h.b16 %v1008
    %v4034 = vunpack.c.l.b16 %v1009
    %v4035 = vunpack.c.h.b16 %v1009
    %v4036 = vunpack.c.l.b16 %v1010
    %v4037 = vunpack.c.h.b16 %v1010
    %v4038 = vunpack.c.l.b16 %v1011
    %v4039 = vunpack.c.h.b16 %v1011
    %v4040 = vunpack.c.l.b16 %v1012
    %v4041 = vunpack.c.h.b16 %v1012
    %v4042 = vunpack.c.l.b16 %v1013
    %v4043 = vunpack.c.h.b16 %v1013
    %v4044 = vunpack.c.l.b16 %v1014
    %v4045 = vunpack.c.h.b16 %v1014
    %v4046 = vunpack.c.l.b16 %v1015
    %v4047 = vunpack.c.h.b16 %v1015
    %v4048 = vunpack.c.l.b16 %v1016
    %v4049 = vunpack.c.h.b16 %v1016
    %v4050 = vunpack.c.l.b16 %v1017
    %v4051 = vunpack.c.h.b16 %v1017
    %v4052 = vunpack.c.l.b16 %v1018
    %v4053 = vunpack.c.h.b16 %v1018
    %v4054 = vunpack.c.l.b16 %v1019
    %v4055 = vunpack.c.h.b16 %v1019
    %v4056 = vunpack.c.l.b16 %v1020
    %v4057 = vunpack.c.h.b16 %v1020
    %v4058 = vunpack.c.l.b16 %v1021
    %v4059 = vunpack.c.h.b16 %v1021
    %v4060 = vunpack.c.l.b16 %v1022
    %v4061 = vunpack.c.h.b16 %v1022
    %v4062 = vunpack.c.l.b16 %v1023
    %v4063 = vunpack.c.h.b16 %v1023
    %v4064 = vunpack.c.l.b16 %v1024
    %v4065 = vunpack.c.h.b16 %v1024
    %v4066 = vunpack.c.l.b16 %v1025
    %v4067 = vunpack.c.h.b16 %v1025
    %v4068 = vunpack.c.l.b16 %v1026
    %v4069 = vunpack.c.h.b16 %v1026
    %v4070 = vunpack.c.l.b16 %v1027
    %v4071 = vunpack.c.h.b16 %v1027
    %v4072 = vunpack.c.l.b16 %v1028
    %v4073 = vunpack.c.h.b16 %v1028
    %v4074 = vunpack.c.l.b16 %v1029
    %v4075 = vunpack.c.h.b16 %v1029
    %v4076 = vunpack.c.l.b16 %v1030
    %v4077 = vunpack.c.h.b16 %v1030
    %v4078 = vunpack.c.l.b16 %v1031
    %v4079 = vunpack.c.h.b16 %v1031
    %v4080 = vunpack.c.l.b16 %v1032
    %v4081 = vunpack.c.h.b16 %v1032
    %v4082 = vunpack.c.l.b16 %v1033
    %v4083 = vunpack.c.h.b16 %v1033
    %v4084 = vunpack.c.l.b16 %v1034
    %v4085 = vunpack.c.h.b16 %v1034
    %v4086 = vunpack.c.l.b16 %v1035
    %v4087 = vunpack.c.h.b16 %v1035
    %v4088 = vunpack.c.l.b16 %v1036
    %v4089 = vunpack.c.h.b16 %v1036
    %v4090 = vunpack.c.l.b16 %v1037
    %v4091 = vunpack.c.h.b16 %v1037
    %v4092 = vunpack.c.l.b16 %v1038
    %v4093 = vunpack.c.h.b16 %v1038
    %v4094 = vunpack.c.l.b16 %v1039
    %v4095 = vunpack.c.h.b16 %v1039
    %v4096 = vunpack.c.l.b16 %v1040
    %v4097 = vunpack.c.h.b16 %v1040
    %v4098 = vunpack.c.l.b16 %v1041
    %v4099 = vunpack.c.h.b16 %v1041
    %v4100 = vunpack.c.l.b16 %v1042
    %v4101 = vunpack.c.h.b16 %v1042
    %v4102 = vunpack.c.l.b16 %v1043
    %v4103 = vunpack.c.h.b16 %v1043
    %v4104 = vunpack.c.l.b16 %v1044
    %v4105 = vunpack.c.h.b16 %v1044
    %v4106 = vunpack.c.l.b16 %v1045
    %v4107 = vunpack.c.h.b16 %v1045
    %v4108 = vunpack.c.l.b16 %v1046
    %v4109 = vunpack.c.h.b16 %v1046
    %v4110 = vunpack.c.l.b16 %v1047
    %v4111 = vunpack.c.h.b16 %v1047
    %v4112 = vunpack.c.l.b16 %v1048
    %v4113 = vunpack.c.h.b16 %v1048
    %v4114 = vunpack.c.l.b16 %v1049
    %v4115 = vunpack.c.h.b16 %v1049
    %v4116 = vunpack.c.l.b16 %v1050
    %v4117 = vunpack.c.h.b16 %v1050
    %v4118 = vunpack.c.l.b16 %v1051
    %v4119 = vunpack.c.h.b16 %v1051
    %v4120 = vunpack.c.l.b16 %v1052
    %v4121 = vunpack.c.h.b16 %v1052
    %v4122 = vunpack.c.l.b16 %v1053
    %v4123 = vunpack.c.h.b16 %v1053
    %v4124 = vunpack.c.l.b16 %v1054
    %v4125 = vunpack.c.h.b16 %v1054
    %v4126 = vunpack.c.l.b16 %v1055
    %v4127 = vunpack.c.h.b16 %v1055
    %v4128 = vunpack.c.l.b16 %v1056
    %v4129 = vunpack.c.h.b16 %v1056
    %v4130 = vunpack.c.l.b16 %v1057
    %v4131 = vunpack.c.h.b16 %v1057
    %v4132 = vunpack.c.l.b16 %v1058
    %v4133 = vunpack.c.h.b16 %v1058
    %v4134 = vunpack.c.l.b16 %v1059
    %v4135 = vunpack.c.h.b16 %v1059
    %v4136 = vunpack.c.l.b16 %v1060
    %v4137 = vunpack.c.h.b16 %v1060
    %v4138 = vunpack.c.l.b16 %v1061
    %v4139 = vunpack.c.h.b16 %v1061
    %v4140 = vunpack.c.l.b16 %v1062
    %v4141 = vunpack.c.h.b16 %v1062
    %v4142 = vunpack.c.l.b16 %v1063
    %v4143 = vunpack.c.h.b16 %v1063
    %v4144 = vunpack.c.l.b16 %v1064
    %v4145 = vunpack.c.h.b16 %v1064
    %v4146 = vunpack.c.l.b16 %v1065
    %v4147 = vunpack.c.h.b16 %v1065
    %v4148 = vunpack.c.l.b16 %v1066
    %v4149 = vunpack.c.h.b16 %v1066
    %v4150 = vunpack.c.l.b16 %v1067
    %v4151 = vunpack.c.h.b16 %v1067
    %v4152 = vunpack.c.l.b16 %v1068
    %v4153 = vunpack.c.h.b16 %v1068
    %v4154 = vunpack.c.l.b16 %v1069
    %v4155 = vunpack.c.h.b16 %v1069
    %v4156 = vunpack.c.l.b16 %v1070
    %v4157 = vunpack.c.h.b16 %v1070
    %v4158 = vunpack.c.l.b16 %v1071
    %v4159 = vunpack.c.h.b16 %v1071
    %v4160 = vunpack.c.l.b16 %v1072
    %v4161 = vunpack.c.h.b16 %v1072
    %v4162 = vunpack.c.l.b16 %v1073
    %v4163 = vunpack.c.h.b16 %v1073
    %v4164 = vunpack.c.l.b16 %v1074
    %v4165 = vunpack.c.h.b16 %v1074
    %v4166 = vunpack.c.l.b16 %v1075
    %v4167 = vunpack.c.h.b16 %v1075
    %v4168 = vunpack.c.l.b16 %v1076
    %v4169 = vunpack.c.h.b16 %v1076
    %v4170 = vunpack.c.l.b16 %v1077
    %v4171 = vunpack.c.h.b16 %v1077
    %v4172 = vunpack.c.l.b16 %v1078
    %v4173 = vunpack.c.h.b16 %v1078
    %v4174 = vunpack.c.l.b16 %v1079
    %v4175 = vunpack.c.h.b16 %v1079
    %v4176 = vunpack.c.l.b16 %v1080
    %v4177 = vunpack.c.h.b16 %v1080
    %v4178 = vunpack.c.l.b16 %v1081
    %v4179 = vunpack.c.h.b16 %v1081
    %v4180 = vunpack.c.l.b16 %v1082
    %v4181 = vunpack.c.h.b16 %v1082
    %v4182 = vunpack.c.l.b16 %v1083
    %v4183 = vunpack.c.h.b16 %v1083
    %v4184 = vunpack.c.l.b16 %v1084
    %v4185 = vunpack.c.h.b16 %v1084
    %v4186 = vunpack.c.l.b16 %v1085
    %v4187 = vunpack.c.h.b16 %v1085
    %v4188 = vunpack.c.l.b16 %v1086
    %v4189 = vunpack.c.h.b16 %v1086
    %v4190 = vunpack.c.l.b16 %v1087
    %v4191 = vunpack.c.h.b16 %v1087
    %v4192 = vunpack.c.l.b16 %v1088
    %v4193 = vunpack.c.h.b16 %v1088
    %v4194 = vunpack.c.l.b16 %v1089
    %v4195 = vunpack.c.h.b16 %v1089
    %v4196 = vunpack.c.l.b16 %v1090
    %v4197 = vunpack.c.h.b16 %v1090
    %v4198 = vunpack.c.l.b16 %v1091
    %v4199 = vunpack.c.h.b16 %v1091
    %v4200 = vunpack.c.l.b16 %v1092
    %v4201 = vunpack.c.h.b16 %v1092
    %v4202 = vunpack.c.l.b16 %v1093
    %v4203 = vunpack.c.h.b16 %v1093
    %v4204 = vunpack.c.l.b16 %v1094
    %v4205 = vunpack.c.h.b16 %v1094
    %v4206 = vunpack.c.l.b16 %v1095
    %v4207 = vunpack.c.h.b16 %v1095
    %v4208 = vunpack.c.l.b16 %v1096
    %v4209 = vunpack.c.h.b16 %v1096
    %v4210 = vunpack.c.l.b16 %v1097
    %v4211 = vunpack.c.h.b16 %v1097
    %v4212 = vunpack.c.l.b16 %v1098
    %v4213 = vunpack.c.h.b16 %v1098
    %v4214 = vunpack.c.l.b16 %v1099
    %v4215 = vunpack.c.h.b16 %v1099
    %v4216 = vunpack.c.l.b16 %v1100
    %v4217 = vunpack.c.h.b16 %v1100
    %v4218 = vunpack.c.l.b16 %v1101
    %v4219 = vunpack.c.h.b16 %v1101
    %v4220 = vunpack.c.l.b16 %v1102
    %v4221 = vunpack.c.h.b16 %v1102
    %v4222 = vunpack.c.l.b16 %v1103
    %v4223 = vunpack.c.h.b16 %v1103
    %v4224 = vunpack.c.l.b16 %v1104
    %v4225 = vunpack.c.h.b16 %v1104
    %v4226 = vunpack.c.l.b16 %v1105
    %v4227 = vunpack.c.h.b16 %v1105
    %v4228 = vunpack.c.l.b16 %v1106
    %v4229 = vunpack.c.h.b16 %v1106
    %v4230 = vunpack.c.l.b16 %v1107
    %v4231 = vunpack.c.h.b16 %v1107
    %v4232 = vunpack.c.l.b16 %v1108
    %v4233 = vunpack.c.h.b16 %v1108
    %v4234 = vunpack.c.l.b16 %v1109
    %v4235 = vunpack.c.h.b16 %v1109
    %v4236 = vunpack.c.l.b16 %v1110
    %v4237 = vunpack.c.h.b16 %v1110
    %v4238 = vunpack.c.l.b16 %v1111
    %v4239 = vunpack.c.h.b16 %v1111
    %v4240 = vunpack.c.l.b16 %v1112
    %v4241 = vunpack.c.h.b16 %v1112
    %v4242 = vunpack.c.l.b16 %v1113
    %v4243 = vunpack.c.h.b16 %v1113
    %v4244 = vunpack.c.l.b16 %v1114
    %v4245 = vunpack.c.h.b16 %v1114
    %v4246 = vunpack.c.l.b16 %v1115
    %v4247 = vunpack.c.h.b16 %v1115
    %v4248 = vunpack.c.l.b16 %v1116
    %v4249 = vunpack.c.h.b16 %v1116
    %v4250 = vunpack.c.l.b16 %v1117
    %v4251 = vunpack.c.h.b16 %v1117
    %v4252 = vunpack.c.l.b16 %v1118
    %v4253 = vunpack.c.h.b16 %v1118
    %v4254 = vunpack.c.l.b16 %v1119
    %v4255 = vunpack.c.h.b16 %v1119
    %v4256 = vunpack.c.l.b16 %v1120
    %v4257 = vunpack.c.h.b16 %v1120
    %v4258 = vunpack.c.l.b16 %v1121
    %v4259 = vunpack.c.h.b16 %v1121
    %v4260 = vunpack.c.l.b16 %v1122
    %v4261 = vunpack.c.h.b16 %v1122
    %v4262 = vunpack.c.l.b16 %v1123
    %v4263 = vunpack.c.h.b16 %v1123
    %v4264 = vunpack.c.l.b16 %v1124
    %v4265 = vunpack.c.h.b16 %v1124
    %v4266 = vunpack.c.l.b16 %v1125
    %v4267 = vunpack.c.h.b16 %v1125
    %v4268 = vunpack.c.l.b16 %v1126
    %v4269 = vunpack.c.h.b16 %v1126
    %v4270 = vunpack.c.l.b16 %v1127
    %v4271 = vunpack.c.h.b16 %v1127
    %v4272 = vunpack.c.l.b16 %v1128
    %v4273 = vunpack.c.h.b16 %v1128
    %v4274 = vunpack.c.l.b16 %v1129
    %v4275 = vunpack.c.h.b16 %v1129
    %v4276 = vunpack.c.l.b16 %v1130
    %v4277 = vunpack.c.h.b16 %v1130
    %v4278 = vunpack.c.l.b16 %v1131
    %v4279 = vunpack.c.h.b16 %v1131
    %v4280 = vunpack.c.l.b16 %v1132
    %v4281 = vunpack.c.h.b16 %v1132
    %v4282 = vunpack.c.l.b16 %v1133
    %v4283 = vunpack.c.h.b16 %v1133
    %v4284 = vunpack.c.l.b16 %v1134
    %v4285 = vunpack.c.h.b16 %v1134
    %v4286 = vunpack.c.l.b16 %v1135
    %v4287 = vunpack.c.h.b16 %v1135
    %v4288 = vunpack.c.l.b16 %v1136
    %v4289 = vunpack.c.h.b16 %v1136
    %v4290 = vunpack.c.l.b16 %v1137
    %v4291 = vunpack.c.h.b16 %v1137
    %v4292 = vunpack.c.l.b16 %v1138
    %v4293 = vunpack.c.h.b16 %v1138
    %v4294 = vunpack.c.l.b16 %v1139
    %v4295 = vunpack.c.h.b16 %v1139
    %v4296 = vunpack.c.l.b16 %v1140
    %v4297 = vunpack.c.h.b16 %v1140
    %v4298 = vunpack.c.l.b16 %v1141
    %v4299 = vunpack.c.h.b16 %v1141
    %v4300 = vunpack.c.l.b16 %v1142
    %v4301 = vunpack.c.h.b16 %v1142
    %v4302 = vunpack.c.l.b16 %v1143
    %v4303 = vunpack.c.h.b16 %v1143
    %v4304 = vunpack.c.l.b16 %v1144
    %v4305 = vunpack.c.h.b16 %v1144
    %v4306 = vunpack.c.l.b16 %v1145
    %v4307 = vunpack.c.h.b16 %v1145
    %v4308 = vunpack.c.l.b16 %v1146
    %v4309 = vunpack.c.h.b16 %v1146
    %v4310 = vunpack.c.l.b16 %v1147
    %v4311 = vunpack.c.h.b16 %v1147
    %v4312 = vunpack.c.l.b16 %v1148
    %v4313 = vunpack.c.h.b16 %v1148
    %v4314 = vunpack.c.l.b16 %v1149
    %v4315 = vunpack.c.h.b16 %v1149
    %v4316 = vunpack.c.l.b16 %v1150
    %v4317 = vunpack.c.h.b16 %v1150
    %v4318 = vunpack.c.l.b16 %v1151
    %v4319 = vunpack.c.h.b16 %v1151
    %v4320 = vunpack.c.l.b16 %v1152
    %v4321 = vunpack.c.h.b16 %v1152
    %v4322 = vunpack.c.l.b16 %v1153
    %v4323 = vunpack.c.h.b16 %v1153
    %v4324 = vpack.c.b16 %v2284, %v2276
    %v4325 = vpack.c.b16 %v2285, %v2277
    %v4326 = vpack.c.b16 %v2286, %v2278
    %v4327 = vpack.c.b16 %v2287, %v2279
    %v4328 = vpack.c.b16 %v2288, %v2280
    %v4329 = vpack.c.b16 %v2289, %v2281
    %v4330 = vpack.c.b16 %v2290, %v2282
    %v4331 = vpack.c.b16 %v2291, %v2283
    %v4332 = vpack.c.b16 %v2300, %v2292
    %v4333 = vpack.c.b16 %v2301, %v2293
    %v4334 = vpack.c.b16 %v2302, %v2294
    %v4335 = vpack.c.b16 %v2303, %v2295
    %v4336 = vpack.c.b16 %v2304, %v2296
    %v4337 = vpack.c.b16 %v2305, %v2297
    %v4338 = vpack.c.b16 %v2306, %v2298
    %v4339 = vpack.c.b16 %v2307, %v2299
    %v4340 = vpack.c.b16 %v2316, %v2308
    %v4341 = vpack.c.b16 %v2317, %v2309
    %v4342 = vpack.c.b16 %v2318, %v2310
    %v4343 = vpack.c.b16 %v2319, %v2311
    %v4344 = vpack.c.b16 %v2320, %v2312
    %v4345 = vpack.c.b16 %v2321, %v2313
    %v4346 = vpack.c.b16 %v2322, %v2314
    %v4347 = vpack.c.b16 %v2323, %v2315
    %v4348 = vpack.c.b16 %v2332, %v2324
    %v4349 = vpack.c.b16 %v2333, %v2325
    %v4350 = vpack.c.b16 %v2334, %v2326
    %v4351 = vpack.c.b16 %v2335, %v2327
    %v4352 = vpack.c.b16 %v2336, %v2328
    %v4353 = vpack.c.b16 %v2337, %v2329
    %v4354 = vpack.c.b16 %v2338, %v2330
    %v4355 = vpack.c.b16 %v2339, %v2331
    %v4356 = vpack.c.b16 %v2348, %v2340
    %v4357 = vpack.c.b16 %v2349, %v2341
    %v4358 = vpack.c.b16 %v2350, %v2342
    %v4359 = vpack.c.b16 %v2351, %v2343
    %v4360 = vpack.c.b16 %v2352, %v2344
    %v4361 = vpack.c.b16 %v2353, %v2345
    %v4362 = vpack.c.b16 %v2354, %v2346
    %v4363 = vpack.c.b16 %v2355, %v2347
    %v4364 = vpack.c.b16 %v2364, %v2356
    %v4365 = vpack.c.b16 %v2365, %v2357
    %v4366 = vpack.c.b16 %v2366, %v2358
    %v4367 = vpack.c.b16 %v2367, %v2359
    %v4368 = vpack.c.b16 %v2368, %v2360
    %v4369 = vpack.c.b16 %v2369, %v2361
    %v4370 = vpack.c.b16 %v2370, %v2362
    %v4371 = vpack.c.b16 %v2371, %v2363
    %v4372 = vpack.c.b16 %v2380, %v2372
    %v4373 = vpack.c.b16 %v2381, %v2373
    %v4374 = vpack.c.b16 %v2382, %v2374
    %v4375 = vpack.c.b16 %v2383, %v2375
    %v4376 = vpack.c.b16 %v2384, %v2376
    %v4377 = vpack.c.b16 %v2385, %v2377
    %v4378 = vpack.c.b16 %v2386, %v2378
    %v4379 = vpack.c.b16 %v2387, %v2379
    %v4380 = vpack.c.b16 %v2396, %v2388
    %v4381 = vpack.c.b16 %v2397, %v2389
    %v4382 = vpack.c.b16 %v2398, %v2390
    %v4383 = vpack.c.b16 %v2399, %v2391
    %v4384 = vpack.c.b16 %v2400, %v2392
    %v4385 = vpack.c.b16 %v2401, %v2393
    %v4386 = vpack.c.b16 %v2402, %v2394
    %v4387 = vpack.c.b16 %v2403, %v2395
    %v4388 = vpack.c.b16 %v2412, %v2404
    %v4389 = vpack.c.b16 %v2413, %v2405
    %v4390 = vpack.c.b16 %v2414, %v2406
    %v4391 = vpack.c.b16 %v2415, %v2407
    %v4392 = vpack.c.b16 %v2416, %v2408
    %v4393 = vpack.c.b16 %v2417, %v2409
    %v4394 = vpack.c.b16 %v2418, %v2410
    %v4395 = vpack.c.b16 %v2419, %v2411
    %v4396 = vpack.c.b16 %v2428, %v2420
    %v4397 = vpack.c.b16 %v2429, %v2421
    %v4398 = vpack.c.b16 %v2430, %v2422
    %v4399 = vpack.c.b16 %v2431, %v2423
    %v4400 = vpack.c.b16 %v2432, %v2424
    %v4401 = vpack.c.b16 %v2433, %v2425
    %v4402 = vpack.c.b16 %v2434, %v2426
    %v4403 = vpack.c.b16 %v2435, %v2427
    %v4404 = vpack.c.b16 %v2444, %v2436
    %v4405 = vpack.c.b16 %v2445, %v2437
    %v4406 = vpack.c.b16 %v2446, %v2438
    %v4407 = vpack.c.b16 %v2447, %v2439
    %v4408 = vpack.c.b16 %v2448, %v2440
    %v4409 = vpack.c.b16 %v2449, %v2441
    %v4410 = vpack.c.b16 %v2450, %v2442
    %v4411 = vpack.c.b16 %v2451, %v2443
    %v4412 = vpack.c.b16 %v2460, %v2452
    %v4413 = vpack.c.b16 %v2461, %v2453
    %v4414 = vpack.c.b16 %v2462, %v2454
    %v4415 = vpack.c.b16 %v2463, %v2455
    %v4416 = vpack.c.b16 %v2464, %v2456
    %v4417 = vpack.c.b16 %v2465, %v2457
    %v4418 = vpack.c.b16 %v2466, %v2458
    %v4419 = vpack.c.b16 %v2467, %v2459
    %v4420 = vpack.c.b16 %v2476, %v2468
    %v4421 = vpack.c.b16 %v2477, %v2469
    %v4422 = vpack.c.b16 %v2478, %v2470
    %v4423 = vpack.c.b16 %v2479, %v2471
    %v4424 = vpack.c.b16 %v2480, %v2472
    %v4425 = vpack.c.b16 %v2481, %v2473
    %v4426 = vpack.c.b16 %v2482, %v2474
    %v4427 = vpack.c.b16 %v2483, %v2475
    %v4428 = vpack.c.b16 %v2492, %v2484
    %v4429 = vpack.c.b16 %v2493, %v2485
    %v4430 = vpack.c.b16 %v2494, %v2486
    %v4431 = vpack.c.b16 %v2495, %v2487
    %v4432 = vpack.c.b16 %v2496, %v2488
    %v4433 = vpack.c.b16 %v2497, %v2489
    %v4434 = vpack.c.b16 %v2498, %v2490
    %v4435 = vpack.c.b16 %v2499, %v2491
    %v4436 = vpack.c.b16 %v2508, %v2500
    %v4437 = vpack.c.b16 %v2509, %v2501
    %v4438 = vpack.c.b16 %v2510, %v2502
    %v4439 = vpack.c.b16 %v2511, %v2503
    %v4440 = vpack.c.b16 %v2512, %v2504
    %v4441 = vpack.c.b16 %v2513, %v2505
    %v4442 = vpack.c.b16 %v2514, %v2506
    %v4443 = vpack.c.b16 %v2515, %v2507
    %v4444 = vpack.c.b16 %v2524, %v2516
    %v4445 = vpack.c.b16 %v2525, %v2517
    %v4446 = vpack.c.b16 %v2526, %v2518
    %v4447 = vpack.c.b16 %v2527, %v2519
    %v4448 = vpack.c.b16 %v2528, %v2520
    %v4449 = vpack.c.b16 %v2529, %v2521
    %v4450 = vpack.c.b16 %v2530, %v2522
    %v4451 = vpack.c.b16 %v2531, %v2523
    %v4452 = vpack.c.b16 %v2540, %v2532
    %v4453 = vpack.c.b16 %v2541, %v2533
    %v4454 = vpack.c.b16 %v2542, %v2534
    %v4455 = vpack.c.b16 %v2543, %v2535
    %v4456 = vpack.c.b16 %v2544, %v2536
    %v4457 = vpack.c.b16 %v2545, %v2537
    %v4458 = vpack.c.b16 %v2546, %v2538
    %v4459 = vpack.c.b16 %v2547, %v2539
    %v4460 = vpack.c.b16 %v2556, %v2548
    %v4461 = vpack.c.b16 %v2557, %v2549
    %v4462 = vpack.c.b16 %v2558, %v2550
    %v4463 = vpack.c.b16 %v2559, %v2551
    %v4464 = vpack.c.b16 %v2560, %v2552
    %v4465 = vpack.c.b16 %v2561, %v2553
    %v4466 = vpack.c.b16 %v2562, %v2554
    %v4467 = vpack.c.b16 %v2563, %v2555
    %v4468 = vpack.c.b16 %v2572, %v2564
    %v4469 = vpack.c.b16 %v2573, %v2565
    %v4470 = vpack.c.b16 %v2574, %v2566
    %v4471 = vpack.c.b16 %v2575, %v2567
    %v4472 = vpack.c.b16 %v2576, %v2568
    %v4473 = vpack.c.b16 %v2577, %v2569
    %v4474 = vpack.c.b16 %v2578, %v2570
    %v4475 = vpack.c.b16 %v2579, %v2571
    %v4476 = vpack.c.b16 %v2588, %v2580
    %v4477 = vpack.c.b16 %v2589, %v2581
    %v4478 = vpack.c.b16 %v2590, %v2582
    %v4479 = vpack.c.b16 %v2591, %v2583
    %v4480 = vpack.c.b16 %v2592, %v2584
    %v4481 = vpack.c.b16 %v2593, %v2585
    %v4482 = vpack.c.b16 %v2594, %v2586
    %v4483 = vpack.c.b16 %v2595, %v2587
    %v4484 = vpack.c.b16 %v2604, %v2596
    %v4485 = vpack.c.b16 %v2605, %v2597
    %v4486 = vpack.c.b16 %v2606, %v2598
    %v4487 = vpack.c.b16 %v2607, %v2599
    %v4488 = vpack.c.b16 %v2608, %v2600
    %v4489 = vpack.c.b16 %v2609, %v2601
    %v4490 = vpack.c.b16 %v2610, %v2602
    %v4491 = vpack.c.b16 %v2611, %v2603
    %v4492 = vpack.c.b16 %v2620, %v2612
    %v4493 = vpack.c.b16 %v2621, %v2613
    %v4494 = vpack.c.b16 %v2622, %v2614
    %v4495 = vpack.c.b16 %v2623, %v2615
    %v4496 = vpack.c.b16 %v2624, %v2616
    %v4497 = vpack.c.b16 %v2625, %v2617
    %v4498 = vpack.c.b16 %v2626, %v2618
    %v4499 = vpack.c.b16 %v2627, %v2619
    %v4500 = vpack.c.b16 %v2636, %v2628
    %v4501 = vpack.c.b16 %v2637, %v2629
    %v4502 = vpack.c.b16 %v2638, %v2630
    %v4503 = vpack.c.b16 %v2639, %v2631
    %v4504 = vpack.c.b16 %v2640, %v2632
    %v4505 = vpack.c.b16 %v2641, %v2633
    %v4506 = vpack.c.b16 %v2642, %v2634
    %v4507 = vpack.c.b16 %v2643, %v2635
    %v4508 = vpack.c.b16 %v2652, %v2644
    %v4509 = vpack.c.b16 %v2653, %v2645
    %v4510 = vpack.c.b16 %v2654, %v2646
    %v4511 = vpack.c.b16 %v2655, %v2647
    %v4512 = vpack.c.b16 %v2656, %v2648
    %v4513 = vpack.c.b16 %v2657, %v2649
    %v4514 = vpack.c.b16 %v2658, %v2650
    %v4515 = vpack.c.b16 %v2659, %v2651
    %v4516 = vpack.c.b16 %v2668, %v2660
    %v4517 = vpack.c.b16 %v2669, %v2661
    %v4518 = vpack.c.b16 %v2670, %v2662
    %v4519 = vpack.c.b16 %v2671, %v2663
    %v4520 = vpack.c.b16 %v2672, %v2664
    %v4521 = vpack.c.b16 %v2673, %v2665
    %v4522 = vpack.c.b16 %v2674, %v2666
    %v4523 = vpack.c.b16 %v2675, %v2667
    %v4524 = vpack.c.b16 %v2684, %v2676
    %v4525 = vpack.c.b16 %v2685, %v2677
    %v4526 = vpack.c.b16 %v2686, %v2678
    %v4527 = vpack.c.b16 %v2687, %v2679
    %v4528 = vpack.c.b16 %v2688, %v2680
    %v4529 = vpack.c.b16 %v2689, %v2681
    %v4530 = vpack.c.b16 %v2690, %v2682
    %v4531 = vpack.c.b16 %v2691, %v2683
    %v4532 = vpack.c.b16 %v2700, %v2692
    %v4533 = vpack.c.b16 %v2701, %v2693
    %v4534 = vpack.c.b16 %v2702, %v2694
    %v4535 = vpack.c.b16 %v2703, %v2695
    %v4536 = vpack.c.b16 %v2704, %v2696
    %v4537 = vpack.c.b16 %v2705, %v2697
    %v4538 = vpack.c.b16 %v2706, %v2698
    %v4539 = vpack.c.b16 %v2707, %v2699
    %v4540 = vpack.c.b16 %v2716, %v2708
    %v4541 = vpack.c.b16 %v2717, %v2709
    %v4542 = vpack.c.b16 %v2718, %v2710
    %v4543 = vpack.c.b16 %v2719, %v2711
    %v4544 = vpack.c.b16 %v2720, %v2712
    %v4545 = vpack.c.b16 %v2721, %v2713
    %v4546 = vpack.c.b16 %v2722, %v2714
    %v4547 = vpack.c.b16 %v2723, %v2715
    %v4548 = vpack.c.b16 %v2732, %v2724
    %v4549 = vpack.c.b16 %v2733, %v2725
    %v4550 = vpack.c.b16 %v2734, %v2726
    %v4551 = vpack.c.b16 %v2735, %v2727
    %v4552 = vpack.c.b16 %v2736, %v2728
    %v4553 = vpack.c.b16 %v2737, %v2729
    %v4554 = vpack.c.b16 %v2738, %v2730
    %v4555 = vpack.c.b16 %v2739, %v2731
    %v4556 = vpack.c.b16 %v2748, %v2740
    %v4557 = vpack.c.b16 %v2749, %v2741
    %v4558 = vpack.c.b16 %v2750, %v2742
    %v4559 = vpack.c.b16 %v2751, %v2743
    %v4560 = vpack.c.b16 %v2752, %v2744
    %v4561 = vpack.c.b16 %v2753, %v2745
    %v4562 = vpack.c.b16 %v2754, %v2746
    %v4563 = vpack.c.b16 %v2755, %v2747
    %v4564 = vpack.c.b16 %v2764, %v2756
    %v4565 = vpack.c.b16 %v2765, %v2757
    %v4566 = vpack.c.b16 %v2766, %v2758
    %v4567 = vpack.c.b16 %v2767, %v2759
    %v4568 = vpack.c.b16 %v2768, %v2760
    %v4569 = vpack.c.b16 %v2769, %v2761
    %v4570 = vpack.c.b16 %v2770, %v2762
    %v4571 = vpack.c.b16 %v2771, %v2763
    %v4572 = vpack.c.b16 %v2780, %v2772
    %v4573 = vpack.c.b16 %v2781, %v2773
    %v4574 = vpack.c.b16 %v2782, %v2774
    %v4575 = vpack.c.b16 %v2783, %v2775
    %v4576 = vpack.c.b16 %v2784, %v2776
    %v4577 = vpack.c.b16 %v2785, %v2777
    %v4578 = vpack.c.b16 %v2786, %v2778
    %v4579 = vpack.c.b16 %v2787, %v2779
    %v4580 = vpack.c.b16 %v2796, %v2788
    %v4581 = vpack.c.b16 %v2797, %v2789
    %v4582 = vpack.c.b16 %v2798, %v2790
    %v4583 = vpack.c.b16 %v2799, %v2791
    %v4584 = vpack.c.b16 %v2800, %v2792
    %v4585 = vpack.c.b16 %v2801, %v2793
    %v4586 = vpack.c.b16 %v2802, %v2794
    %v4587 = vpack.c.b16 %v2803, %v2795
    %v4588 = vpack.c.b16 %v2812, %v2804
    %v4589 = vpack.c.b16 %v2813, %v2805
    %v4590 = vpack.c.b16 %v2814, %v2806
    %v4591 = vpack.c.b16 %v2815, %v2807
    %v4592 = vpack.c.b16 %v2816, %v2808
    %v4593 = vpack.c.b16 %v2817, %v2809
    %v4594 = vpack.c.b16 %v2818, %v2810
    %v4595 = vpack.c.b16 %v2819, %v2811
    %v4596 = vpack.c.b16 %v2828, %v2820
    %v4597 = vpack.c.b16 %v2829, %v2821
    %v4598 = vpack.c.b16 %v2830, %v2822
    %v4599 = vpack.c.b16 %v2831, %v2823
    %v4600 = vpack.c.b16 %v2832, %v2824
    %v4601 = vpack.c.b16 %v2833, %v2825
    %v4602 = vpack.c.b16 %v2834, %v2826
    %v4603 = vpack.c.b16 %v2835, %v2827
    %v4604 = vpack.c.b16 %v2844, %v2836
    %v4605 = vpack.c.b16 %v2845, %v2837
    %v4606 = vpack.c.b16 %v2846, %v2838
    %v4607 = vpack.c.b16 %v2847, %v2839
    %v4608 = vpack.c.b16 %v2848, %v2840
    %v4609 = vpack.c.b16 %v2849, %v2841
    %v4610 = vpack.c.b16 %v2850, %v2842
    %v4611 = vpack.c.b16 %v2851, %v2843
    %v4612 = vpack.c.b16 %v2860, %v2852
    %v4613 = vpack.c.b16 %v2861, %v2853
    %v4614 = vpack.c.b16 %v2862, %v2854
    %v4615 = vpack.c.b16 %v2863, %v2855
    %v4616 = vpack.c.b16 %v2864, %v2856
    %v4617 = vpack.c.b16 %v2865, %v2857
    %v4618 = vpack.c.b16 %v2866, %v2858
    %v4619 = vpack.c.b16 %v2867, %v2859
    %v4620 = vpack.c.b16 %v2876, %v2868
    %v4621 = vpack.c.b16 %v2877, %v2869
    %v4622 = vpack.c.b16 %v2878, %v2870
    %v4623 = vpack.c.b16 %v2879, %v2871
    %v4624 = vpack.c.b16 %v2880, %v2872
    %v4625 = vpack.c.b16 %v2881, %v2873
    %v4626 = vpack.c.b16 %v2882, %v2874
    %v4627 = vpack.c.b16 %v2883, %v2875
    %v4628 = vpack.c.b16 %v2892, %v2884
    %v4629 = vpack.c.b16 %v2893, %v2885
    %v4630 = vpack.c.b16 %v2894, %v2886
    %v4631 = vpack.c.b16 %v2895, %v2887
    %v4632 = vpack.c.b16 %v2896, %v2888
    %v4633 = vpack.c.b16 %v2897, %v2889
    %v4634 = vpack.c.b16 %v2898, %v2890
    %v4635 = vpack.c.b16 %v2899, %v2891
    %v4636 = vpack.c.b16 %v2908, %v2900
    %v4637 = vpack.c.b16 %v2909, %v2901
    %v4638 = vpack.c.b16 %v2910, %v2902
    %v4639 = vpack.c.b16 %v2911, %v2903
    %v4640 = vpack.c.b16 %v2912, %v2904
    %v4641 = vpack.c.b16 %v2913, %v2905
    %v4642 = vpack.c.b16 %v2914, %v2906
    %v4643 = vpack.c.b16 %v2915, %v2907
    %v4644 = vpack.c.b16 %v2924, %v2916
    %v4645 = vpack.c.b16 %v2925, %v2917
    %v4646 = vpack.c.b16 %v2926, %v2918
    %v4647 = vpack.c.b16 %v2927, %v2919
    %v4648 = vpack.c.b16 %v2928, %v2920
    %v4649 = vpack.c.b16 %v2929, %v2921
    %v4650 = vpack.c.b16 %v2930, %v2922
    %v4651 = vpack.c.b16 %v2931, %v2923
    %v4652 = vpack.c.b16 %v2940, %v2932
    %v4653 = vpack.c.b16 %v2941, %v2933
    %v4654 = vpack.c.b16 %v2942, %v2934
    %v4655 = vpack.c.b16 %v2943, %v2935
    %v4656 = vpack.c.b16 %v2944, %v2936
    %v4657 = vpack.c.b16 %v2945, %v2937
    %v4658 = vpack.c.b16 %v2946, %v2938
    %v4659 = vpack.c.b16 %v2947, %v2939
    %v4660 = vpack.c.b16 %v2956, %v2948
    %v4661 = vpack.c.b16 %v2957, %v2949
    %v4662 = vpack.c.b16 %v2958, %v2950
    %v4663 = vpack.c.b16 %v2959, %v2951
    %v4664 = vpack.c.b16 %v2960, %v2952
    %v4665 = vpack.c.b16 %v2961, %v2953
    %v4666 = vpack.c.b16 %v2962, %v2954
    %v4667 = vpack.c.b16 %v2963, %v2955
    %v4668 = vpack.c.b16 %v2972, %v2964
    %v4669 = vpack.c.b16 %v2973, %v2965
    %v4670 = vpack.c.b16 %v2974, %v2966
    %v4671 = vpack.c.b16 %v2975, %v2967
    %v4672 = vpack.c.b16 %v2976, %v2968
    %v4673 = vpack.c.b16 %v2977, %v2969
    %v4674 = vpack.c.b16 %v2978, %v2970
    %v4675 = vpack.c.b16 %v2979, %v2971
    %v4676 = vpack.c.b16 %v2988, %v2980
    %v4677 = vpack.c.b16 %v2989, %v2981
    %v4678 = vpack.c.b16 %v2990, %v2982
    %v4679 = vpack.c.b16 %v2991, %v2983
    %v4680 = vpack.c.b16 %v2992, %v2984
    %v4681 = vpack.c.b16 %v2993, %v2985
    %v4682 = vpack.c.b16 %v2994, %v2986
    %v4683 = vpack.c.b16 %v2995, %v2987
    %v4684 = vpack.c.b16 %v3004, %v2996
    %v4685 = vpack.c.b16 %v3005, %v2997
    %v4686 = vpack.c.b16 %v3006, %v2998
    %v4687 = vpack.c.b16 %v3007, %v2999
    %v4688 = vpack.c.b16 %v3008, %v3000
    %v4689 = vpack.c.b16 %v3009, %v3001
    %v4690 = vpack.c.b16 %v3010, %v3002
    %v4691 = vpack.c.b16 %v3011, %v3003
    %v4692 = vpack.c.b16 %v3020, %v3012
    %v4693 = vpack.c.b16 %v3021, %v3013
    %v4694 = vpack.c.b16 %v3022, %v3014
    %v4695 = vpack.c.b16 %v3023, %v3015
    %v4696 = vpack.c.b16 %v3024, %v3016
    %v4697 = vpack.c.b16 %v3025, %v3017
    %v4698 = vpack.c.b16 %v3026, %v3018
    %v4699 = vpack.c.b16 %v3027, %v3019
    %v4700 = vpack.c.b16 %v3036, %v3028
    %v4701 = vpack.c.b16 %v3037, %v3029
    %v4702 = vpack.c.b16 %v3038, %v3030
    %v4703 = vpack.c.b16 %v3039, %v3031
    %v4704 = vpack.c.b16 %v3040, %v3032
    %v4705 = vpack.c.b16 %v3041, %v3033
    %v4706 = vpack.c.b16 %v3042, %v3034
    %v4707 = vpack.c.b16 %v3043, %v3035
    %v4708 = vpack.c.b16 %v3052, %v3044
    %v4709 = vpack.c.b16 %v3053, %v3045
    %v4710 = vpack.c.b16 %v3054, %v3046
    %v4711 = vpack.c.b16 %v3055, %v3047
    %v4712 = vpack.c.b16 %v3056, %v3048
    %v4713 = vpack.c.b16 %v3057, %v3049
    %v4714 = vpack.c.b16 %v3058, %v3050
    %v4715 = vpack.c.b16 %v3059, %v3051
    %v4716 = vpack.c.b16 %v3068, %v3060
    %v4717 = vpack.c.b16 %v3069, %v3061
    %v4718 = vpack.c.b16 %v3070, %v3062
    %v4719 = vpack.c.b16 %v3071, %v3063
    %v4720 = vpack.c.b16 %v3072, %v3064
    %v4721 = vpack.c.b16 %v3073, %v3065
    %v4722 = vpack.c.b16 %v3074, %v3066
    %v4723 = vpack.c.b16 %v3075, %v3067
    %v4724 = vpack.c.b16 %v3084, %v3076
    %v4725 = vpack.c.b16 %v3085, %v3077
    %v4726 = vpack.c.b16 %v3086, %v3078
    %v4727 = vpack.c.b16 %v3087, %v3079
    %v4728 = vpack.c.b16 %v3088, %v3080
    %v4729 = vpack.c.b16 %v3089, %v3081
    %v4730 = vpack.c.b16 %v3090, %v3082
    %v4731 = vpack.c.b16 %v3091, %v3083
    %v4732 = vpack.c.b16 %v3100, %v3092
    %v4733 = vpack.c.b16 %v3101, %v3093
    %v4734 = vpack.c.b16 %v3102, %v3094
    %v4735 = vpack.c.b16 %v3103, %v3095
    %v4736 = vpack.c.b16 %v3104, %v3096
    %v4737 = vpack.c.b16 %v3105, %v3097
    %v4738 = vpack.c.b16 %v3106, %v3098
    %v4739 = vpack.c.b16 %v3107, %v3099
    %v4740 = vpack.c.b16 %v3116, %v3108
    %v4741 = vpack.c.b16 %v3117, %v3109
    %v4742 = vpack.c.b16 %v3118, %v3110
    %v4743 = vpack.c.b16 %v3119, %v3111
    %v4744 = vpack.c.b16 %v3120, %v3112
    %v4745 = vpack.c.b16 %v3121, %v3113
    %v4746 = vpack.c.b16 %v3122, %v3114
    %v4747 = vpack.c.b16 %v3123, %v3115
    %v4748 = vpack.c.b16 %v3132, %v3124
    %v4749 = vpack.c.b16 %v3133, %v3125
    %v4750 = vpack.c.b16 %v3134, %v3126
    %v4751 = vpack.c.b16 %v3135, %v3127
    %v4752 = vpack.c.b16 %v3136, %v3128
    %v4753 = vpack.c.b16 %v3137, %v3129
    %v4754 = vpack.c.b16 %v3138, %v3130
    %v4755 = vpack.c.b16 %v3139, %v3131
    %v4756 = vpack.c.b16 %v3148, %v3140
    %v4757 = vpack.c.b16 %v3149, %v3141
    %v4758 = vpack.c.b16 %v3150, %v3142
    %v4759 = vpack.c.b16 %v3151, %v3143
    %v4760 = vpack.c.b16 %v3152, %v3144
    %v4761 = vpack.c.b16 %v3153, %v3145
    %v4762 = vpack.c.b16 %v3154, %v3146
    %v4763 = vpack.c.b16 %v3155, %v3147
    %v4764 = vpack.c.b16 %v3164, %v3156
    %v4765 = vpack.c.b16 %v3165, %v3157
    %v4766 = vpack.c.b16 %v3166, %v3158
    %v4767 = vpack.c.b16 %v3167, %v3159
    %v4768 = vpack.c.b16 %v3168, %v3160
    %v4769 = vpack.c.b16 %v3169, %v3161
    %v4770 = vpack.c.b16 %v3170, %v3162
    %v4771 = vpack.c.b16 %v3171, %v3163
    %v4772 = vpack.c.b16 %v3180, %v3172
    %v4773 = vpack.c.b16 %v3181, %v3173
    %v4774 = vpack.c.b16 %v3182, %v3174
    %v4775 = vpack.c.b16 %v3183, %v3175
    %v4776 = vpack.c.b16 %v3184, %v3176
    %v4777 = vpack.c.b16 %v3185, %v3177
    %v4778 = vpack.c.b16 %v3186, %v3178
    %v4779 = vpack.c.b16 %v3187, %v3179
    %v4780 = vpack.c.b16 %v3196, %v3188
    %v4781 = vpack.c.b16 %v3197, %v3189
    %v4782 = vpack.c.b16 %v3198, %v3190
    %v4783 = vpack.c.b16 %v3199, %v3191
    %v4784 = vpack.c.b16 %v3200, %v3192
    %v4785 = vpack.c.b16 %v3201, %v3193
    %v4786 = vpack.c.b16 %v3202, %v3194
    %v4787 = vpack.c.b16 %v3203, %v3195
    %v4788 = vpack.c.b16 %v3212, %v3204
    %v4789 = vpack.c.b16 %v3213, %v3205
    %v4790 = vpack.c.b16 %v3214, %v3206
    %v4791 = vpack.c.b16 %v3215, %v3207
    %v4792 = vpack.c.b16 %v3216, %v3208
    %v4793 = vpack.c.b16 %v3217, %v3209
    %v4794 = vpack.c.b16 %v3218, %v3210
    %v4795 = vpack.c.b16 %v3219, %v3211
    %v4796 = vpack.c.b16 %v3228, %v3220
    %v4797 = vpack.c.b16 %v3229, %v3221
    %v4798 = vpack.c.b16 %v3230, %v3222
    %v4799 = vpack.c.b16 %v3231, %v3223
    %v4800 = vpack.c.b16 %v3232, %v3224
    %v4801 = vpack.c.b16 %v3233, %v3225
    %v4802 = vpack.c.b16 %v3234, %v3226
    %v4803 = vpack.c.b16 %v3235, %v3227
    %v4804 = vpack.c.b16 %v3244, %v3236
    %v4805 = vpack.c.b16 %v3245, %v3237
    %v4806 = vpack.c.b16 %v3246, %v3238
    %v4807 = vpack.c.b16 %v3247, %v3239
    %v4808 = vpack.c.b16 %v3248, %v3240
    %v4809 = vpack.c.b16 %v3249, %v3241
    %v4810 = vpack.c.b16 %v3250, %v3242
    %v4811 = vpack.c.b16 %v3251, %v3243
    %v4812 = vpack.c.b16 %v3260, %v3252
    %v4813 = vpack.c.b16 %v3261, %v3253
    %v4814 = vpack.c.b16 %v3262, %v3254
    %v4815 = vpack.c.b16 %v3263, %v3255
    %v4816 = vpack.c.b16 %v3264, %v3256
    %v4817 = vpack.c.b16 %v3265, %v3257
    %v4818 = vpack.c.b16 %v3266, %v3258
    %v4819 = vpack.c.b16 %v3267, %v3259
    %v4820 = vpack.c.b16 %v3276, %v3268
    %v4821 = vpack.c.b16 %v3277, %v3269
    %v4822 = vpack.c.b16 %v3278, %v3270
    %v4823 = vpack.c.b16 %v3279, %v3271
    %v4824 = vpack.c.b16 %v3280, %v3272
    %v4825 = vpack.c.b16 %v3281, %v3273
    %v4826 = vpack.c.b16 %v3282, %v3274
    %v4827 = vpack.c.b16 %v3283, %v3275
    %v4828 = vpack.c.b16 %v3292, %v3284
    %v4829 = vpack.c.b16 %v3293, %v3285
    %v4830 = vpack.c.b16 %v3294, %v3286
    %v4831 = vpack.c.b16 %v3295, %v3287
    %v4832 = vpack.c.b16 %v3296, %v3288
    %v4833 = vpack.c.b16 %v3297, %v3289
    %v4834 = vpack.c.b16 %v3298, %v3290
    %v4835 = vpack.c.b16 %v3299, %v3291
    %v4836 = vpack.c.b16 %v3308, %v3300
    %v4837 = vpack.c.b16 %v3309, %v3301
    %v4838 = vpack.c.b16 %v3310, %v3302
    %v4839 = vpack.c.b16 %v3311, %v3303
    %v4840 = vpack.c.b16 %v3312, %v3304
    %v4841 = vpack.c.b16 %v3313, %v3305
    %v4842 = vpack.c.b16 %v3314, %v3306
    %v4843 = vpack.c.b16 %v3315, %v3307
    %v4844 = vpack.c.b16 %v3324, %v3316
    %v4845 = vpack.c.b16 %v3325, %v3317
    %v4846 = vpack.c.b16 %v3326, %v3318
    %v4847 = vpack.c.b16 %v3327, %v3319
    %v4848 = vpack.c.b16 %v3328, %v3320
    %v4849 = vpack.c.b16 %v3329, %v3321
    %v4850 = vpack.c.b16 %v3330, %v3322
    %v4851 = vpack.c.b16 %v3331, %v3323
    %v4852 = vpack.c.b16 %v3340, %v3332
    %v4853 = vpack.c.b16 %v3341, %v3333
    %v4854 = vpack.c.b16 %v3342, %v3334
    %v4855 = vpack.c.b16 %v3343, %v3335
    %v4856 = vpack.c.b16 %v3344, %v3336
    %v4857 = vpack.c.b16 %v3345, %v3337
    %v4858 = vpack.c.b16 %v3346, %v3338
    %v4859 = vpack.c.b16 %v3347, %v3339
    %v4860 = vpack.c.b16 %v3356, %v3348
    %v4861 = vpack.c.b16 %v3357, %v3349
    %v4862 = vpack.c.b16 %v3358, %v3350
    %v4863 = vpack.c.b16 %v3359, %v3351
    %v4864 = vpack.c.b16 %v3360, %v3352
    %v4865 = vpack.c.b16 %v3361, %v3353
    %v4866 = vpack.c.b16 %v3362, %v3354
    %v4867 = vpack.c.b16 %v3363, %v3355
    %v4868 = vpack.c.b16 %v3372, %v3364
    %v4869 = vpack.c.b16 %v3373, %v3365
    %v4870 = vpack.c.b16 %v3374, %v3366
    %v4871 = vpack.c.b16 %v3375, %v3367
    %v4872 = vpack.c.b16 %v3376, %v3368
    %v4873 = vpack.c.b16 %v3377, %v3369
    %v4874 = vpack.c.b16 %v3378, %v3370
    %v4875 = vpack.c.b16 %v3379, %v3371
    %v4876 = vpack.c.b16 %v3388, %v3380
    %v4877 = vpack.c.b16 %v3389, %v3381
    %v4878 = vpack.c.b16 %v3390, %v3382
    %v4879 = vpack.c.b16 %v3391, %v3383
    %v4880 = vpack.c.b16 %v3392, %v3384
    %v4881 = vpack.c.b16 %v3393, %v3385
    %v4882 = vpack.c.b16 %v3394, %v3386
    %v4883 = vpack.c.b16 %v3395, %v3387
    %v4884 = vpack.c.b16 %v3404, %v3396
    %v4885 = vpack.c.b16 %v3405, %v3397
    %v4886 = vpack.c.b16 %v3406, %v3398
    %v4887 = vpack.c.b16 %v3407, %v3399
    %v4888 = vpack.c.b16 %v3408, %v3400
    %v4889 = vpack.c.b16 %v3409, %v3401
    %v4890 = vpack.c.b16 %v3410, %v3402
    %v4891 = vpack.c.b16 %v3411, %v3403
    %v4892 = vpack.c.b16 %v3420, %v3412
    %v4893 = vpack.c.b16 %v3421, %v3413
    %v4894 = vpack.c.b16 %v3422, %v3414
    %v4895 = vpack.c.b16 %v3423, %v3415
    %v4896 = vpack.c.b16 %v3424, %v3416
    %v4897 = vpack.c.b16 %v3425, %v3417
    %v4898 = vpack.c.b16 %v3426, %v3418
    %v4899 = vpack.c.b16 %v3427, %v3419
    %v4900 = vpack.c.b16 %v3436, %v3428
    %v4901 = vpack.c.b16 %v3437, %v3429
    %v4902 = vpack.c.b16 %v3438, %v3430
    %v4903 = vpack.c.b16 %v3439, %v3431
    %v4904 = vpack.c.b16 %v3440, %v3432
    %v4905 = vpack.c.b16 %v3441, %v3433
    %v4906 = vpack.c.b16 %v3442, %v3434
    %v4907 = vpack.c.b16 %v3443, %v3435
    %v4908 = vpack.c.b16 %v3452, %v3444
    %v4909 = vpack.c.b16 %v3453, %v3445
    %v4910 = vpack.c.b16 %v3454, %v3446
    %v4911 = vpack.c.b16 %v3455, %v3447
    %v4912 = vpack.c.b16 %v3456, %v3448
    %v4913 = vpack.c.b16 %v3457, %v3449
    %v4914 = vpack.c.b16 %v3458, %v3450
    %v4915 = vpack.c.b16 %v3459, %v3451
    %v4916 = vpack.c.b16 %v3468, %v3460
    %v4917 = vpack.c.b16 %v3469, %v3461
    %v4918 = vpack.c.b16 %v3470, %v3462
    %v4919 = vpack.c.b16 %v3471, %v3463
    %v4920 = vpack.c.b16 %v3472, %v3464
    %v4921 = vpack.c.b16 %v3473, %v3465
    %v4922 = vpack.c.b16 %v3474, %v3466
    %v4923 = vpack.c.b16 %v3475, %v3467
    %v4924 = vpack.c.b16 %v3484, %v3476
    %v4925 = vpack.c.b16 %v3485, %v3477
    %v4926 = vpack.c.b16 %v3486, %v3478
    %v4927 = vpack.c.b16 %v3487, %v3479
    %v4928 = vpack.c.b16 %v3488, %v3480
    %v4929 = vpack.c.b16 %v3489, %v3481
    %v4930 = vpack.c.b16 %v3490, %v3482
    %v4931 = vpack.c.b16 %v3491, %v3483
    %v4932 = vpack.c.b16 %v3500, %v3492
    %v4933 = vpack.c.b16 %v3501, %v3493
    %v4934 = vpack.c.b16 %v3502, %v3494
    %v4935 = vpack.c.b16 %v3503, %v3495
    %v4936 = vpack.c.b16 %v3504, %v3496
    %v4937 = vpack.c.b16 %v3505, %v3497
    %v4938 = vpack.c.b16 %v3506, %v3498
    %v4939 = vpack.c.b16 %v3507, %v3499
    %v4940 = vpack.c.b16 %v3516, %v3508
    %v4941 = vpack.c.b16 %v3517, %v3509
    %v4942 = vpack.c.b16 %v3518, %v3510
    %v4943 = vpack.c.b16 %v3519, %v3511
    %v4944 = vpack.c.b16 %v3520, %v3512
    %v4945 = vpack.c.b16 %v3521, %v3513
    %v4946 = vpack.c.b16 %v3522, %v3514
    %v4947 = vpack.c.b16 %v3523, %v3515
    %v4948 = vpack.c.b16 %v3532, %v3524
    %v4949 = vpack.c.b16 %v3533, %v3525
    %v4950 = vpack.c.b16 %v3534, %v3526
    %v4951 = vpack.c.b16 %v3535, %v3527
    %v4952 = vpack.c.b16 %v3536, %v3528
    %v4953 = vpack.c.b16 %v3537, %v3529
    %v4954 = vpack.c.b16 %v3538, %v3530
    %v4955 = vpack.c.b16 %v3539, %v3531
    %v4956 = vpack.c.b16 %v3548, %v3540
    %v4957 = vpack.c.b16 %v3549, %v3541
    %v4958 = vpack.c.b16 %v3550, %v3542
    %v4959 = vpack.c.b16 %v3551, %v3543
    %v4960 = vpack.c.b16 %v3552, %v3544
    %v4961 = vpack.c.b16 %v3553, %v3545
    %v4962 = vpack.c.b16 %v3554, %v3546
    %v4963 = vpack.c.b16 %v3555, %v3547
    %v4964 = vpack.c.b16 %v3564, %v3556
    %v4965 = vpack.c.b16 %v3565, %v3557
    %v4966 = vpack.c.b16 %v3566, %v3558
    %v4967 = vpack.c.b16 %v3567, %v3559
    %v4968 = vpack.c.b16 %v3568, %v3560
    %v4969 = vpack.c.b16 %v3569, %v3561
    %v4970 = vpack.c.b16 %v3570, %v3562
    %v4971 = vpack.c.b16 %v3571, %v3563
    %v4972 = vpack.c.b16 %v3580, %v3572
    %v4973 = vpack.c.b16 %v3581, %v3573
    %v4974 = vpack.c.b16 %v3582, %v3574
    %v4975 = vpack.c.b16 %v3583, %v3575
    %v4976 = vpack.c.b16 %v3584, %v3576
    %v4977 = vpack.c.b16 %v3585, %v3577
    %v4978 = vpack.c.b16 %v3586, %v3578
    %v4979 = vpack.c.b16 %v3587, %v3579
    %v4980 = vpack.c.b16 %v3596, %v3588
    %v4981 = vpack.c.b16 %v3597, %v3589
    %v4982 = vpack.c.b16 %v3598, %v3590
    %v4983 = vpack.c.b16 %v3599, %v3591
    %v4984 = vpack.c.b16 %v3600, %v3592
    %v4985 = vpack.c.b16 %v3601, %v3593
    %v4986 = vpack.c.b16 %v3602, %v3594
    %v4987 = vpack.c.b16 %v3603, %v3595
    %v4988 = vpack.c.b16 %v3612, %v3604
    %v4989 = vpack.c.b16 %v3613, %v3605
    %v4990 = vpack.c.b16 %v3614, %v3606
    %v4991 = vpack.c.b16 %v3615, %v3607
    %v4992 = vpack.c.b16 %v3616, %v3608
    %v4993 = vpack.c.b16 %v3617, %v3609
    %v4994 = vpack.c.b16 %v3618, %v3610
    %v4995 = vpack.c.b16 %v3619, %v3611
    %v4996 = vpack.c.b16 %v3628, %v3620
    %v4997 = vpack.c.b16 %v3629, %v3621
    %v4998 = vpack.c.b16 %v3630, %v3622
    %v4999 = vpack.c.b16 %v3631, %v3623
    %v5000 = vpack.c.b16 %v3632, %v3624
    %v5001 = vpack.c.b16 %v3633, %v3625
    %v5002 = vpack.c.b16 %v3634, %v3626
    %v5003 = vpack.c.b16 %v3635, %v3627
    %v5004 = vpack.c.b16 %v3644, %v3636
    %v5005 = vpack.c.b16 %v3645, %v3637
    %v5006 = vpack.c.b16 %v3646, %v3638
    %v5007 = vpack.c.b16 %v3647, %v3639
    %v5008 = vpack.c.b16 %v3648, %v3640
    %v5009 = vpack.c.b16 %v3649, %v3641
    %v5010 = vpack.c.b16 %v3650, %v3642
    %v5011 = vpack.c.b16 %v3651, %v3643
    %v5012 = vpack.c.b16 %v3660, %v3652
    %v5013 = vpack.c.b16 %v3661, %v3653
    %v5014 = vpack.c.b16 %v3662, %v3654
    %v5015 = vpack.c.b16 %v3663, %v3655
    %v5016 = vpack.c.b16 %v3664, %v3656
    %v5017 = vpack.c.b16 %v3665, %v3657
    %v5018 = vpack.c.b16 %v3666, %v3658
    %v5019 = vpack.c.b16 %v3667, %v3659
    %v5020 = vpack.c.b16 %v3676, %v3668
    %v5021 = vpack.c.b16 %v3677, %v3669
    %v5022 = vpack.c.b16 %v3678, %v3670
    %v5023 = vpack.c.b16 %v3679, %v3671
    %v5024 = vpack.c.b16 %v3680, %v3672
    %v5025 = vpack.c.b16 %v3681, %v3673
    %v5026 = vpack.c.b16 %v3682, %v3674
    %v5027 = vpack.c.b16 %v3683, %v3675
    %v5028 = vpack.c.b16 %v3692, %v3684
    %v5029 = vpack.c.b16 %v3693, %v3685
    %v5030 = vpack.c.b16 %v3694, %v3686
    %v5031 = vpack.c.b16 %v3695, %v3687
    %v5032 = vpack.c.b16 %v3696, %v3688
    %v5033 = vpack.c.b16 %v3697, %v3689
    %v5034 = vpack.c.b16 %v3698, %v3690
    %v5035 = vpack.c.b16 %v3699, %v3691
    %v5036 = vpack.c.b16 %v3708, %v3700
    %v5037 = vpack.c.b16 %v3709, %v3701
    %v5038 = vpack.c.b16 %v3710, %v3702
    %v5039 = vpack.c.b16 %v3711, %v3703
    %v5040 = vpack.c.b16 %v3712, %v3704
    %v5041 = vpack.c.b16 %v3713, %v3705
    %v5042 = vpack.c.b16 %v3714, %v3706
    %v5043 = vpack.c.b16 %v3715, %v3707
    %v5044 = vpack.c.b16 %v3724, %v3716
    %v5045 = vpack.c.b16 %v3725, %v3717
    %v5046 = vpack.c.b16 %v3726, %v3718
    %v5047 = vpack.c.b16 %v3727, %v3719
    %v5048 = vpack.c.b16 %v3728, %v3720
    %v5049 = vpack.c.b16 %v3729, %v3721
    %v5050 = vpack.c.b16 %v3730, %v3722
    %v5051 = vpack.c.b16 %v3731, %v3723
    %v5052 = vpack.c.b16 %v3740, %v3732
    %v5053 = vpack.c.b16 %v3741, %v3733
    %v5054 = vpack.c.b16 %v3742, %v3734
    %v5055 = vpack.c.b16 %v3743, %v3735
    %v5056 = vpack.c.b16 %v3744, %v3736
    %v5057 = vpack.c.b16 %v3745, %v3737
    %v5058 = vpack.c.b16 %v3746, %v3738
    %v5059 = vpack.c.b16 %v3747, %v3739
    %v5060 = vpack.c.b16 %v3756, %v3748
    %v5061 = vpack.c.b16 %v3757, %v3749
    %v5062 = vpack.c.b16 %v3758, %v3750
    %v5063 = vpack.c.b16 %v3759, %v3751
    %v5064 = vpack.c.b16 %v3760, %v3752
    %v5065 = vpack.c.b16 %v3761, %v3753
    %v5066 = vpack.c.b16 %v3762, %v3754
    %v5067 = vpack.c.b16 %v3763, %v3755
    %v5068 = vpack.c.b16 %v3772, %v3764
    %v5069 = vpack.c.b16 %v3773, %v3765
    %v5070 = vpack.c.b16 %v3774, %v3766
    %v5071 = vpack.c.b16 %v3775, %v3767
    %v5072 = vpack.c.b16 %v3776, %v3768
    %v5073 = vpack.c.b16 %v3777, %v3769
    %v5074 = vpack.c.b16 %v3778, %v3770
    %v5075 = vpack.c.b16 %v3779, %v3771
    %v5076 = vpack.c.b16 %v3788, %v3780
    %v5077 = vpack.c.b16 %v3789, %v3781
    %v5078 = vpack.c.b16 %v3790, %v3782
    %v5079 = vpack.c.b16 %v3791, %v3783
    %v5080 = vpack.c.b16 %v3792, %v3784
    %v5081 = vpack.c.b16 %v3793, %v3785
    %v5082 = vpack.c.b16 %v3794, %v3786
    %v5083 = vpack.c.b16 %v3795, %v3787
    %v5084 = vpack.c.b16 %v3804, %v3796
    %v5085 = vpack.c.b16 %v3805, %v3797
    %v5086 = vpack.c.b16 %v3806, %v3798
    %v5087 = vpack.c.b16 %v3807, %v3799
    %v5088 = vpack.c.b16 %v3808, %v3800
    %v5089 = vpack.c.b16 %v3809, %v3801
    %v5090 = vpack.c.b16 %v3810, %v3802
    %v5091 = vpack.c.b16 %v3811, %v3803
    %v5092 = vpack.c.b16 %v3820, %v3812
    %v5093 = vpack.c.b16 %v3821, %v3813
    %v5094 = vpack.c.b16 %v3822, %v3814
    %v5095 = vpack.c.b16 %v3823, %v3815
    %v5096 = vpack.c.b16 %v3824, %v3816
    %v5097 = vpack.c.b16 %v3825, %v3817
    %v5098 = vpack.c.b16 %v3826, %v3818
    %v5099 = vpack.c.b16 %v3827, %v3819
    %v5100 = vpack.c.b16 %v3836, %v3828
    %v5101 = vpack.c.b16 %v3837, %v3829
    %v5102 = vpack.c.b16 %v3838, %v3830
    %v5103 = vpack.c.b16 %v3839, %v3831
    %v5104 = vpack.c.b16 %v3840, %v3832
    %v5105 = vpack.c.b16 %v3841, %v3833
    %v5106 = vpack.c.b16 %v3842, %v3834
    %v5107 = vpack.c.b16 %v3843, %v3835
    %v5108 = vpack.c.b16 %v3852, %v3844
    %v5109 = vpack.c.b16 %v3853, %v3845
    %v5110 = vpack.c.b16 %v3854, %v3846
    %v5111 = vpack.c.b16 %v3855, %v3847
    %v5112 = vpack.c.b16 %v3856, %v3848
    %v5113 = vpack.c.b16 %v3857, %v3849
    %v5114 = vpack.c.b16 %v3858, %v3850
    %v5115 = vpack.c.b16 %v3859, %v3851
    %v5116 = vpack.c.b16 %v3868, %v3860
    %v5117 = vpack.c.b16 %v3869, %v3861
    %v5118 = vpack.c.b16 %v3870, %v3862
    %v5119 = vpack.c.b16 %v3871, %v3863
    %v5120 = vpack.c.b16 %v3872, %v3864
    %v5121 = vpack.c.b16 %v3873, %v3865
    %v5122 = vpack.c.b16 %v3874, %v3866
    %v5123 = vpack.c.b16 %v3875, %v3867
    %v5124 = vpack.c.b16 %v3884, %v3876
    %v5125 = vpack.c.b16 %v3885, %v3877
    %v5126 = vpack.c.b16 %v3886, %v3878
    %v5127 = vpack.c.b16 %v3887, %v3879
    %v5128 = vpack.c.b16 %v3888, %v3880
    %v5129 = vpack.c.b16 %v3889, %v3881
    %v5130 = vpack.c.b16 %v3890, %v3882
    %v5131 = vpack.c.b16 %v3891, %v3883
    %v5132 = vpack.c.b16 %v3900, %v3892
    %v5133 = vpack.c.b16 %v3901, %v3893
    %v5134 = vpack.c.b16 %v3902, %v3894
    %v5135 = vpack.c.b16 %v3903, %v3895
    %v5136 = vpack.c.b16 %v3904, %v3896
    %v5137 = vpack.c.b16 %v3905, %v3897
    %v5138 = vpack.c.b16 %v3906, %v3898
    %v5139 = vpack.c.b16 %v3907, %v3899
    %v5140 = vpack.c.b16 %v3916, %v3908
    %v5141 = vpack.c.b16 %v3917, %v3909
    %v5142 = vpack.c.b16 %v3918, %v3910
    %v5143 = vpack.c.b16 %v3919, %v3911
    %v5144 = vpack.c.b16 %v3920, %v3912
    %v5145 = vpack.c.b16 %v3921, %v3913
    %v5146 = vpack.c.b16 %v3922, %v3914
    %v5147 = vpack.c.b16 %v3923, %v3915
    %v5148 = vpack.c.b16 %v3932, %v3924
    %v5149 = vpack.c.b16 %v3933, %v3925
    %v5150 = vpack.c.b16 %v3934, %v3926
    %v5151 = vpack.c.b16 %v3935, %v3927
    %v5152 = vpack.c.b16 %v3936, %v3928
    %v5153 = vpack.c.b16 %v3937, %v3929
    %v5154 = vpack.c.b16 %v3938, %v3930
    %v5155 = vpack.c.b16 %v3939, %v3931
    %v5156 = vpack.c.b16 %v3948, %v3940
    %v5157 = vpack.c.b16 %v3949, %v3941
    %v5158 = vpack.c.b16 %v3950, %v3942
    %v5159 = vpack.c.b16 %v3951, %v3943
    %v5160 = vpack.c.b16 %v3952, %v3944
    %v5161 = vpack.c.b16 %v3953, %v3945
    %v5162 = vpack.c.b16 %v3954, %v3946
    %v5163 = vpack.c.b16 %v3955, %v3947
    %v5164 = vpack.c.b16 %v3964, %v3956
    %v5165 = vpack.c.b16 %v3965, %v3957
    %v5166 = vpack.c.b16 %v3966, %v3958
    %v5167 = vpack.c.b16 %v3967, %v3959
    %v5168 = vpack.c.b16 %v3968, %v3960
    %v5169 = vpack.c.b16 %v3969, %v3961
    %v5170 = vpack.c.b16 %v3970, %v3962
    %v5171 = vpack.c.b16 %v3971, %v3963
    %v5172 = vpack.c.b16 %v3980, %v3972
    %v5173 = vpack.c.b16 %v3981, %v3973
    %v5174 = vpack.c.b16 %v3982, %v3974
    %v5175 = vpack.c.b16 %v3983, %v3975
    %v5176 = vpack.c.b16 %v3984, %v3976
    %v5177 = vpack.c.b16 %v3985, %v3977
    %v5178 = vpack.c.b16 %v3986, %v3978
    %v5179 = vpack.c.b16 %v3987, %v3979
    %v5180 = vpack.c.b16 %v3996, %v3988
    %v5181 = vpack.c.b16 %v3997, %v3989
    %v5182 = vpack.c.b16 %v3998, %v3990
    %v5183 = vpack.c.b16 %v3999, %v3991
    %v5184 = vpack.c.b16 %v4000, %v3992
    %v5185 = vpack.c.b16 %v4001, %v3993
    %v5186 = vpack.c.b16 %v4002, %v3994
    %v5187 = vpack.c.b16 %v4003, %v3995
    %v5188 = vpack.c.b16 %v4012, %v4004
    %v5189 = vpack.c.b16 %v4013, %v4005
    %v5190 = vpack.c.b16 %v4014, %v4006
    %v5191 = vpack.c.b16 %v4015, %v4007
    %v5192 = vpack.c.b16 %v4016, %v4008
    %v5193 = vpack.c.b16 %v4017, %v4009
    %v5194 = vpack.c.b16 %v4018, %v4010
    %v5195 = vpack.c.b16 %v4019, %v4011
    %v5196 = vpack.c.b16 %v4028, %v4020
    %v5197 = vpack.c.b16 %v4029, %v4021
    %v5198 = vpack.c.b16 %v4030, %v4022
    %v5199 = vpack.c.b16 %v4031, %v4023
    %v5200 = vpack.c.b16 %v4032, %v4024
    %v5201 = vpack.c.b16 %v4033, %v4025
    %v5202 = vpack.c.b16 %v4034, %v4026
    %v5203 = vpack.c.b16 %v4035, %v4027
    %v5204 = vpack.c.b16 %v4044, %v4036
    %v5205 = vpack.c.b16 %v4045, %v4037
    %v5206 = vpack.c.b16 %v4046, %v4038
    %v5207 = vpack.c.b16 %v4047, %v4039
    %v5208 = vpack.c.b16 %v4048, %v4040
    %v5209 = vpack.c.b16 %v4049, %v4041
    %v5210 = vpack.c.b16 %v4050, %v4042
    %v5211 = vpack.c.b16 %v4051, %v4043
    %v5212 = vpack.c.b16 %v4060, %v4052
    %v5213 = vpack.c.b16 %v4061, %v4053
    %v5214 = vpack.c.b16 %v4062, %v4054
    %v5215 = vpack.c.b16 %v4063, %v4055
    %v5216 = vpack.c.b16 %v4064, %v4056
    %v5217 = vpack.c.b16 %v4065, %v4057
    %v5218 = vpack.c.b16 %v4066, %v4058
    %v5219 = vpack.c.b16 %v4067, %v4059
    %v5220 = vpack.c.b16 %v4076, %v4068
    %v5221 = vpack.c.b16 %v4077, %v4069
    %v5222 = vpack.c.b16 %v4078, %v4070
    %v5223 = vpack.c.b16 %v4079, %v4071
    %v5224 = vpack.c.b16 %v4080, %v4072
    %v5225 = vpack.c.b16 %v4081, %v4073
    %v5226 = vpack.c.b16 %v4082, %v4074
    %v5227 = vpack.c.b16 %v4083, %v4075
    %v5228 = vpack.c.b16 %v4092, %v4084
    %v5229 = vpack.c.b16 %v4093, %v4085
    %v5230 = vpack.c.b16 %v4094, %v4086
    %v5231 = vpack.c.b16 %v4095, %v4087
    %v5232 = vpack.c.b16 %v4096, %v4088
    %v5233 = vpack.c.b16 %v4097, %v4089
    %v5234 = vpack.c.b16 %v4098, %v4090
    %v5235 = vpack.c.b16 %v4099, %v4091
    %v5236 = vpack.c.b16 %v4108, %v4100
    %v5237 = vpack.c.b16 %v4109, %v4101
    %v5238 = vpack.c.b16 %v4110, %v4102
    %v5239 = vpack.c.b16 %v4111, %v4103
    %v5240 = vpack.c.b16 %v4112, %v4104
    %v5241 = vpack.c.b16 %v4113, %v4105
    %v5242 = vpack.c.b16 %v4114, %v4106
    %v5243 = vpack.c.b16 %v4115, %v4107
    %v5244 = vpack.c.b16 %v4124, %v4116
    %v5245 = vpack.c.b16 %v4125, %v4117
    %v5246 = vpack.c.b16 %v4126, %v4118
    %v5247 = vpack.c.b16 %v4127, %v4119
    %v5248 = vpack.c.b16 %v4128, %v4120
    %v5249 = vpack.c.b16 %v4129, %v4121
    %v5250 = vpack.c.b16 %v4130, %v4122
    %v5251 = vpack.c.b16 %v4131, %v4123
    %v5252 = vpack.c.b16 %v4140, %v4132
    %v5253 = vpack.c.b16 %v4141, %v4133
    %v5254 = vpack.c.b16 %v4142, %v4134
    %v5255 = vpack.c.b16 %v4143, %v4135
    %v5256 = vpack.c.b16 %v4144, %v4136
    %v5257 = vpack.c.b16 %v4145, %v4137
    %v5258 = vpack.c.b16 %v4146, %v4138
    %v5259 = vpack.c.b16 %v4147, %v4139
    %v5260 = vpack.c.b16 %v4156, %v4148
    %v5261 = vpack.c.b16 %v4157, %v4149
    %v5262 = vpack.c.b16 %v4158, %v4150
    %v5263 = vpack.c.b16 %v4159, %v4151
    %v5264 = vpack.c.b16 %v4160, %v4152
    %v5265 = vpack.c.b16 %v4161, %v4153
    %v5266 = vpack.c.b16 %v4162, %v4154
    %v5267 = vpack.c.b16 %v4163, %v4155
    %v5268 = vpack.c.b16 %v4172, %v4164
    %v5269 = vpack.c.b16 %v4173, %v4165
    %v5270 = vpack.c.b16 %v4174, %v4166
    %v5271 = vpack.c.b16 %v4175, %v4167
    %v5272 = vpack.c.b16 %v4176, %v4168
    %v5273 = vpack.c.b16 %v4177, %v4169
    %v5274 = vpack.c.b16 %v4178, %v4170
    %v5275 = vpack.c.b16 %v4179, %v4171
    %v5276 = vpack.c.b16 %v4188, %v4180
    %v5277 = vpack.c.b16 %v4189, %v4181
    %v5278 = vpack.c.b16 %v4190, %v4182
    %v5279 = vpack.c.b16 %v4191, %v4183
    %v5280 = vpack.c.b16 %v4192, %v4184
    %v5281 = vpack.c.b16 %v4193, %v4185
    %v5282 = vpack.c.b16 %v4194, %v4186
    %v5283 = vpack.c.b16 %v4195, %v4187
    %v5284 = vpack.c.b16 %v4204, %v4196
    %v5285 = vpack.c.b16 %v4205, %v4197
    %v5286 = vpack.c.b16 %v4206, %v4198
    %v5287 = vpack.c.b16 %v4207, %v4199
    %v5288 = vpack.c.b16 %v4208, %v4200
    %v5289 = vpack.c.b16 %v4209, %v4201
    %v5290 = vpack.c.b16 %v4210, %v4202
    %v5291 = vpack.c.b16 %v4211, %v4203
    %v5292 = vpack.c.b16 %v4220, %v4212
    %v5293 = vpack.c.b16 %v4221, %v4213
    %v5294 = vpack.c.b16 %v4222, %v4214
    %v5295 = vpack.c.b16 %v4223, %v4215
    %v5296 = vpack.c.b16 %v4224, %v4216
    %v5297 = vpack.c.b16 %v4225, %v4217
    %v5298 = vpack.c.b16 %v4226, %v4218
    %v5299 = vpack.c.b16 %v4227, %v4219
    %v5300 = vpack.c.b16 %v4236, %v4228
    %v5301 = vpack.c.b16 %v4237, %v4229
    %v5302 = vpack.c.b16 %v4238, %v4230
    %v5303 = vpack.c.b16 %v4239, %v4231
    %v5304 = vpack.c.b16 %v4240, %v4232
    %v5305 = vpack.c.b16 %v4241, %v4233
    %v5306 = vpack.c.b16 %v4242, %v4234
    %v5307 = vpack.c.b16 %v4243, %v4235
    %v5308 = vpack.c.b16 %v4252, %v4244
    %v5309 = vpack.c.b16 %v4253, %v4245
    %v5310 = vpack.c.b16 %v4254, %v4246
    %v5311 = vpack.c.b16 %v4255, %v4247
    %v5312 = vpack.c.b16 %v4256, %v4248
    %v5313 = vpack.c.b16 %v4257, %v4249
    %v5314 = vpack.c.b16 %v4258, %v4250
    %v5315 = vpack.c.b16 %v4259, %v4251
    %v5316 = vpack.c.b16 %v4268, %v4260
    %v5317 = vpack.c.b16 %v4269, %v4261
    %v5318 = vpack.c.b16 %v4270, %v4262
    %v5319 = vpack.c.b16 %v4271, %v4263
    %v5320 = vpack.c.b16 %v4272, %v4264
    %v5321 = vpack.c.b16 %v4273, %v4265
    %v5322 = vpack.c.b16 %v4274, %v4266
    %v5323 = vpack.c.b16 %v4275, %v4267
    %v5324 = vpack.c.b16 %v4284, %v4276
    %v5325 = vpack.c.b16 %v4285, %v4277
    %v5326 = vpack.c.b16 %v4286, %v4278
    %v5327 = vpack.c.b16 %v4287, %v4279
    %v5328 = vpack.c.b16 %v4288, %v4280
    %v5329 = vpack.c.b16 %v4289, %v4281
    %v5330 = vpack.c.b16 %v4290, %v4282
    %v5331 = vpack.c.b16 %v4291, %v4283
    %v5332 = vpack.c.b16 %v4300, %v4292
    %v5333 = vpack.c.b16 %v4301, %v4293
    %v5334 = vpack.c.b16 %v4302, %v4294
    %v5335 = vpack.c.b16 %v4303, %v4295
    %v5336 = vpack.c.b16 %v4304, %v4296
    %v5337 = vpack.c.b16 %v4305, %v4297
    %v5338 = vpack.c.b16 %v4306, %v4298
    %v5339 = vpack.c.b16 %v4307, %v4299
    %v5340 = vpack.c.b16 %v4316, %v4308
    %v5341 = vpack.c.b16 %v4317, %v4309
    %v5342 = vpack.c.b16 %v4318, %v4310
    %v5343 = vpack.c.b16 %v4319, %v4311
    %v5344 = vpack.c.b16 %v4320, %v4312
    %v5345 = vpack.c.b16 %v4321, %v4313
    %v5346 = vpack.c.b16 %v4322, %v4314
    %v5347 = vpack.c.b16 %v4323, %v4315
    %6372 = vmatpush.bf16.msra.mxu0 %v4380
    %6373 = vmatpush.bf16.msra.mxu0 %v4372
    %6374 = vmatpush.bf16.msra.mxu0 %v4364
    %6375 = vmatpush.bf16.msra.mxu0 %v4356
    %6376 = vmatpush.bf16.msra.mxu0 %v4348
    %6377 = vmatpush.bf16.msra.mxu0 %v4340
    %6378 = vmatpush.bf16.msra.mxu0 %v4332
    %6379 = vmatpush.bf16.msra.mxu0 %v4324
    %6380 = vmatmul.bf16.gmra.mxu0 %v1220
    %v6381 = vpop.f32.mrf.mxu0
    %v6382 = vadd.f32 %v1156, %v6381
    %v6383 = vpop.f32.mrf.mxu0
    %v6384 = vadd.f32 %v1156, %v6383
    %6385 = vdwg.mxu0
    %6386 = vmatpush.bf16.msra.mxu0 %v4444
    %6387 = vmatpush.bf16.msra.mxu0 %v4436
    %6388 = vmatpush.bf16.msra.mxu0 %v4428
    %6389 = vmatpush.bf16.msra.mxu0 %v4420
    %6390 = vmatpush.bf16.msra.mxu0 %v4412
    %6391 = vmatpush.bf16.msra.mxu0 %v4404
    %6392 = vmatpush.bf16.msra.mxu0 %v4396
    %6393 = vmatpush.bf16.msra.mxu0 %v4388
    %6394 = vmatmul.bf16.gmra.mxu0 %v1221
    %v6395 = vpop.f32.mrf.mxu0
    %v6396 = vadd.f32 %v6382, %v6395
    %v6397 = vpop.f32.mrf.mxu0
    %v6398 = vadd.f32 %v6384, %v6397
    %6399 = vdwg.mxu0
    %6400 = vmatpush.bf16.msra.mxu0 %v4508
    %6401 = vmatpush.bf16.msra.mxu0 %v4500
    %6402 = vmatpush.bf16.msra.mxu0 %v4492
    %6403 = vmatpush.bf16.msra.mxu0 %v4484
    %6404 = vmatpush.bf16.msra.mxu0 %v4476
    %6405 = vmatpush.bf16.msra.mxu0 %v4468
    %6406 = vmatpush.bf16.msra.mxu0 %v4460
    %6407 = vmatpush.bf16.msra.mxu0 %v4452
    %6408 = vmatmul.bf16.gmra.mxu0 %v1222
    %v6409 = vpop.f32.mrf.mxu0
    %v6410 = vadd.f32 %v6396, %v6409
    %v6411 = vpop.f32.mrf.mxu0
    %v6412 = vadd.f32 %v6398, %v6411
    %6413 = vdwg.mxu0
    %6414 = vmatpush.bf16.msra.mxu0 %v4572
    %6415 = vmatpush.bf16.msra.mxu0 %v4564
    %6416 = vmatpush.bf16.msra.mxu0 %v4556
    %6417 = vmatpush.bf16.msra.mxu0 %v4548
    %6418 = vmatpush.bf16.msra.mxu0 %v4540
    %6419 = vmatpush.bf16.msra.mxu0 %v4532
    %6420 = vmatpush.bf16.msra.mxu0 %v4524
    %6421 = vmatpush.bf16.msra.mxu0 %v4516
    %6422 = vmatmul.bf16.gmra.mxu0 %v1223
    %v6423 = vpop.f32.mrf.mxu0
    %v6424 = vadd.f32 %v6410, %v6423
    %v6425 = vpop.f32.mrf.mxu0
    %v6426 = vadd.f32 %v6412, %v6425
    %6427 = vdwg.mxu0
    %6428 = vmatpush.bf16.msra.mxu0 %v4636
    %6429 = vmatpush.bf16.msra.mxu0 %v4628
    %6430 = vmatpush.bf16.msra.mxu0 %v4620
    %6431 = vmatpush.bf16.msra.mxu0 %v4612
    %6432 = vmatpush.bf16.msra.mxu0 %v4604
    %6433 = vmatpush.bf16.msra.mxu0 %v4596
    %6434 = vmatpush.bf16.msra.mxu0 %v4588
    %6435 = vmatpush.bf16.msra.mxu0 %v4580
    %6436 = vmatmul.bf16.gmra.mxu0 %v1224
    %v6437 = vpop.f32.mrf.mxu0
    %v6438 = vadd.f32 %v6424, %v6437
    %v6439 = vpop.f32.mrf.mxu0
    %v6440 = vadd.f32 %v6426, %v6439
    %6441 = vdwg.mxu0
    %6442 = vmatpush.bf16.msra.mxu0 %v4700
    %6443 = vmatpush.bf16.msra.mxu0 %v4692
    %6444 = vmatpush.bf16.msra.mxu0 %v4684
    %6445 = vmatpush.bf16.msra.mxu0 %v4676
    %6446 = vmatpush.bf16.msra.mxu0 %v4668
    %6447 = vmatpush.bf16.msra.mxu0 %v4660
    %6448 = vmatpush.bf16.msra.mxu0 %v4652
    %6449 = vmatpush.bf16.msra.mxu0 %v4644
    %6450 = vmatmul.bf16.gmra.mxu0 %v1225
    %v6451 = vpop.f32.mrf.mxu0
    %v6452 = vadd.f32 %v6438, %v6451
    %v6453 = vpop.f32.mrf.mxu0
    %v6454 = vadd.f32 %v6440, %v6453
    %6455 = vdwg.mxu0
    %6456 = vmatpush.bf16.msra.mxu0 %v4764
    %6457 = vmatpush.bf16.msra.mxu0 %v4756
    %6458 = vmatpush.bf16.msra.mxu0 %v4748
    %6459 = vmatpush.bf16.msra.mxu0 %v4740
    %6460 = vmatpush.bf16.msra.mxu0 %v4732
    %6461 = vmatpush.bf16.msra.mxu0 %v4724
    %6462 = vmatpush.bf16.msra.mxu0 %v4716
    %6463 = vmatpush.bf16.msra.mxu0 %v4708
    %6464 = vmatmul.bf16.gmra.mxu0 %v1226
    %v6465 = vpop.f32.mrf.mxu0
    %v6466 = vadd.f32 %v6452, %v6465
    %v6467 = vpop.f32.mrf.mxu0
    %v6468 = vadd.f32 %v6454, %v6467
    %6469 = vdwg.mxu0
    %6470 = vmatpush.bf16.msra.mxu0 %v4828
    %6471 = vmatpush.bf16.msra.mxu0 %v4820
    %6472 = vmatpush.bf16.msra.mxu0 %v4812
    %6473 = vmatpush.bf16.msra.mxu0 %v4804
    %6474 = vmatpush.bf16.msra.mxu0 %v4796
    %6475 = vmatpush.bf16.msra.mxu0 %v4788
    %6476 = vmatpush.bf16.msra.mxu0 %v4780
    %6477 = vmatpush.bf16.msra.mxu0 %v4772
    %6478 = vmatmul.bf16.gmra.mxu0 %v1227
    %v6479 = vpop.f32.mrf.mxu0
    %v6480 = vadd.f32 %v6466, %v6479
    %v6481 = vpop.f32.mrf.mxu0
    %v6482 = vadd.f32 %v6468, %v6481
    %6483 = vdwg.mxu0
    %6484 = vmatpush.bf16.msra.mxu0 %v4892
    %6485 = vmatpush.bf16.msra.mxu0 %v4884
    %6486 = vmatpush.bf16.msra.mxu0 %v4876
    %6487 = vmatpush.bf16.msra.mxu0 %v4868
    %6488 = vmatpush.bf16.msra.mxu0 %v4860
    %6489 = vmatpush.bf16.msra.mxu0 %v4852
    %6490 = vmatpush.bf16.msra.mxu0 %v4844
    %6491 = vmatpush.bf16.msra.mxu0 %v4836
    %6492 = vmatmul.bf16.gmra.mxu0 %v1228
    %v6493 = vpop.f32.mrf.mxu0
    %v6494 = vadd.f32 %v6480, %v6493
    %v6495 = vpop.f32.mrf.mxu0
    %v6496 = vadd.f32 %v6482, %v6495
    %6497 = vdwg.mxu0
    %6498 = vmatpush.bf16.msra.mxu0 %v4956
    %6499 = vmatpush.bf16.msra.mxu0 %v4948
    %6500 = vmatpush.bf16.msra.mxu0 %v4940
    %6501 = vmatpush.bf16.msra.mxu0 %v4932
    %6502 = vmatpush.bf16.msra.mxu0 %v4924
    %6503 = vmatpush.bf16.msra.mxu0 %v4916
    %6504 = vmatpush.bf16.msra.mxu0 %v4908
    %6505 = vmatpush.bf16.msra.mxu0 %v4900
    %6506 = vmatmul.bf16.gmra.mxu0 %v1229
    %v6507 = vpop.f32.mrf.mxu0
    %v6508 = vadd.f32 %v6494, %v6507
    %v6509 = vpop.f32.mrf.mxu0
    %v6510 = vadd.f32 %v6496, %v6509
    %6511 = vdwg.mxu0
    %6512 = vmatpush.bf16.msra.mxu0 %v5020
    %6513 = vmatpush.bf16.msra.mxu0 %v5012
    %6514 = vmatpush.bf16.msra.mxu0 %v5004
    %6515 = vmatpush.bf16.msra.mxu0 %v4996
    %6516 = vmatpush.bf16.msra.mxu0 %v4988
    %6517 = vmatpush.bf16.msra.mxu0 %v4980
    %6518 = vmatpush.bf16.msra.mxu0 %v4972
    %6519 = vmatpush.bf16.msra.mxu0 %v4964
    %6520 = vmatmul.bf16.gmra.mxu0 %v1230
    %v6521 = vpop.f32.mrf.mxu0
    %v6522 = vadd.f32 %v6508, %v6521
    %v6523 = vpop.f32.mrf.mxu0
    %v6524 = vadd.f32 %v6510, %v6523
    %6525 = vdwg.mxu0
    %6526 = vmatpush.bf16.msra.mxu0 %v5084
    %6527 = vmatpush.bf16.msra.mxu0 %v5076
    %6528 = vmatpush.bf16.msra.mxu0 %v5068
    %6529 = vmatpush.bf16.msra.mxu0 %v5060
    %6530 = vmatpush.bf16.msra.mxu0 %v5052
    %6531 = vmatpush.bf16.msra.mxu0 %v5044
    %6532 = vmatpush.bf16.msra.mxu0 %v5036
    %6533 = vmatpush.bf16.msra.mxu0 %v5028
    %6534 = vmatmul.bf16.gmra.mxu0 %v1231
    %v6535 = vpop.f32.mrf.mxu0
    %v6536 = vadd.f32 %v6522, %v6535
    %v6537 = vpop.f32.mrf.mxu0
    %v6538 = vadd.f32 %v6524, %v6537
    %6539 = vdwg.mxu0
    %6540 = vmatpush.bf16.msra.mxu0 %v5148
    %6541 = vmatpush.bf16.msra.mxu0 %v5140
    %6542 = vmatpush.bf16.msra.mxu0 %v5132
    %6543 = vmatpush.bf16.msra.mxu0 %v5124
    %6544 = vmatpush.bf16.msra.mxu0 %v5116
    %6545 = vmatpush.bf16.msra.mxu0 %v5108
    %6546 = vmatpush.bf16.msra.mxu0 %v5100
    %6547 = vmatpush.bf16.msra.mxu0 %v5092
    %6548 = vmatmul.bf16.gmra.mxu0 %v1232
    %v6549 = vpop.f32.mrf.mxu0
    %v6550 = vadd.f32 %v6536, %v6549
    %v6551 = vpop.f32.mrf.mxu0
    %v6552 = vadd.f32 %v6538, %v6551
    %6553 = vdwg.mxu0
    %6554 = vmatpush.bf16.msra.mxu0 %v5212
    %6555 = vmatpush.bf16.msra.mxu0 %v5204
    %6556 = vmatpush.bf16.msra.mxu0 %v5196
    %6557 = vmatpush.bf16.msra.mxu0 %v5188
    %6558 = vmatpush.bf16.msra.mxu0 %v5180
    %6559 = vmatpush.bf16.msra.mxu0 %v5172
    %6560 = vmatpush.bf16.msra.mxu0 %v5164
    %6561 = vmatpush.bf16.msra.mxu0 %v5156
    %6562 = vmatmul.bf16.gmra.mxu0 %v1233
    %v6563 = vpop.f32.mrf.mxu0
    %v6564 = vadd.f32 %v6550, %v6563
    %v6565 = vpop.f32.mrf.mxu0
    %v6566 = vadd.f32 %v6552, %v6565
    %6567 = vdwg.mxu0
    %6568 = vmatpush.bf16.msra.mxu0 %v5276
    %6569 = vmatpush.bf16.msra.mxu0 %v5268
    %6570 = vmatpush.bf16.msra.mxu0 %v5260
    %6571 = vmatpush.bf16.msra.mxu0 %v5252
    %6572 = vmatpush.bf16.msra.mxu0 %v5244
    %6573 = vmatpush.bf16.msra.mxu0 %v5236
    %6574 = vmatpush.bf16.msra.mxu0 %v5228
    %6575 = vmatpush.bf16.msra.mxu0 %v5220
    %6576 = vmatmul.bf16.gmra.mxu0 %v1234
    %v6577 = vpop.f32.mrf.mxu0
    %v6578 = vadd.f32 %v6564, %v6577
    %v6579 = vpop.f32.mrf.mxu0
    %v6580 = vadd.f32 %v6566, %v6579
    %6581 = vdwg.mxu0
    %6582 = vmatpush.bf16.msra.mxu0 %v5340
    %6583 = vmatpush.bf16.msra.mxu0 %v5332
    %6584 = vmatpush.bf16.msra.mxu0 %v5324
    %6585 = vmatpush.bf16.msra.mxu0 %v5316
    %6586 = vmatpush.bf16.msra.mxu0 %v5308
    %6587 = vmatpush.bf16.msra.mxu0 %v5300
    %6588 = vmatpush.bf16.msra.mxu0 %v5292
    %6589 = vmatpush.bf16.msra.mxu0 %v5284
    %6590 = vmatmul.bf16.gmra.mxu0 %v1235
    %v6591 = vpop.f32.mrf.mxu0
    %v6592 = vadd.f32 %v6578, %v6591
    %v6593 = vpop.f32.mrf.mxu0
    %v6594 = vadd.f32 %v6580, %v6593
    %6595 = vdwg.mxu0
    %6596 = vmatpush.bf16.msra.mxu0 %v4381
    %6597 = vmatpush.bf16.msra.mxu0 %v4373
    %6598 = vmatpush.bf16.msra.mxu0 %v4365
    %6599 = vmatpush.bf16.msra.mxu0 %v4357
    %6600 = vmatpush.bf16.msra.mxu0 %v4349
    %6601 = vmatpush.bf16.msra.mxu0 %v4341
    %6602 = vmatpush.bf16.msra.mxu0 %v4333
    %6603 = vmatpush.bf16.msra.mxu0 %v4325
    %6604 = vmatmul.bf16.gmra.mxu0 %v1220
    %v6605 = vpop.f32.mrf.mxu0
    %v6606 = vadd.f32 %v1157, %v6605
    %v6607 = vpop.f32.mrf.mxu0
    %v6608 = vadd.f32 %v1157, %v6607
    %6609 = vdwg.mxu0
    %6610 = vmatpush.bf16.msra.mxu0 %v4445
    %6611 = vmatpush.bf16.msra.mxu0 %v4437
    %6612 = vmatpush.bf16.msra.mxu0 %v4429
    %6613 = vmatpush.bf16.msra.mxu0 %v4421
    %6614 = vmatpush.bf16.msra.mxu0 %v4413
    %6615 = vmatpush.bf16.msra.mxu0 %v4405
    %6616 = vmatpush.bf16.msra.mxu0 %v4397
    %6617 = vmatpush.bf16.msra.mxu0 %v4389
    %6618 = vmatmul.bf16.gmra.mxu0 %v1221
    %v6619 = vpop.f32.mrf.mxu0
    %v6620 = vadd.f32 %v6606, %v6619
    %v6621 = vpop.f32.mrf.mxu0
    %v6622 = vadd.f32 %v6608, %v6621
    %6623 = vdwg.mxu0
    %6624 = vmatpush.bf16.msra.mxu0 %v4509
    %6625 = vmatpush.bf16.msra.mxu0 %v4501
    %6626 = vmatpush.bf16.msra.mxu0 %v4493
    %6627 = vmatpush.bf16.msra.mxu0 %v4485
    %6628 = vmatpush.bf16.msra.mxu0 %v4477
    %6629 = vmatpush.bf16.msra.mxu0 %v4469
    %6630 = vmatpush.bf16.msra.mxu0 %v4461
    %6631 = vmatpush.bf16.msra.mxu0 %v4453
    %6632 = vmatmul.bf16.gmra.mxu0 %v1222
    %v6633 = vpop.f32.mrf.mxu0
    %v6634 = vadd.f32 %v6620, %v6633
    %v6635 = vpop.f32.mrf.mxu0
    %v6636 = vadd.f32 %v6622, %v6635
    %6637 = vdwg.mxu0
    %6638 = vmatpush.bf16.msra.mxu0 %v4573
    %6639 = vmatpush.bf16.msra.mxu0 %v4565
    %6640 = vmatpush.bf16.msra.mxu0 %v4557
    %6641 = vmatpush.bf16.msra.mxu0 %v4549
    %6642 = vmatpush.bf16.msra.mxu0 %v4541
    %6643 = vmatpush.bf16.msra.mxu0 %v4533
    %6644 = vmatpush.bf16.msra.mxu0 %v4525
    %6645 = vmatpush.bf16.msra.mxu0 %v4517
    %6646 = vmatmul.bf16.gmra.mxu0 %v1223
    %v6647 = vpop.f32.mrf.mxu0
    %v6648 = vadd.f32 %v6634, %v6647
    %v6649 = vpop.f32.mrf.mxu0
    %v6650 = vadd.f32 %v6636, %v6649
    %6651 = vdwg.mxu0
    %6652 = vmatpush.bf16.msra.mxu0 %v4637
    %6653 = vmatpush.bf16.msra.mxu0 %v4629
    %6654 = vmatpush.bf16.msra.mxu0 %v4621
    %6655 = vmatpush.bf16.msra.mxu0 %v4613
    %6656 = vmatpush.bf16.msra.mxu0 %v4605
    %6657 = vmatpush.bf16.msra.mxu0 %v4597
    %6658 = vmatpush.bf16.msra.mxu0 %v4589
    %6659 = vmatpush.bf16.msra.mxu0 %v4581
    %6660 = vmatmul.bf16.gmra.mxu0 %v1224
    %v6661 = vpop.f32.mrf.mxu0
    %v6662 = vadd.f32 %v6648, %v6661
    %v6663 = vpop.f32.mrf.mxu0
    %v6664 = vadd.f32 %v6650, %v6663
    %6665 = vdwg.mxu0
    %6666 = vmatpush.bf16.msra.mxu0 %v4701
    %6667 = vmatpush.bf16.msra.mxu0 %v4693
    %6668 = vmatpush.bf16.msra.mxu0 %v4685
    %6669 = vmatpush.bf16.msra.mxu0 %v4677
    %6670 = vmatpush.bf16.msra.mxu0 %v4669
    %6671 = vmatpush.bf16.msra.mxu0 %v4661
    %6672 = vmatpush.bf16.msra.mxu0 %v4653
    %6673 = vmatpush.bf16.msra.mxu0 %v4645
    %6674 = vmatmul.bf16.gmra.mxu0 %v1225
    %v6675 = vpop.f32.mrf.mxu0
    %v6676 = vadd.f32 %v6662, %v6675
    %v6677 = vpop.f32.mrf.mxu0
    %v6678 = vadd.f32 %v6664, %v6677
    %6679 = vdwg.mxu0
    %6680 = vmatpush.bf16.msra.mxu0 %v4765
    %6681 = vmatpush.bf16.msra.mxu0 %v4757
    %6682 = vmatpush.bf16.msra.mxu0 %v4749
    %6683 = vmatpush.bf16.msra.mxu0 %v4741
    %6684 = vmatpush.bf16.msra.mxu0 %v4733
    %6685 = vmatpush.bf16.msra.mxu0 %v4725
    %6686 = vmatpush.bf16.msra.mxu0 %v4717
    %6687 = vmatpush.bf16.msra.mxu0 %v4709
    %6688 = vmatmul.bf16.gmra.mxu0 %v1226
    %v6689 = vpop.f32.mrf.mxu0
    %v6690 = vadd.f32 %v6676, %v6689
    %v6691 = vpop.f32.mrf.mxu0
    %v6692 = vadd.f32 %v6678, %v6691
    %6693 = vdwg.mxu0
    %6694 = vmatpush.bf16.msra.mxu0 %v4829
    %6695 = vmatpush.bf16.msra.mxu0 %v4821
    %6696 = vmatpush.bf16.msra.mxu0 %v4813
    %6697 = vmatpush.bf16.msra.mxu0 %v4805
    %6698 = vmatpush.bf16.msra.mxu0 %v4797
    %6699 = vmatpush.bf16.msra.mxu0 %v4789
    %6700 = vmatpush.bf16.msra.mxu0 %v4781
    %6701 = vmatpush.bf16.msra.mxu0 %v4773
    %6702 = vmatmul.bf16.gmra.mxu0 %v1227
    %v6703 = vpop.f32.mrf.mxu0
    %v6704 = vadd.f32 %v6690, %v6703
    %v6705 = vpop.f32.mrf.mxu0
    %v6706 = vadd.f32 %v6692, %v6705
    %6707 = vdwg.mxu0
    %6708 = vmatpush.bf16.msra.mxu0 %v4893
    %6709 = vmatpush.bf16.msra.mxu0 %v4885
    %6710 = vmatpush.bf16.msra.mxu0 %v4877
    %6711 = vmatpush.bf16.msra.mxu0 %v4869
    %6712 = vmatpush.bf16.msra.mxu0 %v4861
    %6713 = vmatpush.bf16.msra.mxu0 %v4853
    %6714 = vmatpush.bf16.msra.mxu0 %v4845
    %6715 = vmatpush.bf16.msra.mxu0 %v4837
    %6716 = vmatmul.bf16.gmra.mxu0 %v1228
    %v6717 = vpop.f32.mrf.mxu0
    %v6718 = vadd.f32 %v6704, %v6717
    %v6719 = vpop.f32.mrf.mxu0
    %v6720 = vadd.f32 %v6706, %v6719
    %6721 = vdwg.mxu0
    %6722 = vmatpush.bf16.msra.mxu0 %v4957
    %6723 = vmatpush.bf16.msra.mxu0 %v4949
    %6724 = vmatpush.bf16.msra.mxu0 %v4941
    %6725 = vmatpush.bf16.msra.mxu0 %v4933
    %6726 = vmatpush.bf16.msra.mxu0 %v4925
    %6727 = vmatpush.bf16.msra.mxu0 %v4917
    %6728 = vmatpush.bf16.msra.mxu0 %v4909
    %6729 = vmatpush.bf16.msra.mxu0 %v4901
    %6730 = vmatmul.bf16.gmra.mxu0 %v1229
    %v6731 = vpop.f32.mrf.mxu0
    %v6732 = vadd.f32 %v6718, %v6731
    %v6733 = vpop.f32.mrf.mxu0
    %v6734 = vadd.f32 %v6720, %v6733
    %6735 = vdwg.mxu0
    %6736 = vmatpush.bf16.msra.mxu0 %v5021
    %6737 = vmatpush.bf16.msra.mxu0 %v5013
    %6738 = vmatpush.bf16.msra.mxu0 %v5005
    %6739 = vmatpush.bf16.msra.mxu0 %v4997
    %6740 = vmatpush.bf16.msra.mxu0 %v4989
    %6741 = vmatpush.bf16.msra.mxu0 %v4981
    %6742 = vmatpush.bf16.msra.mxu0 %v4973
    %6743 = vmatpush.bf16.msra.mxu0 %v4965
    %6744 = vmatmul.bf16.gmra.mxu0 %v1230
    %v6745 = vpop.f32.mrf.mxu0
    %v6746 = vadd.f32 %v6732, %v6745
    %v6747 = vpop.f32.mrf.mxu0
    %v6748 = vadd.f32 %v6734, %v6747
    %6749 = vdwg.mxu0
    %6750 = vmatpush.bf16.msra.mxu0 %v5085
    %6751 = vmatpush.bf16.msra.mxu0 %v5077
    %6752 = vmatpush.bf16.msra.mxu0 %v5069
    %6753 = vmatpush.bf16.msra.mxu0 %v5061
    %6754 = vmatpush.bf16.msra.mxu0 %v5053
    %6755 = vmatpush.bf16.msra.mxu0 %v5045
    %6756 = vmatpush.bf16.msra.mxu0 %v5037
    %6757 = vmatpush.bf16.msra.mxu0 %v5029
    %6758 = vmatmul.bf16.gmra.mxu0 %v1231
    %v6759 = vpop.f32.mrf.mxu0
    %v6760 = vadd.f32 %v6746, %v6759
    %v6761 = vpop.f32.mrf.mxu0
    %v6762 = vadd.f32 %v6748, %v6761
    %6763 = vdwg.mxu0
    %6764 = vmatpush.bf16.msra.mxu0 %v5149
    %6765 = vmatpush.bf16.msra.mxu0 %v5141
    %6766 = vmatpush.bf16.msra.mxu0 %v5133
    %6767 = vmatpush.bf16.msra.mxu0 %v5125
    %6768 = vmatpush.bf16.msra.mxu0 %v5117
    %6769 = vmatpush.bf16.msra.mxu0 %v5109
    %6770 = vmatpush.bf16.msra.mxu0 %v5101
    %6771 = vmatpush.bf16.msra.mxu0 %v5093
    %6772 = vmatmul.bf16.gmra.mxu0 %v1232
    %v6773 = vpop.f32.mrf.mxu0
    %v6774 = vadd.f32 %v6760, %v6773
    %v6775 = vpop.f32.mrf.mxu0
    %v6776 = vadd.f32 %v6762, %v6775
    %6777 = vdwg.mxu0
    %6778 = vmatpush.bf16.msra.mxu0 %v5213
    %6779 = vmatpush.bf16.msra.mxu0 %v5205
    %6780 = vmatpush.bf16.msra.mxu0 %v5197
    %6781 = vmatpush.bf16.msra.mxu0 %v5189
    %6782 = vmatpush.bf16.msra.mxu0 %v5181
    %6783 = vmatpush.bf16.msra.mxu0 %v5173
    %6784 = vmatpush.bf16.msra.mxu0 %v5165
    %6785 = vmatpush.bf16.msra.mxu0 %v5157
    %6786 = vmatmul.bf16.gmra.mxu0 %v1233
    %v6787 = vpop.f32.mrf.mxu0
    %v6788 = vadd.f32 %v6774, %v6787
    %v6789 = vpop.f32.mrf.mxu0
    %v6790 = vadd.f32 %v6776, %v6789
    %6791 = vdwg.mxu0
    %6792 = vmatpush.bf16.msra.mxu0 %v5277
    %6793 = vmatpush.bf16.msra.mxu0 %v5269
    %6794 = vmatpush.bf16.msra.mxu0 %v5261
    %6795 = vmatpush.bf16.msra.mxu0 %v5253
    %6796 = vmatpush.bf16.msra.mxu0 %v5245
    %6797 = vmatpush.bf16.msra.mxu0 %v5237
    %6798 = vmatpush.bf16.msra.mxu0 %v5229
    %6799 = vmatpush.bf16.msra.mxu0 %v5221
    %6800 = vmatmul.bf16.gmra.mxu0 %v1234
    %v6801 = vpop.f32.mrf.mxu0
    %v6802 = vadd.f32 %v6788, %v6801
    %v6803 = vpop.f32.mrf.mxu0
    %v6804 = vadd.f32 %v6790, %v6803
    %6805 = vdwg.mxu0
    %6806 = vmatpush.bf16.msra.mxu0 %v5341
    %6807 = vmatpush.bf16.msra.mxu0 %v5333
    %6808 = vmatpush.bf16.msra.mxu0 %v5325
    %6809 = vmatpush.bf16.msra.mxu0 %v5317
    %6810 = vmatpush.bf16.msra.mxu0 %v5309
    %6811 = vmatpush.bf16.msra.mxu0 %v5301
    %6812 = vmatpush.bf16.msra.mxu0 %v5293
    %6813 = vmatpush.bf16.msra.mxu0 %v5285
    %6814 = vmatmul.bf16.gmra.mxu0 %v1235
    %v6815 = vpop.f32.mrf.mxu0
    %v6816 = vadd.f32 %v6802, %v6815
    %v6817 = vpop.f32.mrf.mxu0
    %v6818 = vadd.f32 %v6804, %v6817
    %6819 = vdwg.mxu0
    %6820 = vmatpush.bf16.msra.mxu0 %v4382
    %6821 = vmatpush.bf16.msra.mxu0 %v4374
    %6822 = vmatpush.bf16.msra.mxu0 %v4366
    %6823 = vmatpush.bf16.msra.mxu0 %v4358
    %6824 = vmatpush.bf16.msra.mxu0 %v4350
    %6825 = vmatpush.bf16.msra.mxu0 %v4342
    %6826 = vmatpush.bf16.msra.mxu0 %v4334
    %6827 = vmatpush.bf16.msra.mxu0 %v4326
    %6828 = vmatmul.bf16.gmra.mxu0 %v1220
    %v6829 = vpop.f32.mrf.mxu0
    %v6830 = vadd.f32 %v1158, %v6829
    %v6831 = vpop.f32.mrf.mxu0
    %v6832 = vadd.f32 %v1158, %v6831
    %6833 = vdwg.mxu0
    %6834 = vmatpush.bf16.msra.mxu0 %v4446
    %6835 = vmatpush.bf16.msra.mxu0 %v4438
    %6836 = vmatpush.bf16.msra.mxu0 %v4430
    %6837 = vmatpush.bf16.msra.mxu0 %v4422
    %6838 = vmatpush.bf16.msra.mxu0 %v4414
    %6839 = vmatpush.bf16.msra.mxu0 %v4406
    %6840 = vmatpush.bf16.msra.mxu0 %v4398
    %6841 = vmatpush.bf16.msra.mxu0 %v4390
    %6842 = vmatmul.bf16.gmra.mxu0 %v1221
    %v6843 = vpop.f32.mrf.mxu0
    %v6844 = vadd.f32 %v6830, %v6843
    %v6845 = vpop.f32.mrf.mxu0
    %v6846 = vadd.f32 %v6832, %v6845
    %6847 = vdwg.mxu0
    %6848 = vmatpush.bf16.msra.mxu0 %v4510
    %6849 = vmatpush.bf16.msra.mxu0 %v4502
    %6850 = vmatpush.bf16.msra.mxu0 %v4494
    %6851 = vmatpush.bf16.msra.mxu0 %v4486
    %6852 = vmatpush.bf16.msra.mxu0 %v4478
    %6853 = vmatpush.bf16.msra.mxu0 %v4470
    %6854 = vmatpush.bf16.msra.mxu0 %v4462
    %6855 = vmatpush.bf16.msra.mxu0 %v4454
    %6856 = vmatmul.bf16.gmra.mxu0 %v1222
    %v6857 = vpop.f32.mrf.mxu0
    %v6858 = vadd.f32 %v6844, %v6857
    %v6859 = vpop.f32.mrf.mxu0
    %v6860 = vadd.f32 %v6846, %v6859
    %6861 = vdwg.mxu0
    %6862 = vmatpush.bf16.msra.mxu0 %v4574
    %6863 = vmatpush.bf16.msra.mxu0 %v4566
    %6864 = vmatpush.bf16.msra.mxu0 %v4558
    %6865 = vmatpush.bf16.msra.mxu0 %v4550
    %6866 = vmatpush.bf16.msra.mxu0 %v4542
    %6867 = vmatpush.bf16.msra.mxu0 %v4534
    %6868 = vmatpush.bf16.msra.mxu0 %v4526
    %6869 = vmatpush.bf16.msra.mxu0 %v4518
    %6870 = vmatmul.bf16.gmra.mxu0 %v1223
    %v6871 = vpop.f32.mrf.mxu0
    %v6872 = vadd.f32 %v6858, %v6871
    %v6873 = vpop.f32.mrf.mxu0
    %v6874 = vadd.f32 %v6860, %v6873
    %6875 = vdwg.mxu0
    %6876 = vmatpush.bf16.msra.mxu0 %v4638
    %6877 = vmatpush.bf16.msra.mxu0 %v4630
    %6878 = vmatpush.bf16.msra.mxu0 %v4622
    %6879 = vmatpush.bf16.msra.mxu0 %v4614
    %6880 = vmatpush.bf16.msra.mxu0 %v4606
    %6881 = vmatpush.bf16.msra.mxu0 %v4598
    %6882 = vmatpush.bf16.msra.mxu0 %v4590
    %6883 = vmatpush.bf16.msra.mxu0 %v4582
    %6884 = vmatmul.bf16.gmra.mxu0 %v1224
    %v6885 = vpop.f32.mrf.mxu0
    %v6886 = vadd.f32 %v6872, %v6885
    %v6887 = vpop.f32.mrf.mxu0
    %v6888 = vadd.f32 %v6874, %v6887
    %6889 = vdwg.mxu0
    %6890 = vmatpush.bf16.msra.mxu0 %v4702
    %6891 = vmatpush.bf16.msra.mxu0 %v4694
    %6892 = vmatpush.bf16.msra.mxu0 %v4686
    %6893 = vmatpush.bf16.msra.mxu0 %v4678
    %6894 = vmatpush.bf16.msra.mxu0 %v4670
    %6895 = vmatpush.bf16.msra.mxu0 %v4662
    %6896 = vmatpush.bf16.msra.mxu0 %v4654
    %6897 = vmatpush.bf16.msra.mxu0 %v4646
    %6898 = vmatmul.bf16.gmra.mxu0 %v1225
    %v6899 = vpop.f32.mrf.mxu0
    %v6900 = vadd.f32 %v6886, %v6899
    %v6901 = vpop.f32.mrf.mxu0
    %v6902 = vadd.f32 %v6888, %v6901
    %6903 = vdwg.mxu0
    %6904 = vmatpush.bf16.msra.mxu0 %v4766
    %6905 = vmatpush.bf16.msra.mxu0 %v4758
    %6906 = vmatpush.bf16.msra.mxu0 %v4750
    %6907 = vmatpush.bf16.msra.mxu0 %v4742
    %6908 = vmatpush.bf16.msra.mxu0 %v4734
    %6909 = vmatpush.bf16.msra.mxu0 %v4726
    %6910 = vmatpush.bf16.msra.mxu0 %v4718
    %6911 = vmatpush.bf16.msra.mxu0 %v4710
    %6912 = vmatmul.bf16.gmra.mxu0 %v1226
    %v6913 = vpop.f32.mrf.mxu0
    %v6914 = vadd.f32 %v6900, %v6913
    %v6915 = vpop.f32.mrf.mxu0
    %v6916 = vadd.f32 %v6902, %v6915
    %6917 = vdwg.mxu0
    %6918 = vmatpush.bf16.msra.mxu0 %v4830
    %6919 = vmatpush.bf16.msra.mxu0 %v4822
    %6920 = vmatpush.bf16.msra.mxu0 %v4814
    %6921 = vmatpush.bf16.msra.mxu0 %v4806
    %6922 = vmatpush.bf16.msra.mxu0 %v4798
    %6923 = vmatpush.bf16.msra.mxu0 %v4790
    %6924 = vmatpush.bf16.msra.mxu0 %v4782
    %6925 = vmatpush.bf16.msra.mxu0 %v4774
    %6926 = vmatmul.bf16.gmra.mxu0 %v1227
    %v6927 = vpop.f32.mrf.mxu0
    %v6928 = vadd.f32 %v6914, %v6927
    %v6929 = vpop.f32.mrf.mxu0
    %v6930 = vadd.f32 %v6916, %v6929
    %6931 = vdwg.mxu0
    %6932 = vmatpush.bf16.msra.mxu0 %v4894
    %6933 = vmatpush.bf16.msra.mxu0 %v4886
    %6934 = vmatpush.bf16.msra.mxu0 %v4878
    %6935 = vmatpush.bf16.msra.mxu0 %v4870
    %6936 = vmatpush.bf16.msra.mxu0 %v4862
    %6937 = vmatpush.bf16.msra.mxu0 %v4854
    %6938 = vmatpush.bf16.msra.mxu0 %v4846
    %6939 = vmatpush.bf16.msra.mxu0 %v4838
    %6940 = vmatmul.bf16.gmra.mxu0 %v1228
    %v6941 = vpop.f32.mrf.mxu0
    %v6942 = vadd.f32 %v6928, %v6941
    %v6943 = vpop.f32.mrf.mxu0
    %v6944 = vadd.f32 %v6930, %v6943
    %6945 = vdwg.mxu0
    %6946 = vmatpush.bf16.msra.mxu0 %v4958
    %6947 = vmatpush.bf16.msra.mxu0 %v4950
    %6948 = vmatpush.bf16.msra.mxu0 %v4942
    %6949 = vmatpush.bf16.msra.mxu0 %v4934
    %6950 = vmatpush.bf16.msra.mxu0 %v4926
    %6951 = vmatpush.bf16.msra.mxu0 %v4918
    %6952 = vmatpush.bf16.msra.mxu0 %v4910
    %6953 = vmatpush.bf16.msra.mxu0 %v4902
    %6954 = vmatmul.bf16.gmra.mxu0 %v1229
    %v6955 = vpop.f32.mrf.mxu0
    %v6956 = vadd.f32 %v6942, %v6955
    %v6957 = vpop.f32.mrf.mxu0
    %v6958 = vadd.f32 %v6944, %v6957
    %6959 = vdwg.mxu0
    %6960 = vmatpush.bf16.msra.mxu0 %v5022
    %6961 = vmatpush.bf16.msra.mxu0 %v5014
    %6962 = vmatpush.bf16.msra.mxu0 %v5006
    %6963 = vmatpush.bf16.msra.mxu0 %v4998
    %6964 = vmatpush.bf16.msra.mxu0 %v4990
    %6965 = vmatpush.bf16.msra.mxu0 %v4982
    %6966 = vmatpush.bf16.msra.mxu0 %v4974
    %6967 = vmatpush.bf16.msra.mxu0 %v4966
    %6968 = vmatmul.bf16.gmra.mxu0 %v1230
    %v6969 = vpop.f32.mrf.mxu0
    %v6970 = vadd.f32 %v6956, %v6969
    %v6971 = vpop.f32.mrf.mxu0
    %v6972 = vadd.f32 %v6958, %v6971
    %6973 = vdwg.mxu0
    %6974 = vmatpush.bf16.msra.mxu0 %v5086
    %6975 = vmatpush.bf16.msra.mxu0 %v5078
    %6976 = vmatpush.bf16.msra.mxu0 %v5070
    %6977 = vmatpush.bf16.msra.mxu0 %v5062
    %6978 = vmatpush.bf16.msra.mxu0 %v5054
    %6979 = vmatpush.bf16.msra.mxu0 %v5046
    %6980 = vmatpush.bf16.msra.mxu0 %v5038
    %6981 = vmatpush.bf16.msra.mxu0 %v5030
    %6982 = vmatmul.bf16.gmra.mxu0 %v1231
    %v6983 = vpop.f32.mrf.mxu0
    %v6984 = vadd.f32 %v6970, %v6983
    %v6985 = vpop.f32.mrf.mxu0
    %v6986 = vadd.f32 %v6972, %v6985
    %6987 = vdwg.mxu0
    %6988 = vmatpush.bf16.msra.mxu0 %v5150
    %6989 = vmatpush.bf16.msra.mxu0 %v5142
    %6990 = vmatpush.bf16.msra.mxu0 %v5134
    %6991 = vmatpush.bf16.msra.mxu0 %v5126
    %6992 = vmatpush.bf16.msra.mxu0 %v5118
    %6993 = vmatpush.bf16.msra.mxu0 %v5110
    %6994 = vmatpush.bf16.msra.mxu0 %v5102
    %6995 = vmatpush.bf16.msra.mxu0 %v5094
    %6996 = vmatmul.bf16.gmra.mxu0 %v1232
    %v6997 = vpop.f32.mrf.mxu0
    %v6998 = vadd.f32 %v6984, %v6997
    %v6999 = vpop.f32.mrf.mxu0
    %v7000 = vadd.f32 %v6986, %v6999
    %7001 = vdwg.mxu0
    %7002 = vmatpush.bf16.msra.mxu0 %v5214
    %7003 = vmatpush.bf16.msra.mxu0 %v5206
    %7004 = vmatpush.bf16.msra.mxu0 %v5198
    %7005 = vmatpush.bf16.msra.mxu0 %v5190
    %7006 = vmatpush.bf16.msra.mxu0 %v5182
    %7007 = vmatpush.bf16.msra.mxu0 %v5174
    %7008 = vmatpush.bf16.msra.mxu0 %v5166
    %7009 = vmatpush.bf16.msra.mxu0 %v5158
    %7010 = vmatmul.bf16.gmra.mxu0 %v1233
    %v7011 = vpop.f32.mrf.mxu0
    %v7012 = vadd.f32 %v6998, %v7011
    %v7013 = vpop.f32.mrf.mxu0
    %v7014 = vadd.f32 %v7000, %v7013
    %7015 = vdwg.mxu0
    %7016 = vmatpush.bf16.msra.mxu0 %v5278
    %7017 = vmatpush.bf16.msra.mxu0 %v5270
    %7018 = vmatpush.bf16.msra.mxu0 %v5262
    %7019 = vmatpush.bf16.msra.mxu0 %v5254
    %7020 = vmatpush.bf16.msra.mxu0 %v5246
    %7021 = vmatpush.bf16.msra.mxu0 %v5238
    %7022 = vmatpush.bf16.msra.mxu0 %v5230
    %7023 = vmatpush.bf16.msra.mxu0 %v5222
    %7024 = vmatmul.bf16.gmra.mxu0 %v1234
    %v7025 = vpop.f32.mrf.mxu0
    %v7026 = vadd.f32 %v7012, %v7025
    %v7027 = vpop.f32.mrf.mxu0
    %v7028 = vadd.f32 %v7014, %v7027
    %7029 = vdwg.mxu0
    %7030 = vmatpush.bf16.msra.mxu0 %v5342
    %7031 = vmatpush.bf16.msra.mxu0 %v5334
    %7032 = vmatpush.bf16.msra.mxu0 %v5326
    %7033 = vmatpush.bf16.msra.mxu0 %v5318
    %7034 = vmatpush.bf16.msra.mxu0 %v5310
    %7035 = vmatpush.bf16.msra.mxu0 %v5302
    %7036 = vmatpush.bf16.msra.mxu0 %v5294
    %7037 = vmatpush.bf16.msra.mxu0 %v5286
    %7038 = vmatmul.bf16.gmra.mxu0 %v1235
    %v7039 = vpop.f32.mrf.mxu0
    %v7040 = vadd.f32 %v7026, %v7039
    %v7041 = vpop.f32.mrf.mxu0
    %v7042 = vadd.f32 %v7028, %v7041
    %7043 = vdwg.mxu0
    %7044 = vmatpush.bf16.msra.mxu0 %v4383
    %7045 = vmatpush.bf16.msra.mxu0 %v4375
    %7046 = vmatpush.bf16.msra.mxu0 %v4367
    %7047 = vmatpush.bf16.msra.mxu0 %v4359
    %7048 = vmatpush.bf16.msra.mxu0 %v4351
    %7049 = vmatpush.bf16.msra.mxu0 %v4343
    %7050 = vmatpush.bf16.msra.mxu0 %v4335
    %7051 = vmatpush.bf16.msra.mxu0 %v4327
    %7052 = vmatmul.bf16.gmra.mxu0 %v1220
    %v7053 = vpop.f32.mrf.mxu0
    %v7054 = vadd.f32 %v1159, %v7053
    %v7055 = vpop.f32.mrf.mxu0
    %v7056 = vadd.f32 %v1159, %v7055
    %7057 = vdwg.mxu0
    %7058 = vmatpush.bf16.msra.mxu0 %v4447
    %7059 = vmatpush.bf16.msra.mxu0 %v4439
    %7060 = vmatpush.bf16.msra.mxu0 %v4431
    %7061 = vmatpush.bf16.msra.mxu0 %v4423
    %7062 = vmatpush.bf16.msra.mxu0 %v4415
    %7063 = vmatpush.bf16.msra.mxu0 %v4407
    %7064 = vmatpush.bf16.msra.mxu0 %v4399
    %7065 = vmatpush.bf16.msra.mxu0 %v4391
    %7066 = vmatmul.bf16.gmra.mxu0 %v1221
    %v7067 = vpop.f32.mrf.mxu0
    %v7068 = vadd.f32 %v7054, %v7067
    %v7069 = vpop.f32.mrf.mxu0
    %v7070 = vadd.f32 %v7056, %v7069
    %7071 = vdwg.mxu0
    %7072 = vmatpush.bf16.msra.mxu0 %v4511
    %7073 = vmatpush.bf16.msra.mxu0 %v4503
    %7074 = vmatpush.bf16.msra.mxu0 %v4495
    %7075 = vmatpush.bf16.msra.mxu0 %v4487
    %7076 = vmatpush.bf16.msra.mxu0 %v4479
    %7077 = vmatpush.bf16.msra.mxu0 %v4471
    %7078 = vmatpush.bf16.msra.mxu0 %v4463
    %7079 = vmatpush.bf16.msra.mxu0 %v4455
    %7080 = vmatmul.bf16.gmra.mxu0 %v1222
    %v7081 = vpop.f32.mrf.mxu0
    %v7082 = vadd.f32 %v7068, %v7081
    %v7083 = vpop.f32.mrf.mxu0
    %v7084 = vadd.f32 %v7070, %v7083
    %7085 = vdwg.mxu0
    %7086 = vmatpush.bf16.msra.mxu0 %v4575
    %7087 = vmatpush.bf16.msra.mxu0 %v4567
    %7088 = vmatpush.bf16.msra.mxu0 %v4559
    %7089 = vmatpush.bf16.msra.mxu0 %v4551
    %7090 = vmatpush.bf16.msra.mxu0 %v4543
    %7091 = vmatpush.bf16.msra.mxu0 %v4535
    %7092 = vmatpush.bf16.msra.mxu0 %v4527
    %7093 = vmatpush.bf16.msra.mxu0 %v4519
    %7094 = vmatmul.bf16.gmra.mxu0 %v1223
    %v7095 = vpop.f32.mrf.mxu0
    %v7096 = vadd.f32 %v7082, %v7095
    %v7097 = vpop.f32.mrf.mxu0
    %v7098 = vadd.f32 %v7084, %v7097
    %7099 = vdwg.mxu0
    %7100 = vmatpush.bf16.msra.mxu0 %v4639
    %7101 = vmatpush.bf16.msra.mxu0 %v4631
    %7102 = vmatpush.bf16.msra.mxu0 %v4623
    %7103 = vmatpush.bf16.msra.mxu0 %v4615
    %7104 = vmatpush.bf16.msra.mxu0 %v4607
    %7105 = vmatpush.bf16.msra.mxu0 %v4599
    %7106 = vmatpush.bf16.msra.mxu0 %v4591
    %7107 = vmatpush.bf16.msra.mxu0 %v4583
    %7108 = vmatmul.bf16.gmra.mxu0 %v1224
    %v7109 = vpop.f32.mrf.mxu0
    %v7110 = vadd.f32 %v7096, %v7109
    %v7111 = vpop.f32.mrf.mxu0
    %v7112 = vadd.f32 %v7098, %v7111
    %7113 = vdwg.mxu0
    %7114 = vmatpush.bf16.msra.mxu0 %v4703
    %7115 = vmatpush.bf16.msra.mxu0 %v4695
    %7116 = vmatpush.bf16.msra.mxu0 %v4687
    %7117 = vmatpush.bf16.msra.mxu0 %v4679
    %7118 = vmatpush.bf16.msra.mxu0 %v4671
    %7119 = vmatpush.bf16.msra.mxu0 %v4663
    %7120 = vmatpush.bf16.msra.mxu0 %v4655
    %7121 = vmatpush.bf16.msra.mxu0 %v4647
    %7122 = vmatmul.bf16.gmra.mxu0 %v1225
    %v7123 = vpop.f32.mrf.mxu0
    %v7124 = vadd.f32 %v7110, %v7123
    %v7125 = vpop.f32.mrf.mxu0
    %v7126 = vadd.f32 %v7112, %v7125
    %7127 = vdwg.mxu0
    %7128 = vmatpush.bf16.msra.mxu0 %v4767
    %7129 = vmatpush.bf16.msra.mxu0 %v4759
    %7130 = vmatpush.bf16.msra.mxu0 %v4751
    %7131 = vmatpush.bf16.msra.mxu0 %v4743
    %7132 = vmatpush.bf16.msra.mxu0 %v4735
    %7133 = vmatpush.bf16.msra.mxu0 %v4727
    %7134 = vmatpush.bf16.msra.mxu0 %v4719
    %7135 = vmatpush.bf16.msra.mxu0 %v4711
    %7136 = vmatmul.bf16.gmra.mxu0 %v1226
    %v7137 = vpop.f32.mrf.mxu0
    %v7138 = vadd.f32 %v7124, %v7137
    %v7139 = vpop.f32.mrf.mxu0
    %v7140 = vadd.f32 %v7126, %v7139
    %7141 = vdwg.mxu0
    %7142 = vmatpush.bf16.msra.mxu0 %v4831
    %7143 = vmatpush.bf16.msra.mxu0 %v4823
    %7144 = vmatpush.bf16.msra.mxu0 %v4815
    %7145 = vmatpush.bf16.msra.mxu0 %v4807
    %7146 = vmatpush.bf16.msra.mxu0 %v4799
    %7147 = vmatpush.bf16.msra.mxu0 %v4791
    %7148 = vmatpush.bf16.msra.mxu0 %v4783
    %7149 = vmatpush.bf16.msra.mxu0 %v4775
    %7150 = vmatmul.bf16.gmra.mxu0 %v1227
    %v7151 = vpop.f32.mrf.mxu0
    %v7152 = vadd.f32 %v7138, %v7151
    %v7153 = vpop.f32.mrf.mxu0
    %v7154 = vadd.f32 %v7140, %v7153
    %7155 = vdwg.mxu0
    %7156 = vmatpush.bf16.msra.mxu0 %v4895
    %7157 = vmatpush.bf16.msra.mxu0 %v4887
    %7158 = vmatpush.bf16.msra.mxu0 %v4879
    %7159 = vmatpush.bf16.msra.mxu0 %v4871
    %7160 = vmatpush.bf16.msra.mxu0 %v4863
    %7161 = vmatpush.bf16.msra.mxu0 %v4855
    %7162 = vmatpush.bf16.msra.mxu0 %v4847
    %7163 = vmatpush.bf16.msra.mxu0 %v4839
    %7164 = vmatmul.bf16.gmra.mxu0 %v1228
    %v7165 = vpop.f32.mrf.mxu0
    %v7166 = vadd.f32 %v7152, %v7165
    %v7167 = vpop.f32.mrf.mxu0
    %v7168 = vadd.f32 %v7154, %v7167
    %7169 = vdwg.mxu0
    %7170 = vmatpush.bf16.msra.mxu0 %v4959
    %7171 = vmatpush.bf16.msra.mxu0 %v4951
    %7172 = vmatpush.bf16.msra.mxu0 %v4943
    %7173 = vmatpush.bf16.msra.mxu0 %v4935
    %7174 = vmatpush.bf16.msra.mxu0 %v4927
    %7175 = vmatpush.bf16.msra.mxu0 %v4919
    %7176 = vmatpush.bf16.msra.mxu0 %v4911
    %7177 = vmatpush.bf16.msra.mxu0 %v4903
    %7178 = vmatmul.bf16.gmra.mxu0 %v1229
    %v7179 = vpop.f32.mrf.mxu0
    %v7180 = vadd.f32 %v7166, %v7179
    %v7181 = vpop.f32.mrf.mxu0
    %v7182 = vadd.f32 %v7168, %v7181
    %7183 = vdwg.mxu0
    %7184 = vmatpush.bf16.msra.mxu0 %v5023
    %7185 = vmatpush.bf16.msra.mxu0 %v5015
    %7186 = vmatpush.bf16.msra.mxu0 %v5007
    %7187 = vmatpush.bf16.msra.mxu0 %v4999
    %7188 = vmatpush.bf16.msra.mxu0 %v4991
    %7189 = vmatpush.bf16.msra.mxu0 %v4983
    %7190 = vmatpush.bf16.msra.mxu0 %v4975
    %7191 = vmatpush.bf16.msra.mxu0 %v4967
    %7192 = vmatmul.bf16.gmra.mxu0 %v1230
    %v7193 = vpop.f32.mrf.mxu0
    %v7194 = vadd.f32 %v7180, %v7193
    %v7195 = vpop.f32.mrf.mxu0
    %v7196 = vadd.f32 %v7182, %v7195
    %7197 = vdwg.mxu0
    %7198 = vmatpush.bf16.msra.mxu0 %v5087
    %7199 = vmatpush.bf16.msra.mxu0 %v5079
    %7200 = vmatpush.bf16.msra.mxu0 %v5071
    %7201 = vmatpush.bf16.msra.mxu0 %v5063
    %7202 = vmatpush.bf16.msra.mxu0 %v5055
    %7203 = vmatpush.bf16.msra.mxu0 %v5047
    %7204 = vmatpush.bf16.msra.mxu0 %v5039
    %7205 = vmatpush.bf16.msra.mxu0 %v5031
    %7206 = vmatmul.bf16.gmra.mxu0 %v1231
    %v7207 = vpop.f32.mrf.mxu0
    %v7208 = vadd.f32 %v7194, %v7207
    %v7209 = vpop.f32.mrf.mxu0
    %v7210 = vadd.f32 %v7196, %v7209
    %7211 = vdwg.mxu0
    %7212 = vmatpush.bf16.msra.mxu0 %v5151
    %7213 = vmatpush.bf16.msra.mxu0 %v5143
    %7214 = vmatpush.bf16.msra.mxu0 %v5135
    %7215 = vmatpush.bf16.msra.mxu0 %v5127
    %7216 = vmatpush.bf16.msra.mxu0 %v5119
    %7217 = vmatpush.bf16.msra.mxu0 %v5111
    %7218 = vmatpush.bf16.msra.mxu0 %v5103
    %7219 = vmatpush.bf16.msra.mxu0 %v5095
    %7220 = vmatmul.bf16.gmra.mxu0 %v1232
    %v7221 = vpop.f32.mrf.mxu0
    %v7222 = vadd.f32 %v7208, %v7221
    %v7223 = vpop.f32.mrf.mxu0
    %v7224 = vadd.f32 %v7210, %v7223
    %7225 = vdwg.mxu0
    %7226 = vmatpush.bf16.msra.mxu0 %v5215
    %7227 = vmatpush.bf16.msra.mxu0 %v5207
    %7228 = vmatpush.bf16.msra.mxu0 %v5199
    %7229 = vmatpush.bf16.msra.mxu0 %v5191
    %7230 = vmatpush.bf16.msra.mxu0 %v5183
    %7231 = vmatpush.bf16.msra.mxu0 %v5175
    %7232 = vmatpush.bf16.msra.mxu0 %v5167
    %7233 = vmatpush.bf16.msra.mxu0 %v5159
    %7234 = vmatmul.bf16.gmra.mxu0 %v1233
    %v7235 = vpop.f32.mrf.mxu0
    %v7236 = vadd.f32 %v7222, %v7235
    %v7237 = vpop.f32.mrf.mxu0
    %v7238 = vadd.f32 %v7224, %v7237
    %7239 = vdwg.mxu0
    %7240 = vmatpush.bf16.msra.mxu0 %v5279
    %7241 = vmatpush.bf16.msra.mxu0 %v5271
    %7242 = vmatpush.bf16.msra.mxu0 %v5263
    %7243 = vmatpush.bf16.msra.mxu0 %v5255
    %7244 = vmatpush.bf16.msra.mxu0 %v5247
    %7245 = vmatpush.bf16.msra.mxu0 %v5239
    %7246 = vmatpush.bf16.msra.mxu0 %v5231
    %7247 = vmatpush.bf16.msra.mxu0 %v5223
    %7248 = vmatmul.bf16.gmra.mxu0 %v1234
    %v7249 = vpop.f32.mrf.mxu0
    %v7250 = vadd.f32 %v7236, %v7249
    %v7251 = vpop.f32.mrf.mxu0
    %v7252 = vadd.f32 %v7238, %v7251
    %7253 = vdwg.mxu0
    %7254 = vmatpush.bf16.msra.mxu0 %v5343
    %7255 = vmatpush.bf16.msra.mxu0 %v5335
    %7256 = vmatpush.bf16.msra.mxu0 %v5327
    %7257 = vmatpush.bf16.msra.mxu0 %v5319
    %7258 = vmatpush.bf16.msra.mxu0 %v5311
    %7259 = vmatpush.bf16.msra.mxu0 %v5303
    %7260 = vmatpush.bf16.msra.mxu0 %v5295
    %7261 = vmatpush.bf16.msra.mxu0 %v5287
    %7262 = vmatmul.bf16.gmra.mxu0 %v1235
    %v7263 = vpop.f32.mrf.mxu0
    %v7264 = vadd.f32 %v7250, %v7263
    %v7265 = vpop.f32.mrf.mxu0
    %v7266 = vadd.f32 %v7252, %v7265
    %7267 = vdwg.mxu0
    %7268 = vmatpush.bf16.msra.mxu0 %v4384
    %7269 = vmatpush.bf16.msra.mxu0 %v4376
    %7270 = vmatpush.bf16.msra.mxu0 %v4368
    %7271 = vmatpush.bf16.msra.mxu0 %v4360
    %7272 = vmatpush.bf16.msra.mxu0 %v4352
    %7273 = vmatpush.bf16.msra.mxu0 %v4344
    %7274 = vmatpush.bf16.msra.mxu0 %v4336
    %7275 = vmatpush.bf16.msra.mxu0 %v4328
    %7276 = vmatmul.bf16.gmra.mxu0 %v1220
    %v7277 = vpop.f32.mrf.mxu0
    %v7278 = vadd.f32 %v1160, %v7277
    %v7279 = vpop.f32.mrf.mxu0
    %v7280 = vadd.f32 %v1160, %v7279
    %7281 = vdwg.mxu0
    %7282 = vmatpush.bf16.msra.mxu0 %v4448
    %7283 = vmatpush.bf16.msra.mxu0 %v4440
    %7284 = vmatpush.bf16.msra.mxu0 %v4432
    %7285 = vmatpush.bf16.msra.mxu0 %v4424
    %7286 = vmatpush.bf16.msra.mxu0 %v4416
    %7287 = vmatpush.bf16.msra.mxu0 %v4408
    %7288 = vmatpush.bf16.msra.mxu0 %v4400
    %7289 = vmatpush.bf16.msra.mxu0 %v4392
    %7290 = vmatmul.bf16.gmra.mxu0 %v1221
    %v7291 = vpop.f32.mrf.mxu0
    %v7292 = vadd.f32 %v7278, %v7291
    %v7293 = vpop.f32.mrf.mxu0
    %v7294 = vadd.f32 %v7280, %v7293
    %7295 = vdwg.mxu0
    %7296 = vmatpush.bf16.msra.mxu0 %v4512
    %7297 = vmatpush.bf16.msra.mxu0 %v4504
    %7298 = vmatpush.bf16.msra.mxu0 %v4496
    %7299 = vmatpush.bf16.msra.mxu0 %v4488
    %7300 = vmatpush.bf16.msra.mxu0 %v4480
    %7301 = vmatpush.bf16.msra.mxu0 %v4472
    %7302 = vmatpush.bf16.msra.mxu0 %v4464
    %7303 = vmatpush.bf16.msra.mxu0 %v4456
    %7304 = vmatmul.bf16.gmra.mxu0 %v1222
    %v7305 = vpop.f32.mrf.mxu0
    %v7306 = vadd.f32 %v7292, %v7305
    %v7307 = vpop.f32.mrf.mxu0
    %v7308 = vadd.f32 %v7294, %v7307
    %7309 = vdwg.mxu0
    %7310 = vmatpush.bf16.msra.mxu0 %v4576
    %7311 = vmatpush.bf16.msra.mxu0 %v4568
    %7312 = vmatpush.bf16.msra.mxu0 %v4560
    %7313 = vmatpush.bf16.msra.mxu0 %v4552
    %7314 = vmatpush.bf16.msra.mxu0 %v4544
    %7315 = vmatpush.bf16.msra.mxu0 %v4536
    %7316 = vmatpush.bf16.msra.mxu0 %v4528
    %7317 = vmatpush.bf16.msra.mxu0 %v4520
    %7318 = vmatmul.bf16.gmra.mxu0 %v1223
    %v7319 = vpop.f32.mrf.mxu0
    %v7320 = vadd.f32 %v7306, %v7319
    %v7321 = vpop.f32.mrf.mxu0
    %v7322 = vadd.f32 %v7308, %v7321
    %7323 = vdwg.mxu0
    %7324 = vmatpush.bf16.msra.mxu0 %v4640
    %7325 = vmatpush.bf16.msra.mxu0 %v4632
    %7326 = vmatpush.bf16.msra.mxu0 %v4624
    %7327 = vmatpush.bf16.msra.mxu0 %v4616
    %7328 = vmatpush.bf16.msra.mxu0 %v4608
    %7329 = vmatpush.bf16.msra.mxu0 %v4600
    %7330 = vmatpush.bf16.msra.mxu0 %v4592
    %7331 = vmatpush.bf16.msra.mxu0 %v4584
    %7332 = vmatmul.bf16.gmra.mxu0 %v1224
    %v7333 = vpop.f32.mrf.mxu0
    %v7334 = vadd.f32 %v7320, %v7333
    %v7335 = vpop.f32.mrf.mxu0
    %v7336 = vadd.f32 %v7322, %v7335
    %7337 = vdwg.mxu0
    %7338 = vmatpush.bf16.msra.mxu0 %v4704
    %7339 = vmatpush.bf16.msra.mxu0 %v4696
    %7340 = vmatpush.bf16.msra.mxu0 %v4688
    %7341 = vmatpush.bf16.msra.mxu0 %v4680
    %7342 = vmatpush.bf16.msra.mxu0 %v4672
    %7343 = vmatpush.bf16.msra.mxu0 %v4664
    %7344 = vmatpush.bf16.msra.mxu0 %v4656
    %7345 = vmatpush.bf16.msra.mxu0 %v4648
    %7346 = vmatmul.bf16.gmra.mxu0 %v1225
    %v7347 = vpop.f32.mrf.mxu0
    %v7348 = vadd.f32 %v7334, %v7347
    %v7349 = vpop.f32.mrf.mxu0
    %v7350 = vadd.f32 %v7336, %v7349
    %7351 = vdwg.mxu0
    %7352 = vmatpush.bf16.msra.mxu0 %v4768
    %7353 = vmatpush.bf16.msra.mxu0 %v4760
    %7354 = vmatpush.bf16.msra.mxu0 %v4752
    %7355 = vmatpush.bf16.msra.mxu0 %v4744
    %7356 = vmatpush.bf16.msra.mxu0 %v4736
    %7357 = vmatpush.bf16.msra.mxu0 %v4728
    %7358 = vmatpush.bf16.msra.mxu0 %v4720
    %7359 = vmatpush.bf16.msra.mxu0 %v4712
    %7360 = vmatmul.bf16.gmra.mxu0 %v1226
    %v7361 = vpop.f32.mrf.mxu0
    %v7362 = vadd.f32 %v7348, %v7361
    %v7363 = vpop.f32.mrf.mxu0
    %v7364 = vadd.f32 %v7350, %v7363
    %7365 = vdwg.mxu0
    %7366 = vmatpush.bf16.msra.mxu0 %v4832
    %7367 = vmatpush.bf16.msra.mxu0 %v4824
    %7368 = vmatpush.bf16.msra.mxu0 %v4816
    %7369 = vmatpush.bf16.msra.mxu0 %v4808
    %7370 = vmatpush.bf16.msra.mxu0 %v4800
    %7371 = vmatpush.bf16.msra.mxu0 %v4792
    %7372 = vmatpush.bf16.msra.mxu0 %v4784
    %7373 = vmatpush.bf16.msra.mxu0 %v4776
    %7374 = vmatmul.bf16.gmra.mxu0 %v1227
    %v7375 = vpop.f32.mrf.mxu0
    %v7376 = vadd.f32 %v7362, %v7375
    %v7377 = vpop.f32.mrf.mxu0
    %v7378 = vadd.f32 %v7364, %v7377
    %7379 = vdwg.mxu0
    %7380 = vmatpush.bf16.msra.mxu0 %v4896
    %7381 = vmatpush.bf16.msra.mxu0 %v4888
    %7382 = vmatpush.bf16.msra.mxu0 %v4880
    %7383 = vmatpush.bf16.msra.mxu0 %v4872
    %7384 = vmatpush.bf16.msra.mxu0 %v4864
    %7385 = vmatpush.bf16.msra.mxu0 %v4856
    %7386 = vmatpush.bf16.msra.mxu0 %v4848
    %7387 = vmatpush.bf16.msra.mxu0 %v4840
    %7388 = vmatmul.bf16.gmra.mxu0 %v1228
    %v7389 = vpop.f32.mrf.mxu0
    %v7390 = vadd.f32 %v7376, %v7389
    %v7391 = vpop.f32.mrf.mxu0
    %v7392 = vadd.f32 %v7378, %v7391
    %7393 = vdwg.mxu0
    %7394 = vmatpush.bf16.msra.mxu0 %v4960
    %7395 = vmatpush.bf16.msra.mxu0 %v4952
    %7396 = vmatpush.bf16.msra.mxu0 %v4944
    %7397 = vmatpush.bf16.msra.mxu0 %v4936
    %7398 = vmatpush.bf16.msra.mxu0 %v4928
    %7399 = vmatpush.bf16.msra.mxu0 %v4920
    %7400 = vmatpush.bf16.msra.mxu0 %v4912
    %7401 = vmatpush.bf16.msra.mxu0 %v4904
    %7402 = vmatmul.bf16.gmra.mxu0 %v1229
    %v7403 = vpop.f32.mrf.mxu0
    %v7404 = vadd.f32 %v7390, %v7403
    %v7405 = vpop.f32.mrf.mxu0
    %v7406 = vadd.f32 %v7392, %v7405
    %7407 = vdwg.mxu0
    %7408 = vmatpush.bf16.msra.mxu0 %v5024
    %7409 = vmatpush.bf16.msra.mxu0 %v5016
    %7410 = vmatpush.bf16.msra.mxu0 %v5008
    %7411 = vmatpush.bf16.msra.mxu0 %v5000
    %7412 = vmatpush.bf16.msra.mxu0 %v4992
    %7413 = vmatpush.bf16.msra.mxu0 %v4984
    %7414 = vmatpush.bf16.msra.mxu0 %v4976
    %7415 = vmatpush.bf16.msra.mxu0 %v4968
    %7416 = vmatmul.bf16.gmra.mxu0 %v1230
    %v7417 = vpop.f32.mrf.mxu0
    %v7418 = vadd.f32 %v7404, %v7417
    %v7419 = vpop.f32.mrf.mxu0
    %v7420 = vadd.f32 %v7406, %v7419
    %7421 = vdwg.mxu0
    %7422 = vmatpush.bf16.msra.mxu0 %v5088
    %7423 = vmatpush.bf16.msra.mxu0 %v5080
    %7424 = vmatpush.bf16.msra.mxu0 %v5072
    %7425 = vmatpush.bf16.msra.mxu0 %v5064
    %7426 = vmatpush.bf16.msra.mxu0 %v5056
    %7427 = vmatpush.bf16.msra.mxu0 %v5048
    %7428 = vmatpush.bf16.msra.mxu0 %v5040
    %7429 = vmatpush.bf16.msra.mxu0 %v5032
    %7430 = vmatmul.bf16.gmra.mxu0 %v1231
    %v7431 = vpop.f32.mrf.mxu0
    %v7432 = vadd.f32 %v7418, %v7431
    %v7433 = vpop.f32.mrf.mxu0
    %v7434 = vadd.f32 %v7420, %v7433
    %7435 = vdwg.mxu0
    %7436 = vmatpush.bf16.msra.mxu0 %v5152
    %7437 = vmatpush.bf16.msra.mxu0 %v5144
    %7438 = vmatpush.bf16.msra.mxu0 %v5136
    %7439 = vmatpush.bf16.msra.mxu0 %v5128
    %7440 = vmatpush.bf16.msra.mxu0 %v5120
    %7441 = vmatpush.bf16.msra.mxu0 %v5112
    %7442 = vmatpush.bf16.msra.mxu0 %v5104
    %7443 = vmatpush.bf16.msra.mxu0 %v5096
    %7444 = vmatmul.bf16.gmra.mxu0 %v1232
    %v7445 = vpop.f32.mrf.mxu0
    %v7446 = vadd.f32 %v7432, %v7445
    %v7447 = vpop.f32.mrf.mxu0
    %v7448 = vadd.f32 %v7434, %v7447
    %7449 = vdwg.mxu0
    %7450 = vmatpush.bf16.msra.mxu0 %v5216
    %7451 = vmatpush.bf16.msra.mxu0 %v5208
    %7452 = vmatpush.bf16.msra.mxu0 %v5200
    %7453 = vmatpush.bf16.msra.mxu0 %v5192
    %7454 = vmatpush.bf16.msra.mxu0 %v5184
    %7455 = vmatpush.bf16.msra.mxu0 %v5176
    %7456 = vmatpush.bf16.msra.mxu0 %v5168
    %7457 = vmatpush.bf16.msra.mxu0 %v5160
    %7458 = vmatmul.bf16.gmra.mxu0 %v1233
    %v7459 = vpop.f32.mrf.mxu0
    %v7460 = vadd.f32 %v7446, %v7459
    %v7461 = vpop.f32.mrf.mxu0
    %v7462 = vadd.f32 %v7448, %v7461
    %7463 = vdwg.mxu0
    %7464 = vmatpush.bf16.msra.mxu0 %v5280
    %7465 = vmatpush.bf16.msra.mxu0 %v5272
    %7466 = vmatpush.bf16.msra.mxu0 %v5264
    %7467 = vmatpush.bf16.msra.mxu0 %v5256
    %7468 = vmatpush.bf16.msra.mxu0 %v5248
    %7469 = vmatpush.bf16.msra.mxu0 %v5240
    %7470 = vmatpush.bf16.msra.mxu0 %v5232
    %7471 = vmatpush.bf16.msra.mxu0 %v5224
    %7472 = vmatmul.bf16.gmra.mxu0 %v1234
    %v7473 = vpop.f32.mrf.mxu0
    %v7474 = vadd.f32 %v7460, %v7473
    %v7475 = vpop.f32.mrf.mxu0
    %v7476 = vadd.f32 %v7462, %v7475
    %7477 = vdwg.mxu0
    %7478 = vmatpush.bf16.msra.mxu0 %v5344
    %7479 = vmatpush.bf16.msra.mxu0 %v5336
    %7480 = vmatpush.bf16.msra.mxu0 %v5328
    %7481 = vmatpush.bf16.msra.mxu0 %v5320
    %7482 = vmatpush.bf16.msra.mxu0 %v5312
    %7483 = vmatpush.bf16.msra.mxu0 %v5304
    %7484 = vmatpush.bf16.msra.mxu0 %v5296
    %7485 = vmatpush.bf16.msra.mxu0 %v5288
    %7486 = vmatmul.bf16.gmra.mxu0 %v1235
    %v7487 = vpop.f32.mrf.mxu0
    %v7488 = vadd.f32 %v7474, %v7487
    %v7489 = vpop.f32.mrf.mxu0
    %v7490 = vadd.f32 %v7476, %v7489
    %7491 = vdwg.mxu0
    %7492 = vmatpush.bf16.msra.mxu0 %v4385
    %7493 = vmatpush.bf16.msra.mxu0 %v4377
    %7494 = vmatpush.bf16.msra.mxu0 %v4369
    %7495 = vmatpush.bf16.msra.mxu0 %v4361
    %7496 = vmatpush.bf16.msra.mxu0 %v4353
    %7497 = vmatpush.bf16.msra.mxu0 %v4345
    %7498 = vmatpush.bf16.msra.mxu0 %v4337
    %7499 = vmatpush.bf16.msra.mxu0 %v4329
    %7500 = vmatmul.bf16.gmra.mxu0 %v1220
    %v7501 = vpop.f32.mrf.mxu0
    %v7502 = vadd.f32 %v1161, %v7501
    %v7503 = vpop.f32.mrf.mxu0
    %v7504 = vadd.f32 %v1161, %v7503
    %7505 = vdwg.mxu0
    %7506 = vmatpush.bf16.msra.mxu0 %v4449
    %7507 = vmatpush.bf16.msra.mxu0 %v4441
    %7508 = vmatpush.bf16.msra.mxu0 %v4433
    %7509 = vmatpush.bf16.msra.mxu0 %v4425
    %7510 = vmatpush.bf16.msra.mxu0 %v4417
    %7511 = vmatpush.bf16.msra.mxu0 %v4409
    %7512 = vmatpush.bf16.msra.mxu0 %v4401
    %7513 = vmatpush.bf16.msra.mxu0 %v4393
    %7514 = vmatmul.bf16.gmra.mxu0 %v1221
    %v7515 = vpop.f32.mrf.mxu0
    %v7516 = vadd.f32 %v7502, %v7515
    %v7517 = vpop.f32.mrf.mxu0
    %v7518 = vadd.f32 %v7504, %v7517
    %7519 = vdwg.mxu0
    %7520 = vmatpush.bf16.msra.mxu0 %v4513
    %7521 = vmatpush.bf16.msra.mxu0 %v4505
    %7522 = vmatpush.bf16.msra.mxu0 %v4497
    %7523 = vmatpush.bf16.msra.mxu0 %v4489
    %7524 = vmatpush.bf16.msra.mxu0 %v4481
    %7525 = vmatpush.bf16.msra.mxu0 %v4473
    %7526 = vmatpush.bf16.msra.mxu0 %v4465
    %7527 = vmatpush.bf16.msra.mxu0 %v4457
    %7528 = vmatmul.bf16.gmra.mxu0 %v1222
    %v7529 = vpop.f32.mrf.mxu0
    %v7530 = vadd.f32 %v7516, %v7529
    %v7531 = vpop.f32.mrf.mxu0
    %v7532 = vadd.f32 %v7518, %v7531
    %7533 = vdwg.mxu0
    %7534 = vmatpush.bf16.msra.mxu0 %v4577
    %7535 = vmatpush.bf16.msra.mxu0 %v4569
    %7536 = vmatpush.bf16.msra.mxu0 %v4561
    %7537 = vmatpush.bf16.msra.mxu0 %v4553
    %7538 = vmatpush.bf16.msra.mxu0 %v4545
    %7539 = vmatpush.bf16.msra.mxu0 %v4537
    %7540 = vmatpush.bf16.msra.mxu0 %v4529
    %7541 = vmatpush.bf16.msra.mxu0 %v4521
    %7542 = vmatmul.bf16.gmra.mxu0 %v1223
    %v7543 = vpop.f32.mrf.mxu0
    %v7544 = vadd.f32 %v7530, %v7543
    %v7545 = vpop.f32.mrf.mxu0
    %v7546 = vadd.f32 %v7532, %v7545
    %7547 = vdwg.mxu0
    %7548 = vmatpush.bf16.msra.mxu0 %v4641
    %7549 = vmatpush.bf16.msra.mxu0 %v4633
    %7550 = vmatpush.bf16.msra.mxu0 %v4625
    %7551 = vmatpush.bf16.msra.mxu0 %v4617
    %7552 = vmatpush.bf16.msra.mxu0 %v4609
    %7553 = vmatpush.bf16.msra.mxu0 %v4601
    %7554 = vmatpush.bf16.msra.mxu0 %v4593
    %7555 = vmatpush.bf16.msra.mxu0 %v4585
    %7556 = vmatmul.bf16.gmra.mxu0 %v1224
    %v7557 = vpop.f32.mrf.mxu0
    %v7558 = vadd.f32 %v7544, %v7557
    %v7559 = vpop.f32.mrf.mxu0
    %v7560 = vadd.f32 %v7546, %v7559
    %7561 = vdwg.mxu0
    %7562 = vmatpush.bf16.msra.mxu0 %v4705
    %7563 = vmatpush.bf16.msra.mxu0 %v4697
    %7564 = vmatpush.bf16.msra.mxu0 %v4689
    %7565 = vmatpush.bf16.msra.mxu0 %v4681
    %7566 = vmatpush.bf16.msra.mxu0 %v4673
    %7567 = vmatpush.bf16.msra.mxu0 %v4665
    %7568 = vmatpush.bf16.msra.mxu0 %v4657
    %7569 = vmatpush.bf16.msra.mxu0 %v4649
    %7570 = vmatmul.bf16.gmra.mxu0 %v1225
    %v7571 = vpop.f32.mrf.mxu0
    %v7572 = vadd.f32 %v7558, %v7571
    %v7573 = vpop.f32.mrf.mxu0
    %v7574 = vadd.f32 %v7560, %v7573
    %7575 = vdwg.mxu0
    %7576 = vmatpush.bf16.msra.mxu0 %v4769
    %7577 = vmatpush.bf16.msra.mxu0 %v4761
    %7578 = vmatpush.bf16.msra.mxu0 %v4753
    %7579 = vmatpush.bf16.msra.mxu0 %v4745
    %7580 = vmatpush.bf16.msra.mxu0 %v4737
    %7581 = vmatpush.bf16.msra.mxu0 %v4729
    %7582 = vmatpush.bf16.msra.mxu0 %v4721
    %7583 = vmatpush.bf16.msra.mxu0 %v4713
    %7584 = vmatmul.bf16.gmra.mxu0 %v1226
    %v7585 = vpop.f32.mrf.mxu0
    %v7586 = vadd.f32 %v7572, %v7585
    %v7587 = vpop.f32.mrf.mxu0
    %v7588 = vadd.f32 %v7574, %v7587
    %7589 = vdwg.mxu0
    %7590 = vmatpush.bf16.msra.mxu0 %v4833
    %7591 = vmatpush.bf16.msra.mxu0 %v4825
    %7592 = vmatpush.bf16.msra.mxu0 %v4817
    %7593 = vmatpush.bf16.msra.mxu0 %v4809
    %7594 = vmatpush.bf16.msra.mxu0 %v4801
    %7595 = vmatpush.bf16.msra.mxu0 %v4793
    %7596 = vmatpush.bf16.msra.mxu0 %v4785
    %7597 = vmatpush.bf16.msra.mxu0 %v4777
    %7598 = vmatmul.bf16.gmra.mxu0 %v1227
    %v7599 = vpop.f32.mrf.mxu0
    %v7600 = vadd.f32 %v7586, %v7599
    %v7601 = vpop.f32.mrf.mxu0
    %v7602 = vadd.f32 %v7588, %v7601
    %7603 = vdwg.mxu0
    %7604 = vmatpush.bf16.msra.mxu0 %v4897
    %7605 = vmatpush.bf16.msra.mxu0 %v4889
    %7606 = vmatpush.bf16.msra.mxu0 %v4881
    %7607 = vmatpush.bf16.msra.mxu0 %v4873
    %7608 = vmatpush.bf16.msra.mxu0 %v4865
    %7609 = vmatpush.bf16.msra.mxu0 %v4857
    %7610 = vmatpush.bf16.msra.mxu0 %v4849
    %7611 = vmatpush.bf16.msra.mxu0 %v4841
    %7612 = vmatmul.bf16.gmra.mxu0 %v1228
    %v7613 = vpop.f32.mrf.mxu0
    %v7614 = vadd.f32 %v7600, %v7613
    %v7615 = vpop.f32.mrf.mxu0
    %v7616 = vadd.f32 %v7602, %v7615
    %7617 = vdwg.mxu0
    %7618 = vmatpush.bf16.msra.mxu0 %v4961
    %7619 = vmatpush.bf16.msra.mxu0 %v4953
    %7620 = vmatpush.bf16.msra.mxu0 %v4945
    %7621 = vmatpush.bf16.msra.mxu0 %v4937
    %7622 = vmatpush.bf16.msra.mxu0 %v4929
    %7623 = vmatpush.bf16.msra.mxu0 %v4921
    %7624 = vmatpush.bf16.msra.mxu0 %v4913
    %7625 = vmatpush.bf16.msra.mxu0 %v4905
    %7626 = vmatmul.bf16.gmra.mxu0 %v1229
    %v7627 = vpop.f32.mrf.mxu0
    %v7628 = vadd.f32 %v7614, %v7627
    %v7629 = vpop.f32.mrf.mxu0
    %v7630 = vadd.f32 %v7616, %v7629
    %7631 = vdwg.mxu0
    %7632 = vmatpush.bf16.msra.mxu0 %v5025
    %7633 = vmatpush.bf16.msra.mxu0 %v5017
    %7634 = vmatpush.bf16.msra.mxu0 %v5009
    %7635 = vmatpush.bf16.msra.mxu0 %v5001
    %7636 = vmatpush.bf16.msra.mxu0 %v4993
    %7637 = vmatpush.bf16.msra.mxu0 %v4985
    %7638 = vmatpush.bf16.msra.mxu0 %v4977
    %7639 = vmatpush.bf16.msra.mxu0 %v4969
    %7640 = vmatmul.bf16.gmra.mxu0 %v1230
    %v7641 = vpop.f32.mrf.mxu0
    %v7642 = vadd.f32 %v7628, %v7641
    %v7643 = vpop.f32.mrf.mxu0
    %v7644 = vadd.f32 %v7630, %v7643
    %7645 = vdwg.mxu0
    %7646 = vmatpush.bf16.msra.mxu0 %v5089
    %7647 = vmatpush.bf16.msra.mxu0 %v5081
    %7648 = vmatpush.bf16.msra.mxu0 %v5073
    %7649 = vmatpush.bf16.msra.mxu0 %v5065
    %7650 = vmatpush.bf16.msra.mxu0 %v5057
    %7651 = vmatpush.bf16.msra.mxu0 %v5049
    %7652 = vmatpush.bf16.msra.mxu0 %v5041
    %7653 = vmatpush.bf16.msra.mxu0 %v5033
    %7654 = vmatmul.bf16.gmra.mxu0 %v1231
    %v7655 = vpop.f32.mrf.mxu0
    %v7656 = vadd.f32 %v7642, %v7655
    %v7657 = vpop.f32.mrf.mxu0
    %v7658 = vadd.f32 %v7644, %v7657
    %7659 = vdwg.mxu0
    %7660 = vmatpush.bf16.msra.mxu0 %v5153
    %7661 = vmatpush.bf16.msra.mxu0 %v5145
    %7662 = vmatpush.bf16.msra.mxu0 %v5137
    %7663 = vmatpush.bf16.msra.mxu0 %v5129
    %7664 = vmatpush.bf16.msra.mxu0 %v5121
    %7665 = vmatpush.bf16.msra.mxu0 %v5113
    %7666 = vmatpush.bf16.msra.mxu0 %v5105
    %7667 = vmatpush.bf16.msra.mxu0 %v5097
    %7668 = vmatmul.bf16.gmra.mxu0 %v1232
    %v7669 = vpop.f32.mrf.mxu0
    %v7670 = vadd.f32 %v7656, %v7669
    %v7671 = vpop.f32.mrf.mxu0
    %v7672 = vadd.f32 %v7658, %v7671
    %7673 = vdwg.mxu0
    %7674 = vmatpush.bf16.msra.mxu0 %v5217
    %7675 = vmatpush.bf16.msra.mxu0 %v5209
    %7676 = vmatpush.bf16.msra.mxu0 %v5201
    %7677 = vmatpush.bf16.msra.mxu0 %v5193
    %7678 = vmatpush.bf16.msra.mxu0 %v5185
    %7679 = vmatpush.bf16.msra.mxu0 %v5177
    %7680 = vmatpush.bf16.msra.mxu0 %v5169
    %7681 = vmatpush.bf16.msra.mxu0 %v5161
    %7682 = vmatmul.bf16.gmra.mxu0 %v1233
    %v7683 = vpop.f32.mrf.mxu0
    %v7684 = vadd.f32 %v7670, %v7683
    %v7685 = vpop.f32.mrf.mxu0
    %v7686 = vadd.f32 %v7672, %v7685
    %7687 = vdwg.mxu0
    %7688 = vmatpush.bf16.msra.mxu0 %v5281
    %7689 = vmatpush.bf16.msra.mxu0 %v5273
    %7690 = vmatpush.bf16.msra.mxu0 %v5265
    %7691 = vmatpush.bf16.msra.mxu0 %v5257
    %7692 = vmatpush.bf16.msra.mxu0 %v5249
    %7693 = vmatpush.bf16.msra.mxu0 %v5241
    %7694 = vmatpush.bf16.msra.mxu0 %v5233
    %7695 = vmatpush.bf16.msra.mxu0 %v5225
    %7696 = vmatmul.bf16.gmra.mxu0 %v1234
    %v7697 = vpop.f32.mrf.mxu0
    %v7698 = vadd.f32 %v7684, %v7697
    %v7699 = vpop.f32.mrf.mxu0
    %v7700 = vadd.f32 %v7686, %v7699
    %7701 = vdwg.mxu0
    %7702 = vmatpush.bf16.msra.mxu0 %v5345
    %7703 = vmatpush.bf16.msra.mxu0 %v5337
    %7704 = vmatpush.bf16.msra.mxu0 %v5329
    %7705 = vmatpush.bf16.msra.mxu0 %v5321
    %7706 = vmatpush.bf16.msra.mxu0 %v5313
    %7707 = vmatpush.bf16.msra.mxu0 %v5305
    %7708 = vmatpush.bf16.msra.mxu0 %v5297
    %7709 = vmatpush.bf16.msra.mxu0 %v5289
    %7710 = vmatmul.bf16.gmra.mxu0 %v1235
    %v7711 = vpop.f32.mrf.mxu0
    %v7712 = vadd.f32 %v7698, %v7711
    %v7713 = vpop.f32.mrf.mxu0
    %v7714 = vadd.f32 %v7700, %v7713
    %7715 = vdwg.mxu0
    %7716 = vmatpush.bf16.msra.mxu0 %v4386
    %7717 = vmatpush.bf16.msra.mxu0 %v4378
    %7718 = vmatpush.bf16.msra.mxu0 %v4370
    %7719 = vmatpush.bf16.msra.mxu0 %v4362
    %7720 = vmatpush.bf16.msra.mxu0 %v4354
    %7721 = vmatpush.bf16.msra.mxu0 %v4346
    %7722 = vmatpush.bf16.msra.mxu0 %v4338
    %7723 = vmatpush.bf16.msra.mxu0 %v4330
    %7724 = vmatmul.bf16.gmra.mxu0 %v1220
    %v7725 = vpop.f32.mrf.mxu0
    %v7726 = vadd.f32 %v1162, %v7725
    %v7727 = vpop.f32.mrf.mxu0
    %v7728 = vadd.f32 %v1162, %v7727
    %7729 = vdwg.mxu0
    %7730 = vmatpush.bf16.msra.mxu0 %v4450
    %7731 = vmatpush.bf16.msra.mxu0 %v4442
    %7732 = vmatpush.bf16.msra.mxu0 %v4434
    %7733 = vmatpush.bf16.msra.mxu0 %v4426
    %7734 = vmatpush.bf16.msra.mxu0 %v4418
    %7735 = vmatpush.bf16.msra.mxu0 %v4410
    %7736 = vmatpush.bf16.msra.mxu0 %v4402
    %7737 = vmatpush.bf16.msra.mxu0 %v4394
    %7738 = vmatmul.bf16.gmra.mxu0 %v1221
    %v7739 = vpop.f32.mrf.mxu0
    %v7740 = vadd.f32 %v7726, %v7739
    %v7741 = vpop.f32.mrf.mxu0
    %v7742 = vadd.f32 %v7728, %v7741
    %7743 = vdwg.mxu0
    %7744 = vmatpush.bf16.msra.mxu0 %v4514
    %7745 = vmatpush.bf16.msra.mxu0 %v4506
    %7746 = vmatpush.bf16.msra.mxu0 %v4498
    %7747 = vmatpush.bf16.msra.mxu0 %v4490
    %7748 = vmatpush.bf16.msra.mxu0 %v4482
    %7749 = vmatpush.bf16.msra.mxu0 %v4474
    %7750 = vmatpush.bf16.msra.mxu0 %v4466
    %7751 = vmatpush.bf16.msra.mxu0 %v4458
    %7752 = vmatmul.bf16.gmra.mxu0 %v1222
    %v7753 = vpop.f32.mrf.mxu0
    %v7754 = vadd.f32 %v7740, %v7753
    %v7755 = vpop.f32.mrf.mxu0
    %v7756 = vadd.f32 %v7742, %v7755
    %7757 = vdwg.mxu0
    %7758 = vmatpush.bf16.msra.mxu0 %v4578
    %7759 = vmatpush.bf16.msra.mxu0 %v4570
    %7760 = vmatpush.bf16.msra.mxu0 %v4562
    %7761 = vmatpush.bf16.msra.mxu0 %v4554
    %7762 = vmatpush.bf16.msra.mxu0 %v4546
    %7763 = vmatpush.bf16.msra.mxu0 %v4538
    %7764 = vmatpush.bf16.msra.mxu0 %v4530
    %7765 = vmatpush.bf16.msra.mxu0 %v4522
    %7766 = vmatmul.bf16.gmra.mxu0 %v1223
    %v7767 = vpop.f32.mrf.mxu0
    %v7768 = vadd.f32 %v7754, %v7767
    %v7769 = vpop.f32.mrf.mxu0
    %v7770 = vadd.f32 %v7756, %v7769
    %7771 = vdwg.mxu0
    %7772 = vmatpush.bf16.msra.mxu0 %v4642
    %7773 = vmatpush.bf16.msra.mxu0 %v4634
    %7774 = vmatpush.bf16.msra.mxu0 %v4626
    %7775 = vmatpush.bf16.msra.mxu0 %v4618
    %7776 = vmatpush.bf16.msra.mxu0 %v4610
    %7777 = vmatpush.bf16.msra.mxu0 %v4602
    %7778 = vmatpush.bf16.msra.mxu0 %v4594
    %7779 = vmatpush.bf16.msra.mxu0 %v4586
    %7780 = vmatmul.bf16.gmra.mxu0 %v1224
    %v7781 = vpop.f32.mrf.mxu0
    %v7782 = vadd.f32 %v7768, %v7781
    %v7783 = vpop.f32.mrf.mxu0
    %v7784 = vadd.f32 %v7770, %v7783
    %7785 = vdwg.mxu0
    %7786 = vmatpush.bf16.msra.mxu0 %v4706
    %7787 = vmatpush.bf16.msra.mxu0 %v4698
    %7788 = vmatpush.bf16.msra.mxu0 %v4690
    %7789 = vmatpush.bf16.msra.mxu0 %v4682
    %7790 = vmatpush.bf16.msra.mxu0 %v4674
    %7791 = vmatpush.bf16.msra.mxu0 %v4666
    %7792 = vmatpush.bf16.msra.mxu0 %v4658
    %7793 = vmatpush.bf16.msra.mxu0 %v4650
    %7794 = vmatmul.bf16.gmra.mxu0 %v1225
    %v7795 = vpop.f32.mrf.mxu0
    %v7796 = vadd.f32 %v7782, %v7795
    %v7797 = vpop.f32.mrf.mxu0
    %v7798 = vadd.f32 %v7784, %v7797
    %7799 = vdwg.mxu0
    %7800 = vmatpush.bf16.msra.mxu0 %v4770
    %7801 = vmatpush.bf16.msra.mxu0 %v4762
    %7802 = vmatpush.bf16.msra.mxu0 %v4754
    %7803 = vmatpush.bf16.msra.mxu0 %v4746
    %7804 = vmatpush.bf16.msra.mxu0 %v4738
    %7805 = vmatpush.bf16.msra.mxu0 %v4730
    %7806 = vmatpush.bf16.msra.mxu0 %v4722
    %7807 = vmatpush.bf16.msra.mxu0 %v4714
    %7808 = vmatmul.bf16.gmra.mxu0 %v1226
    %v7809 = vpop.f32.mrf.mxu0
    %v7810 = vadd.f32 %v7796, %v7809
    %v7811 = vpop.f32.mrf.mxu0
    %v7812 = vadd.f32 %v7798, %v7811
    %7813 = vdwg.mxu0
    %7814 = vmatpush.bf16.msra.mxu0 %v4834
    %7815 = vmatpush.bf16.msra.mxu0 %v4826
    %7816 = vmatpush.bf16.msra.mxu0 %v4818
    %7817 = vmatpush.bf16.msra.mxu0 %v4810
    %7818 = vmatpush.bf16.msra.mxu0 %v4802
    %7819 = vmatpush.bf16.msra.mxu0 %v4794
    %7820 = vmatpush.bf16.msra.mxu0 %v4786
    %7821 = vmatpush.bf16.msra.mxu0 %v4778
    %7822 = vmatmul.bf16.gmra.mxu0 %v1227
    %v7823 = vpop.f32.mrf.mxu0
    %v7824 = vadd.f32 %v7810, %v7823
    %v7825 = vpop.f32.mrf.mxu0
    %v7826 = vadd.f32 %v7812, %v7825
    %7827 = vdwg.mxu0
    %7828 = vmatpush.bf16.msra.mxu0 %v4898
    %7829 = vmatpush.bf16.msra.mxu0 %v4890
    %7830 = vmatpush.bf16.msra.mxu0 %v4882
    %7831 = vmatpush.bf16.msra.mxu0 %v4874
    %7832 = vmatpush.bf16.msra.mxu0 %v4866
    %7833 = vmatpush.bf16.msra.mxu0 %v4858
    %7834 = vmatpush.bf16.msra.mxu0 %v4850
    %7835 = vmatpush.bf16.msra.mxu0 %v4842
    %7836 = vmatmul.bf16.gmra.mxu0 %v1228
    %v7837 = vpop.f32.mrf.mxu0
    %v7838 = vadd.f32 %v7824, %v7837
    %v7839 = vpop.f32.mrf.mxu0
    %v7840 = vadd.f32 %v7826, %v7839
    %7841 = vdwg.mxu0
    %7842 = vmatpush.bf16.msra.mxu0 %v4962
    %7843 = vmatpush.bf16.msra.mxu0 %v4954
    %7844 = vmatpush.bf16.msra.mxu0 %v4946
    %7845 = vmatpush.bf16.msra.mxu0 %v4938
    %7846 = vmatpush.bf16.msra.mxu0 %v4930
    %7847 = vmatpush.bf16.msra.mxu0 %v4922
    %7848 = vmatpush.bf16.msra.mxu0 %v4914
    %7849 = vmatpush.bf16.msra.mxu0 %v4906
    %7850 = vmatmul.bf16.gmra.mxu0 %v1229
    %v7851 = vpop.f32.mrf.mxu0
    %v7852 = vadd.f32 %v7838, %v7851
    %v7853 = vpop.f32.mrf.mxu0
    %v7854 = vadd.f32 %v7840, %v7853
    %7855 = vdwg.mxu0
    %7856 = vmatpush.bf16.msra.mxu0 %v5026
    %7857 = vmatpush.bf16.msra.mxu0 %v5018
    %7858 = vmatpush.bf16.msra.mxu0 %v5010
    %7859 = vmatpush.bf16.msra.mxu0 %v5002
    %7860 = vmatpush.bf16.msra.mxu0 %v4994
    %7861 = vmatpush.bf16.msra.mxu0 %v4986
    %7862 = vmatpush.bf16.msra.mxu0 %v4978
    %7863 = vmatpush.bf16.msra.mxu0 %v4970
    %7864 = vmatmul.bf16.gmra.mxu0 %v1230
    %v7865 = vpop.f32.mrf.mxu0
    %v7866 = vadd.f32 %v7852, %v7865
    %v7867 = vpop.f32.mrf.mxu0
    %v7868 = vadd.f32 %v7854, %v7867
    %7869 = vdwg.mxu0
    %7870 = vmatpush.bf16.msra.mxu0 %v5090
    %7871 = vmatpush.bf16.msra.mxu0 %v5082
    %7872 = vmatpush.bf16.msra.mxu0 %v5074
    %7873 = vmatpush.bf16.msra.mxu0 %v5066
    %7874 = vmatpush.bf16.msra.mxu0 %v5058
    %7875 = vmatpush.bf16.msra.mxu0 %v5050
    %7876 = vmatpush.bf16.msra.mxu0 %v5042
    %7877 = vmatpush.bf16.msra.mxu0 %v5034
    %7878 = vmatmul.bf16.gmra.mxu0 %v1231
    %v7879 = vpop.f32.mrf.mxu0
    %v7880 = vadd.f32 %v7866, %v7879
    %v7881 = vpop.f32.mrf.mxu0
    %v7882 = vadd.f32 %v7868, %v7881
    %7883 = vdwg.mxu0
    %7884 = vmatpush.bf16.msra.mxu0 %v5154
    %7885 = vmatpush.bf16.msra.mxu0 %v5146
    %7886 = vmatpush.bf16.msra.mxu0 %v5138
    %7887 = vmatpush.bf16.msra.mxu0 %v5130
    %7888 = vmatpush.bf16.msra.mxu0 %v5122
    %7889 = vmatpush.bf16.msra.mxu0 %v5114
    %7890 = vmatpush.bf16.msra.mxu0 %v5106
    %7891 = vmatpush.bf16.msra.mxu0 %v5098
    %7892 = vmatmul.bf16.gmra.mxu0 %v1232
    %v7893 = vpop.f32.mrf.mxu0
    %v7894 = vadd.f32 %v7880, %v7893
    %v7895 = vpop.f32.mrf.mxu0
    %v7896 = vadd.f32 %v7882, %v7895
    %7897 = vdwg.mxu0
    %7898 = vmatpush.bf16.msra.mxu0 %v5218
    %7899 = vmatpush.bf16.msra.mxu0 %v5210
    %7900 = vmatpush.bf16.msra.mxu0 %v5202
    %7901 = vmatpush.bf16.msra.mxu0 %v5194
    %7902 = vmatpush.bf16.msra.mxu0 %v5186
    %7903 = vmatpush.bf16.msra.mxu0 %v5178
    %7904 = vmatpush.bf16.msra.mxu0 %v5170
    %7905 = vmatpush.bf16.msra.mxu0 %v5162
    %7906 = vmatmul.bf16.gmra.mxu0 %v1233
    %v7907 = vpop.f32.mrf.mxu0
    %v7908 = vadd.f32 %v7894, %v7907
    %v7909 = vpop.f32.mrf.mxu0
    %v7910 = vadd.f32 %v7896, %v7909
    %7911 = vdwg.mxu0
    %7912 = vmatpush.bf16.msra.mxu0 %v5282
    %7913 = vmatpush.bf16.msra.mxu0 %v5274
    %7914 = vmatpush.bf16.msra.mxu0 %v5266
    %7915 = vmatpush.bf16.msra.mxu0 %v5258
    %7916 = vmatpush.bf16.msra.mxu0 %v5250
    %7917 = vmatpush.bf16.msra.mxu0 %v5242
    %7918 = vmatpush.bf16.msra.mxu0 %v5234
    %7919 = vmatpush.bf16.msra.mxu0 %v5226
    %7920 = vmatmul.bf16.gmra.mxu0 %v1234
    %v7921 = vpop.f32.mrf.mxu0
    %v7922 = vadd.f32 %v7908, %v7921
    %v7923 = vpop.f32.mrf.mxu0
    %v7924 = vadd.f32 %v7910, %v7923
    %7925 = vdwg.mxu0
    %7926 = vmatpush.bf16.msra.mxu0 %v5346
    %7927 = vmatpush.bf16.msra.mxu0 %v5338
    %7928 = vmatpush.bf16.msra.mxu0 %v5330
    %7929 = vmatpush.bf16.msra.mxu0 %v5322
    %7930 = vmatpush.bf16.msra.mxu0 %v5314
    %7931 = vmatpush.bf16.msra.mxu0 %v5306
    %7932 = vmatpush.bf16.msra.mxu0 %v5298
    %7933 = vmatpush.bf16.msra.mxu0 %v5290
    %7934 = vmatmul.bf16.gmra.mxu0 %v1235
    %v7935 = vpop.f32.mrf.mxu0
    %v7936 = vadd.f32 %v7922, %v7935
    %v7937 = vpop.f32.mrf.mxu0
    %v7938 = vadd.f32 %v7924, %v7937
    %7939 = vdwg.mxu0
    %7940 = vmatpush.bf16.msra.mxu0 %v4387
    %7941 = vmatpush.bf16.msra.mxu0 %v4379
    %7942 = vmatpush.bf16.msra.mxu0 %v4371
    %7943 = vmatpush.bf16.msra.mxu0 %v4363
    %7944 = vmatpush.bf16.msra.mxu0 %v4355
    %7945 = vmatpush.bf16.msra.mxu0 %v4347
    %7946 = vmatpush.bf16.msra.mxu0 %v4339
    %7947 = vmatpush.bf16.msra.mxu0 %v4331
    %7948 = vmatmul.bf16.gmra.mxu0 %v1220
    %v7949 = vpop.f32.mrf.mxu0
    %v7950 = vadd.f32 %v1163, %v7949
    %v7951 = vpop.f32.mrf.mxu0
    %v7952 = vadd.f32 %v1163, %v7951
    %7953 = vdwg.mxu0
    %7954 = vmatpush.bf16.msra.mxu0 %v4451
    %7955 = vmatpush.bf16.msra.mxu0 %v4443
    %7956 = vmatpush.bf16.msra.mxu0 %v4435
    %7957 = vmatpush.bf16.msra.mxu0 %v4427
    %7958 = vmatpush.bf16.msra.mxu0 %v4419
    %7959 = vmatpush.bf16.msra.mxu0 %v4411
    %7960 = vmatpush.bf16.msra.mxu0 %v4403
    %7961 = vmatpush.bf16.msra.mxu0 %v4395
    %7962 = vmatmul.bf16.gmra.mxu0 %v1221
    %v7963 = vpop.f32.mrf.mxu0
    %v7964 = vadd.f32 %v7950, %v7963
    %v7965 = vpop.f32.mrf.mxu0
    %v7966 = vadd.f32 %v7952, %v7965
    %7967 = vdwg.mxu0
    %7968 = vmatpush.bf16.msra.mxu0 %v4515
    %7969 = vmatpush.bf16.msra.mxu0 %v4507
    %7970 = vmatpush.bf16.msra.mxu0 %v4499
    %7971 = vmatpush.bf16.msra.mxu0 %v4491
    %7972 = vmatpush.bf16.msra.mxu0 %v4483
    %7973 = vmatpush.bf16.msra.mxu0 %v4475
    %7974 = vmatpush.bf16.msra.mxu0 %v4467
    %7975 = vmatpush.bf16.msra.mxu0 %v4459
    %7976 = vmatmul.bf16.gmra.mxu0 %v1222
    %v7977 = vpop.f32.mrf.mxu0
    %v7978 = vadd.f32 %v7964, %v7977
    %v7979 = vpop.f32.mrf.mxu0
    %v7980 = vadd.f32 %v7966, %v7979
    %7981 = vdwg.mxu0
    %7982 = vmatpush.bf16.msra.mxu0 %v4579
    %7983 = vmatpush.bf16.msra.mxu0 %v4571
    %7984 = vmatpush.bf16.msra.mxu0 %v4563
    %7985 = vmatpush.bf16.msra.mxu0 %v4555
    %7986 = vmatpush.bf16.msra.mxu0 %v4547
    %7987 = vmatpush.bf16.msra.mxu0 %v4539
    %7988 = vmatpush.bf16.msra.mxu0 %v4531
    %7989 = vmatpush.bf16.msra.mxu0 %v4523
    %7990 = vmatmul.bf16.gmra.mxu0 %v1223
    %v7991 = vpop.f32.mrf.mxu0
    %v7992 = vadd.f32 %v7978, %v7991
    %v7993 = vpop.f32.mrf.mxu0
    %v7994 = vadd.f32 %v7980, %v7993
    %7995 = vdwg.mxu0
    %7996 = vmatpush.bf16.msra.mxu0 %v4643
    %7997 = vmatpush.bf16.msra.mxu0 %v4635
    %7998 = vmatpush.bf16.msra.mxu0 %v4627
    %7999 = vmatpush.bf16.msra.mxu0 %v4619
    %8000 = vmatpush.bf16.msra.mxu0 %v4611
    %8001 = vmatpush.bf16.msra.mxu0 %v4603
    %8002 = vmatpush.bf16.msra.mxu0 %v4595
    %8003 = vmatpush.bf16.msra.mxu0 %v4587
    %8004 = vmatmul.bf16.gmra.mxu0 %v1224
    %v8005 = vpop.f32.mrf.mxu0
    %v8006 = vadd.f32 %v7992, %v8005
    %v8007 = vpop.f32.mrf.mxu0
    %v8008 = vadd.f32 %v7994, %v8007
    %8009 = vdwg.mxu0
    %8010 = vmatpush.bf16.msra.mxu0 %v4707
    %8011 = vmatpush.bf16.msra.mxu0 %v4699
    %8012 = vmatpush.bf16.msra.mxu0 %v4691
    %8013 = vmatpush.bf16.msra.mxu0 %v4683
    %8014 = vmatpush.bf16.msra.mxu0 %v4675
    %8015 = vmatpush.bf16.msra.mxu0 %v4667
    %8016 = vmatpush.bf16.msra.mxu0 %v4659
    %8017 = vmatpush.bf16.msra.mxu0 %v4651
    %8018 = vmatmul.bf16.gmra.mxu0 %v1225
    %v8019 = vpop.f32.mrf.mxu0
    %v8020 = vadd.f32 %v8006, %v8019
    %v8021 = vpop.f32.mrf.mxu0
    %v8022 = vadd.f32 %v8008, %v8021
    %8023 = vdwg.mxu0
    %8024 = vmatpush.bf16.msra.mxu0 %v4771
    %8025 = vmatpush.bf16.msra.mxu0 %v4763
    %8026 = vmatpush.bf16.msra.mxu0 %v4755
    %8027 = vmatpush.bf16.msra.mxu0 %v4747
    %8028 = vmatpush.bf16.msra.mxu0 %v4739
    %8029 = vmatpush.bf16.msra.mxu0 %v4731
    %8030 = vmatpush.bf16.msra.mxu0 %v4723
    %8031 = vmatpush.bf16.msra.mxu0 %v4715
    %8032 = vmatmul.bf16.gmra.mxu0 %v1226
    %v8033 = vpop.f32.mrf.mxu0
    %v8034 = vadd.f32 %v8020, %v8033
    %v8035 = vpop.f32.mrf.mxu0
    %v8036 = vadd.f32 %v8022, %v8035
    %8037 = vdwg.mxu0
    %8038 = vmatpush.bf16.msra.mxu0 %v4835
    %8039 = vmatpush.bf16.msra.mxu0 %v4827
    %8040 = vmatpush.bf16.msra.mxu0 %v4819
    %8041 = vmatpush.bf16.msra.mxu0 %v4811
    %8042 = vmatpush.bf16.msra.mxu0 %v4803
    %8043 = vmatpush.bf16.msra.mxu0 %v4795
    %8044 = vmatpush.bf16.msra.mxu0 %v4787
    %8045 = vmatpush.bf16.msra.mxu0 %v4779
    %8046 = vmatmul.bf16.gmra.mxu0 %v1227
    %v8047 = vpop.f32.mrf.mxu0
    %v8048 = vadd.f32 %v8034, %v8047
    %v8049 = vpop.f32.mrf.mxu0
    %v8050 = vadd.f32 %v8036, %v8049
    %8051 = vdwg.mxu0
    %8052 = vmatpush.bf16.msra.mxu0 %v4899
    %8053 = vmatpush.bf16.msra.mxu0 %v4891
    %8054 = vmatpush.bf16.msra.mxu0 %v4883
    %8055 = vmatpush.bf16.msra.mxu0 %v4875
    %8056 = vmatpush.bf16.msra.mxu0 %v4867
    %8057 = vmatpush.bf16.msra.mxu0 %v4859
    %8058 = vmatpush.bf16.msra.mxu0 %v4851
    %8059 = vmatpush.bf16.msra.mxu0 %v4843
    %8060 = vmatmul.bf16.gmra.mxu0 %v1228
    %v8061 = vpop.f32.mrf.mxu0
    %v8062 = vadd.f32 %v8048, %v8061
    %v8063 = vpop.f32.mrf.mxu0
    %v8064 = vadd.f32 %v8050, %v8063
    %8065 = vdwg.mxu0
    %8066 = vmatpush.bf16.msra.mxu0 %v4963
    %8067 = vmatpush.bf16.msra.mxu0 %v4955
    %8068 = vmatpush.bf16.msra.mxu0 %v4947
    %8069 = vmatpush.bf16.msra.mxu0 %v4939
    %8070 = vmatpush.bf16.msra.mxu0 %v4931
    %8071 = vmatpush.bf16.msra.mxu0 %v4923
    %8072 = vmatpush.bf16.msra.mxu0 %v4915
    %8073 = vmatpush.bf16.msra.mxu0 %v4907
    %8074 = vmatmul.bf16.gmra.mxu0 %v1229
    %v8075 = vpop.f32.mrf.mxu0
    %v8076 = vadd.f32 %v8062, %v8075
    %v8077 = vpop.f32.mrf.mxu0
    %v8078 = vadd.f32 %v8064, %v8077
    %8079 = vdwg.mxu0
    %8080 = vmatpush.bf16.msra.mxu0 %v5027
    %8081 = vmatpush.bf16.msra.mxu0 %v5019
    %8082 = vmatpush.bf16.msra.mxu0 %v5011
    %8083 = vmatpush.bf16.msra.mxu0 %v5003
    %8084 = vmatpush.bf16.msra.mxu0 %v4995
    %8085 = vmatpush.bf16.msra.mxu0 %v4987
    %8086 = vmatpush.bf16.msra.mxu0 %v4979
    %8087 = vmatpush.bf16.msra.mxu0 %v4971
    %8088 = vmatmul.bf16.gmra.mxu0 %v1230
    %v8089 = vpop.f32.mrf.mxu0
    %v8090 = vadd.f32 %v8076, %v8089
    %v8091 = vpop.f32.mrf.mxu0
    %v8092 = vadd.f32 %v8078, %v8091
    %8093 = vdwg.mxu0
    %8094 = vmatpush.bf16.msra.mxu0 %v5091
    %8095 = vmatpush.bf16.msra.mxu0 %v5083
    %8096 = vmatpush.bf16.msra.mxu0 %v5075
    %8097 = vmatpush.bf16.msra.mxu0 %v5067
    %8098 = vmatpush.bf16.msra.mxu0 %v5059
    %8099 = vmatpush.bf16.msra.mxu0 %v5051
    %8100 = vmatpush.bf16.msra.mxu0 %v5043
    %8101 = vmatpush.bf16.msra.mxu0 %v5035
    %8102 = vmatmul.bf16.gmra.mxu0 %v1231
    %v8103 = vpop.f32.mrf.mxu0
    %v8104 = vadd.f32 %v8090, %v8103
    %v8105 = vpop.f32.mrf.mxu0
    %v8106 = vadd.f32 %v8092, %v8105
    %8107 = vdwg.mxu0
    %8108 = vmatpush.bf16.msra.mxu0 %v5155
    %8109 = vmatpush.bf16.msra.mxu0 %v5147
    %8110 = vmatpush.bf16.msra.mxu0 %v5139
    %8111 = vmatpush.bf16.msra.mxu0 %v5131
    %8112 = vmatpush.bf16.msra.mxu0 %v5123
    %8113 = vmatpush.bf16.msra.mxu0 %v5115
    %8114 = vmatpush.bf16.msra.mxu0 %v5107
    %8115 = vmatpush.bf16.msra.mxu0 %v5099
    %8116 = vmatmul.bf16.gmra.mxu0 %v1232
    %v8117 = vpop.f32.mrf.mxu0
    %v8118 = vadd.f32 %v8104, %v8117
    %v8119 = vpop.f32.mrf.mxu0
    %v8120 = vadd.f32 %v8106, %v8119
    %8121 = vdwg.mxu0
    %8122 = vmatpush.bf16.msra.mxu0 %v5219
    %8123 = vmatpush.bf16.msra.mxu0 %v5211
    %8124 = vmatpush.bf16.msra.mxu0 %v5203
    %8125 = vmatpush.bf16.msra.mxu0 %v5195
    %8126 = vmatpush.bf16.msra.mxu0 %v5187
    %8127 = vmatpush.bf16.msra.mxu0 %v5179
    %8128 = vmatpush.bf16.msra.mxu0 %v5171
    %8129 = vmatpush.bf16.msra.mxu0 %v5163
    %8130 = vmatmul.bf16.gmra.mxu0 %v1233
    %v8131 = vpop.f32.mrf.mxu0
    %v8132 = vadd.f32 %v8118, %v8131
    %v8133 = vpop.f32.mrf.mxu0
    %v8134 = vadd.f32 %v8120, %v8133
    %8135 = vdwg.mxu0
    %8136 = vmatpush.bf16.msra.mxu0 %v5283
    %8137 = vmatpush.bf16.msra.mxu0 %v5275
    %8138 = vmatpush.bf16.msra.mxu0 %v5267
    %8139 = vmatpush.bf16.msra.mxu0 %v5259
    %8140 = vmatpush.bf16.msra.mxu0 %v5251
    %8141 = vmatpush.bf16.msra.mxu0 %v5243
    %8142 = vmatpush.bf16.msra.mxu0 %v5235
    %8143 = vmatpush.bf16.msra.mxu0 %v5227
    %8144 = vmatmul.bf16.gmra.mxu0 %v1234
    %v8145 = vpop.f32.mrf.mxu0
    %v8146 = vadd.f32 %v8132, %v8145
    %v8147 = vpop.f32.mrf.mxu0
    %v8148 = vadd.f32 %v8134, %v8147
    %8149 = vdwg.mxu0
    %8150 = vmatpush.bf16.msra.mxu0 %v5347
    %8151 = vmatpush.bf16.msra.mxu0 %v5339
    %8152 = vmatpush.bf16.msra.mxu0 %v5331
    %8153 = vmatpush.bf16.msra.mxu0 %v5323
    %8154 = vmatpush.bf16.msra.mxu0 %v5315
    %8155 = vmatpush.bf16.msra.mxu0 %v5307
    %8156 = vmatpush.bf16.msra.mxu0 %v5299
    %8157 = vmatpush.bf16.msra.mxu0 %v5291
    %8158 = vmatmul.bf16.gmra.mxu0 %v1235
    %v8159 = vpop.f32.mrf.mxu0
    %v8160 = vadd.f32 %v8146, %v8159
    %v8161 = vpop.f32.mrf.mxu0
    %v8162 = vadd.f32 %v8148, %v8161
    %8163 = vdwg.mxu0
    %v8164 = vmax.f32 %v6592, 0.0
    %v8165 = vmax.f32 %v6816, 0.0
    %v8166 = vmax.f32 %v7040, 0.0
    %v8167 = vmax.f32 %v7264, 0.0
    %v8168 = vmax.f32 %v7488, 0.0
    %v8169 = vmax.f32 %v7712, 0.0
    %v8170 = vmax.f32 %v7936, 0.0
    %v8171 = vmax.f32 %v8160, 0.0
    %v8172 = vmax.f32 %v6594, 0.0
    %v8173 = vmax.f32 %v6818, 0.0
    %v8174 = vmax.f32 %v7042, 0.0
    %v8175 = vmax.f32 %v7266, 0.0
    %v8176 = vmax.f32 %v7490, 0.0
    %v8177 = vmax.f32 %v7714, 0.0
    %v8178 = vmax.f32 %v7938, 0.0
    %v8179 = vmax.f32 %v8162, 0.0
    %v8180 = vpack.c.bf16 %v8172, %v8164
    %v8181 = vpack.c.bf16 %v8173, %v8165
    %v8182 = vpack.c.bf16 %v8174, %v8166
    %v8183 = vpack.c.bf16 %v8175, %v8167
    %v8184 = vpack.c.bf16 %v8176, %v8168
    %v8185 = vpack.c.bf16 %v8177, %v8169
    %v8186 = vpack.c.bf16 %v8178, %v8170
    %v8187 = vpack.c.bf16 %v8179, %v8171
    %v8188 = vld [vmem:[#allocation6] sm:$0xff]
    %v8189 = vld [vmem:[#allocation6 + $0x8] sm:$0xff]
    %v8190 = vld [vmem:[#allocation6 + $0x10] sm:$0xff]
    %v8191 = vld [vmem:[#allocation6 + $0x18] sm:$0xff]
    %v8192 = vld [vmem:[#allocation6 + $0x20] sm:$0xff]
    %v8193 = vld [vmem:[#allocation6 + $0x28] sm:$0xff]
    %v8194 = vld [vmem:[#allocation6 + $0x30] sm:$0xff]
    %v8195 = vld [vmem:[#allocation6 + $0x38] sm:$0xff]
    %v8196 = vld [vmem:[#allocation6 + $0x40] sm:$0xff]
    %v8197 = vld [vmem:[#allocation6 + $0x48] sm:$0xff]
    %v8198 = vld [vmem:[#allocation6 + $0x50] sm:$0xff]
    %v8199 = vld [vmem:[#allocation6 + $0x58] sm:$0xff]
    %v8200 = vld [vmem:[#allocation6 + $0x60] sm:$0xff]
    %v8201 = vld [vmem:[#allocation6 + $0x68] sm:$0xff]
    %v8202 = vld [vmem:[#allocation6 + $0x70] sm:$0xff]
    %v8203 = vld [vmem:[#allocation6 + $0x78] sm:$0xff]
    %v8204 = vld [vmem:[#allocation6 + $0x80] sm:$0xff]
    %v8205 = vld [vmem:[#allocation6 + $0x88] sm:$0xff]
    %v8206 = vld [vmem:[#allocation6 + $0x90] sm:$0xff]
    %v8207 = vld [vmem:[#allocation6 + $0x98] sm:$0xff]
    %v8208 = vld [vmem:[#allocation6 + $0xa0] sm:$0xff]
    %v8209 = vld [vmem:[#allocation6 + $0xa8] sm:$0xff]
    %v8210 = vld [vmem:[#allocation6 + $0xb0] sm:$0xff]
    %v8211 = vld [vmem:[#allocation6 + $0xb8] sm:$0xff]
    %v8212 = vld [vmem:[#allocation6 + $0xc0] sm:$0xff]
    %v8213 = vld [vmem:[#allocation6 + $0xc8] sm:$0xff]
    %v8214 = vld [vmem:[#allocation6 + $0xd0] sm:$0xff]
    %v8215 = vld [vmem:[#allocation6 + $0xd8] sm:$0xff]
    %v8216 = vld [vmem:[#allocation6 + $0xe0] sm:$0xff]
    %v8217 = vld [vmem:[#allocation6 + $0xe8] sm:$0xff]
    %v8218 = vld [vmem:[#allocation6 + $0xf0] sm:$0xff]
    %v8219 = vld [vmem:[#allocation6 + $0xf8] sm:$0xff]
    %v8220 = vld [vmem:[#allocation6 + $0x100] sm:$0xff]
    %v8221 = vld [vmem:[#allocation6 + $0x108] sm:$0xff]
    %v8222 = vld [vmem:[#allocation6 + $0x110] sm:$0xff]
    %v8223 = vld [vmem:[#allocation6 + $0x118] sm:$0xff]
    %v8224 = vld [vmem:[#allocation6 + $0x120] sm:$0xff]
    %v8225 = vld [vmem:[#allocation6 + $0x128] sm:$0xff]
    %v8226 = vld [vmem:[#allocation6 + $0x130] sm:$0xff]
    %v8227 = vld [vmem:[#allocation6 + $0x138] sm:$0xff]
    %v8228 = vld [vmem:[#allocation6 + $0x140] sm:$0xff]
    %v8229 = vld [vmem:[#allocation6 + $0x148] sm:$0xff]
    %v8230 = vld [vmem:[#allocation6 + $0x150] sm:$0xff]
    %v8231 = vld [vmem:[#allocation6 + $0x158] sm:$0xff]
    %v8232 = vld [vmem:[#allocation6 + $0x160] sm:$0xff]
    %v8233 = vld [vmem:[#allocation6 + $0x168] sm:$0xff]
    %v8234 = vld [vmem:[#allocation6 + $0x170] sm:$0xff]
    %v8235 = vld [vmem:[#allocation6 + $0x178] sm:$0xff]
    %v8236 = vld [vmem:[#allocation6 + $0x180] sm:$0xff]
    %v8237 = vld [vmem:[#allocation6 + $0x188] sm:$0xff]
    %v8238 = vld [vmem:[#allocation6 + $0x190] sm:$0xff]
    %v8239 = vld [vmem:[#allocation6 + $0x198] sm:$0xff]
    %v8240 = vld [vmem:[#allocation6 + $0x1a0] sm:$0xff]
    %v8241 = vld [vmem:[#allocation6 + $0x1a8] sm:$0xff]
    %v8242 = vld [vmem:[#allocation6 + $0x1b0] sm:$0xff]
    %v8243 = vld [vmem:[#allocation6 + $0x1b8] sm:$0xff]
    %v8244 = vld [vmem:[#allocation6 + $0x1c0] sm:$0xff]
    %v8245 = vld [vmem:[#allocation6 + $0x1c8] sm:$0xff]
    %v8246 = vld [vmem:[#allocation6 + $0x1d0] sm:$0xff]
    %v8247 = vld [vmem:[#allocation6 + $0x1d8] sm:$0xff]
    %v8248 = vld [vmem:[#allocation6 + $0x1e0] sm:$0xff]
    %v8249 = vld [vmem:[#allocation6 + $0x1e8] sm:$0xff]
    %v8250 = vld [vmem:[#allocation6 + $0x1f0] sm:$0xff]
    %v8251 = vld [vmem:[#allocation6 + $0x1f8] sm:$0xff]
    %v8252 = vld [vmem:[#allocation6 + $0x200] sm:$0xff]
    %v8253 = vld [vmem:[#allocation6 + $0x208] sm:$0xff]
    %v8254 = vld [vmem:[#allocation6 + $0x210] sm:$0xff]
    %v8255 = vld [vmem:[#allocation6 + $0x218] sm:$0xff]
    %v8256 = vld [vmem:[#allocation6 + $0x220] sm:$0xff]
    %v8257 = vld [vmem:[#allocation6 + $0x228] sm:$0xff]
    %v8258 = vld [vmem:[#allocation6 + $0x230] sm:$0xff]
    %v8259 = vld [vmem:[#allocation6 + $0x238] sm:$0xff]
    %v8260 = vld [vmem:[#allocation6 + $0x240] sm:$0xff]
    %v8261 = vld [vmem:[#allocation6 + $0x248] sm:$0xff]
    %v8262 = vld [vmem:[#allocation6 + $0x250] sm:$0xff]
    %v8263 = vld [vmem:[#allocation6 + $0x258] sm:$0xff]
    %v8264 = vld [vmem:[#allocation6 + $0x260] sm:$0xff]
    %v8265 = vld [vmem:[#allocation6 + $0x268] sm:$0xff]
    %v8266 = vld [vmem:[#allocation6 + $0x270] sm:$0xff]
    %v8267 = vld [vmem:[#allocation6 + $0x278] sm:$0xff]
    %v8268 = vld [vmem:[#allocation6 + $0x280] sm:$0xff]
    %v8269 = vld [vmem:[#allocation6 + $0x288] sm:$0xff]
    %v8270 = vld [vmem:[#allocation6 + $0x290] sm:$0xff]
    %v8271 = vld [vmem:[#allocation6 + $0x298] sm:$0xff]
    %v8272 = vld [vmem:[#allocation6 + $0x2a0] sm:$0xff]
    %v8273 = vld [vmem:[#allocation6 + $0x2a8] sm:$0xff]
    %v8274 = vld [vmem:[#allocation6 + $0x2b0] sm:$0xff]
    %v8275 = vld [vmem:[#allocation6 + $0x2b8] sm:$0xff]
    %v8276 = vld [vmem:[#allocation6 + $0x2c0] sm:$0xff]
    %v8277 = vld [vmem:[#allocation6 + $0x2c8] sm:$0xff]
    %v8278 = vld [vmem:[#allocation6 + $0x2d0] sm:$0xff]
    %v8279 = vld [vmem:[#allocation6 + $0x2d8] sm:$0xff]
    %v8280 = vld [vmem:[#allocation6 + $0x2e0] sm:$0xff]
    %v8281 = vld [vmem:[#allocation6 + $0x2e8] sm:$0xff]
    %v8282 = vld [vmem:[#allocation6 + $0x2f0] sm:$0xff]
    %v8283 = vld [vmem:[#allocation6 + $0x2f8] sm:$0xff]
    %v8284 = vld [vmem:[#allocation6 + $0x300] sm:$0xff]
    %v8285 = vld [vmem:[#allocation6 + $0x308] sm:$0xff]
    %v8286 = vld [vmem:[#allocation6 + $0x310] sm:$0xff]
    %v8287 = vld [vmem:[#allocation6 + $0x318] sm:$0xff]
    %v8288 = vld [vmem:[#allocation6 + $0x320] sm:$0xff]
    %v8289 = vld [vmem:[#allocation6 + $0x328] sm:$0xff]
    %v8290 = vld [vmem:[#allocation6 + $0x330] sm:$0xff]
    %v8291 = vld [vmem:[#allocation6 + $0x338] sm:$0xff]
    %v8292 = vld [vmem:[#allocation6 + $0x340] sm:$0xff]
    %v8293 = vld [vmem:[#allocation6 + $0x348] sm:$0xff]
    %v8294 = vld [vmem:[#allocation6 + $0x350] sm:$0xff]
    %v8295 = vld [vmem:[#allocation6 + $0x358] sm:$0xff]
    %v8296 = vld [vmem:[#allocation6 + $0x360] sm:$0xff]
    %v8297 = vld [vmem:[#allocation6 + $0x368] sm:$0xff]
    %v8298 = vld [vmem:[#allocation6 + $0x370] sm:$0xff]
    %v8299 = vld [vmem:[#allocation6 + $0x378] sm:$0xff]
    %v8300 = vld [vmem:[#allocation6 + $0x380] sm:$0xff]
    %v8301 = vld [vmem:[#allocation6 + $0x388] sm:$0xff]
    %v8302 = vld [vmem:[#allocation6 + $0x390] sm:$0xff]
    %v8303 = vld [vmem:[#allocation6 + $0x398] sm:$0xff]
    %v8304 = vld [vmem:[#allocation6 + $0x3a0] sm:$0xff]
    %v8305 = vld [vmem:[#allocation6 + $0x3a8] sm:$0xff]
    %v8306 = vld [vmem:[#allocation6 + $0x3b0] sm:$0xff]
    %v8307 = vld [vmem:[#allocation6 + $0x3b8] sm:$0xff]
    %v8308 = vld [vmem:[#allocation6 + $0x3c0] sm:$0xff]
    %v8309 = vld [vmem:[#allocation6 + $0x3c8] sm:$0xff]
    %v8310 = vld [vmem:[#allocation6 + $0x3d0] sm:$0xff]
    %v8311 = vld [vmem:[#allocation6 + $0x3d8] sm:$0xff]
    %v8312 = vld [vmem:[#allocation6 + $0x3e0] sm:$0xff]
    %v8313 = vld [vmem:[#allocation6 + $0x3e8] sm:$0xff]
    %v8314 = vld [vmem:[#allocation6 + $0x3f0] sm:$0xff]
    %v8315 = vld [vmem:[#allocation6 + $0x3f8] sm:$0xff]
    %v8316 = vld [vmem:[#allocation6 + $0x400] sm:$0xff]
    %v8317 = vld [vmem:[#allocation6 + $0x408] sm:$0xff]
    %v8318 = vld [vmem:[#allocation6 + $0x410] sm:$0xff]
    %v8319 = vld [vmem:[#allocation6 + $0x418] sm:$0xff]
    %v8320 = vld [vmem:[#allocation6 + $0x420] sm:$0xff]
    %v8321 = vld [vmem:[#allocation6 + $0x428] sm:$0xff]
    %v8322 = vld [vmem:[#allocation6 + $0x430] sm:$0xff]
    %v8323 = vld [vmem:[#allocation6 + $0x438] sm:$0xff]
    %v8324 = vld [vmem:[#allocation6 + $0x440] sm:$0xff]
    %v8325 = vld [vmem:[#allocation6 + $0x448] sm:$0xff]
    %v8326 = vld [vmem:[#allocation6 + $0x450] sm:$0xff]
    %v8327 = vld [vmem:[#allocation6 + $0x458] sm:$0xff]
    %v8328 = vld [vmem:[#allocation6 + $0x460] sm:$0xff]
    %v8329 = vld [vmem:[#allocation6 + $0x468] sm:$0xff]
    %v8330 = vld [vmem:[#allocation6 + $0x470] sm:$0xff]
    %v8331 = vld [vmem:[#allocation6 + $0x478] sm:$0xff]
    %v8332 = vld [vmem:[#allocation6 + $0x480] sm:$0xff]
    %v8333 = vld [vmem:[#allocation6 + $0x488] sm:$0xff]
    %v8334 = vld [vmem:[#allocation6 + $0x490] sm:$0xff]
    %v8335 = vld [vmem:[#allocation6 + $0x498] sm:$0xff]
    %v8336 = vld [vmem:[#allocation6 + $0x4a0] sm:$0xff]
    %v8337 = vld [vmem:[#allocation6 + $0x4a8] sm:$0xff]
    %v8338 = vld [vmem:[#allocation6 + $0x4b0] sm:$0xff]
    %v8339 = vld [vmem:[#allocation6 + $0x4b8] sm:$0xff]
    %v8340 = vld [vmem:[#allocation6 + $0x4c0] sm:$0xff]
    %v8341 = vld [vmem:[#allocation6 + $0x4c8] sm:$0xff]
    %v8342 = vld [vmem:[#allocation6 + $0x4d0] sm:$0xff]
    %v8343 = vld [vmem:[#allocation6 + $0x4d8] sm:$0xff]
    %v8344 = vld [vmem:[#allocation6 + $0x4e0] sm:$0xff]
    %v8345 = vld [vmem:[#allocation6 + $0x4e8] sm:$0xff]
    %v8346 = vld [vmem:[#allocation6 + $0x4f0] sm:$0xff]
    %v8347 = vld [vmem:[#allocation6 + $0x4f8] sm:$0xff]
    %v8348 = vld [vmem:[#allocation6 + $0x500] sm:$0xff]
    %v8349 = vld [vmem:[#allocation6 + $0x508] sm:$0xff]
    %v8350 = vld [vmem:[#allocation6 + $0x510] sm:$0xff]
    %v8351 = vld [vmem:[#allocation6 + $0x518] sm:$0xff]
    %v8352 = vld [vmem:[#allocation6 + $0x520] sm:$0xff]
    %v8353 = vld [vmem:[#allocation6 + $0x528] sm:$0xff]
    %v8354 = vld [vmem:[#allocation6 + $0x530] sm:$0xff]
    %v8355 = vld [vmem:[#allocation6 + $0x538] sm:$0xff]
    %v8356 = vld [vmem:[#allocation6 + $0x540] sm:$0xff]
    %v8357 = vld [vmem:[#allocation6 + $0x548] sm:$0xff]
    %v8358 = vld [vmem:[#allocation6 + $0x550] sm:$0xff]
    %v8359 = vld [vmem:[#allocation6 + $0x558] sm:$0xff]
    %v8360 = vld [vmem:[#allocation6 + $0x560] sm:$0xff]
    %v8361 = vld [vmem:[#allocation6 + $0x568] sm:$0xff]
    %v8362 = vld [vmem:[#allocation6 + $0x570] sm:$0xff]
    %v8363 = vld [vmem:[#allocation6 + $0x578] sm:$0xff]
    %v8364 = vld [vmem:[#allocation6 + $0x580] sm:$0xff]
    %v8365 = vld [vmem:[#allocation6 + $0x588] sm:$0xff]
    %v8366 = vld [vmem:[#allocation6 + $0x590] sm:$0xff]
    %v8367 = vld [vmem:[#allocation6 + $0x598] sm:$0xff]
    %v8368 = vld [vmem:[#allocation6 + $0x5a0] sm:$0xff]
    %v8369 = vld [vmem:[#allocation6 + $0x5a8] sm:$0xff]
    %v8370 = vld [vmem:[#allocation6 + $0x5b0] sm:$0xff]
    %v8371 = vld [vmem:[#allocation6 + $0x5b8] sm:$0xff]
    %v8372 = vld [vmem:[#allocation6 + $0x5c0] sm:$0xff]
    %v8373 = vld [vmem:[#allocation6 + $0x5c8] sm:$0xff]
    %v8374 = vld [vmem:[#allocation6 + $0x5d0] sm:$0xff]
    %v8375 = vld [vmem:[#allocation6 + $0x5d8] sm:$0xff]
    %v8376 = vld [vmem:[#allocation6 + $0x5e0] sm:$0xff]
    %v8377 = vld [vmem:[#allocation6 + $0x5e8] sm:$0xff]
    %v8378 = vld [vmem:[#allocation6 + $0x5f0] sm:$0xff]
    %v8379 = vld [vmem:[#allocation6 + $0x5f8] sm:$0xff]
    %v8380 = vld [vmem:[#allocation6 + $0x600] sm:$0xff]
    %v8381 = vld [vmem:[#allocation6 + $0x608] sm:$0xff]
    %v8382 = vld [vmem:[#allocation6 + $0x610] sm:$0xff]
    %v8383 = vld [vmem:[#allocation6 + $0x618] sm:$0xff]
    %v8384 = vld [vmem:[#allocation6 + $0x620] sm:$0xff]
    %v8385 = vld [vmem:[#allocation6 + $0x628] sm:$0xff]
    %v8386 = vld [vmem:[#allocation6 + $0x630] sm:$0xff]
    %v8387 = vld [vmem:[#allocation6 + $0x638] sm:$0xff]
    %v8388 = vld [vmem:[#allocation6 + $0x640] sm:$0xff]
    %v8389 = vld [vmem:[#allocation6 + $0x648] sm:$0xff]
    %v8390 = vld [vmem:[#allocation6 + $0x650] sm:$0xff]
    %v8391 = vld [vmem:[#allocation6 + $0x658] sm:$0xff]
    %v8392 = vld [vmem:[#allocation6 + $0x660] sm:$0xff]
    %v8393 = vld [vmem:[#allocation6 + $0x668] sm:$0xff]
    %v8394 = vld [vmem:[#allocation6 + $0x670] sm:$0xff]
    %v8395 = vld [vmem:[#allocation6 + $0x678] sm:$0xff]
    %v8396 = vld [vmem:[#allocation6 + $0x680] sm:$0xff]
    %v8397 = vld [vmem:[#allocation6 + $0x688] sm:$0xff]
    %v8398 = vld [vmem:[#allocation6 + $0x690] sm:$0xff]
    %v8399 = vld [vmem:[#allocation6 + $0x698] sm:$0xff]
    %v8400 = vld [vmem:[#allocation6 + $0x6a0] sm:$0xff]
    %v8401 = vld [vmem:[#allocation6 + $0x6a8] sm:$0xff]
    %v8402 = vld [vmem:[#allocation6 + $0x6b0] sm:$0xff]
    %v8403 = vld [vmem:[#allocation6 + $0x6b8] sm:$0xff]
    %v8404 = vld [vmem:[#allocation6 + $0x6c0] sm:$0xff]
    %v8405 = vld [vmem:[#allocation6 + $0x6c8] sm:$0xff]
    %v8406 = vld [vmem:[#allocation6 + $0x6d0] sm:$0xff]
    %v8407 = vld [vmem:[#allocation6 + $0x6d8] sm:$0xff]
    %v8408 = vld [vmem:[#allocation6 + $0x6e0] sm:$0xff]
    %v8409 = vld [vmem:[#allocation6 + $0x6e8] sm:$0xff]
    %v8410 = vld [vmem:[#allocation6 + $0x6f0] sm:$0xff]
    %v8411 = vld [vmem:[#allocation6 + $0x6f8] sm:$0xff]
    %v8412 = vld [vmem:[#allocation6 + $0x700] sm:$0xff]
    %v8413 = vld [vmem:[#allocation6 + $0x708] sm:$0xff]
    %v8414 = vld [vmem:[#allocation6 + $0x710] sm:$0xff]
    %v8415 = vld [vmem:[#allocation6 + $0x718] sm:$0xff]
    %v8416 = vld [vmem:[#allocation6 + $0x720] sm:$0xff]
    %v8417 = vld [vmem:[#allocation6 + $0x728] sm:$0xff]
    %v8418 = vld [vmem:[#allocation6 + $0x730] sm:$0xff]
    %v8419 = vld [vmem:[#allocation6 + $0x738] sm:$0xff]
    %v8420 = vld [vmem:[#allocation6 + $0x740] sm:$0xff]
    %v8421 = vld [vmem:[#allocation6 + $0x748] sm:$0xff]
    %v8422 = vld [vmem:[#allocation6 + $0x750] sm:$0xff]
    %v8423 = vld [vmem:[#allocation6 + $0x758] sm:$0xff]
    %v8424 = vld [vmem:[#allocation6 + $0x760] sm:$0xff]
    %v8425 = vld [vmem:[#allocation6 + $0x768] sm:$0xff]
    %v8426 = vld [vmem:[#allocation6 + $0x770] sm:$0xff]
    %v8427 = vld [vmem:[#allocation6 + $0x778] sm:$0xff]
    %v8428 = vld [vmem:[#allocation6 + $0x780] sm:$0xff]
    %v8429 = vld [vmem:[#allocation6 + $0x788] sm:$0xff]
    %v8430 = vld [vmem:[#allocation6 + $0x790] sm:$0xff]
    %v8431 = vld [vmem:[#allocation6 + $0x798] sm:$0xff]
    %v8432 = vld [vmem:[#allocation6 + $0x7a0] sm:$0xff]
    %v8433 = vld [vmem:[#allocation6 + $0x7a8] sm:$0xff]
    %v8434 = vld [vmem:[#allocation6 + $0x7b0] sm:$0xff]
    %v8435 = vld [vmem:[#allocation6 + $0x7b8] sm:$0xff]
    %v8436 = vld [vmem:[#allocation6 + $0x7c0] sm:$0xff]
    %v8437 = vld [vmem:[#allocation6 + $0x7c8] sm:$0xff]
    %v8438 = vld [vmem:[#allocation6 + $0x7d0] sm:$0xff]
    %v8439 = vld [vmem:[#allocation6 + $0x7d8] sm:$0xff]
    %v8440 = vld [vmem:[#allocation6 + $0x7e0] sm:$0xff]
    %v8441 = vld [vmem:[#allocation6 + $0x7e8] sm:$0xff]
    %v8442 = vld [vmem:[#allocation6 + $0x7f0] sm:$0xff]
    %v8443 = vld [vmem:[#allocation6 + $0x7f8] sm:$0xff]
    %v8444 = vld [vmem:[#allocation7] sm:$0xf]
    %v8446 = vperm.slane %v8444, 0
    %v8447 = vperm.slane %v8444, 1
    %v8448 = vperm.slane %v8444, 2
    %v8449 = vperm.slane %v8444, 3
    %v8710 = vunpack.c.l.b16 %v8188
    %v8711 = vunpack.c.h.b16 %v8188
    %v8712 = vunpack.c.l.b16 %v8189
    %v8713 = vunpack.c.h.b16 %v8189
    %v8714 = vunpack.c.l.b16 %v8190
    %v8715 = vunpack.c.h.b16 %v8190
    %v8716 = vunpack.c.l.b16 %v8191
    %v8717 = vunpack.c.h.b16 %v8191
    %v8718 = vunpack.c.l.b16 %v8192
    %v8719 = vunpack.c.h.b16 %v8192
    %v8720 = vunpack.c.l.b16 %v8193
    %v8721 = vunpack.c.h.b16 %v8193
    %v8722 = vunpack.c.l.b16 %v8194
    %v8723 = vunpack.c.h.b16 %v8194
    %v8724 = vunpack.c.l.b16 %v8195
    %v8725 = vunpack.c.h.b16 %v8195
    %v8726 = vunpack.c.l.b16 %v8196
    %v8727 = vunpack.c.h.b16 %v8196
    %v8728 = vunpack.c.l.b16 %v8197
    %v8729 = vunpack.c.h.b16 %v8197
    %v8730 = vunpack.c.l.b16 %v8198
    %v8731 = vunpack.c.h.b16 %v8198
    %v8732 = vunpack.c.l.b16 %v8199
    %v8733 = vunpack.c.h.b16 %v8199
    %v8734 = vunpack.c.l.b16 %v8200
    %v8735 = vunpack.c.h.b16 %v8200
    %v8736 = vunpack.c.l.b16 %v8201
    %v8737 = vunpack.c.h.b16 %v8201
    %v8738 = vunpack.c.l.b16 %v8202
    %v8739 = vunpack.c.h.b16 %v8202
    %v8740 = vunpack.c.l.b16 %v8203
    %v8741 = vunpack.c.h.b16 %v8203
    %v8742 = vunpack.c.l.b16 %v8204
    %v8743 = vunpack.c.h.b16 %v8204
    %v8744 = vunpack.c.l.b16 %v8205
    %v8745 = vunpack.c.h.b16 %v8205
    %v8746 = vunpack.c.l.b16 %v8206
    %v8747 = vunpack.c.h.b16 %v8206
    %v8748 = vunpack.c.l.b16 %v8207
    %v8749 = vunpack.c.h.b16 %v8207
    %v8750 = vunpack.c.l.b16 %v8208
    %v8751 = vunpack.c.h.b16 %v8208
    %v8752 = vunpack.c.l.b16 %v8209
    %v8753 = vunpack.c.h.b16 %v8209
    %v8754 = vunpack.c.l.b16 %v8210
    %v8755 = vunpack.c.h.b16 %v8210
    %v8756 = vunpack.c.l.b16 %v8211
    %v8757 = vunpack.c.h.b16 %v8211
    %v8758 = vunpack.c.l.b16 %v8212
    %v8759 = vunpack.c.h.b16 %v8212
    %v8760 = vunpack.c.l.b16 %v8213
    %v8761 = vunpack.c.h.b16 %v8213
    %v8762 = vunpack.c.l.b16 %v8214
    %v8763 = vunpack.c.h.b16 %v8214
    %v8764 = vunpack.c.l.b16 %v8215
    %v8765 = vunpack.c.h.b16 %v8215
    %v8766 = vunpack.c.l.b16 %v8216
    %v8767 = vunpack.c.h.b16 %v8216
    %v8768 = vunpack.c.l.b16 %v8217
    %v8769 = vunpack.c.h.b16 %v8217
    %v8770 = vunpack.c.l.b16 %v8218
    %v8771 = vunpack.c.h.b16 %v8218
    %v8772 = vunpack.c.l.b16 %v8219
    %v8773 = vunpack.c.h.b16 %v8219
    %v8774 = vunpack.c.l.b16 %v8220
    %v8775 = vunpack.c.h.b16 %v8220
    %v8776 = vunpack.c.l.b16 %v8221
    %v8777 = vunpack.c.h.b16 %v8221
    %v8778 = vunpack.c.l.b16 %v8222
    %v8779 = vunpack.c.h.b16 %v8222
    %v8780 = vunpack.c.l.b16 %v8223
    %v8781 = vunpack.c.h.b16 %v8223
    %v8782 = vunpack.c.l.b16 %v8224
    %v8783 = vunpack.c.h.b16 %v8224
    %v8784 = vunpack.c.l.b16 %v8225
    %v8785 = vunpack.c.h.b16 %v8225
    %v8786 = vunpack.c.l.b16 %v8226
    %v8787 = vunpack.c.h.b16 %v8226
    %v8788 = vunpack.c.l.b16 %v8227
    %v8789 = vunpack.c.h.b16 %v8227
    %v8790 = vunpack.c.l.b16 %v8228
    %v8791 = vunpack.c.h.b16 %v8228
    %v8792 = vunpack.c.l.b16 %v8229
    %v8793 = vunpack.c.h.b16 %v8229
    %v8794 = vunpack.c.l.b16 %v8230
    %v8795 = vunpack.c.h.b16 %v8230
    %v8796 = vunpack.c.l.b16 %v8231
    %v8797 = vunpack.c.h.b16 %v8231
    %v8798 = vunpack.c.l.b16 %v8232
    %v8799 = vunpack.c.h.b16 %v8232
    %v8800 = vunpack.c.l.b16 %v8233
    %v8801 = vunpack.c.h.b16 %v8233
    %v8802 = vunpack.c.l.b16 %v8234
    %v8803 = vunpack.c.h.b16 %v8234
    %v8804 = vunpack.c.l.b16 %v8235
    %v8805 = vunpack.c.h.b16 %v8235
    %v8806 = vunpack.c.l.b16 %v8236
    %v8807 = vunpack.c.h.b16 %v8236
    %v8808 = vunpack.c.l.b16 %v8237
    %v8809 = vunpack.c.h.b16 %v8237
    %v8810 = vunpack.c.l.b16 %v8238
    %v8811 = vunpack.c.h.b16 %v8238
    %v8812 = vunpack.c.l.b16 %v8239
    %v8813 = vunpack.c.h.b16 %v8239
    %v8814 = vunpack.c.l.b16 %v8240
    %v8815 = vunpack.c.h.b16 %v8240
    %v8816 = vunpack.c.l.b16 %v8241
    %v8817 = vunpack.c.h.b16 %v8241
    %v8818 = vunpack.c.l.b16 %v8242
    %v8819 = vunpack.c.h.b16 %v8242
    %v8820 = vunpack.c.l.b16 %v8243
    %v8821 = vunpack.c.h.b16 %v8243
    %v8822 = vunpack.c.l.b16 %v8244
    %v8823 = vunpack.c.h.b16 %v8244
    %v8824 = vunpack.c.l.b16 %v8245
    %v8825 = vunpack.c.h.b16 %v8245
    %v8826 = vunpack.c.l.b16 %v8246
    %v8827 = vunpack.c.h.b16 %v8246
    %v8828 = vunpack.c.l.b16 %v8247
    %v8829 = vunpack.c.h.b16 %v8247
    %v8830 = vunpack.c.l.b16 %v8248
    %v8831 = vunpack.c.h.b16 %v8248
    %v8832 = vunpack.c.l.b16 %v8249
    %v8833 = vunpack.c.h.b16 %v8249
    %v8834 = vunpack.c.l.b16 %v8250
    %v8835 = vunpack.c.h.b16 %v8250
    %v8836 = vunpack.c.l.b16 %v8251
    %v8837 = vunpack.c.h.b16 %v8251
    %v8838 = vunpack.c.l.b16 %v8252
    %v8839 = vunpack.c.h.b16 %v8252
    %v8840 = vunpack.c.l.b16 %v8253
    %v8841 = vunpack.c.h.b16 %v8253
    %v8842 = vunpack.c.l.b16 %v8254
    %v8843 = vunpack.c.h.b16 %v8254
    %v8844 = vunpack.c.l.b16 %v8255
    %v8845 = vunpack.c.h.b16 %v8255
    %v8846 = vunpack.c.l.b16 %v8256
    %v8847 = vunpack.c.h.b16 %v8256
    %v8848 = vunpack.c.l.b16 %v8257
    %v8849 = vunpack.c.h.b16 %v8257
    %v8850 = vunpack.c.l.b16 %v8258
    %v8851 = vunpack.c.h.b16 %v8258
    %v8852 = vunpack.c.l.b16 %v8259
    %v8853 = vunpack.c.h.b16 %v8259
    %v8854 = vunpack.c.l.b16 %v8260
    %v8855 = vunpack.c.h.b16 %v8260
    %v8856 = vunpack.c.l.b16 %v8261
    %v8857 = vunpack.c.h.b16 %v8261
    %v8858 = vunpack.c.l.b16 %v8262
    %v8859 = vunpack.c.h.b16 %v8262
    %v8860 = vunpack.c.l.b16 %v8263
    %v8861 = vunpack.c.h.b16 %v8263
    %v8862 = vunpack.c.l.b16 %v8264
    %v8863 = vunpack.c.h.b16 %v8264
    %v8864 = vunpack.c.l.b16 %v8265
    %v8865 = vunpack.c.h.b16 %v8265
    %v8866 = vunpack.c.l.b16 %v8266
    %v8867 = vunpack.c.h.b16 %v8266
    %v8868 = vunpack.c.l.b16 %v8267
    %v8869 = vunpack.c.h.b16 %v8267
    %v8870 = vunpack.c.l.b16 %v8268
    %v8871 = vunpack.c.h.b16 %v8268
    %v8872 = vunpack.c.l.b16 %v8269
    %v8873 = vunpack.c.h.b16 %v8269
    %v8874 = vunpack.c.l.b16 %v8270
    %v8875 = vunpack.c.h.b16 %v8270
    %v8876 = vunpack.c.l.b16 %v8271
    %v8877 = vunpack.c.h.b16 %v8271
    %v8878 = vunpack.c.l.b16 %v8272
    %v8879 = vunpack.c.h.b16 %v8272
    %v8880 = vunpack.c.l.b16 %v8273
    %v8881 = vunpack.c.h.b16 %v8273
    %v8882 = vunpack.c.l.b16 %v8274
    %v8883 = vunpack.c.h.b16 %v8274
    %v8884 = vunpack.c.l.b16 %v8275
    %v8885 = vunpack.c.h.b16 %v8275
    %v8886 = vunpack.c.l.b16 %v8276
    %v8887 = vunpack.c.h.b16 %v8276
    %v8888 = vunpack.c.l.b16 %v8277
    %v8889 = vunpack.c.h.b16 %v8277
    %v8890 = vunpack.c.l.b16 %v8278
    %v8891 = vunpack.c.h.b16 %v8278
    %v8892 = vunpack.c.l.b16 %v8279
    %v8893 = vunpack.c.h.b16 %v8279
    %v8894 = vunpack.c.l.b16 %v8280
    %v8895 = vunpack.c.h.b16 %v8280
    %v8896 = vunpack.c.l.b16 %v8281
    %v8897 = vunpack.c.h.b16 %v8281
    %v8898 = vunpack.c.l.b16 %v8282
    %v8899 = vunpack.c.h.b16 %v8282
    %v8900 = vunpack.c.l.b16 %v8283
    %v8901 = vunpack.c.h.b16 %v8283
    %v8902 = vunpack.c.l.b16 %v8284
    %v8903 = vunpack.c.h.b16 %v8284
    %v8904 = vunpack.c.l.b16 %v8285
    %v8905 = vunpack.c.h.b16 %v8285
    %v8906 = vunpack.c.l.b16 %v8286
    %v8907 = vunpack.c.h.b16 %v8286
    %v8908 = vunpack.c.l.b16 %v8287
    %v8909 = vunpack.c.h.b16 %v8287
    %v8910 = vunpack.c.l.b16 %v8288
    %v8911 = vunpack.c.h.b16 %v8288
    %v8912 = vunpack.c.l.b16 %v8289
    %v8913 = vunpack.c.h.b16 %v8289
    %v8914 = vunpack.c.l.b16 %v8290
    %v8915 = vunpack.c.h.b16 %v8290
    %v8916 = vunpack.c.l.b16 %v8291
    %v8917 = vunpack.c.h.b16 %v8291
    %v8918 = vunpack.c.l.b16 %v8292
    %v8919 = vunpack.c.h.b16 %v8292
    %v8920 = vunpack.c.l.b16 %v8293
    %v8921 = vunpack.c.h.b16 %v8293
    %v8922 = vunpack.c.l.b16 %v8294
    %v8923 = vunpack.c.h.b16 %v8294
    %v8924 = vunpack.c.l.b16 %v8295
    %v8925 = vunpack.c.h.b16 %v8295
    %v8926 = vunpack.c.l.b16 %v8296
    %v8927 = vunpack.c.h.b16 %v8296
    %v8928 = vunpack.c.l.b16 %v8297
    %v8929 = vunpack.c.h.b16 %v8297
    %v8930 = vunpack.c.l.b16 %v8298
    %v8931 = vunpack.c.h.b16 %v8298
    %v8932 = vunpack.c.l.b16 %v8299
    %v8933 = vunpack.c.h.b16 %v8299
    %v8934 = vunpack.c.l.b16 %v8300
    %v8935 = vunpack.c.h.b16 %v8300
    %v8936 = vunpack.c.l.b16 %v8301
    %v8937 = vunpack.c.h.b16 %v8301
    %v8938 = vunpack.c.l.b16 %v8302
    %v8939 = vunpack.c.h.b16 %v8302
    %v8940 = vunpack.c.l.b16 %v8303
    %v8941 = vunpack.c.h.b16 %v8303
    %v8942 = vunpack.c.l.b16 %v8304
    %v8943 = vunpack.c.h.b16 %v8304
    %v8944 = vunpack.c.l.b16 %v8305
    %v8945 = vunpack.c.h.b16 %v8305
    %v8946 = vunpack.c.l.b16 %v8306
    %v8947 = vunpack.c.h.b16 %v8306
    %v8948 = vunpack.c.l.b16 %v8307
    %v8949 = vunpack.c.h.b16 %v8307
    %v8950 = vunpack.c.l.b16 %v8308
    %v8951 = vunpack.c.h.b16 %v8308
    %v8952 = vunpack.c.l.b16 %v8309
    %v8953 = vunpack.c.h.b16 %v8309
    %v8954 = vunpack.c.l.b16 %v8310
    %v8955 = vunpack.c.h.b16 %v8310
    %v8956 = vunpack.c.l.b16 %v8311
    %v8957 = vunpack.c.h.b16 %v8311
    %v8958 = vunpack.c.l.b16 %v8312
    %v8959 = vunpack.c.h.b16 %v8312
    %v8960 = vunpack.c.l.b16 %v8313
    %v8961 = vunpack.c.h.b16 %v8313
    %v8962 = vunpack.c.l.b16 %v8314
    %v8963 = vunpack.c.h.b16 %v8314
    %v8964 = vunpack.c.l.b16 %v8315
    %v8965 = vunpack.c.h.b16 %v8315
    %v8966 = vunpack.c.l.b16 %v8316
    %v8967 = vunpack.c.h.b16 %v8316
    %v8968 = vunpack.c.l.b16 %v8317
    %v8969 = vunpack.c.h.b16 %v8317
    %v8970 = vunpack.c.l.b16 %v8318
    %v8971 = vunpack.c.h.b16 %v8318
    %v8972 = vunpack.c.l.b16 %v8319
    %v8973 = vunpack.c.h.b16 %v8319
    %v8974 = vunpack.c.l.b16 %v8320
    %v8975 = vunpack.c.h.b16 %v8320
    %v8976 = vunpack.c.l.b16 %v8321
    %v8977 = vunpack.c.h.b16 %v8321
    %v8978 = vunpack.c.l.b16 %v8322
    %v8979 = vunpack.c.h.b16 %v8322
    %v8980 = vunpack.c.l.b16 %v8323
    %v8981 = vunpack.c.h.b16 %v8323
    %v8982 = vunpack.c.l.b16 %v8324
    %v8983 = vunpack.c.h.b16 %v8324
    %v8984 = vunpack.c.l.b16 %v8325
    %v8985 = vunpack.c.h.b16 %v8325
    %v8986 = vunpack.c.l.b16 %v8326
    %v8987 = vunpack.c.h.b16 %v8326
    %v8988 = vunpack.c.l.b16 %v8327
    %v8989 = vunpack.c.h.b16 %v8327
    %v8990 = vunpack.c.l.b16 %v8328
    %v8991 = vunpack.c.h.b16 %v8328
    %v8992 = vunpack.c.l.b16 %v8329
    %v8993 = vunpack.c.h.b16 %v8329
    %v8994 = vunpack.c.l.b16 %v8330
    %v8995 = vunpack.c.h.b16 %v8330
    %v8996 = vunpack.c.l.b16 %v8331
    %v8997 = vunpack.c.h.b16 %v8331
    %v8998 = vunpack.c.l.b16 %v8332
    %v8999 = vunpack.c.h.b16 %v8332
    %v9000 = vunpack.c.l.b16 %v8333
    %v9001 = vunpack.c.h.b16 %v8333
    %v9002 = vunpack.c.l.b16 %v8334
    %v9003 = vunpack.c.h.b16 %v8334
    %v9004 = vunpack.c.l.b16 %v8335
    %v9005 = vunpack.c.h.b16 %v8335
    %v9006 = vunpack.c.l.b16 %v8336
    %v9007 = vunpack.c.h.b16 %v8336
    %v9008 = vunpack.c.l.b16 %v8337
    %v9009 = vunpack.c.h.b16 %v8337
    %v9010 = vunpack.c.l.b16 %v8338
    %v9011 = vunpack.c.h.b16 %v8338
    %v9012 = vunpack.c.l.b16 %v8339
    %v9013 = vunpack.c.h.b16 %v8339
    %v9014 = vunpack.c.l.b16 %v8340
    %v9015 = vunpack.c.h.b16 %v8340
    %v9016 = vunpack.c.l.b16 %v8341
    %v9017 = vunpack.c.h.b16 %v8341
    %v9018 = vunpack.c.l.b16 %v8342
    %v9019 = vunpack.c.h.b16 %v8342
    %v9020 = vunpack.c.l.b16 %v8343
    %v9021 = vunpack.c.h.b16 %v8343
    %v9022 = vunpack.c.l.b16 %v8344
    %v9023 = vunpack.c.h.b16 %v8344
    %v9024 = vunpack.c.l.b16 %v8345
    %v9025 = vunpack.c.h.b16 %v8345
    %v9026 = vunpack.c.l.b16 %v8346
    %v9027 = vunpack.c.h.b16 %v8346
    %v9028 = vunpack.c.l.b16 %v8347
    %v9029 = vunpack.c.h.b16 %v8347
    %v9030 = vunpack.c.l.b16 %v8348
    %v9031 = vunpack.c.h.b16 %v8348
    %v9032 = vunpack.c.l.b16 %v8349
    %v9033 = vunpack.c.h.b16 %v8349
    %v9034 = vunpack.c.l.b16 %v8350
    %v9035 = vunpack.c.h.b16 %v8350
    %v9036 = vunpack.c.l.b16 %v8351
    %v9037 = vunpack.c.h.b16 %v8351
    %v9038 = vunpack.c.l.b16 %v8352
    %v9039 = vunpack.c.h.b16 %v8352
    %v9040 = vunpack.c.l.b16 %v8353
    %v9041 = vunpack.c.h.b16 %v8353
    %v9042 = vunpack.c.l.b16 %v8354
    %v9043 = vunpack.c.h.b16 %v8354
    %v9044 = vunpack.c.l.b16 %v8355
    %v9045 = vunpack.c.h.b16 %v8355
    %v9046 = vunpack.c.l.b16 %v8356
    %v9047 = vunpack.c.h.b16 %v8356
    %v9048 = vunpack.c.l.b16 %v8357
    %v9049 = vunpack.c.h.b16 %v8357
    %v9050 = vunpack.c.l.b16 %v8358
    %v9051 = vunpack.c.h.b16 %v8358
    %v9052 = vunpack.c.l.b16 %v8359
    %v9053 = vunpack.c.h.b16 %v8359
    %v9054 = vunpack.c.l.b16 %v8360
    %v9055 = vunpack.c.h.b16 %v8360
    %v9056 = vunpack.c.l.b16 %v8361
    %v9057 = vunpack.c.h.b16 %v8361
    %v9058 = vunpack.c.l.b16 %v8362
    %v9059 = vunpack.c.h.b16 %v8362
    %v9060 = vunpack.c.l.b16 %v8363
    %v9061 = vunpack.c.h.b16 %v8363
    %v9062 = vunpack.c.l.b16 %v8364
    %v9063 = vunpack.c.h.b16 %v8364
    %v9064 = vunpack.c.l.b16 %v8365
    %v9065 = vunpack.c.h.b16 %v8365
    %v9066 = vunpack.c.l.b16 %v8366
    %v9067 = vunpack.c.h.b16 %v8366
    %v9068 = vunpack.c.l.b16 %v8367
    %v9069 = vunpack.c.h.b16 %v8367
    %v9070 = vunpack.c.l.b16 %v8368
    %v9071 = vunpack.c.h.b16 %v8368
    %v9072 = vunpack.c.l.b16 %v8369
    %v9073 = vunpack.c.h.b16 %v8369
    %v9074 = vunpack.c.l.b16 %v8370
    %v9075 = vunpack.c.h.b16 %v8370
    %v9076 = vunpack.c.l.b16 %v8371
    %v9077 = vunpack.c.h.b16 %v8371
    %v9078 = vunpack.c.l.b16 %v8372
    %v9079 = vunpack.c.h.b16 %v8372
    %v9080 = vunpack.c.l.b16 %v8373
    %v9081 = vunpack.c.h.b16 %v8373
    %v9082 = vunpack.c.l.b16 %v8374
    %v9083 = vunpack.c.h.b16 %v8374
    %v9084 = vunpack.c.l.b16 %v8375
    %v9085 = vunpack.c.h.b16 %v8375
    %v9086 = vunpack.c.l.b16 %v8376
    %v9087 = vunpack.c.h.b16 %v8376
    %v9088 = vunpack.c.l.b16 %v8377
    %v9089 = vunpack.c.h.b16 %v8377
    %v9090 = vunpack.c.l.b16 %v8378
    %v9091 = vunpack.c.h.b16 %v8378
    %v9092 = vunpack.c.l.b16 %v8379
    %v9093 = vunpack.c.h.b16 %v8379
    %v9094 = vunpack.c.l.b16 %v8380
    %v9095 = vunpack.c.h.b16 %v8380
    %v9096 = vunpack.c.l.b16 %v8381
    %v9097 = vunpack.c.h.b16 %v8381
    %v9098 = vunpack.c.l.b16 %v8382
    %v9099 = vunpack.c.h.b16 %v8382
    %v9100 = vunpack.c.l.b16 %v8383
    %v9101 = vunpack.c.h.b16 %v8383
    %v9102 = vunpack.c.l.b16 %v8384
    %v9103 = vunpack.c.h.b16 %v8384
    %v9104 = vunpack.c.l.b16 %v8385
    %v9105 = vunpack.c.h.b16 %v8385
    %v9106 = vunpack.c.l.b16 %v8386
    %v9107 = vunpack.c.h.b16 %v8386
    %v9108 = vunpack.c.l.b16 %v8387
    %v9109 = vunpack.c.h.b16 %v8387
    %v9110 = vunpack.c.l.b16 %v8388
    %v9111 = vunpack.c.h.b16 %v8388
    %v9112 = vunpack.c.l.b16 %v8389
    %v9113 = vunpack.c.h.b16 %v8389
    %v9114 = vunpack.c.l.b16 %v8390
    %v9115 = vunpack.c.h.b16 %v8390
    %v9116 = vunpack.c.l.b16 %v8391
    %v9117 = vunpack.c.h.b16 %v8391
    %v9118 = vunpack.c.l.b16 %v8392
    %v9119 = vunpack.c.h.b16 %v8392
    %v9120 = vunpack.c.l.b16 %v8393
    %v9121 = vunpack.c.h.b16 %v8393
    %v9122 = vunpack.c.l.b16 %v8394
    %v9123 = vunpack.c.h.b16 %v8394
    %v9124 = vunpack.c.l.b16 %v8395
    %v9125 = vunpack.c.h.b16 %v8395
    %v9126 = vunpack.c.l.b16 %v8396
    %v9127 = vunpack.c.h.b16 %v8396
    %v9128 = vunpack.c.l.b16 %v8397
    %v9129 = vunpack.c.h.b16 %v8397
    %v9130 = vunpack.c.l.b16 %v8398
    %v9131 = vunpack.c.h.b16 %v8398
    %v9132 = vunpack.c.l.b16 %v8399
    %v9133 = vunpack.c.h.b16 %v8399
    %v9134 = vunpack.c.l.b16 %v8400
    %v9135 = vunpack.c.h.b16 %v8400
    %v9136 = vunpack.c.l.b16 %v8401
    %v9137 = vunpack.c.h.b16 %v8401
    %v9138 = vunpack.c.l.b16 %v8402
    %v9139 = vunpack.c.h.b16 %v8402
    %v9140 = vunpack.c.l.b16 %v8403
    %v9141 = vunpack.c.h.b16 %v8403
    %v9142 = vunpack.c.l.b16 %v8404
    %v9143 = vunpack.c.h.b16 %v8404
    %v9144 = vunpack.c.l.b16 %v8405
    %v9145 = vunpack.c.h.b16 %v8405
    %v9146 = vunpack.c.l.b16 %v8406
    %v9147 = vunpack.c.h.b16 %v8406
    %v9148 = vunpack.c.l.b16 %v8407
    %v9149 = vunpack.c.h.b16 %v8407
    %v9150 = vunpack.c.l.b16 %v8408
    %v9151 = vunpack.c.h.b16 %v8408
    %v9152 = vunpack.c.l.b16 %v8409
    %v9153 = vunpack.c.h.b16 %v8409
    %v9154 = vunpack.c.l.b16 %v8410
    %v9155 = vunpack.c.h.b16 %v8410
    %v9156 = vunpack.c.l.b16 %v8411
    %v9157 = vunpack.c.h.b16 %v8411
    %v9158 = vunpack.c.l.b16 %v8412
    %v9159 = vunpack.c.h.b16 %v8412
    %v9160 = vunpack.c.l.b16 %v8413
    %v9161 = vunpack.c.h.b16 %v8413
    %v9162 = vunpack.c.l.b16 %v8414
    %v9163 = vunpack.c.h.b16 %v8414
    %v9164 = vunpack.c.l.b16 %v8415
    %v9165 = vunpack.c.h.b16 %v8415
    %v9166 = vunpack.c.l.b16 %v8416
    %v9167 = vunpack.c.h.b16 %v8416
    %v9168 = vunpack.c.l.b16 %v8417
    %v9169 = vunpack.c.h.b16 %v8417
    %v9170 = vunpack.c.l.b16 %v8418
    %v9171 = vunpack.c.h.b16 %v8418
    %v9172 = vunpack.c.l.b16 %v8419
    %v9173 = vunpack.c.h.b16 %v8419
    %v9174 = vunpack.c.l.b16 %v8420
    %v9175 = vunpack.c.h.b16 %v8420
    %v9176 = vunpack.c.l.b16 %v8421
    %v9177 = vunpack.c.h.b16 %v8421
    %v9178 = vunpack.c.l.b16 %v8422
    %v9179 = vunpack.c.h.b16 %v8422
    %v9180 = vunpack.c.l.b16 %v8423
    %v9181 = vunpack.c.h.b16 %v8423
    %v9182 = vunpack.c.l.b16 %v8424
    %v9183 = vunpack.c.h.b16 %v8424
    %v9184 = vunpack.c.l.b16 %v8425
    %v9185 = vunpack.c.h.b16 %v8425
    %v9186 = vunpack.c.l.b16 %v8426
    %v9187 = vunpack.c.h.b16 %v8426
    %v9188 = vunpack.c.l.b16 %v8427
    %v9189 = vunpack.c.h.b16 %v8427
    %v9190 = vunpack.c.l.b16 %v8428
    %v9191 = vunpack.c.h.b16 %v8428
    %v9192 = vunpack.c.l.b16 %v8429
    %v9193 = vunpack.c.h.b16 %v8429
    %v9194 = vunpack.c.l.b16 %v8430
    %v9195 = vunpack.c.h.b16 %v8430
    %v9196 = vunpack.c.l.b16 %v8431
    %v9197 = vunpack.c.h.b16 %v8431
    %v9198 = vunpack.c.l.b16 %v8432
    %v9199 = vunpack.c.h.b16 %v8432
    %v9200 = vunpack.c.l.b16 %v8433
    %v9201 = vunpack.c.h.b16 %v8433
    %v9202 = vunpack.c.l.b16 %v8434
    %v9203 = vunpack.c.h.b16 %v8434
    %v9204 = vunpack.c.l.b16 %v8435
    %v9205 = vunpack.c.h.b16 %v8435
    %v9206 = vunpack.c.l.b16 %v8436
    %v9207 = vunpack.c.h.b16 %v8436
    %v9208 = vunpack.c.l.b16 %v8437
    %v9209 = vunpack.c.h.b16 %v8437
    %v9210 = vunpack.c.l.b16 %v8438
    %v9211 = vunpack.c.h.b16 %v8438
    %v9212 = vunpack.c.l.b16 %v8439
    %v9213 = vunpack.c.h.b16 %v8439
    %v9214 = vunpack.c.l.b16 %v8440
    %v9215 = vunpack.c.h.b16 %v8440
    %v9216 = vunpack.c.l.b16 %v8441
    %v9217 = vunpack.c.h.b16 %v8441
    %v9218 = vunpack.c.l.b16 %v8442
    %v9219 = vunpack.c.h.b16 %v8442
    %v9220 = vunpack.c.l.b16 %v8443
    %v9221 = vunpack.c.h.b16 %v8443
    %v9222 = vpack.c.b16 %v8714, %v8710
    %v9223 = vpack.c.b16 %v8715, %v8711
    %v9224 = vpack.c.b16 %v8716, %v8712
    %v9225 = vpack.c.b16 %v8717, %v8713
    %v9226 = vpack.c.b16 %v8722, %v8718
    %v9227 = vpack.c.b16 %v8723, %v8719
    %v9228 = vpack.c.b16 %v8724, %v8720
    %v9229 = vpack.c.b16 %v8725, %v8721
    %v9230 = vpack.c.b16 %v8730, %v8726
    %v9231 = vpack.c.b16 %v8731, %v8727
    %v9232 = vpack.c.b16 %v8732, %v8728
    %v9233 = vpack.c.b16 %v8733, %v8729
    %v9234 = vpack.c.b16 %v8738, %v8734
    %v9235 = vpack.c.b16 %v8739, %v8735
    %v9236 = vpack.c.b16 %v8740, %v8736
    %v9237 = vpack.c.b16 %v8741, %v8737
    %v9238 = vpack.c.b16 %v8746, %v8742
    %v9239 = vpack.c.b16 %v8747, %v8743
    %v9240 = vpack.c.b16 %v8748, %v8744
    %v9241 = vpack.c.b16 %v8749, %v8745
    %v9242 = vpack.c.b16 %v8754, %v8750
    %v9243 = vpack.c.b16 %v8755, %v8751
    %v9244 = vpack.c.b16 %v8756, %v8752
    %v9245 = vpack.c.b16 %v8757, %v8753
    %v9246 = vpack.c.b16 %v8762, %v8758
    %v9247 = vpack.c.b16 %v8763, %v8759
    %v9248 = vpack.c.b16 %v8764, %v8760
    %v9249 = vpack.c.b16 %v8765, %v8761
    %v9250 = vpack.c.b16 %v8770, %v8766
    %v9251 = vpack.c.b16 %v8771, %v8767
    %v9252 = vpack.c.b16 %v8772, %v8768
    %v9253 = vpack.c.b16 %v8773, %v8769
    %v9254 = vpack.c.b16 %v8778, %v8774
    %v9255 = vpack.c.b16 %v8779, %v8775
    %v9256 = vpack.c.b16 %v8780, %v8776
    %v9257 = vpack.c.b16 %v8781, %v8777
    %v9258 = vpack.c.b16 %v8786, %v8782
    %v9259 = vpack.c.b16 %v8787, %v8783
    %v9260 = vpack.c.b16 %v8788, %v8784
    %v9261 = vpack.c.b16 %v8789, %v8785
    %v9262 = vpack.c.b16 %v8794, %v8790
    %v9263 = vpack.c.b16 %v8795, %v8791
    %v9264 = vpack.c.b16 %v8796, %v8792
    %v9265 = vpack.c.b16 %v8797, %v8793
    %v9266 = vpack.c.b16 %v8802, %v8798
    %v9267 = vpack.c.b16 %v8803, %v8799
    %v9268 = vpack.c.b16 %v8804, %v8800
    %v9269 = vpack.c.b16 %v8805, %v8801
    %v9270 = vpack.c.b16 %v8810, %v8806
    %v9271 = vpack.c.b16 %v8811, %v8807
    %v9272 = vpack.c.b16 %v8812, %v8808
    %v9273 = vpack.c.b16 %v8813, %v8809
    %v9274 = vpack.c.b16 %v8818, %v8814
    %v9275 = vpack.c.b16 %v8819, %v8815
    %v9276 = vpack.c.b16 %v8820, %v8816
    %v9277 = vpack.c.b16 %v8821, %v8817
    %v9278 = vpack.c.b16 %v8826, %v8822
    %v9279 = vpack.c.b16 %v8827, %v8823
    %v9280 = vpack.c.b16 %v8828, %v8824
    %v9281 = vpack.c.b16 %v8829, %v8825
    %v9282 = vpack.c.b16 %v8834, %v8830
    %v9283 = vpack.c.b16 %v8835, %v8831
    %v9284 = vpack.c.b16 %v8836, %v8832
    %v9285 = vpack.c.b16 %v8837, %v8833
    %v9286 = vpack.c.b16 %v8842, %v8838
    %v9287 = vpack.c.b16 %v8843, %v8839
    %v9288 = vpack.c.b16 %v8844, %v8840
    %v9289 = vpack.c.b16 %v8845, %v8841
    %v9290 = vpack.c.b16 %v8850, %v8846
    %v9291 = vpack.c.b16 %v8851, %v8847
    %v9292 = vpack.c.b16 %v8852, %v8848
    %v9293 = vpack.c.b16 %v8853, %v8849
    %v9294 = vpack.c.b16 %v8858, %v8854
    %v9295 = vpack.c.b16 %v8859, %v8855
    %v9296 = vpack.c.b16 %v8860, %v8856
    %v9297 = vpack.c.b16 %v8861, %v8857
    %v9298 = vpack.c.b16 %v8866, %v8862
    %v9299 = vpack.c.b16 %v8867, %v8863
    %v9300 = vpack.c.b16 %v8868, %v8864
    %v9301 = vpack.c.b16 %v8869, %v8865
    %v9302 = vpack.c.b16 %v8874, %v8870
    %v9303 = vpack.c.b16 %v8875, %v8871
    %v9304 = vpack.c.b16 %v8876, %v8872
    %v9305 = vpack.c.b16 %v8877, %v8873
    %v9306 = vpack.c.b16 %v8882, %v8878
    %v9307 = vpack.c.b16 %v8883, %v8879
    %v9308 = vpack.c.b16 %v8884, %v8880
    %v9309 = vpack.c.b16 %v8885, %v8881
    %v9310 = vpack.c.b16 %v8890, %v8886
    %v9311 = vpack.c.b16 %v8891, %v8887
    %v9312 = vpack.c.b16 %v8892, %v8888
    %v9313 = vpack.c.b16 %v8893, %v8889
    %v9314 = vpack.c.b16 %v8898, %v8894
    %v9315 = vpack.c.b16 %v8899, %v8895
    %v9316 = vpack.c.b16 %v8900, %v8896
    %v9317 = vpack.c.b16 %v8901, %v8897
    %v9318 = vpack.c.b16 %v8906, %v8902
    %v9319 = vpack.c.b16 %v8907, %v8903
    %v9320 = vpack.c.b16 %v8908, %v8904
    %v9321 = vpack.c.b16 %v8909, %v8905
    %v9322 = vpack.c.b16 %v8914, %v8910
    %v9323 = vpack.c.b16 %v8915, %v8911
    %v9324 = vpack.c.b16 %v8916, %v8912
    %v9325 = vpack.c.b16 %v8917, %v8913
    %v9326 = vpack.c.b16 %v8922, %v8918
    %v9327 = vpack.c.b16 %v8923, %v8919
    %v9328 = vpack.c.b16 %v8924, %v8920
    %v9329 = vpack.c.b16 %v8925, %v8921
    %v9330 = vpack.c.b16 %v8930, %v8926
    %v9331 = vpack.c.b16 %v8931, %v8927
    %v9332 = vpack.c.b16 %v8932, %v8928
    %v9333 = vpack.c.b16 %v8933, %v8929
    %v9334 = vpack.c.b16 %v8938, %v8934
    %v9335 = vpack.c.b16 %v8939, %v8935
    %v9336 = vpack.c.b16 %v8940, %v8936
    %v9337 = vpack.c.b16 %v8941, %v8937
    %v9338 = vpack.c.b16 %v8946, %v8942
    %v9339 = vpack.c.b16 %v8947, %v8943
    %v9340 = vpack.c.b16 %v8948, %v8944
    %v9341 = vpack.c.b16 %v8949, %v8945
    %v9342 = vpack.c.b16 %v8954, %v8950
    %v9343 = vpack.c.b16 %v8955, %v8951
    %v9344 = vpack.c.b16 %v8956, %v8952
    %v9345 = vpack.c.b16 %v8957, %v8953
    %v9346 = vpack.c.b16 %v8962, %v8958
    %v9347 = vpack.c.b16 %v8963, %v8959
    %v9348 = vpack.c.b16 %v8964, %v8960
    %v9349 = vpack.c.b16 %v8965, %v8961
    %v9350 = vpack.c.b16 %v8970, %v8966
    %v9351 = vpack.c.b16 %v8971, %v8967
    %v9352 = vpack.c.b16 %v8972, %v8968
    %v9353 = vpack.c.b16 %v8973, %v8969
    %v9354 = vpack.c.b16 %v8978, %v8974
    %v9355 = vpack.c.b16 %v8979, %v8975
    %v9356 = vpack.c.b16 %v8980, %v8976
    %v9357 = vpack.c.b16 %v8981, %v8977
    %v9358 = vpack.c.b16 %v8986, %v8982
    %v9359 = vpack.c.b16 %v8987, %v8983
    %v9360 = vpack.c.b16 %v8988, %v8984
    %v9361 = vpack.c.b16 %v8989, %v8985
    %v9362 = vpack.c.b16 %v8994, %v8990
    %v9363 = vpack.c.b16 %v8995, %v8991
    %v9364 = vpack.c.b16 %v8996, %v8992
    %v9365 = vpack.c.b16 %v8997, %v8993
    %v9366 = vpack.c.b16 %v9002, %v8998
    %v9367 = vpack.c.b16 %v9003, %v8999
    %v9368 = vpack.c.b16 %v9004, %v9000
    %v9369 = vpack.c.b16 %v9005, %v9001
    %v9370 = vpack.c.b16 %v9010, %v9006
    %v9371 = vpack.c.b16 %v9011, %v9007
    %v9372 = vpack.c.b16 %v9012, %v9008
    %v9373 = vpack.c.b16 %v9013, %v9009
    %v9374 = vpack.c.b16 %v9018, %v9014
    %v9375 = vpack.c.b16 %v9019, %v9015
    %v9376 = vpack.c.b16 %v9020, %v9016
    %v9377 = vpack.c.b16 %v9021, %v9017
    %v9378 = vpack.c.b16 %v9026, %v9022
    %v9379 = vpack.c.b16 %v9027, %v9023
    %v9380 = vpack.c.b16 %v9028, %v9024
    %v9381 = vpack.c.b16 %v9029, %v9025
    %v9382 = vpack.c.b16 %v9034, %v9030
    %v9383 = vpack.c.b16 %v9035, %v9031
    %v9384 = vpack.c.b16 %v9036, %v9032
    %v9385 = vpack.c.b16 %v9037, %v9033
    %v9386 = vpack.c.b16 %v9042, %v9038
    %v9387 = vpack.c.b16 %v9043, %v9039
    %v9388 = vpack.c.b16 %v9044, %v9040
    %v9389 = vpack.c.b16 %v9045, %v9041
    %v9390 = vpack.c.b16 %v9050, %v9046
    %v9391 = vpack.c.b16 %v9051, %v9047
    %v9392 = vpack.c.b16 %v9052, %v9048
    %v9393 = vpack.c.b16 %v9053, %v9049
    %v9394 = vpack.c.b16 %v9058, %v9054
    %v9395 = vpack.c.b16 %v9059, %v9055
    %v9396 = vpack.c.b16 %v9060, %v9056
    %v9397 = vpack.c.b16 %v9061, %v9057
    %v9398 = vpack.c.b16 %v9066, %v9062
    %v9399 = vpack.c.b16 %v9067, %v9063
    %v9400 = vpack.c.b16 %v9068, %v9064
    %v9401 = vpack.c.b16 %v9069, %v9065
    %v9402 = vpack.c.b16 %v9074, %v9070
    %v9403 = vpack.c.b16 %v9075, %v9071
    %v9404 = vpack.c.b16 %v9076, %v9072
    %v9405 = vpack.c.b16 %v9077, %v9073
    %v9406 = vpack.c.b16 %v9082, %v9078
    %v9407 = vpack.c.b16 %v9083, %v9079
    %v9408 = vpack.c.b16 %v9084, %v9080
    %v9409 = vpack.c.b16 %v9085, %v9081
    %v9410 = vpack.c.b16 %v9090, %v9086
    %v9411 = vpack.c.b16 %v9091, %v9087
    %v9412 = vpack.c.b16 %v9092, %v9088
    %v9413 = vpack.c.b16 %v9093, %v9089
    %v9414 = vpack.c.b16 %v9098, %v9094
    %v9415 = vpack.c.b16 %v9099, %v9095
    %v9416 = vpack.c.b16 %v9100, %v9096
    %v9417 = vpack.c.b16 %v9101, %v9097
    %v9418 = vpack.c.b16 %v9106, %v9102
    %v9419 = vpack.c.b16 %v9107, %v9103
    %v9420 = vpack.c.b16 %v9108, %v9104
    %v9421 = vpack.c.b16 %v9109, %v9105
    %v9422 = vpack.c.b16 %v9114, %v9110
    %v9423 = vpack.c.b16 %v9115, %v9111
    %v9424 = vpack.c.b16 %v9116, %v9112
    %v9425 = vpack.c.b16 %v9117, %v9113
    %v9426 = vpack.c.b16 %v9122, %v9118
    %v9427 = vpack.c.b16 %v9123, %v9119
    %v9428 = vpack.c.b16 %v9124, %v9120
    %v9429 = vpack.c.b16 %v9125, %v9121
    %v9430 = vpack.c.b16 %v9130, %v9126
    %v9431 = vpack.c.b16 %v9131, %v9127
    %v9432 = vpack.c.b16 %v9132, %v9128
    %v9433 = vpack.c.b16 %v9133, %v9129
    %v9434 = vpack.c.b16 %v9138, %v9134
    %v9435 = vpack.c.b16 %v9139, %v9135
    %v9436 = vpack.c.b16 %v9140, %v9136
    %v9437 = vpack.c.b16 %v9141, %v9137
    %v9438 = vpack.c.b16 %v9146, %v9142
    %v9439 = vpack.c.b16 %v9147, %v9143
    %v9440 = vpack.c.b16 %v9148, %v9144
    %v9441 = vpack.c.b16 %v9149, %v9145
    %v9442 = vpack.c.b16 %v9154, %v9150
    %v9443 = vpack.c.b16 %v9155, %v9151
    %v9444 = vpack.c.b16 %v9156, %v9152
    %v9445 = vpack.c.b16 %v9157, %v9153
    %v9446 = vpack.c.b16 %v9162, %v9158
    %v9447 = vpack.c.b16 %v9163, %v9159
    %v9448 = vpack.c.b16 %v9164, %v9160
    %v9449 = vpack.c.b16 %v9165, %v9161
    %v9450 = vpack.c.b16 %v9170, %v9166
    %v9451 = vpack.c.b16 %v9171, %v9167
    %v9452 = vpack.c.b16 %v9172, %v9168
    %v9453 = vpack.c.b16 %v9173, %v9169
    %v9454 = vpack.c.b16 %v9178, %v9174
    %v9455 = vpack.c.b16 %v9179, %v9175
    %v9456 = vpack.c.b16 %v9180, %v9176
    %v9457 = vpack.c.b16 %v9181, %v9177
    %v9458 = vpack.c.b16 %v9186, %v9182
    %v9459 = vpack.c.b16 %v9187, %v9183
    %v9460 = vpack.c.b16 %v9188, %v9184
    %v9461 = vpack.c.b16 %v9189, %v9185
    %v9462 = vpack.c.b16 %v9194, %v9190
    %v9463 = vpack.c.b16 %v9195, %v9191
    %v9464 = vpack.c.b16 %v9196, %v9192
    %v9465 = vpack.c.b16 %v9197, %v9193
    %v9466 = vpack.c.b16 %v9202, %v9198
    %v9467 = vpack.c.b16 %v9203, %v9199
    %v9468 = vpack.c.b16 %v9204, %v9200
    %v9469 = vpack.c.b16 %v9205, %v9201
    %v9470 = vpack.c.b16 %v9210, %v9206
    %v9471 = vpack.c.b16 %v9211, %v9207
    %v9472 = vpack.c.b16 %v9212, %v9208
    %v9473 = vpack.c.b16 %v9213, %v9209
    %v9474 = vpack.c.b16 %v9218, %v9214
    %v9475 = vpack.c.b16 %v9219, %v9215
    %v9476 = vpack.c.b16 %v9220, %v9216
    %v9477 = vpack.c.b16 %v9221, %v9217
    %9734 = vmatpush.bf16.msra.mxu0 %v9250
    %9735 = vmatpush.bf16.msra.mxu0 %v9246
    %9736 = vmatpush.bf16.msra.mxu0 %v9242
    %9737 = vmatpush.bf16.msra.mxu0 %v9238
    %9738 = vmatpush.bf16.msra.mxu0 %v9234
    %9739 = vmatpush.bf16.msra.mxu0 %v9230
    %9740 = vmatpush.bf16.msra.mxu0 %v9226
    %9741 = vmatpush.bf16.msra.mxu0 %v9222
    %9742 = vmatmul.bf16.gmra.mxu0 %v8180
    %v9743 = vpop.f32.mrf.mxu0
    %v9744 = vadd.f32 %v8446, %v9743
    %v9745 = vpop.f32.mrf.mxu0
    %v9746 = vadd.f32 %v8446, %v9745
    %9747 = vdwg.mxu0
    %9748 = vmatpush.bf16.msra.mxu0 %v9282
    %9749 = vmatpush.bf16.msra.mxu0 %v9278
    %9750 = vmatpush.bf16.msra.mxu0 %v9274
    %9751 = vmatpush.bf16.msra.mxu0 %v9270
    %9752 = vmatpush.bf16.msra.mxu0 %v9266
    %9753 = vmatpush.bf16.msra.mxu0 %v9262
    %9754 = vmatpush.bf16.msra.mxu0 %v9258
    %9755 = vmatpush.bf16.msra.mxu0 %v9254
    %9756 = vmatmul.bf16.gmra.mxu0 %v8181
    %v9757 = vpop.f32.mrf.mxu0
    %v9758 = vadd.f32 %v9744, %v9757
    %v9759 = vpop.f32.mrf.mxu0
    %v9760 = vadd.f32 %v9746, %v9759
    %9761 = vdwg.mxu0
    %9762 = vmatpush.bf16.msra.mxu0 %v9314
    %9763 = vmatpush.bf16.msra.mxu0 %v9310
    %9764 = vmatpush.bf16.msra.mxu0 %v9306
    %9765 = vmatpush.bf16.msra.mxu0 %v9302
    %9766 = vmatpush.bf16.msra.mxu0 %v9298
    %9767 = vmatpush.bf16.msra.mxu0 %v9294
    %9768 = vmatpush.bf16.msra.mxu0 %v9290
    %9769 = vmatpush.bf16.msra.mxu0 %v9286
    %9770 = vmatmul.bf16.gmra.mxu0 %v8182
    %v9771 = vpop.f32.mrf.mxu0
    %v9772 = vadd.f32 %v9758, %v9771
    %v9773 = vpop.f32.mrf.mxu0
    %v9774 = vadd.f32 %v9760, %v9773
    %9775 = vdwg.mxu0
    %9776 = vmatpush.bf16.msra.mxu0 %v9346
    %9777 = vmatpush.bf16.msra.mxu0 %v9342
    %9778 = vmatpush.bf16.msra.mxu0 %v9338
    %9779 = vmatpush.bf16.msra.mxu0 %v9334
    %9780 = vmatpush.bf16.msra.mxu0 %v9330
    %9781 = vmatpush.bf16.msra.mxu0 %v9326
    %9782 = vmatpush.bf16.msra.mxu0 %v9322
    %9783 = vmatpush.bf16.msra.mxu0 %v9318
    %9784 = vmatmul.bf16.gmra.mxu0 %v8183
    %v9785 = vpop.f32.mrf.mxu0
    %v9786 = vadd.f32 %v9772, %v9785
    %v9787 = vpop.f32.mrf.mxu0
    %v9788 = vadd.f32 %v9774, %v9787
    %9789 = vdwg.mxu0
    %9790 = vmatpush.bf16.msra.mxu0 %v9378
    %9791 = vmatpush.bf16.msra.mxu0 %v9374
    %9792 = vmatpush.bf16.msra.mxu0 %v9370
    %9793 = vmatpush.bf16.msra.mxu0 %v9366
    %9794 = vmatpush.bf16.msra.mxu0 %v9362
    %9795 = vmatpush.bf16.msra.mxu0 %v9358
    %9796 = vmatpush.bf16.msra.mxu0 %v9354
    %9797 = vmatpush.bf16.msra.mxu0 %v9350
    %9798 = vmatmul.bf16.gmra.mxu0 %v8184
    %v9799 = vpop.f32.mrf.mxu0
    %v9800 = vadd.f32 %v9786, %v9799
    %v9801 = vpop.f32.mrf.mxu0
    %v9802 = vadd.f32 %v9788, %v9801
    %9803 = vdwg.mxu0
    %9804 = vmatpush.bf16.msra.mxu0 %v9410
    %9805 = vmatpush.bf16.msra.mxu0 %v9406
    %9806 = vmatpush.bf16.msra.mxu0 %v9402
    %9807 = vmatpush.bf16.msra.mxu0 %v9398
    %9808 = vmatpush.bf16.msra.mxu0 %v9394
    %9809 = vmatpush.bf16.msra.mxu0 %v9390
    %9810 = vmatpush.bf16.msra.mxu0 %v9386
    %9811 = vmatpush.bf16.msra.mxu0 %v9382
    %9812 = vmatmul.bf16.gmra.mxu0 %v8185
    %v9813 = vpop.f32.mrf.mxu0
    %v9814 = vadd.f32 %v9800, %v9813
    %v9815 = vpop.f32.mrf.mxu0
    %v9816 = vadd.f32 %v9802, %v9815
    %9817 = vdwg.mxu0
    %9818 = vmatpush.bf16.msra.mxu0 %v9442
    %9819 = vmatpush.bf16.msra.mxu0 %v9438
    %9820 = vmatpush.bf16.msra.mxu0 %v9434
    %9821 = vmatpush.bf16.msra.mxu0 %v9430
    %9822 = vmatpush.bf16.msra.mxu0 %v9426
    %9823 = vmatpush.bf16.msra.mxu0 %v9422
    %9824 = vmatpush.bf16.msra.mxu0 %v9418
    %9825 = vmatpush.bf16.msra.mxu0 %v9414
    %9826 = vmatmul.bf16.gmra.mxu0 %v8186
    %v9827 = vpop.f32.mrf.mxu0
    %v9828 = vadd.f32 %v9814, %v9827
    %v9829 = vpop.f32.mrf.mxu0
    %v9830 = vadd.f32 %v9816, %v9829
    %9831 = vdwg.mxu0
    %9832 = vmatpush.bf16.msra.mxu0 %v9474
    %9833 = vmatpush.bf16.msra.mxu0 %v9470
    %9834 = vmatpush.bf16.msra.mxu0 %v9466
    %9835 = vmatpush.bf16.msra.mxu0 %v9462
    %9836 = vmatpush.bf16.msra.mxu0 %v9458
    %9837 = vmatpush.bf16.msra.mxu0 %v9454
    %9838 = vmatpush.bf16.msra.mxu0 %v9450
    %9839 = vmatpush.bf16.msra.mxu0 %v9446
    %9840 = vmatmul.bf16.gmra.mxu0 %v8187
    %v9841 = vpop.f32.mrf.mxu0
    %v9842 = vadd.f32 %v9828, %v9841
    %v9843 = vpop.f32.mrf.mxu0
    %v9844 = vadd.f32 %v9830, %v9843
    %9845 = vdwg.mxu0
    %9846 = vmatpush.bf16.msra.mxu0 %v9251
    %9847 = vmatpush.bf16.msra.mxu0 %v9247
    %9848 = vmatpush.bf16.msra.mxu0 %v9243
    %9849 = vmatpush.bf16.msra.mxu0 %v9239
    %9850 = vmatpush.bf16.msra.mxu0 %v9235
    %9851 = vmatpush.bf16.msra.mxu0 %v9231
    %9852 = vmatpush.bf16.msra.mxu0 %v9227
    %9853 = vmatpush.bf16.msra.mxu0 %v9223
    %9854 = vmatmul.bf16.gmra.mxu0 %v8180
    %v9855 = vpop.f32.mrf.mxu0
    %v9856 = vadd.f32 %v8447, %v9855
    %v9857 = vpop.f32.mrf.mxu0
    %v9858 = vadd.f32 %v8447, %v9857
    %9859 = vdwg.mxu0
    %9860 = vmatpush.bf16.msra.mxu0 %v9283
    %9861 = vmatpush.bf16.msra.mxu0 %v9279
    %9862 = vmatpush.bf16.msra.mxu0 %v9275
    %9863 = vmatpush.bf16.msra.mxu0 %v9271
    %9864 = vmatpush.bf16.msra.mxu0 %v9267
    %9865 = vmatpush.bf16.msra.mxu0 %v9263
    %9866 = vmatpush.bf16.msra.mxu0 %v9259
    %9867 = vmatpush.bf16.msra.mxu0 %v9255
    %9868 = vmatmul.bf16.gmra.mxu0 %v8181
    %v9869 = vpop.f32.mrf.mxu0
    %v9870 = vadd.f32 %v9856, %v9869
    %v9871 = vpop.f32.mrf.mxu0
    %v9872 = vadd.f32 %v9858, %v9871
    %9873 = vdwg.mxu0
    %9874 = vmatpush.bf16.msra.mxu0 %v9315
    %9875 = vmatpush.bf16.msra.mxu0 %v9311
    %9876 = vmatpush.bf16.msra.mxu0 %v9307
    %9877 = vmatpush.bf16.msra.mxu0 %v9303
    %9878 = vmatpush.bf16.msra.mxu0 %v9299
    %9879 = vmatpush.bf16.msra.mxu0 %v9295
    %9880 = vmatpush.bf16.msra.mxu0 %v9291
    %9881 = vmatpush.bf16.msra.mxu0 %v9287
    %9882 = vmatmul.bf16.gmra.mxu0 %v8182
    %v9883 = vpop.f32.mrf.mxu0
    %v9884 = vadd.f32 %v9870, %v9883
    %v9885 = vpop.f32.mrf.mxu0
    %v9886 = vadd.f32 %v9872, %v9885
    %9887 = vdwg.mxu0
    %9888 = vmatpush.bf16.msra.mxu0 %v9347
    %9889 = vmatpush.bf16.msra.mxu0 %v9343
    %9890 = vmatpush.bf16.msra.mxu0 %v9339
    %9891 = vmatpush.bf16.msra.mxu0 %v9335
    %9892 = vmatpush.bf16.msra.mxu0 %v9331
    %9893 = vmatpush.bf16.msra.mxu0 %v9327
    %9894 = vmatpush.bf16.msra.mxu0 %v9323
    %9895 = vmatpush.bf16.msra.mxu0 %v9319
    %9896 = vmatmul.bf16.gmra.mxu0 %v8183
    %v9897 = vpop.f32.mrf.mxu0
    %v9898 = vadd.f32 %v9884, %v9897
    %v9899 = vpop.f32.mrf.mxu0
    %v9900 = vadd.f32 %v9886, %v9899
    %9901 = vdwg.mxu0
    %9902 = vmatpush.bf16.msra.mxu0 %v9379
    %9903 = vmatpush.bf16.msra.mxu0 %v9375
    %9904 = vmatpush.bf16.msra.mxu0 %v9371
    %9905 = vmatpush.bf16.msra.mxu0 %v9367
    %9906 = vmatpush.bf16.msra.mxu0 %v9363
    %9907 = vmatpush.bf16.msra.mxu0 %v9359
    %9908 = vmatpush.bf16.msra.mxu0 %v9355
    %9909 = vmatpush.bf16.msra.mxu0 %v9351
    %9910 = vmatmul.bf16.gmra.mxu0 %v8184
    %v9911 = vpop.f32.mrf.mxu0
    %v9912 = vadd.f32 %v9898, %v9911
    %v9913 = vpop.f32.mrf.mxu0
    %v9914 = vadd.f32 %v9900, %v9913
    %9915 = vdwg.mxu0
    %9916 = vmatpush.bf16.msra.mxu0 %v9411
    %9917 = vmatpush.bf16.msra.mxu0 %v9407
    %9918 = vmatpush.bf16.msra.mxu0 %v9403
    %9919 = vmatpush.bf16.msra.mxu0 %v9399
    %9920 = vmatpush.bf16.msra.mxu0 %v9395
    %9921 = vmatpush.bf16.msra.mxu0 %v9391
    %9922 = vmatpush.bf16.msra.mxu0 %v9387
    %9923 = vmatpush.bf16.msra.mxu0 %v9383
    %9924 = vmatmul.bf16.gmra.mxu0 %v8185
    %v9925 = vpop.f32.mrf.mxu0
    %v9926 = vadd.f32 %v9912, %v9925
    %v9927 = vpop.f32.mrf.mxu0
    %v9928 = vadd.f32 %v9914, %v9927
    %9929 = vdwg.mxu0
    %9930 = vmatpush.bf16.msra.mxu0 %v9443
    %9931 = vmatpush.bf16.msra.mxu0 %v9439
    %9932 = vmatpush.bf16.msra.mxu0 %v9435
    %9933 = vmatpush.bf16.msra.mxu0 %v9431
    %9934 = vmatpush.bf16.msra.mxu0 %v9427
    %9935 = vmatpush.bf16.msra.mxu0 %v9423
    %9936 = vmatpush.bf16.msra.mxu0 %v9419
    %9937 = vmatpush.bf16.msra.mxu0 %v9415
    %9938 = vmatmul.bf16.gmra.mxu0 %v8186
    %v9939 = vpop.f32.mrf.mxu0
    %v9940 = vadd.f32 %v9926, %v9939
    %v9941 = vpop.f32.mrf.mxu0
    %v9942 = vadd.f32 %v9928, %v9941
    %9943 = vdwg.mxu0
    %9944 = vmatpush.bf16.msra.mxu0 %v9475
    %9945 = vmatpush.bf16.msra.mxu0 %v9471
    %9946 = vmatpush.bf16.msra.mxu0 %v9467
    %9947 = vmatpush.bf16.msra.mxu0 %v9463
    %9948 = vmatpush.bf16.msra.mxu0 %v9459
    %9949 = vmatpush.bf16.msra.mxu0 %v9455
    %9950 = vmatpush.bf16.msra.mxu0 %v9451
    %9951 = vmatpush.bf16.msra.mxu0 %v9447
    %9952 = vmatmul.bf16.gmra.mxu0 %v8187
    %v9953 = vpop.f32.mrf.mxu0
    %v9954 = vadd.f32 %v9940, %v9953
    %v9955 = vpop.f32.mrf.mxu0
    %v9956 = vadd.f32 %v9942, %v9955
    %9957 = vdwg.mxu0
    %9958 = vmatpush.bf16.msra.mxu0 %v9252
    %9959 = vmatpush.bf16.msra.mxu0 %v9248
    %9960 = vmatpush.bf16.msra.mxu0 %v9244
    %9961 = vmatpush.bf16.msra.mxu0 %v9240
    %9962 = vmatpush.bf16.msra.mxu0 %v9236
    %9963 = vmatpush.bf16.msra.mxu0 %v9232
    %9964 = vmatpush.bf16.msra.mxu0 %v9228
    %9965 = vmatpush.bf16.msra.mxu0 %v9224
    %9966 = vmatmul.bf16.gmra.mxu0 %v8180
    %v9967 = vpop.f32.mrf.mxu0
    %v9968 = vadd.f32 %v8448, %v9967
    %v9969 = vpop.f32.mrf.mxu0
    %v9970 = vadd.f32 %v8448, %v9969
    %9971 = vdwg.mxu0
    %9972 = vmatpush.bf16.msra.mxu0 %v9284
    %9973 = vmatpush.bf16.msra.mxu0 %v9280
    %9974 = vmatpush.bf16.msra.mxu0 %v9276
    %9975 = vmatpush.bf16.msra.mxu0 %v9272
    %9976 = vmatpush.bf16.msra.mxu0 %v9268
    %9977 = vmatpush.bf16.msra.mxu0 %v9264
    %9978 = vmatpush.bf16.msra.mxu0 %v9260
    %9979 = vmatpush.bf16.msra.mxu0 %v9256
    %9980 = vmatmul.bf16.gmra.mxu0 %v8181
    %v9981 = vpop.f32.mrf.mxu0
    %v9982 = vadd.f32 %v9968, %v9981
    %v9983 = vpop.f32.mrf.mxu0
    %v9984 = vadd.f32 %v9970, %v9983
    %9985 = vdwg.mxu0
    %9986 = vmatpush.bf16.msra.mxu0 %v9316
    %9987 = vmatpush.bf16.msra.mxu0 %v9312
    %9988 = vmatpush.bf16.msra.mxu0 %v9308
    %9989 = vmatpush.bf16.msra.mxu0 %v9304
    %9990 = vmatpush.bf16.msra.mxu0 %v9300
    %9991 = vmatpush.bf16.msra.mxu0 %v9296
    %9992 = vmatpush.bf16.msra.mxu0 %v9292
    %9993 = vmatpush.bf16.msra.mxu0 %v9288
    %9994 = vmatmul.bf16.gmra.mxu0 %v8182
    %v9995 = vpop.f32.mrf.mxu0
    %v9996 = vadd.f32 %v9982, %v9995
    %v9997 = vpop.f32.mrf.mxu0
    %v9998 = vadd.f32 %v9984, %v9997
    %9999 = vdwg.mxu0
    %10000 = vmatpush.bf16.msra.mxu0 %v9348
    %10001 = vmatpush.bf16.msra.mxu0 %v9344
    %10002 = vmatpush.bf16.msra.mxu0 %v9340
    %10003 = vmatpush.bf16.msra.mxu0 %v9336
    %10004 = vmatpush.bf16.msra.mxu0 %v9332
    %10005 = vmatpush.bf16.msra.mxu0 %v9328
    %10006 = vmatpush.bf16.msra.mxu0 %v9324
    %10007 = vmatpush.bf16.msra.mxu0 %v9320
    %10008 = vmatmul.bf16.gmra.mxu0 %v8183
    %v10009 = vpop.f32.mrf.mxu0
    %v10010 = vadd.f32 %v9996, %v10009
    %v10011 = vpop.f32.mrf.mxu0
    %v10012 = vadd.f32 %v9998, %v10011
    %10013 = vdwg.mxu0
    %10014 = vmatpush.bf16.msra.mxu0 %v9380
    %10015 = vmatpush.bf16.msra.mxu0 %v9376
    %10016 = vmatpush.bf16.msra.mxu0 %v9372
    %10017 = vmatpush.bf16.msra.mxu0 %v9368
    %10018 = vmatpush.bf16.msra.mxu0 %v9364
    %10019 = vmatpush.bf16.msra.mxu0 %v9360
    %10020 = vmatpush.bf16.msra.mxu0 %v9356
    %10021 = vmatpush.bf16.msra.mxu0 %v9352
    %10022 = vmatmul.bf16.gmra.mxu0 %v8184
    %v10023 = vpop.f32.mrf.mxu0
    %v10024 = vadd.f32 %v10010, %v10023
    %v10025 = vpop.f32.mrf.mxu0
    %v10026 = vadd.f32 %v10012, %v10025
    %10027 = vdwg.mxu0
    %10028 = vmatpush.bf16.msra.mxu0 %v9412
    %10029 = vmatpush.bf16.msra.mxu0 %v9408
    %10030 = vmatpush.bf16.msra.mxu0 %v9404
    %10031 = vmatpush.bf16.msra.mxu0 %v9400
    %10032 = vmatpush.bf16.msra.mxu0 %v9396
    %10033 = vmatpush.bf16.msra.mxu0 %v9392
    %10034 = vmatpush.bf16.msra.mxu0 %v9388
    %10035 = vmatpush.bf16.msra.mxu0 %v9384
    %10036 = vmatmul.bf16.gmra.mxu0 %v8185
    %v10037 = vpop.f32.mrf.mxu0
    %v10038 = vadd.f32 %v10024, %v10037
    %v10039 = vpop.f32.mrf.mxu0
    %v10040 = vadd.f32 %v10026, %v10039
    %10041 = vdwg.mxu0
    %10042 = vmatpush.bf16.msra.mxu0 %v9444
    %10043 = vmatpush.bf16.msra.mxu0 %v9440
    %10044 = vmatpush.bf16.msra.mxu0 %v9436
    %10045 = vmatpush.bf16.msra.mxu0 %v9432
    %10046 = vmatpush.bf16.msra.mxu0 %v9428
    %10047 = vmatpush.bf16.msra.mxu0 %v9424
    %10048 = vmatpush.bf16.msra.mxu0 %v9420
    %10049 = vmatpush.bf16.msra.mxu0 %v9416
    %10050 = vmatmul.bf16.gmra.mxu0 %v8186
    %v10051 = vpop.f32.mrf.mxu0
    %v10052 = vadd.f32 %v10038, %v10051
    %v10053 = vpop.f32.mrf.mxu0
    %v10054 = vadd.f32 %v10040, %v10053
    %10055 = vdwg.mxu0
    %10056 = vmatpush.bf16.msra.mxu0 %v9476
    %10057 = vmatpush.bf16.msra.mxu0 %v9472
    %10058 = vmatpush.bf16.msra.mxu0 %v9468
    %10059 = vmatpush.bf16.msra.mxu0 %v9464
    %10060 = vmatpush.bf16.msra.mxu0 %v9460
    %10061 = vmatpush.bf16.msra.mxu0 %v9456
    %10062 = vmatpush.bf16.msra.mxu0 %v9452
    %10063 = vmatpush.bf16.msra.mxu0 %v9448
    %10064 = vmatmul.bf16.gmra.mxu0 %v8187
    %v10065 = vpop.f32.mrf.mxu0
    %v10066 = vadd.f32 %v10052, %v10065
    %v10067 = vpop.f32.mrf.mxu0
    %v10068 = vadd.f32 %v10054, %v10067
    %10069 = vdwg.mxu0
    %10070 = vmatpush.bf16.msra.mxu0 %v9253
    %10071 = vmatpush.bf16.msra.mxu0 %v9249
    %10072 = vmatpush.bf16.msra.mxu0 %v9245
    %10073 = vmatpush.bf16.msra.mxu0 %v9241
    %10074 = vmatpush.bf16.msra.mxu0 %v9237
    %10075 = vmatpush.bf16.msra.mxu0 %v9233
    %10076 = vmatpush.bf16.msra.mxu0 %v9229
    %10077 = vmatpush.bf16.msra.mxu0 %v9225
    %10078 = vmatmul.bf16.gmra.mxu0 %v8180
    %v10079 = vpop.f32.mrf.mxu0
    %v10080 = vadd.f32 %v8449, %v10079
    %v10081 = vpop.f32.mrf.mxu0
    %v10082 = vadd.f32 %v8449, %v10081
    %10083 = vdwg.mxu0
    %10084 = vmatpush.bf16.msra.mxu0 %v9285
    %10085 = vmatpush.bf16.msra.mxu0 %v9281
    %10086 = vmatpush.bf16.msra.mxu0 %v9277
    %10087 = vmatpush.bf16.msra.mxu0 %v9273
    %10088 = vmatpush.bf16.msra.mxu0 %v9269
    %10089 = vmatpush.bf16.msra.mxu0 %v9265
    %10090 = vmatpush.bf16.msra.mxu0 %v9261
    %10091 = vmatpush.bf16.msra.mxu0 %v9257
    %10092 = vmatmul.bf16.gmra.mxu0 %v8181
    %v10093 = vpop.f32.mrf.mxu0
    %v10094 = vadd.f32 %v10080, %v10093
    %v10095 = vpop.f32.mrf.mxu0
    %v10096 = vadd.f32 %v10082, %v10095
    %10097 = vdwg.mxu0
    %10098 = vmatpush.bf16.msra.mxu0 %v9317
    %10099 = vmatpush.bf16.msra.mxu0 %v9313
    %10100 = vmatpush.bf16.msra.mxu0 %v9309
    %10101 = vmatpush.bf16.msra.mxu0 %v9305
    %10102 = vmatpush.bf16.msra.mxu0 %v9301
    %10103 = vmatpush.bf16.msra.mxu0 %v9297
    %10104 = vmatpush.bf16.msra.mxu0 %v9293
    %10105 = vmatpush.bf16.msra.mxu0 %v9289
    %10106 = vmatmul.bf16.gmra.mxu0 %v8182
    %v10107 = vpop.f32.mrf.mxu0
    %v10108 = vadd.f32 %v10094, %v10107
    %v10109 = vpop.f32.mrf.mxu0
    %v10110 = vadd.f32 %v10096, %v10109
    %10111 = vdwg.mxu0
    %10112 = vmatpush.bf16.msra.mxu0 %v9349
    %10113 = vmatpush.bf16.msra.mxu0 %v9345
    %10114 = vmatpush.bf16.msra.mxu0 %v9341
    %10115 = vmatpush.bf16.msra.mxu0 %v9337
    %10116 = vmatpush.bf16.msra.mxu0 %v9333
    %10117 = vmatpush.bf16.msra.mxu0 %v9329
    %10118 = vmatpush.bf16.msra.mxu0 %v9325
    %10119 = vmatpush.bf16.msra.mxu0 %v9321
    %10120 = vmatmul.bf16.gmra.mxu0 %v8183
    %v10121 = vpop.f32.mrf.mxu0
    %v10122 = vadd.f32 %v10108, %v10121
    %v10123 = vpop.f32.mrf.mxu0
    %v10124 = vadd.f32 %v10110, %v10123
    %10125 = vdwg.mxu0
    %10126 = vmatpush.bf16.msra.mxu0 %v9381
    %10127 = vmatpush.bf16.msra.mxu0 %v9377
    %10128 = vmatpush.bf16.msra.mxu0 %v9373
    %10129 = vmatpush.bf16.msra.mxu0 %v9369
    %10130 = vmatpush.bf16.msra.mxu0 %v9365
    %10131 = vmatpush.bf16.msra.mxu0 %v9361
    %10132 = vmatpush.bf16.msra.mxu0 %v9357
    %10133 = vmatpush.bf16.msra.mxu0 %v9353
    %10134 = vmatmul.bf16.gmra.mxu0 %v8184
    %v10135 = vpop.f32.mrf.mxu0
    %v10136 = vadd.f32 %v10122, %v10135
    %v10137 = vpop.f32.mrf.mxu0
    %v10138 = vadd.f32 %v10124, %v10137
    %10139 = vdwg.mxu0
    %10140 = vmatpush.bf16.msra.mxu0 %v9413
    %10141 = vmatpush.bf16.msra.mxu0 %v9409
    %10142 = vmatpush.bf16.msra.mxu0 %v9405
    %10143 = vmatpush.bf16.msra.mxu0 %v9401
    %10144 = vmatpush.bf16.msra.mxu0 %v9397
    %10145 = vmatpush.bf16.msra.mxu0 %v9393
    %10146 = vmatpush.bf16.msra.mxu0 %v9389
    %10147 = vmatpush.bf16.msra.mxu0 %v9385
    %10148 = vmatmul.bf16.gmra.mxu0 %v8185
    %v10149 = vpop.f32.mrf.mxu0
    %v10150 = vadd.f32 %v10136, %v10149
    %v10151 = vpop.f32.mrf.mxu0
    %v10152 = vadd.f32 %v10138, %v10151
    %10153 = vdwg.mxu0
    %10154 = vmatpush.bf16.msra.mxu0 %v9445
    %10155 = vmatpush.bf16.msra.mxu0 %v9441
    %10156 = vmatpush.bf16.msra.mxu0 %v9437
    %10157 = vmatpush.bf16.msra.mxu0 %v9433
    %10158 = vmatpush.bf16.msra.mxu0 %v9429
    %10159 = vmatpush.bf16.msra.mxu0 %v9425
    %10160 = vmatpush.bf16.msra.mxu0 %v9421
    %10161 = vmatpush.bf16.msra.mxu0 %v9417
    %10162 = vmatmul.bf16.gmra.mxu0 %v8186
    %v10163 = vpop.f32.mrf.mxu0
    %v10164 = vadd.f32 %v10150, %v10163
    %v10165 = vpop.f32.mrf.mxu0
    %v10166 = vadd.f32 %v10152, %v10165
    %10167 = vdwg.mxu0
    %10168 = vmatpush.bf16.msra.mxu0 %v9477
    %10169 = vmatpush.bf16.msra.mxu0 %v9473
    %10170 = vmatpush.bf16.msra.mxu0 %v9469
    %10171 = vmatpush.bf16.msra.mxu0 %v9465
    %10172 = vmatpush.bf16.msra.mxu0 %v9461
    %10173 = vmatpush.bf16.msra.mxu0 %v9457
    %10174 = vmatpush.bf16.msra.mxu0 %v9453
    %10175 = vmatpush.bf16.msra.mxu0 %v9449
    %10176 = vmatmul.bf16.gmra.mxu0 %v8187
    %v10177 = vpop.f32.mrf.mxu0
    %v10178 = vadd.f32 %v10164, %v10177
    %v10179 = vpop.f32.mrf.mxu0
    %v10180 = vadd.f32 %v10166, %v10179
    %10181 = vdwg.mxu0
    %v10182 = vmax.f32 %v9842, 0.0
    %v10183 = vmax.f32 %v9954, 0.0
    %v10184 = vmax.f32 %v10066, 0.0
    %v10185 = vmax.f32 %v10178, 0.0
    %v10186 = vmax.f32 %v9844, 0.0
    %v10187 = vmax.f32 %v9956, 0.0
    %v10188 = vmax.f32 %v10068, 0.0
    %v10189 = vmax.f32 %v10180, 0.0
    %v10190 = vpack.c.bf16 %v10186, %v10182
    %v10191 = vpack.c.bf16 %v10187, %v10183
    %v10192 = vpack.c.bf16 %v10188, %v10184
    %v10193 = vpack.c.bf16 %v10189, %v10185
    %v10194 = vld [vmem:[#allocation9] sm:$0xf]
    %v10195 = vld [vmem:[#allocation9 + $0x4] sm:$0xf]
    %v10196 = vld [vmem:[#allocation9 + $0x8] sm:$0xf]
    %v10197 = vld [vmem:[#allocation9 + $0xc] sm:$0xf]
    %v10198 = vld [vmem:[#allocation9 + $0x10] sm:$0xf]
    %v10199 = vld [vmem:[#allocation9 + $0x14] sm:$0xf]
    %v10200 = vld [vmem:[#allocation9 + $0x18] sm:$0xf]
    %v10201 = vld [vmem:[#allocation9 + $0x1c] sm:$0xf]
    %v10202 = vld [vmem:[#allocation9 + $0x20] sm:$0xf]
    %v10203 = vld [vmem:[#allocation9 + $0x24] sm:$0xf]
    %v10204 = vld [vmem:[#allocation9 + $0x28] sm:$0xf]
    %v10205 = vld [vmem:[#allocation9 + $0x2c] sm:$0xf]
    %v10206 = vld [vmem:[#allocation9 + $0x30] sm:$0xf]
    %v10207 = vld [vmem:[#allocation9 + $0x34] sm:$0xf]
    %v10208 = vld [vmem:[#allocation9 + $0x38] sm:$0xf]
    %v10209 = vld [vmem:[#allocation9 + $0x3c] sm:$0xf]
    %v10210 = vld [vmem:[#allocation9 + $0x40] sm:$0xf]
    %v10211 = vld [vmem:[#allocation9 + $0x44] sm:$0xf]
    %v10212 = vld [vmem:[#allocation9 + $0x48] sm:$0xf]
    %v10213 = vld [vmem:[#allocation9 + $0x4c] sm:$0xf]
    %v10214 = vld [vmem:[#allocation9 + $0x50] sm:$0xf]
    %v10215 = vld [vmem:[#allocation9 + $0x54] sm:$0xf]
    %v10216 = vld [vmem:[#allocation9 + $0x58] sm:$0xf]
    %v10217 = vld [vmem:[#allocation9 + $0x5c] sm:$0xf]
    %v10218 = vld [vmem:[#allocation9 + $0x60] sm:$0xf]
    %v10219 = vld [vmem:[#allocation9 + $0x64] sm:$0xf]
    %v10220 = vld [vmem:[#allocation9 + $0x68] sm:$0xf]
    %v10221 = vld [vmem:[#allocation9 + $0x6c] sm:$0xf]
    %v10222 = vld [vmem:[#allocation9 + $0x70] sm:$0xf]
    %v10223 = vld [vmem:[#allocation9 + $0x74] sm:$0xf]
    %v10224 = vld [vmem:[#allocation9 + $0x78] sm:$0xf]
    %v10225 = vld [vmem:[#allocation9 + $0x7c] sm:$0xf]
    %v10226 = vld [vmem:[#allocation9 + $0x80] sm:$0xf]
    %v10227 = vld [vmem:[#allocation9 + $0x84] sm:$0xf]
    %v10228 = vld [vmem:[#allocation9 + $0x88] sm:$0xf]
    %v10229 = vld [vmem:[#allocation9 + $0x8c] sm:$0xf]
    %v10230 = vld [vmem:[#allocation9 + $0x90] sm:$0xf]
    %v10231 = vld [vmem:[#allocation9 + $0x94] sm:$0xf]
    %v10232 = vld [vmem:[#allocation9 + $0x98] sm:$0xf]
    %v10233 = vld [vmem:[#allocation9 + $0x9c] sm:$0xf]
    %v10234 = vld [vmem:[#allocation9 + $0xa0] sm:$0xf]
    %v10235 = vld [vmem:[#allocation9 + $0xa4] sm:$0xf]
    %v10236 = vld [vmem:[#allocation9 + $0xa8] sm:$0xf]
    %v10237 = vld [vmem:[#allocation9 + $0xac] sm:$0xf]
    %v10238 = vld [vmem:[#allocation9 + $0xb0] sm:$0xf]
    %v10239 = vld [vmem:[#allocation9 + $0xb4] sm:$0xf]
    %v10240 = vld [vmem:[#allocation9 + $0xb8] sm:$0xf]
    %v10241 = vld [vmem:[#allocation9 + $0xbc] sm:$0xf]
    %v10242 = vld [vmem:[#allocation9 + $0xc0] sm:$0xf]
    %v10243 = vld [vmem:[#allocation9 + $0xc4] sm:$0xf]
    %v10244 = vld [vmem:[#allocation9 + $0xc8] sm:$0xf]
    %v10245 = vld [vmem:[#allocation9 + $0xcc] sm:$0xf]
    %v10246 = vld [vmem:[#allocation9 + $0xd0] sm:$0xf]
    %v10247 = vld [vmem:[#allocation9 + $0xd4] sm:$0xf]
    %v10248 = vld [vmem:[#allocation9 + $0xd8] sm:$0xf]
    %v10249 = vld [vmem:[#allocation9 + $0xdc] sm:$0xf]
    %v10250 = vld [vmem:[#allocation9 + $0xe0] sm:$0xf]
    %v10251 = vld [vmem:[#allocation9 + $0xe4] sm:$0xf]
    %v10252 = vld [vmem:[#allocation9 + $0xe8] sm:$0xf]
    %v10253 = vld [vmem:[#allocation9 + $0xec] sm:$0xf]
    %v10254 = vld [vmem:[#allocation9 + $0xf0] sm:$0xf]
    %v10255 = vld [vmem:[#allocation9 + $0xf4] sm:$0xf]
    %v10256 = vld [vmem:[#allocation9 + $0xf8] sm:$0xf]
    %v10257 = vld [vmem:[#allocation9 + $0xfc] sm:$0xf]
    %v10258 = vld [vmem:[#allocation10] sm:$0x1]
    %v10260 = vperm.slane %v10258, 0
    %v10326 = vunpack.c.l.b16 %v10194
    %v10327 = vunpack.c.l.b16 %v10195
    %v10328 = vunpack.c.l.b16 %v10196
    %v10329 = vunpack.c.l.b16 %v10197
    %v10330 = vunpack.c.l.b16 %v10198
    %v10331 = vunpack.c.l.b16 %v10199
    %v10332 = vunpack.c.l.b16 %v10200
    %v10333 = vunpack.c.l.b16 %v10201
    %v10334 = vunpack.c.l.b16 %v10202
    %v10335 = vunpack.c.l.b16 %v10203
    %v10336 = vunpack.c.l.b16 %v10204
    %v10337 = vunpack.c.l.b16 %v10205
    %v10338 = vunpack.c.l.b16 %v10206
    %v10339 = vunpack.c.l.b16 %v10207
    %v10340 = vunpack.c.l.b16 %v10208
    %v10341 = vunpack.c.l.b16 %v10209
    %v10342 = vunpack.c.l.b16 %v10210
    %v10343 = vunpack.c.l.b16 %v10211
    %v10344 = vunpack.c.l.b16 %v10212
    %v10345 = vunpack.c.l.b16 %v10213
    %v10346 = vunpack.c.l.b16 %v10214
    %v10347 = vunpack.c.l.b16 %v10215
    %v10348 = vunpack.c.l.b16 %v10216
    %v10349 = vunpack.c.l.b16 %v10217
    %v10350 = vunpack.c.l.b16 %v10218
    %v10351 = vunpack.c.l.b16 %v10219
    %v10352 = vunpack.c.l.b16 %v10220
    %v10353 = vunpack.c.l.b16 %v10221
    %v10354 = vunpack.c.l.b16 %v10222
    %v10355 = vunpack.c.l.b16 %v10223
    %v10356 = vunpack.c.l.b16 %v10224
    %v10357 = vunpack.c.l.b16 %v10225
    %v10358 = vunpack.c.l.b16 %v10226
    %v10359 = vunpack.c.l.b16 %v10227
    %v10360 = vunpack.c.l.b16 %v10228
    %v10361 = vunpack.c.l.b16 %v10229
    %v10362 = vunpack.c.l.b16 %v10230
    %v10363 = vunpack.c.l.b16 %v10231
    %v10364 = vunpack.c.l.b16 %v10232
    %v10365 = vunpack.c.l.b16 %v10233
    %v10366 = vunpack.c.l.b16 %v10234
    %v10367 = vunpack.c.l.b16 %v10235
    %v10368 = vunpack.c.l.b16 %v10236
    %v10369 = vunpack.c.l.b16 %v10237
    %v10370 = vunpack.c.l.b16 %v10238
    %v10371 = vunpack.c.l.b16 %v10239
    %v10372 = vunpack.c.l.b16 %v10240
    %v10373 = vunpack.c.l.b16 %v10241
    %v10374 = vunpack.c.l.b16 %v10242
    %v10375 = vunpack.c.l.b16 %v10243
    %v10376 = vunpack.c.l.b16 %v10244
    %v10377 = vunpack.c.l.b16 %v10245
    %v10378 = vunpack.c.l.b16 %v10246
    %v10379 = vunpack.c.l.b16 %v10247
    %v10380 = vunpack.c.l.b16 %v10248
    %v10381 = vunpack.c.l.b16 %v10249
    %v10382 = vunpack.c.l.b16 %v10250
    %v10383 = vunpack.c.l.b16 %v10251
    %v10384 = vunpack.c.l.b16 %v10252
    %v10385 = vunpack.c.l.b16 %v10253
    %v10386 = vunpack.c.l.b16 %v10254
    %v10387 = vunpack.c.l.b16 %v10255
    %v10388 = vunpack.c.l.b16 %v10256
    %v10389 = vunpack.c.l.b16 %v10257
    %v10390 = vpack.c.b16 %v10327, %v10326
    %v10391 = vpack.c.b16 %v10329, %v10328
    %v10392 = vpack.c.b16 %v10331, %v10330
    %v10393 = vpack.c.b16 %v10333, %v10332
    %v10394 = vpack.c.b16 %v10335, %v10334
    %v10395 = vpack.c.b16 %v10337, %v10336
    %v10396 = vpack.c.b16 %v10339, %v10338
    %v10397 = vpack.c.b16 %v10341, %v10340
    %v10398 = vpack.c.b16 %v10343, %v10342
    %v10399 = vpack.c.b16 %v10345, %v10344
    %v10400 = vpack.c.b16 %v10347, %v10346
    %v10401 = vpack.c.b16 %v10349, %v10348
    %v10402 = vpack.c.b16 %v10351, %v10350
    %v10403 = vpack.c.b16 %v10353, %v10352
    %v10404 = vpack.c.b16 %v10355, %v10354
    %v10405 = vpack.c.b16 %v10357, %v10356
    %v10406 = vpack.c.b16 %v10359, %v10358
    %v10407 = vpack.c.b16 %v10361, %v10360
    %v10408 = vpack.c.b16 %v10363, %v10362
    %v10409 = vpack.c.b16 %v10365, %v10364
    %v10410 = vpack.c.b16 %v10367, %v10366
    %v10411 = vpack.c.b16 %v10369, %v10368
    %v10412 = vpack.c.b16 %v10371, %v10370
    %v10413 = vpack.c.b16 %v10373, %v10372
    %v10414 = vpack.c.b16 %v10375, %v10374
    %v10415 = vpack.c.b16 %v10377, %v10376
    %v10416 = vpack.c.b16 %v10379, %v10378
    %v10417 = vpack.c.b16 %v10381, %v10380
    %v10418 = vpack.c.b16 %v10383, %v10382
    %v10419 = vpack.c.b16 %v10385, %v10384
    %v10420 = vpack.c.b16 %v10387, %v10386
    %v10421 = vpack.c.b16 %v10389, %v10388
    %10454 = vmatpush.bf16.msra.mxu0 %v10397
    %10455 = vmatpush.bf16.msra.mxu0 %v10396
    %10456 = vmatpush.bf16.msra.mxu0 %v10395
    %10457 = vmatpush.bf16.msra.mxu0 %v10394
    %10458 = vmatpush.bf16.msra.mxu0 %v10393
    %10459 = vmatpush.bf16.msra.mxu0 %v10392
    %10460 = vmatpush.bf16.msra.mxu0 %v10391
    %10461 = vmatpush.bf16.msra.mxu0 %v10390
    %10462 = vmatmul.bf16.gmra.mxu0 %v10190
    %v10463 = vpop.f32.mrf.mxu0
    %v10464 = vadd.f32 %v10260, %v10463
    %v10465 = vpop.f32.mrf.mxu0
    %v10466 = vadd.f32 %v10260, %v10465
    %10467 = vdwg.mxu0
    %10468 = vmatpush.bf16.msra.mxu0 %v10405
    %10469 = vmatpush.bf16.msra.mxu0 %v10404
    %10470 = vmatpush.bf16.msra.mxu0 %v10403
    %10471 = vmatpush.bf16.msra.mxu0 %v10402
    %10472 = vmatpush.bf16.msra.mxu0 %v10401
    %10473 = vmatpush.bf16.msra.mxu0 %v10400
    %10474 = vmatpush.bf16.msra.mxu0 %v10399
    %10475 = vmatpush.bf16.msra.mxu0 %v10398
    %10476 = vmatmul.bf16.gmra.mxu0 %v10191
    %v10477 = vpop.f32.mrf.mxu0
    %v10478 = vadd.f32 %v10464, %v10477
    %v10479 = vpop.f32.mrf.mxu0
    %v10480 = vadd.f32 %v10466, %v10479
    %10481 = vdwg.mxu0
    %10482 = vmatpush.bf16.msra.mxu0 %v10413
    %10483 = vmatpush.bf16.msra.mxu0 %v10412
    %10484 = vmatpush.bf16.msra.mxu0 %v10411
    %10485 = vmatpush.bf16.msra.mxu0 %v10410
    %10486 = vmatpush.bf16.msra.mxu0 %v10409
    %10487 = vmatpush.bf16.msra.mxu0 %v10408
    %10488 = vmatpush.bf16.msra.mxu0 %v10407
    %10489 = vmatpush.bf16.msra.mxu0 %v10406
    %10490 = vmatmul.bf16.gmra.mxu0 %v10192
    %v10491 = vpop.f32.mrf.mxu0
    %v10492 = vadd.f32 %v10478, %v10491
    %v10493 = vpop.f32.mrf.mxu0
    %v10494 = vadd.f32 %v10480, %v10493
    %10495 = vdwg.mxu0
    %10496 = vmatpush.bf16.msra.mxu0 %v10421
    %10497 = vmatpush.bf16.msra.mxu0 %v10420
    %10498 = vmatpush.bf16.msra.mxu0 %v10419
    %10499 = vmatpush.bf16.msra.mxu0 %v10418
    %10500 = vmatpush.bf16.msra.mxu0 %v10417
    %10501 = vmatpush.bf16.msra.mxu0 %v10416
    %10502 = vmatpush.bf16.msra.mxu0 %v10415
    %10503 = vmatpush.bf16.msra.mxu0 %v10414
    %10504 = vmatmul.bf16.gmra.mxu0 %v10193
    %v10505 = vpop.f32.mrf.mxu0
    %v10506 = vadd.f32 %v10492, %v10505
    %v10507 = vpop.f32.mrf.mxu0
    %v10508 = vadd.f32 %v10494, %v10507
    %10509 = vdwg.mxu0
    %10510 = vst [vmem:[%s7] sm:$0xff] %v10506
    %10511 = vst [vmem:[%s7 + $0x8] sm:$0xff] %v10508
    // Predicated region
    $region54: #{car_classifier_forward.1} parent=1 // pred_check
      _
    $region55: #{car_classifier_forward.1} parent=1 // pred_check_branch
      %10513 = sbr.rel (0) target = $region57
    $region56: #{car_classifier_forward.1} parent=1 // pred_region
      _
    $region57: #{car_classifier_forward.1} parent=1 // pred_fallthru
      _
    // Predicated region
    $region58: #{car_classifier_forward.1} parent=1 // pred_check
      _
    $region59: #{car_classifier_forward.1} parent=1 // pred_check_branch
      %10515 = sbr.rel (0) target = $region61
    $region60: #{car_classifier_forward.1} parent=1 // pred_region
      _
    $region61: #{car_classifier_forward.1} parent=1 // pred_fallthru
      _
    %10516 = vsyncpa [#allocation3], 1
    %10517 = vsyncpa [#allocation5], 1
    %10518 = vsyncpa [#allocation8], 1
    %10519 = vsyncpa [#allocation11], 1

</llo_original>
